<compile_context>
chip_gen: v6e
topology: v6e:2x2x1
jax: 0.10.0
libtpu: 0.0.40
codegen_flags: <defaults>
</compile_context>

<pallas_src>
import jax
import jax.numpy as jnp
from jax import lax
from jax.experimental import pallas as pl
from jax.experimental.pallas import tpu as pltpu

C_MID = 64          # 1x1 conv output channels
C_OUT = 128         # 5x5 conv / BatchNorm channels
K5 = 5              # 5x5 kernel extent
KC = K5 * C_MID     # 320: K-concatenated contraction depth of the 5x5 conv
BN_EPS = 1e-5


def _round_up(x, m):
    return (x + m - 1) // m * m


def _make_adapt_kernel(N, H, W):
    """Fused conv1x1 + ReLU + conv5x5(pad=2) + training-mode BatchNorm.

    In-kernel pixel ordering is (y, n, x): with the window buffer laid out as
    rows = ((yy*N)+n)*W + x, the LHS of every per-dy matmul is a contiguous,
    sublane-aligned row band (start dy*N*W, length N*H*W) - no reshape needed.
    """
    if W % 8 != 0:
        # TODO(synk): support W % 8 != 0 via a wrapper-side spatial pad.
        raise ValueError("W must be a multiple of 8 for this kernel")
    Wp = _round_up(W + 4, 8)         # padded hidden width, f32 sublane aligned
    M = N * H * W                    # output pixel count (matmul M dimension)
    NW = N * W                       # rows per padded image row in hcat
    R = (H + 4) * NW                 # total rows of the window buffer

    def kernel(x_ref, w1_ref, b1_ref, w2_ref, b2_ref, gamma_ref, beta_ref,
               out_ref, hpad_ref, hcat_ref):
        # ---- zero only the 2-wide halo of the padded hidden buffer -------------
        # (interior [2:2+H, :, 2:2+W, :] is fully overwritten by the conv1 store)
        hpad_ref[0:2, :, :, :] = jnp.zeros((2, N, Wp, C_MID), jnp.float32)
        hpad_ref[H + 2:H + 4, :, :, :] = jnp.zeros((2, N, Wp, C_MID), jnp.float32)
        hpad_ref[2:H + 2, :, 0:2, :] = jnp.zeros((H, N, 2, C_MID), jnp.float32)
        hpad_ref[2:H + 2, :, W + 2:Wp, :] = jnp.zeros((H, N, Wp - W - 2, C_MID),
                                                      jnp.float32)

        # ---- 1x1 conv: ONE MXU matmul (bf16 inputs, f32 accumulation) ----------
        h = jnp.dot(x_ref[...], w1_ref[...], preferred_element_type=jnp.float32)
        h = jnp.maximum(h + b1_ref[...], 0.0)                    # (M, 64) f32
        hpad_ref[2:2 + H, :, 2:2 + W, :] = h.reshape(H, N, W, C_MID)

        # ---- build the dx-concatenated window buffer ONCE (5 shifted-window
        #      materializations instead of 25; bf16 cast once per element) --------
        #   hcat[(yy*N + n)*W + x, dx*64 + c] == hpad[yy, n, x + dx, c]
        for dx in range(K5):
            win = hpad_ref[:, :, dx:dx + W, :]                   # (H+4, N, W, 64) f32
            hcat_ref[:, dx * C_MID:(dx + 1) * C_MID] = (
                win.reshape(R, C_MID).astype(jnp.bfloat16))

        # ---- 5x5 conv as FIVE K=320 matmuls (one per kernel row dy).  The LHS is
        #      an aligned contiguous row band of hcat (rows (y+dy, n, x)); taps are
        #      accumulated in a local f32 value - no RMW through out_ref. ---------
        acc = None
        for dy in range(K5):
            lhs = hcat_ref[dy * NW:dy * NW + M, :]               # (M, 320) bf16
            tap = jnp.dot(lhs, w2_ref[dy], preferred_element_type=jnp.float32)
            acc = tap if acc is None else acc + tap
        acc = acc + b2_ref[...]                                  # (M, 128) f32

        # ---- BatchNorm2d (training-mode batch stats) fused into the epilogue:
        #      stats from the accumulator value, then ONE normalize + ONE store. --
        inv_count = jnp.float32(1.0 / M)
        mean = jnp.sum(acc, axis=0, keepdims=True) * inv_count          # (1, 128)
        ex2 = jnp.sum(acc * acc, axis=0, keepdims=True) * inv_count     # (1, 128)
        var = jnp.maximum(ex2 - mean * mean, 0.0)    # biased var (PyTorch training BN)
        scale = gamma_ref[...] * lax.rsqrt(var + BN_EPS)                # (1, 128)
        shift = beta_ref[...] - mean * scale
        out_ref[...] = acc * scale + shift           # single lane-dense (128) store

    return kernel, Wp


def adapt_layer_pallas(x_nhwc, params):
    """One adaptation layer: x (N, H, W, C_in) -> (N, H, W, 128)."""
    N, H, W, C_in = x_nhwc.shape
    w1, b1, w2, b2, gamma, beta = params
    M = N * H * W

    # Wrapper-side layout plumbing (XLA): flatten pixels in (y, n, x) order so the
    # kernel only sees lane-dense 2-D matmul operands; cast MXU inputs to bf16
    # (accumulation stays f32 in-kernel); zero-pad the 1x1 contraction dim to a
    # multiple of 16 (bf16 sublane packing - exact); pre-reshape w2 to the K-concat
    # layout (dy, dx*64 + c, f) so in-kernel weight reads are clean 2-D tiles.
    x_flat = jnp.transpose(x_nhwc, (1, 0, 2, 3)).reshape(M, C_in).astype(jnp.bfloat16)
    w1_b = w1.astype(jnp.bfloat16)
    c_pad = _round_up(C_in, 16)
    if c_pad != C_in:
        x_flat = jnp.pad(x_flat, ((0, 0), (0, c_pad - C_in)))
        w1_b = jnp.pad(w1_b, ((0, c_pad - C_in), (0, 0)))
    w2_b = w2.astype(jnp.bfloat16).reshape(K5, KC, C_OUT)

    kernel, Wp = _make_adapt_kernel(N, H, W)
    vmem = pl.BlockSpec(memory_space=pltpu.MemorySpace.VMEM)
    out_flat = pl.pallas_call(
        kernel,
        out_shape=jax.ShapeDtypeStruct((M, C_OUT), jnp.float32),
        in_specs=[vmem] * 7,
        out_specs=vmem,
        scratch_shapes=[
            # Zero-halo padded hidden activations, (yy, n, xx, c) order, f32 so the
            # halo stores / shifted reads / reshapes stay on the plain 8-sublane
            # aligned path for any W % 8 == 0.
            pltpu.VMEM((H + 4, N, Wp, C_MID), jnp.float32),
            # dx-concatenated (K=320) window buffer, bf16: built once, read 5x.
            pltpu.VMEM(((H + 4) * N * W, KC), jnp.bfloat16),
        ],
        compiler_params=pltpu.CompilerParams(
            # Sized with headroom against v7x's 64 MiB/TC (smallest of v5e/v6e/v7x).
            vmem_limit_bytes=48 * 1024 * 1024),
    )(x_flat, w1_b, b1, w2_b, b2, gamma, beta)

    # TODO(synk): for production-size feature maps, add a grid over H row-bands
    # (2-row halo) / batch with dimension_semantics=("parallel",) and a two-pass
    # BatchNorm (conv + partial-stats pass, then normalize pass) so HBM<->VMEM is
    # double-buffered and work shards across v7x's two TensorCores; optionally emit
    # a bf16 output to halve HBM writeback if downstream tolerates it.
    return jnp.transpose(out_flat.reshape(H, N, W, C_OUT), (1, 0, 2, 3))


def adapt_layer_ref(x_nhwc, params, matmul_dtype=jnp.float32):
    """Plain-JAX reference.  matmul_dtype=jnp.bfloat16 mirrors the kernel's
    precision choice (bf16 MXU inputs, f32 accumulation) for a tight check;
    matmul_dtype=jnp.float32 is the pure f32 module semantics."""
    w1, b1, w2, b2, gamma, beta = params
    h = jnp.einsum('nhwc,cf->nhwf',
                   x_nhwc.astype(matmul_dtype), w1.astype(matmul_dtype),
                   preferred_element_type=jnp.float32) + b1[0]
    h = jnp.maximum(h, 0.0)
    y = lax.conv_general_dilated(
        h.astype(matmul_dtype), w2.astype(matmul_dtype),
        window_strides=(1, 1), padding=((2, 2), (2, 2)),
        dimension_numbers=('NHWC', 'HWIO', 'NHWC'),
        preferred_element_type=jnp.float32) + b2[0]
    mean = jnp.mean(y, axis=(0, 1, 2))
    var = jnp.var(y, axis=(0, 1, 2))        # biased, like PyTorch BN training mode
    return (y - mean) * lax.rsqrt(var + BN_EPS) * gamma[0] + beta[0]


if __name__ == "__main__":
    EB3_layers = {'reduction_1': 24, 'reduction_2': 32, 'reduction_3': 48,
                  'reduction_4': 136, 'reduction_5': 384, 'reduction_6': 1536}
    hypercolumn_layers = ['reduction_1', 'reduction_2', 'reduction_3']
    channel_sizes = [EB3_layers[n] for n in hypercolumn_layers]
    spatial = [16, 8, 8]
    N = 2

    key = jax.random.PRNGKey(0)

    # Deterministic synthetic parameters (one adaptation layer per extraction point).
    params = []
    for c_in in channel_sizes:
        key, k1, k2, k3, k4 = jax.random.split(key, 5)
        w1 = jax.random.normal(k1, (c_in, C_MID), jnp.float32) / jnp.sqrt(c_in)
        b1 = 0.01 * jax.random.normal(k2, (1, C_MID), jnp.float32)
        w2 = jax.random.normal(k3, (5, 5, C_MID, C_OUT), jnp.float32) / jnp.sqrt(25 * C_MID)
        b2 = 0.01 * jax.random.normal(k4, (1, C_OUT), jnp.float32)
        gamma = jnp.ones((1, C_OUT), jnp.float32)   # BatchNorm weight init
        beta = jnp.zeros((1, C_OUT), jnp.float32)   # BatchNorm bias init
        params.append((w1, b1, w2, b2, gamma, beta))

    # Features in PyTorch NCHW layout (as the module receives them).
    features_nchw = []
    for c_in, s in zip(channel_sizes, spatial):
        key, kx = jax.random.split(key)
        features_nchw.append(jax.random.normal(kx, (N, c_in, s, s), jnp.float32))

    outputs_nchw = []
    for x_nchw, p in zip(features_nchw, params):
        x_nhwc = jnp.transpose(x_nchw, (0, 2, 3, 1))          # NCHW -> NHWC
        y = adapt_layer_pallas(x_nhwc, p)
        y = jax.block_until_ready(y)
        assert y.shape == (N, x_nchw.shape[2], x_nchw.shape[3], C_OUT)

        # Tight check against a reference with the same bf16-input / f32-accum
        # matmul precision as the kernel.
        y_ref_bf16 = adapt_layer_ref(x_nhwc, p, matmul_dtype=jnp.bfloat16)
        if not jnp.allclose(y, y_ref_bf16, atol=2e-3, rtol=2e-3):
            raise AssertionError("Pallas output mismatch vs bf16-matmul reference")

        # Sanity check against the pure f32 module semantics (looser tolerance
        # only accounts for the bf16 MXU-input rounding).
        y_ref_f32 = adapt_layer_ref(x_nhwc, p, matmul_dtype=jnp.float32)
        if not jnp.allclose(y, y_ref_f32, atol=3e-2, rtol=2e-2):
            raise AssertionError("Pallas output mismatch vs f32 reference")

        outputs_nchw.append(jnp.transpose(y, (0, 3, 1, 2)))   # back to NCHW

    print("KERNEL_OK")
</pallas_src>

<mosaic_0001>
module attributes {stable_mosaic.version = 11 : i64} {
  func.func @kernel(%arg0: memref<512x32xbf16, #tpu.memory_space<vmem>>, %arg1: memref<32x64xbf16, #tpu.memory_space<vmem>>, %arg2: memref<1x64xf32, #tpu.memory_space<vmem>>, %arg3: memref<5x320x128xbf16, #tpu.memory_space<vmem>>, %arg4: memref<1x128xf32, #tpu.memory_space<vmem>>, %arg5: memref<1x128xf32, #tpu.memory_space<vmem>>, %arg6: memref<1x128xf32, #tpu.memory_space<vmem>>, %arg7: memref<512x128xf32, #tpu.memory_space<vmem>>, %arg8: memref<20x2x24x64xf32, #tpu.memory_space<vmem>>, %arg9: memref<640x320xbf16, #tpu.memory_space<vmem>>) attributes {dimension_semantics = [], scalar_prefetch = 0 : i64, scratch_operands = 2 : i64, tpu.core_type = #tpu.core_type<tc>} {
    %cst = arith.constant 0.000000e+00 : f32
    %0 = vector.broadcast %cst : f32 to vector<2x2x24x64xf32>
    %c0 = arith.constant 0 : index
    %c0_0 = arith.constant 0 : index
    %c0_1 = arith.constant 0 : index
    %c0_2 = arith.constant 0 : index
    %1 = vector.load %arg8[%c0, %c0_0, %c0_1, %c0_2] : memref<20x2x24x64xf32, #tpu.memory_space<vmem>>, vector<2x2x24x64xf32>
    tpu.vector_store %arg8[%c0, %c0_0, %c0_1, %c0_2], %0 {strides = array<i32>} : memref<20x2x24x64xf32, #tpu.memory_space<vmem>>, vector<2x2x24x64xf32>,
    %cst_3 = arith.constant 0.000000e+00 : f32
    %2 = vector.broadcast %cst_3 : f32 to vector<2x2x24x64xf32>
    %c18 = arith.constant 18 : index
    %c0_4 = arith.constant 0 : index
    %c0_5 = arith.constant 0 : index
    %c0_6 = arith.constant 0 : index
    %3 = vector.load %arg8[%c18, %c0_4, %c0_5, %c0_6] : memref<20x2x24x64xf32, #tpu.memory_space<vmem>>, vector<2x2x24x64xf32>
    tpu.vector_store %arg8[%c18, %c0_4, %c0_5, %c0_6], %2 {strides = array<i32>} : memref<20x2x24x64xf32, #tpu.memory_space<vmem>>, vector<2x2x24x64xf32>,
    %cst_7 = arith.constant 0.000000e+00 : f32
    %4 = vector.broadcast %cst_7 : f32 to vector<16x2x2x64xf32>
    %c2 = arith.constant 2 : index
    %c0_8 = arith.constant 0 : index
    %c0_9 = arith.constant 0 : index
    %c0_10 = arith.constant 0 : index
    %5 = vector.load %arg8[%c2, %c0_8, %c0_9, %c0_10] : memref<20x2x24x64xf32, #tpu.memory_space<vmem>>, vector<16x2x2x64xf32>
    tpu.vector_store %arg8[%c2, %c0_8, %c0_9, %c0_10], %4 {strides = array<i32>} : memref<20x2x24x64xf32, #tpu.memory_space<vmem>>, vector<16x2x2x64xf32>,
    %cst_11 = arith.constant 0.000000e+00 : f32
    %6 = vector.broadcast %cst_11 : f32 to vector<16x2x6x64xf32>
    %c2_12 = arith.constant 2 : index
    %c0_13 = arith.constant 0 : index
    %c18_14 = arith.constant 18 : index
    %c0_15 = arith.constant 0 : index
    %7 = vector.load %arg8[%c2_12, %c0_13, %c18_14, %c0_15] : memref<20x2x24x64xf32, #tpu.memory_space<vmem>>, vector<16x2x6x64xf32>
    tpu.vector_store %arg8[%c2_12, %c0_13, %c18_14, %c0_15], %6 {strides = array<i32>} : memref<20x2x24x64xf32, #tpu.memory_space<vmem>>, vector<16x2x6x64xf32>,
    %c0_16 = arith.constant 0 : index
    %c0_17 = arith.constant 0 : index
    %8 = vector.load %arg0[%c0_16, %c0_17] : memref<512x32xbf16, #tpu.memory_space<vmem>>, vector<512x32xbf16>
    %c0_18 = arith.constant 0 : index
    %c0_19 = arith.constant 0 : index
    %9 = vector.load %arg1[%c0_18, %c0_19] : memref<32x64xbf16, #tpu.memory_space<vmem>>, vector<32x64xbf16>
    %cst_20 = arith.constant dense<0.000000e+00> : vector<512x64xf32>
    %10 = tpu.matmul %8, %9, %cst_20 {dimension_numbers = #tpu.dot_dimension_numbers<[1], [0], [0], [1], [0, 0, 1, 1], [], []>} : vector<512x32xbf16>, vector<32x64xbf16>, vector<512x64xf32> -> vector<512x64xf32>
    %c0_21 = arith.constant 0 : index
    %c0_22 = arith.constant 0 : index
    %11 = vector.load %arg2[%c0_21, %c0_22] : memref<1x64xf32, #tpu.memory_space<vmem>>, vector<1x64xf32>
    %12 = vector.broadcast %11 : vector<1x64xf32> to vector<512x64xf32>
    %13 = arith.addf %10, %12 : vector<512x64xf32>
    %cst_23 = arith.constant 0.000000e+00 : f32
    %14 = vector.broadcast %cst_23 : f32 to vector<512x64xf32>
    %15 = arith.maximumf %13, %14 : vector<512x64xf32>
    %16 = vector.shape_cast %15 : vector<512x64xf32> to vector<16x2x16x64xf32>
    %c2_24 = arith.constant 2 : index
    %c0_25 = arith.constant 0 : index
    %c2_26 = arith.constant 2 : index
    %c0_27 = arith.constant 0 : index
    %17 = vector.load %arg8[%c2_24, %c0_25, %c2_26, %c0_27] : memref<20x2x24x64xf32, #tpu.memory_space<vmem>>, vector<16x2x16x64xf32>
    tpu.vector_store %arg8[%c2_24, %c0_25, %c2_26, %c0_27], %16 {strides = array<i32>} : memref<20x2x24x64xf32, #tpu.memory_space<vmem>>, vector<16x2x16x64xf32>,
    %c0_28 = arith.constant 0 : index
    %c0_29 = arith.constant 0 : index
    %c0_30 = arith.constant 0 : index
    %c0_31 = arith.constant 0 : index
    %18 = vector.load %arg8[%c0_28, %c0_29, %c0_30, %c0_31] : memref<20x2x24x64xf32, #tpu.memory_space<vmem>>, vector<20x2x16x64xf32>
    %19 = vector.shape_cast %18 : vector<20x2x16x64xf32> to vector<640x64xf32>
    %20 = arith.truncf %19 : vector<640x64xf32> to vector<640x64xbf16>
    %c0_32 = arith.constant 0 : index
    %c0_33 = arith.constant 0 : index
    %21 = vector.load %arg9[%c0_32, %c0_33] : memref<640x320xbf16, #tpu.memory_space<vmem>>, vector<640x64xbf16>
    tpu.vector_store %arg9[%c0_32, %c0_33], %20 {strides = array<i32>} : memref<640x320xbf16, #tpu.memory_space<vmem>>, vector<640x64xbf16>,
    %c0_34 = arith.constant 0 : index
    %c0_35 = arith.constant 0 : index
    %c1 = arith.constant 1 : index
    %c0_36 = arith.constant 0 : index
    %22 = vector.load %arg8[%c0_34, %c0_35, %c1, %c0_36] : memref<20x2x24x64xf32, #tpu.memory_space<vmem>>, vector<20x2x16x64xf32>
    %23 = vector.shape_cast %22 : vector<20x2x16x64xf32> to vector<640x64xf32>
    %24 = arith.truncf %23 : vector<640x64xf32> to vector<640x64xbf16>
    %c0_37 = arith.constant 0 : index
    %c64 = arith.constant 64 : index
    %25 = vector.load %arg9[%c0_37, %c64] : memref<640x320xbf16, #tpu.memory_space<vmem>>, vector<640x64xbf16>
    tpu.vector_store %arg9[%c0_37, %c64], %24 {strides = array<i32>} : memref<640x320xbf16, #tpu.memory_space<vmem>>, vector<640x64xbf16>,
    %c0_38 = arith.constant 0 : index
    %c0_39 = arith.constant 0 : index
    %c2_40 = arith.constant 2 : index
    %c0_41 = arith.constant 0 : index
    %26 = vector.load %arg8[%c0_38, %c0_39, %c2_40, %c0_41] : memref<20x2x24x64xf32, #tpu.memory_space<vmem>>, vector<20x2x16x64xf32>
    %27 = vector.shape_cast %26 : vector<20x2x16x64xf32> to vector<640x64xf32>
    %28 = arith.truncf %27 : vector<640x64xf32> to vector<640x64xbf16>
    %c0_42 = arith.constant 0 : index
    %c128 = arith.constant 128 : index
    %29 = vector.load %arg9[%c0_42, %c128] : memref<640x320xbf16, #tpu.memory_space<vmem>>, vector<640x64xbf16>
    tpu.vector_store %arg9[%c0_42, %c128], %28 {strides = array<i32>} : memref<640x320xbf16, #tpu.memory_space<vmem>>, vector<640x64xbf16>,
    %c0_43 = arith.constant 0 : index
    %c0_44 = arith.constant 0 : index
    %c3 = arith.constant 3 : index
    %c0_45 = arith.constant 0 : index
    %30 = vector.load %arg8[%c0_43, %c0_44, %c3, %c0_45] : memref<20x2x24x64xf32, #tpu.memory_space<vmem>>, vector<20x2x16x64xf32>
    %31 = vector.shape_cast %30 : vector<20x2x16x64xf32> to vector<640x64xf32>
    %32 = arith.truncf %31 : vector<640x64xf32> to vector<640x64xbf16>
    %c0_46 = arith.constant 0 : index
    %c192 = arith.constant 192 : index
    %33 = vector.load %arg9[%c0_46, %c192] : memref<640x320xbf16, #tpu.memory_space<vmem>>, vector<640x64xbf16>
    tpu.vector_store %arg9[%c0_46, %c192], %32 {strides = array<i32>} : memref<640x320xbf16, #tpu.memory_space<vmem>>, vector<640x64xbf16>,
    %c0_47 = arith.constant 0 : index
    %c0_48 = arith.constant 0 : index
    %c4 = arith.constant 4 : index
    %c0_49 = arith.constant 0 : index
    %34 = vector.load %arg8[%c0_47, %c0_48, %c4, %c0_49] : memref<20x2x24x64xf32, #tpu.memory_space<vmem>>, vector<20x2x16x64xf32>
    %35 = vector.shape_cast %34 : vector<20x2x16x64xf32> to vector<640x64xf32>
    %36 = arith.truncf %35 : vector<640x64xf32> to vector<640x64xbf16>
    %c0_50 = arith.constant 0 : index
    %c256 = arith.constant 256 : index
    %37 = vector.load %arg9[%c0_50, %c256] : memref<640x320xbf16, #tpu.memory_space<vmem>>, vector<640x64xbf16>
    tpu.vector_store %arg9[%c0_50, %c256], %36 {strides = array<i32>} : memref<640x320xbf16, #tpu.memory_space<vmem>>, vector<640x64xbf16>,
    %c0_51 = arith.constant 0 : index
    %c0_52 = arith.constant 0 : index
    %38 = vector.load %arg9[%c0_51, %c0_52] : memref<640x320xbf16, #tpu.memory_space<vmem>>, vector<512x320xbf16>
    %c0_53 = arith.constant 0 : index
    %c0_54 = arith.constant 0 : index
    %c0_55 = arith.constant 0 : index
    %39 = vector.load %arg3[%c0_53, %c0_54, %c0_55] : memref<5x320x128xbf16, #tpu.memory_space<vmem>>, vector<1x320x128xbf16>
    %40 = vector.shape_cast %39 : vector<1x320x128xbf16> to vector<320x128xbf16>
    %cst_56 = arith.constant dense<0.000000e+00> : vector<512x128xf32>
    %41 = tpu.matmul %38, %40, %cst_56 {dimension_numbers = #tpu.dot_dimension_numbers<[1], [0], [0], [1], [0, 0, 1, 1], [], []>} : vector<512x320xbf16>, vector<320x128xbf16>, vector<512x128xf32> -> vector<512x128xf32>
    %c32 = arith.constant 32 : index
    %c0_57 = arith.constant 0 : index
    %42 = vector.load %arg9[%c32, %c0_57] : memref<640x320xbf16, #tpu.memory_space<vmem>>, vector<512x320xbf16>
    %c1_58 = arith.constant 1 : index
    %c0_59 = arith.constant 0 : index
    %c0_60 = arith.constant 0 : index
    %43 = vector.load %arg3[%c1_58, %c0_59, %c0_60] : memref<5x320x128xbf16, #tpu.memory_space<vmem>>, vector<1x320x128xbf16>
    %44 = vector.shape_cast %43 : vector<1x320x128xbf16> to vector<320x128xbf16>
    %cst_61 = arith.constant dense<0.000000e+00> : vector<512x128xf32>
    %45 = tpu.matmul %42, %44, %cst_61 {dimension_numbers = #tpu.dot_dimension_numbers<[1], [0], [0], [1], [0, 0, 1, 1], [], []>} : vector<512x320xbf16>, vector<320x128xbf16>, vector<512x128xf32> -> vector<512x128xf32>
    %46 = arith.addf %41, %45 : vector<512x128xf32>
    %c64_62 = arith.constant 64 : index
    %c0_63 = arith.constant 0 : index
    %47 = vector.load %arg9[%c64_62, %c0_63] : memref<640x320xbf16, #tpu.memory_space<vmem>>, vector<512x320xbf16>
    %c2_64 = arith.constant 2 : index
    %c0_65 = arith.constant 0 : index
    %c0_66 = arith.constant 0 : index
    %48 = vector.load %arg3[%c2_64, %c0_65, %c0_66] : memref<5x320x128xbf16, #tpu.memory_space<vmem>>, vector<1x320x128xbf16>
    %49 = vector.shape_cast %48 : vector<1x320x128xbf16> to vector<320x128xbf16>
    %cst_67 = arith.constant dense<0.000000e+00> : vector<512x128xf32>
    %50 = tpu.matmul %47, %49, %cst_67 {dimension_numbers = #tpu.dot_dimension_numbers<[1], [0], [0], [1], [0, 0, 1, 1], [], []>} : vector<512x320xbf16>, vector<320x128xbf16>, vector<512x128xf32> -> vector<512x128xf32>
    %51 = arith.addf %46, %50 : vector<512x128xf32>
    %c96 = arith.constant 96 : index
    %c0_68 = arith.constant 0 : index
    %52 = vector.load %arg9[%c96, %c0_68] : memref<640x320xbf16, #tpu.memory_space<vmem>>, vector<512x320xbf16>
    %c3_69 = arith.constant 3 : index
    %c0_70 = arith.constant 0 : index
    %c0_71 = arith.constant 0 : index
    %53 = vector.load %arg3[%c3_69, %c0_70, %c0_71] : memref<5x320x128xbf16, #tpu.memory_space<vmem>>, vector<1x320x128xbf16>
    %54 = vector.shape_cast %53 : vector<1x320x128xbf16> to vector<320x128xbf16>
    %cst_72 = arith.constant dense<0.000000e+00> : vector<512x128xf32>
    %55 = tpu.matmul %52, %54, %cst_72 {dimension_numbers = #tpu.dot_dimension_numbers<[1], [0], [0], [1], [0, 0, 1, 1], [], []>} : vector<512x320xbf16>, vector<320x128xbf16>, vector<512x128xf32> -> vector<512x128xf32>
    %56 = arith.addf %51, %55 : vector<512x128xf32>
    %c128_73 = arith.constant 128 : index
    %c0_74 = arith.constant 0 : index
    %57 = vector.load %arg9[%c128_73, %c0_74] : memref<640x320xbf16, #tpu.memory_space<vmem>>, vector<512x320xbf16>
    %c4_75 = arith.constant 4 : index
    %c0_76 = arith.constant 0 : index
    %c0_77 = arith.constant 0 : index
    %58 = vector.load %arg3[%c4_75, %c0_76, %c0_77] : memref<5x320x128xbf16, #tpu.memory_space<vmem>>, vector<1x320x128xbf16>
    %59 = vector.shape_cast %58 : vector<1x320x128xbf16> to vector<320x128xbf16>
    %cst_78 = arith.constant dense<0.000000e+00> : vector<512x128xf32>
    %60 = tpu.matmul %57, %59, %cst_78 {dimension_numbers = #tpu.dot_dimension_numbers<[1], [0], [0], [1], [0, 0, 1, 1], [], []>} : vector<512x320xbf16>, vector<320x128xbf16>, vector<512x128xf32> -> vector<512x128xf32>
    %61 = arith.addf %56, %60 : vector<512x128xf32>
    %c0_79 = arith.constant 0 : index
    %c0_80 = arith.constant 0 : index
    %62 = vector.load %arg4[%c0_79, %c0_80] : memref<1x128xf32, #tpu.memory_space<vmem>>, vector<1x128xf32>
    %63 = vector.broadcast %62 : vector<1x128xf32> to vector<512x128xf32>
    %64 = arith.addf %61, %63 : vector<512x128xf32>
    %cst_81 = arith.constant dense<0.000000e+00> : vector<128xf32>
    %65 = vector.multi_reduction <add>, %64, %cst_81 [0] : vector<512x128xf32> to vector<128xf32>
    %66 = vector.shape_cast %65 : vector<128xf32> to vector<1x128xf32>
    %cst_82 = arith.constant 0.001953125 : f32
    %67 = vector.broadcast %cst_82 : f32 to vector<1x128xf32>
    %68 = arith.mulf %66, %67 : vector<1x128xf32>
    %69 = arith.mulf %64, %64 : vector<512x128xf32>
    %cst_83 = arith.constant dense<0.000000e+00> : vector<128xf32>
    %70 = vector.multi_reduction <add>, %69, %cst_83 [0] : vector<512x128xf32> to vector<128xf32>
    %71 = vector.shape_cast %70 : vector<128xf32> to vector<1x128xf32>
    %cst_84 = arith.constant 0.001953125 : f32
    %72 = vector.broadcast %cst_84 : f32 to vector<1x128xf32>
    %73 = arith.mulf %71, %72 : vector<1x128xf32>
    %74 = arith.mulf %68, %68 : vector<1x128xf32>
    %75 = arith.subf %73, %74 : vector<1x128xf32>
    %cst_85 = arith.constant 0.000000e+00 : f32
    %76 = vector.broadcast %cst_85 : f32 to vector<1x128xf32>
    %77 = arith.maximumf %75, %76 : vector<1x128xf32>
    %c0_86 = arith.constant 0 : index
    %c0_87 = arith.constant 0 : index
    %78 = vector.load %arg5[%c0_86, %c0_87] : memref<1x128xf32, #tpu.memory_space<vmem>>, vector<1x128xf32>
    %cst_88 = arith.constant 9.99999974E-6 : f32
    %79 = vector.broadcast %cst_88 : f32 to vector<1x128xf32>
    %80 = arith.addf %77, %79 : vector<1x128xf32>
    %81 = math.rsqrt %80 : vector<1x128xf32>
    %82 = arith.mulf %78, %81 : vector<1x128xf32>
    %c0_89 = arith.constant 0 : index
    %c0_90 = arith.constant 0 : index
    %83 = vector.load %arg6[%c0_89, %c0_90] : memref<1x128xf32, #tpu.memory_space<vmem>>, vector<1x128xf32>
    %84 = arith.mulf %68, %82 : vector<1x128xf32>
    %85 = arith.subf %83, %84 : vector<1x128xf32>
    %86 = vector.broadcast %82 : vector<1x128xf32> to vector<512x128xf32>
    %87 = arith.mulf %64, %86 : vector<512x128xf32>
    %88 = vector.broadcast %85 : vector<1x128xf32> to vector<512x128xf32>
    %89 = arith.addf %87, %88 : vector<512x128xf32>
    %c0_91 = arith.constant 0 : index
    %c0_92 = arith.constant 0 : index
    %90 = vector.load %arg7[%c0_91, %c0_92] : memref<512x128xf32, #tpu.memory_space<vmem>>, vector<512x128xf32>
    tpu.vector_store %arg7[%c0_91, %c0_92], %89 {strides = array<i32>} : memref<512x128xf32, #tpu.memory_space<vmem>>, vector<512x128xf32>,
    return
  }
}

</mosaic_0001>

<llo_original>
// kernel: tpu_custom_call.1
$region0: #{tpu_custom_call.1}
  #allocation0 [shape = 'u32[]', space=smem, size = 0x4, offset = 0x4, fixed_abs, tag = 'smem constant byte address 0x4 - core index']
  #allocation1 [shape = 'u32[144,128]{1,0:T(1,128)}', space=vmem, size = 0x12000, scoped, tag = 'internal scratch']
  #allocation2 [shape = 'f32[20,2,24,64]{3,2,1,0:T(8,128)}', space=vmem, size = 0x78000, scoped, tag = 'scratch operand']
  #allocation3 [shape = 'bf16[640,320]{1,0:T(8,128)(2,1)}', space=vmem, size = 0x78000, scoped, tag = 'scratch operand']
  %s0 = inlined_call_operand.vmem [shape: bf16[512,32], index: 0, kind: input, shape index: {}]
  %s1 = inlined_call_operand.vmem [shape: bf16[32,64], index: 1, kind: input, shape index: {}]
  %s2 = inlined_call_operand.vmem [shape: f32[1,64], index: 2, kind: input, shape index: {}]
  %s3 = inlined_call_operand.hbm [shape: bf16[5,320,128], index: 3, kind: input, shape index: {}]
  %s4 = inlined_call_operand.vmem [shape: f32[1,128], index: 4, kind: input, shape index: {}]
  %s5 = inlined_call_operand.vmem [shape: f32[1,128], index: 5, kind: input, shape index: {}]
  %s6 = inlined_call_operand.vmem [shape: f32[1,128], index: 6, kind: input, shape index: {}]
  %s7 = inlined_call_operand.hbm [shape: f32[512,128], index: 7, kind: output, shape index: {}]
  %s8 = sld [smem:[#allocation0]]
  $region42: #{tpu_custom_call.1} parent=0
    _
  %s10 = ssub.s32 1, %s8
  %s11 = scalar_select 0, %s10, %s8
  $region1: #{tpu_custom_call.1} parent=0
    #allocation4 [shape = 'u8[409600]{0}', space=vmem, size = 0x64000, scoped, tag = 'input window, operand 3, single buffered']
    #allocation5 [shape = 's32[1]{0}', space=sflag, size = 0x4, scoped, tag = 'scoped memory for tpu_custom_call.1']
    #allocation6 [shape = 's32[1]{0}', space=sflag, size = 0x4, scoped, tag = 'scoped memory for tpu_custom_call.1']
    #allocation7 [shape = 'u8[262144]{0}', space=vmem, size = 0x40000, scoped, tag = 'output window, operand 0, single buffered']
    %12 = vsyncpa [#allocation5], 0
    %13 = vsyncpa [#allocation6], 0
    // Predicated region
    $region2: #{tpu_custom_call.1} parent=1 // pred_check
      _
    $region3: #{tpu_custom_call.1} parent=1 // pred_check_branch
      %15 = sbr.rel (0) target = $region5
    $region4: #{tpu_custom_call.1} parent=1 // pred_region
      _
    $region5: #{tpu_custom_call.1} parent=1 // pred_fallthru
      _
    // Predicated region
    $region6: #{tpu_custom_call.1} parent=1 // pred_check
      _
    $region7: #{tpu_custom_call.1} parent=1 // pred_check_branch
      %17 = sbr.rel (0) target = $region9
    $region8: #{tpu_custom_call.1} parent=1 // pred_region
      _
    $region9: #{tpu_custom_call.1} parent=1 // pred_fallthru
      _
    // Predicated region
    $region10: #{tpu_custom_call.1} parent=1 // pred_check
      _
    $region11: #{tpu_custom_call.1} parent=1 // pred_check_branch
      %19 = sbr.rel (0) target = $region13
    $region12: #{tpu_custom_call.1} parent=1 // pred_region
      _
    $region13: #{tpu_custom_call.1} parent=1 // pred_fallthru
      _
    // Predicated region
    $region14: #{tpu_custom_call.1} parent=1 // pred_check
      _
    $region15: #{tpu_custom_call.1} parent=1 // pred_check_branch
      %21 = sbr.rel (0) target = $region17
    $region16: #{tpu_custom_call.1} parent=1 // pred_region
      %s23 = ssub.s32 12800, 12800
      %24 = vsyncadd [#allocation5], %s23
      %s25 = sshll.u32 [#allocation4], 4
      %s26 = int_to_ptr.vmem [resolvable:$true] %s25
      %31 = dma.hbm_to_vmem [thread:$0]  %s3, 12800, %s26, [#allocation5], 64, 64, 4
    $region17: #{tpu_custom_call.1} parent=1 // pred_fallthru
      _
    // Predicated region
    $region18: #{tpu_custom_call.1} parent=1 // pred_check
      _
    $region19: #{tpu_custom_call.1} parent=1 // pred_check_branch
      %33 = sbr.rel (0) target = $region21
    $region20: #{tpu_custom_call.1} parent=1 // pred_region
      _
    $region21: #{tpu_custom_call.1} parent=1 // pred_fallthru
      _
    // Predicated region
    $region22: #{tpu_custom_call.1} parent=1 // pred_check
      _
    $region23: #{tpu_custom_call.1} parent=1 // pred_check_branch
      %35 = sbr.rel (0) target = $region25
    $region24: #{tpu_custom_call.1} parent=1 // pred_region
      _
    $region25: #{tpu_custom_call.1} parent=1 // pred_fallthru
      _
    // Predicated region
    $region26: #{tpu_custom_call.1} parent=1 // pred_check
      _
    $region27: #{tpu_custom_call.1} parent=1 // pred_check_branch
      %37 = sbr.rel (0) target = $region29
    $region28: #{tpu_custom_call.1} parent=1 // pred_region
      _
    $region29: #{tpu_custom_call.1} parent=1 // pred_fallthru
      _
    // Predicated region
    $region30: #{tpu_custom_call.1} parent=1 // pred_check
      _
    $region31: #{tpu_custom_call.1} parent=1 // pred_check_branch
      %39 = sbr.rel (0) target = $region33
    $region32: #{tpu_custom_call.1} parent=1 // pred_region
      %40 = dma.done [#allocation5], 12800
    $region33: #{tpu_custom_call.1} parent=1 // pred_fallthru
      _
    %vm42 = vcmask 523264
    %43 = vst.msk [vmem:[#allocation2] sm:$0xff] %vm42, 0.0
    %44 = vst.msk [vmem:[#allocation2 + $0x8] sm:$0xff] %vm42, 0.0
    %45 = vst.msk [vmem:[#allocation2 + $0x10] sm:$0xff] %vm42, 0.0
    %46 = vst.msk [vmem:[#allocation2 + $0x18] sm:$0xff] %vm42, 0.0
    %47 = vst.msk [vmem:[#allocation2 + $0x20] sm:$0xff] %vm42, 0.0
    %48 = vst.msk [vmem:[#allocation2 + $0x28] sm:$0xff] %vm42, 0.0
    %49 = vst.msk [vmem:[#allocation2 + $0x30] sm:$0xff] %vm42, 0.0
    %50 = vst.msk [vmem:[#allocation2 + $0x38] sm:$0xff] %vm42, 0.0
    %51 = vst.msk [vmem:[#allocation2 + $0x40] sm:$0xff] %vm42, 0.0
    %52 = vst.msk [vmem:[#allocation2 + $0x48] sm:$0xff] %vm42, 0.0
    %53 = vst.msk [vmem:[#allocation2 + $0x50] sm:$0xff] %vm42, 0.0
    %54 = vst.msk [vmem:[#allocation2 + $0x58] sm:$0xff] %vm42, 0.0
    %s55 = scalar_lea.vmem [#allocation2], 864
    %56 = vst.msk [vmem:[%s55] sm:$0xff] %vm42, 0.0
    %57 = vst.msk [vmem:[%s55 + $0x8] sm:$0xff] %vm42, 0.0
    %58 = vst.msk [vmem:[%s55 + $0x10] sm:$0xff] %vm42, 0.0
    %59 = vst.msk [vmem:[%s55 + $0x18] sm:$0xff] %vm42, 0.0
    %60 = vst.msk [vmem:[%s55 + $0x20] sm:$0xff] %vm42, 0.0
    %61 = vst.msk [vmem:[%s55 + $0x28] sm:$0xff] %vm42, 0.0
    %62 = vst.msk [vmem:[%s55 + $0x30] sm:$0xff] %vm42, 0.0
    %63 = vst.msk [vmem:[%s55 + $0x38] sm:$0xff] %vm42, 0.0
    %64 = vst.msk [vmem:[%s55 + $0x40] sm:$0xff] %vm42, 0.0
    %65 = vst.msk [vmem:[%s55 + $0x48] sm:$0xff] %vm42, 0.0
    %66 = vst.msk [vmem:[%s55 + $0x50] sm:$0xff] %vm42, 0.0
    %67 = vst.msk [vmem:[%s55 + $0x58] sm:$0xff] %vm42, 0.0
    %s68 = scalar_lea.vmem [#allocation2], 96
    %vm69 = vcmask 517120
    %70 = vst.msk [vmem:[%s68] sm:$0x3] %vm69, 0.0
    %71 = vst.msk [vmem:[%s68 + $0x18] sm:$0x3] %vm69, 0.0
    %72 = vst.msk [vmem:[%s68 + $0x30] sm:$0x3] %vm69, 0.0
    %73 = vst.msk [vmem:[%s68 + $0x48] sm:$0x3] %vm69, 0.0
    %74 = vst.msk [vmem:[%s68 + $0x60] sm:$0x3] %vm69, 0.0
    %75 = vst.msk [vmem:[%s68 + $0x78] sm:$0x3] %vm69, 0.0
    %76 = vst.msk [vmem:[%s68 + $0x90] sm:$0x3] %vm69, 0.0
    %77 = vst.msk [vmem:[%s68 + $0xa8] sm:$0x3] %vm69, 0.0
    %78 = vst.msk [vmem:[%s68 + $0xc0] sm:$0x3] %vm69, 0.0
    %79 = vst.msk [vmem:[%s68 + $0xd8] sm:$0x3] %vm69, 0.0
    %80 = vst.msk [vmem:[%s68 + $0xf0] sm:$0x3] %vm69, 0.0
    %81 = vst.msk [vmem:[%s68 + $0x108] sm:$0x3] %vm69, 0.0
    %82 = vst.msk [vmem:[%s68 + $0x120] sm:$0x3] %vm69, 0.0
    %83 = vst.msk [vmem:[%s68 + $0x138] sm:$0x3] %vm69, 0.0
    %84 = vst.msk [vmem:[%s68 + $0x150] sm:$0x3] %vm69, 0.0
    %85 = vst.msk [vmem:[%s68 + $0x168] sm:$0x3] %vm69, 0.0
    %86 = vst.msk [vmem:[%s68 + $0x180] sm:$0x3] %vm69, 0.0
    %87 = vst.msk [vmem:[%s68 + $0x198] sm:$0x3] %vm69, 0.0
    %88 = vst.msk [vmem:[%s68 + $0x1b0] sm:$0x3] %vm69, 0.0
    %89 = vst.msk [vmem:[%s68 + $0x1c8] sm:$0x3] %vm69, 0.0
    %90 = vst.msk [vmem:[%s68 + $0x1e0] sm:$0x3] %vm69, 0.0
    %91 = vst.msk [vmem:[%s68 + $0x1f8] sm:$0x3] %vm69, 0.0
    %92 = vst.msk [vmem:[%s68 + $0x210] sm:$0x3] %vm69, 0.0
    %93 = vst.msk [vmem:[%s68 + $0x228] sm:$0x3] %vm69, 0.0
    %94 = vst.msk [vmem:[%s68 + $0x240] sm:$0x3] %vm69, 0.0
    %95 = vst.msk [vmem:[%s68 + $0x258] sm:$0x3] %vm69, 0.0
    %96 = vst.msk [vmem:[%s68 + $0x270] sm:$0x3] %vm69, 0.0
    %97 = vst.msk [vmem:[%s68 + $0x288] sm:$0x3] %vm69, 0.0
    %98 = vst.msk [vmem:[%s68 + $0x2a0] sm:$0x3] %vm69, 0.0
    %99 = vst.msk [vmem:[%s68 + $0x2b8] sm:$0x3] %vm69, 0.0
    %100 = vst.msk [vmem:[%s68 + $0x2d0] sm:$0x3] %vm69, 0.0
    %101 = vst.msk [vmem:[%s68 + $0x2e8] sm:$0x3] %vm69, 0.0
    %vm102 = vcmask 521216
    %103 = vst.msk [vmem:[%s68 + $0x12] sm:$0x3f] %vm102, 0.0
    %104 = vst.msk [vmem:[%s68 + $0x2a] sm:$0x3f] %vm102, 0.0
    %105 = vst.msk [vmem:[%s68 + $0x42] sm:$0x3f] %vm102, 0.0
    %106 = vst.msk [vmem:[%s68 + $0x5a] sm:$0x3f] %vm102, 0.0
    %107 = vst.msk [vmem:[%s68 + $0x72] sm:$0x3f] %vm102, 0.0
    %108 = vst.msk [vmem:[%s68 + $0x8a] sm:$0x3f] %vm102, 0.0
    %109 = vst.msk [vmem:[%s68 + $0xa2] sm:$0x3f] %vm102, 0.0
    %110 = vst.msk [vmem:[%s68 + $0xba] sm:$0x3f] %vm102, 0.0
    %111 = vst.msk [vmem:[%s68 + $0xd2] sm:$0x3f] %vm102, 0.0
    %112 = vst.msk [vmem:[%s68 + $0xea] sm:$0x3f] %vm102, 0.0
    %113 = vst.msk [vmem:[%s68 + $0x102] sm:$0x3f] %vm102, 0.0
    %114 = vst.msk [vmem:[%s68 + $0x11a] sm:$0x3f] %vm102, 0.0
    %115 = vst.msk [vmem:[%s68 + $0x132] sm:$0x3f] %vm102, 0.0
    %116 = vst.msk [vmem:[%s68 + $0x14a] sm:$0x3f] %vm102, 0.0
    %117 = vst.msk [vmem:[%s68 + $0x162] sm:$0x3f] %vm102, 0.0
    %118 = vst.msk [vmem:[%s68 + $0x17a] sm:$0x3f] %vm102, 0.0
    %119 = vst.msk [vmem:[%s68 + $0x192] sm:$0x3f] %vm102, 0.0
    %120 = vst.msk [vmem:[%s68 + $0x1aa] sm:$0x3f] %vm102, 0.0
    %121 = vst.msk [vmem:[%s68 + $0x1c2] sm:$0x3f] %vm102, 0.0
    %122 = vst.msk [vmem:[%s68 + $0x1da] sm:$0x3f] %vm102, 0.0
    %123 = vst.msk [vmem:[%s68 + $0x1f2] sm:$0x3f] %vm102, 0.0
    %124 = vst.msk [vmem:[%s68 + $0x20a] sm:$0x3f] %vm102, 0.0
    %125 = vst.msk [vmem:[%s68 + $0x222] sm:$0x3f] %vm102, 0.0
    %126 = vst.msk [vmem:[%s68 + $0x23a] sm:$0x3f] %vm102, 0.0
    %127 = vst.msk [vmem:[%s68 + $0x252] sm:$0x3f] %vm102, 0.0
    %128 = vst.msk [vmem:[%s68 + $0x26a] sm:$0x3f] %vm102, 0.0
    %129 = vst.msk [vmem:[%s68 + $0x282] sm:$0x3f] %vm102, 0.0
    %130 = vst.msk [vmem:[%s68 + $0x29a] sm:$0x3f] %vm102, 0.0
    %131 = vst.msk [vmem:[%s68 + $0x2b2] sm:$0x3f] %vm102, 0.0
    %132 = vst.msk [vmem:[%s68 + $0x2ca] sm:$0x3f] %vm102, 0.0
    %133 = vst.msk [vmem:[%s68 + $0x2e2] sm:$0x3f] %vm102, 0.0
    %134 = vst.msk [vmem:[%s68 + $0x2fa] sm:$0x3f] %vm102, 0.0
    %v135 = vld [vmem:[%s0] sm:$0xf]
    %v136 = vld [vmem:[%s0 + $0x4] sm:$0xf]
    %v137 = vld [vmem:[%s0 + $0x8] sm:$0xf]
    %v138 = vld [vmem:[%s0 + $0xc] sm:$0xf]
    %v139 = vld [vmem:[%s0 + $0x10] sm:$0xf]
    %v140 = vld [vmem:[%s0 + $0x14] sm:$0xf]
    %v141 = vld [vmem:[%s0 + $0x18] sm:$0xf]
    %v142 = vld [vmem:[%s0 + $0x1c] sm:$0xf]
    %v143 = vld [vmem:[%s0 + $0x20] sm:$0xf]
    %v144 = vld [vmem:[%s0 + $0x24] sm:$0xf]
    %v145 = vld [vmem:[%s0 + $0x28] sm:$0xf]
    %v146 = vld [vmem:[%s0 + $0x2c] sm:$0xf]
    %v147 = vld [vmem:[%s0 + $0x30] sm:$0xf]
    %v148 = vld [vmem:[%s0 + $0x34] sm:$0xf]
    %v149 = vld [vmem:[%s0 + $0x38] sm:$0xf]
    %v150 = vld [vmem:[%s0 + $0x3c] sm:$0xf]
    %v151 = vld [vmem:[%s0 + $0x40] sm:$0xf]
    %v152 = vld [vmem:[%s0 + $0x44] sm:$0xf]
    %v153 = vld [vmem:[%s0 + $0x48] sm:$0xf]
    %v154 = vld [vmem:[%s0 + $0x4c] sm:$0xf]
    %v155 = vld [vmem:[%s0 + $0x50] sm:$0xf]
    %v156 = vld [vmem:[%s0 + $0x54] sm:$0xf]
    %v157 = vld [vmem:[%s0 + $0x58] sm:$0xf]
    %v158 = vld [vmem:[%s0 + $0x5c] sm:$0xf]
    %v159 = vld [vmem:[%s0 + $0x60] sm:$0xf]
    %v160 = vld [vmem:[%s0 + $0x64] sm:$0xf]
    %v161 = vld [vmem:[%s0 + $0x68] sm:$0xf]
    %v162 = vld [vmem:[%s0 + $0x6c] sm:$0xf]
    %v163 = vld [vmem:[%s0 + $0x70] sm:$0xf]
    %v164 = vld [vmem:[%s0 + $0x74] sm:$0xf]
    %v165 = vld [vmem:[%s0 + $0x78] sm:$0xf]
    %v166 = vld [vmem:[%s0 + $0x7c] sm:$0xf]
    %v167 = vld [vmem:[%s0 + $0x80] sm:$0xf]
    %v168 = vld [vmem:[%s0 + $0x84] sm:$0xf]
    %v169 = vld [vmem:[%s0 + $0x88] sm:$0xf]
    %v170 = vld [vmem:[%s0 + $0x8c] sm:$0xf]
    %v171 = vld [vmem:[%s0 + $0x90] sm:$0xf]
    %v172 = vld [vmem:[%s0 + $0x94] sm:$0xf]
    %v173 = vld [vmem:[%s0 + $0x98] sm:$0xf]
    %v174 = vld [vmem:[%s0 + $0x9c] sm:$0xf]
    %v175 = vld [vmem:[%s0 + $0xa0] sm:$0xf]
    %v176 = vld [vmem:[%s0 + $0xa4] sm:$0xf]
    %v177 = vld [vmem:[%s0 + $0xa8] sm:$0xf]
    %v178 = vld [vmem:[%s0 + $0xac] sm:$0xf]
    %v179 = vld [vmem:[%s0 + $0xb0] sm:$0xf]
    %v180 = vld [vmem:[%s0 + $0xb4] sm:$0xf]
    %v181 = vld [vmem:[%s0 + $0xb8] sm:$0xf]
    %v182 = vld [vmem:[%s0 + $0xbc] sm:$0xf]
    %v183 = vld [vmem:[%s0 + $0xc0] sm:$0xf]
    %v184 = vld [vmem:[%s0 + $0xc4] sm:$0xf]
    %v185 = vld [vmem:[%s0 + $0xc8] sm:$0xf]
    %v186 = vld [vmem:[%s0 + $0xcc] sm:$0xf]
    %v187 = vld [vmem:[%s0 + $0xd0] sm:$0xf]
    %v188 = vld [vmem:[%s0 + $0xd4] sm:$0xf]
    %v189 = vld [vmem:[%s0 + $0xd8] sm:$0xf]
    %v190 = vld [vmem:[%s0 + $0xdc] sm:$0xf]
    %v191 = vld [vmem:[%s0 + $0xe0] sm:$0xf]
    %v192 = vld [vmem:[%s0 + $0xe4] sm:$0xf]
    %v193 = vld [vmem:[%s0 + $0xe8] sm:$0xf]
    %v194 = vld [vmem:[%s0 + $0xec] sm:$0xf]
    %v195 = vld [vmem:[%s0 + $0xf0] sm:$0xf]
    %v196 = vld [vmem:[%s0 + $0xf4] sm:$0xf]
    %v197 = vld [vmem:[%s0 + $0xf8] sm:$0xf]
    %v198 = vld [vmem:[%s0 + $0xfc] sm:$0xf]
    %v199 = vld [vmem:[%s1] sm:$0xf]
    %v200 = vld [vmem:[%s1 + $0x4] sm:$0xf]
    %v201 = vld [vmem:[%s1 + $0x8] sm:$0xf]
    %v202 = vld [vmem:[%s1 + $0xc] sm:$0xf]
    %v203 = vld [vmem:[%s2] sm:$0x1]
    %v205 = vlaneseq
    %v206 = vshrl.u32 %v205, 7
    %v207 = vsub.s32 0, %v206
    %v208 = vrot.slane %v203, %v207
    %v274 = vunpack.c.l.b16 %v135
    %v275 = vunpack.c.l.b16 %v136
    %v276 = vunpack.c.l.b16 %v137
    %v277 = vunpack.c.l.b16 %v138
    %v278 = vunpack.c.l.b16 %v139
    %v279 = vunpack.c.l.b16 %v140
    %v280 = vunpack.c.l.b16 %v141
    %v281 = vunpack.c.l.b16 %v142
    %v282 = vunpack.c.l.b16 %v143
    %v283 = vunpack.c.l.b16 %v144
    %v284 = vunpack.c.l.b16 %v145
    %v285 = vunpack.c.l.b16 %v146
    %v286 = vunpack.c.l.b16 %v147
    %v287 = vunpack.c.l.b16 %v148
    %v288 = vunpack.c.l.b16 %v149
    %v289 = vunpack.c.l.b16 %v150
    %v290 = vunpack.c.l.b16 %v151
    %v291 = vunpack.c.l.b16 %v152
    %v292 = vunpack.c.l.b16 %v153
    %v293 = vunpack.c.l.b16 %v154
    %v294 = vunpack.c.l.b16 %v155
    %v295 = vunpack.c.l.b16 %v156
    %v296 = vunpack.c.l.b16 %v157
    %v297 = vunpack.c.l.b16 %v158
    %v298 = vunpack.c.l.b16 %v159
    %v299 = vunpack.c.l.b16 %v160
    %v300 = vunpack.c.l.b16 %v161
    %v301 = vunpack.c.l.b16 %v162
    %v302 = vunpack.c.l.b16 %v163
    %v303 = vunpack.c.l.b16 %v164
    %v304 = vunpack.c.l.b16 %v165
    %v305 = vunpack.c.l.b16 %v166
    %v306 = vunpack.c.l.b16 %v167
    %v307 = vunpack.c.l.b16 %v168
    %v308 = vunpack.c.l.b16 %v169
    %v309 = vunpack.c.l.b16 %v170
    %v310 = vunpack.c.l.b16 %v171
    %v311 = vunpack.c.l.b16 %v172
    %v312 = vunpack.c.l.b16 %v173
    %v313 = vunpack.c.l.b16 %v174
    %v314 = vunpack.c.l.b16 %v175
    %v315 = vunpack.c.l.b16 %v176
    %v316 = vunpack.c.l.b16 %v177
    %v317 = vunpack.c.l.b16 %v178
    %v318 = vunpack.c.l.b16 %v179
    %v319 = vunpack.c.l.b16 %v180
    %v320 = vunpack.c.l.b16 %v181
    %v321 = vunpack.c.l.b16 %v182
    %v322 = vunpack.c.l.b16 %v183
    %v323 = vunpack.c.l.b16 %v184
    %v324 = vunpack.c.l.b16 %v185
    %v325 = vunpack.c.l.b16 %v186
    %v326 = vunpack.c.l.b16 %v187
    %v327 = vunpack.c.l.b16 %v188
    %v328 = vunpack.c.l.b16 %v189
    %v329 = vunpack.c.l.b16 %v190
    %v330 = vunpack.c.l.b16 %v191
    %v331 = vunpack.c.l.b16 %v192
    %v332 = vunpack.c.l.b16 %v193
    %v333 = vunpack.c.l.b16 %v194
    %v334 = vunpack.c.l.b16 %v195
    %v335 = vunpack.c.l.b16 %v196
    %v336 = vunpack.c.l.b16 %v197
    %v337 = vunpack.c.l.b16 %v198
    %v338 = vpack.c.b16 %v275, %v274
    %v339 = vpack.c.b16 %v277, %v276
    %v340 = vpack.c.b16 %v279, %v278
    %v341 = vpack.c.b16 %v281, %v280
    %v342 = vpack.c.b16 %v283, %v282
    %v343 = vpack.c.b16 %v285, %v284
    %v344 = vpack.c.b16 %v287, %v286
    %v345 = vpack.c.b16 %v289, %v288
    %v346 = vpack.c.b16 %v291, %v290
    %v347 = vpack.c.b16 %v293, %v292
    %v348 = vpack.c.b16 %v295, %v294
    %v349 = vpack.c.b16 %v297, %v296
    %v350 = vpack.c.b16 %v299, %v298
    %v351 = vpack.c.b16 %v301, %v300
    %v352 = vpack.c.b16 %v303, %v302
    %v353 = vpack.c.b16 %v305, %v304
    %v354 = vpack.c.b16 %v307, %v306
    %v355 = vpack.c.b16 %v309, %v308
    %v356 = vpack.c.b16 %v311, %v310
    %v357 = vpack.c.b16 %v313, %v312
    %v358 = vpack.c.b16 %v315, %v314
    %v359 = vpack.c.b16 %v317, %v316
    %v360 = vpack.c.b16 %v319, %v318
    %v361 = vpack.c.b16 %v321, %v320
    %v362 = vpack.c.b16 %v323, %v322
    %v363 = vpack.c.b16 %v325, %v324
    %v364 = vpack.c.b16 %v327, %v326
    %v365 = vpack.c.b16 %v329, %v328
    %v366 = vpack.c.b16 %v331, %v330
    %v367 = vpack.c.b16 %v333, %v332
    %v368 = vpack.c.b16 %v335, %v334
    %v369 = vpack.c.b16 %v337, %v336
    %v374 = vunpack.c.l.b16 %v199
    %v375 = vunpack.c.l.b16 %v200
    %v376 = vunpack.c.l.b16 %v201
    %v377 = vunpack.c.l.b16 %v202
    %v378 = vpack.c.b16 %v375, %v374
    %v379 = vpack.c.b16 %v377, %v376
    %vm382 = vcmask 261120
    %v384 = vsel %vm382, %v338, 0
    %v387 = vsel %vm382, %v339, 0
    %v390 = vsel %vm382, %v340, 0
    %v393 = vsel %vm382, %v341, 0
    %v396 = vsel %vm382, %v342, 0
    %v399 = vsel %vm382, %v343, 0
    %v402 = vsel %vm382, %v344, 0
    %v405 = vsel %vm382, %v345, 0
    %v408 = vsel %vm382, %v346, 0
    %v411 = vsel %vm382, %v347, 0
    %v414 = vsel %vm382, %v348, 0
    %v417 = vsel %vm382, %v349, 0
    %v420 = vsel %vm382, %v350, 0
    %v423 = vsel %vm382, %v351, 0
    %v426 = vsel %vm382, %v352, 0
    %v429 = vsel %vm382, %v353, 0
    %v432 = vsel %vm382, %v354, 0
    %v435 = vsel %vm382, %v355, 0
    %v438 = vsel %vm382, %v356, 0
    %v441 = vsel %vm382, %v357, 0
    %v444 = vsel %vm382, %v358, 0
    %v447 = vsel %vm382, %v359, 0
    %v450 = vsel %vm382, %v360, 0
    %v453 = vsel %vm382, %v361, 0
    %v456 = vsel %vm382, %v362, 0
    %v459 = vsel %vm382, %v363, 0
    %v462 = vsel %vm382, %v364, 0
    %v465 = vsel %vm382, %v365, 0
    %v468 = vsel %vm382, %v366, 0
    %v471 = vsel %vm382, %v367, 0
    %v474 = vsel %vm382, %v368, 0
    %v477 = vsel %vm382, %v369, 0
    %479 = vmatprep.subr.bf16.mxu0 0
    %480 = vmatpush1.bf16.msra.mxu0 0
    %481 = vmatprep.subr.bf16.mxu0 0
    %482 = vmatpush1.bf16.msra.mxu0 0
    %483 = vmatprep.subr.bf16.mxu0 0
    %484 = vmatpush1.bf16.msra.mxu0 0
    %485 = vmatprep.subr.bf16.mxu0 0
    %486 = vmatpush1.bf16.msra.mxu0 0
    %487 = vmatprep.subr.bf16.mxu0 0
    %488 = vmatpush1.bf16.msra.mxu0 0
    %489 = vmatprep.subr.bf16.mxu0 0
    %490 = vmatpush1.bf16.msra.mxu0 0
    %491 = vmatprep.subr.bf16.mxu0 0
    %492 = vmatpush1.bf16.msra.mxu0 %v379
    %493 = vmatprep.subr.bf16.mxu0 0
    %494 = vmatpush1.bf16.msra.mxu0 %v378
    %495 = vmatprep.subr.bf16.mxu0 0
    %496 = vmatpush2.bf16.msra.mxu0 0
    %497 = vmatprep.subr.bf16.mxu0 0
    %498 = vmatpush2.bf16.msra.mxu0 0
    %499 = vmatprep.subr.bf16.mxu0 0
    %500 = vmatpush2.bf16.msra.mxu0 0
    %501 = vmatprep.subr.bf16.mxu0 0
    %502 = vmatpush2.bf16.msra.mxu0 0
    %503 = vmatprep.subr.bf16.mxu0 0
    %504 = vmatpush2.bf16.msra.mxu0 0
    %505 = vmatprep.subr.bf16.mxu0 0
    %506 = vmatpush2.bf16.msra.mxu0 0
    %507 = vmatprep.subr.bf16.mxu0 0
    %508 = vmatpush2.bf16.msra.mxu0 0
    %509 = vmatprep.subr.bf16.mxu0 0
    %510 = vmatpush2.bf16.msra.mxu0 0
    %511 = vmatprep.mubr.bf16.mxu0 0
    %512 = vmatmul.mubr.bf16.gmra.mxu0 %v384
    %v513 = vpop.f32.mrf.mxu0
    %v514 = vadd.f32 %v208, %v513
    %v515 = vpop.f32.mrf.mxu0
    %v516 = vpop.f32.mrf.mxu0
    %v517 = vadd.f32 %v208, %v516
    %v518 = vpop.f32.mrf.mxu0
    %519 = vmatprep.mubr.bf16.mxu0 0
    %520 = vmatmul.mubr.bf16.gmra.mxu0 %v387
    %v521 = vpop.f32.mrf.mxu0
    %v522 = vadd.f32 %v208, %v521
    %v523 = vpop.f32.mrf.mxu0
    %v524 = vpop.f32.mrf.mxu0
    %v525 = vadd.f32 %v208, %v524
    %v526 = vpop.f32.mrf.mxu0
    %527 = vmatprep.mubr.bf16.mxu0 0
    %528 = vmatmul.mubr.bf16.gmra.mxu0 %v390
    %v529 = vpop.f32.mrf.mxu0
    %v530 = vadd.f32 %v208, %v529
    %v531 = vpop.f32.mrf.mxu0
    %v532 = vpop.f32.mrf.mxu0
    %v533 = vadd.f32 %v208, %v532
    %v534 = vpop.f32.mrf.mxu0
    %535 = vmatprep.mubr.bf16.mxu0 0
    %536 = vmatmul.mubr.bf16.gmra.mxu0 %v393
    %v537 = vpop.f32.mrf.mxu0
    %v538 = vadd.f32 %v208, %v537
    %v539 = vpop.f32.mrf.mxu0
    %v540 = vpop.f32.mrf.mxu0
    %v541 = vadd.f32 %v208, %v540
    %v542 = vpop.f32.mrf.mxu0
    %543 = vmatprep.mubr.bf16.mxu0 0
    %544 = vmatmul.mubr.bf16.gmra.mxu0 %v396
    %v545 = vpop.f32.mrf.mxu0
    %v546 = vadd.f32 %v208, %v545
    %v547 = vpop.f32.mrf.mxu0
    %v548 = vpop.f32.mrf.mxu0
    %v549 = vadd.f32 %v208, %v548
    %v550 = vpop.f32.mrf.mxu0
    %551 = vmatprep.mubr.bf16.mxu0 0
    %552 = vmatmul.mubr.bf16.gmra.mxu0 %v399
    %v553 = vpop.f32.mrf.mxu0
    %v554 = vadd.f32 %v208, %v553
    %v555 = vpop.f32.mrf.mxu0
    %v556 = vpop.f32.mrf.mxu0
    %v557 = vadd.f32 %v208, %v556
    %v558 = vpop.f32.mrf.mxu0
    %559 = vmatprep.mubr.bf16.mxu0 0
    %560 = vmatmul.mubr.bf16.gmra.mxu0 %v402
    %v561 = vpop.f32.mrf.mxu0
    %v562 = vadd.f32 %v208, %v561
    %v563 = vpop.f32.mrf.mxu0
    %v564 = vpop.f32.mrf.mxu0
    %v565 = vadd.f32 %v208, %v564
    %v566 = vpop.f32.mrf.mxu0
    %567 = vmatprep.mubr.bf16.mxu0 0
    %568 = vmatmul.mubr.bf16.gmra.mxu0 %v405
    %v569 = vpop.f32.mrf.mxu0
    %v570 = vadd.f32 %v208, %v569
    %v571 = vpop.f32.mrf.mxu0
    %v572 = vpop.f32.mrf.mxu0
    %v573 = vadd.f32 %v208, %v572
    %v574 = vpop.f32.mrf.mxu0
    %575 = vmatprep.mubr.bf16.mxu0 0
    %576 = vmatmul.mubr.bf16.gmra.mxu0 %v408
    %v577 = vpop.f32.mrf.mxu0
    %v578 = vadd.f32 %v208, %v577
    %v579 = vpop.f32.mrf.mxu0
    %v580 = vpop.f32.mrf.mxu0
    %v581 = vadd.f32 %v208, %v580
    %v582 = vpop.f32.mrf.mxu0
    %583 = vmatprep.mubr.bf16.mxu0 0
    %584 = vmatmul.mubr.bf16.gmra.mxu0 %v411
    %v585 = vpop.f32.mrf.mxu0
    %v586 = vadd.f32 %v208, %v585
    %v587 = vpop.f32.mrf.mxu0
    %v588 = vpop.f32.mrf.mxu0
    %v589 = vadd.f32 %v208, %v588
    %v590 = vpop.f32.mrf.mxu0
    %591 = vmatprep.mubr.bf16.mxu0 0
    %592 = vmatmul.mubr.bf16.gmra.mxu0 %v414
    %v593 = vpop.f32.mrf.mxu0
    %v594 = vadd.f32 %v208, %v593
    %v595 = vpop.f32.mrf.mxu0
    %v596 = vpop.f32.mrf.mxu0
    %v597 = vadd.f32 %v208, %v596
    %v598 = vpop.f32.mrf.mxu0
    %599 = vmatprep.mubr.bf16.mxu0 0
    %600 = vmatmul.mubr.bf16.gmra.mxu0 %v417
    %v601 = vpop.f32.mrf.mxu0
    %v602 = vadd.f32 %v208, %v601
    %v603 = vpop.f32.mrf.mxu0
    %v604 = vpop.f32.mrf.mxu0
    %v605 = vadd.f32 %v208, %v604
    %v606 = vpop.f32.mrf.mxu0
    %607 = vmatprep.mubr.bf16.mxu0 0
    %608 = vmatmul.mubr.bf16.gmra.mxu0 %v420
    %v609 = vpop.f32.mrf.mxu0
    %v610 = vadd.f32 %v208, %v609
    %v611 = vpop.f32.mrf.mxu0
    %v612 = vpop.f32.mrf.mxu0
    %v613 = vadd.f32 %v208, %v612
    %v614 = vpop.f32.mrf.mxu0
    %615 = vmatprep.mubr.bf16.mxu0 0
    %616 = vmatmul.mubr.bf16.gmra.mxu0 %v423
    %v617 = vpop.f32.mrf.mxu0
    %v618 = vadd.f32 %v208, %v617
    %v619 = vpop.f32.mrf.mxu0
    %v620 = vpop.f32.mrf.mxu0
    %v621 = vadd.f32 %v208, %v620
    %v622 = vpop.f32.mrf.mxu0
    %623 = vmatprep.mubr.bf16.mxu0 0
    %624 = vmatmul.mubr.bf16.gmra.mxu0 %v426
    %v625 = vpop.f32.mrf.mxu0
    %v626 = vadd.f32 %v208, %v625
    %v627 = vpop.f32.mrf.mxu0
    %v628 = vpop.f32.mrf.mxu0
    %v629 = vadd.f32 %v208, %v628
    %v630 = vpop.f32.mrf.mxu0
    %631 = vmatprep.mubr.bf16.mxu0 0
    %632 = vmatmul.mubr.bf16.gmra.mxu0 %v429
    %v633 = vpop.f32.mrf.mxu0
    %v634 = vadd.f32 %v208, %v633
    %v635 = vpop.f32.mrf.mxu0
    %v636 = vpop.f32.mrf.mxu0
    %v637 = vadd.f32 %v208, %v636
    %v638 = vpop.f32.mrf.mxu0
    %639 = vmatprep.mubr.bf16.mxu0 0
    %640 = vmatmul.mubr.bf16.gmra.mxu0 %v432
    %v641 = vpop.f32.mrf.mxu0
    %v642 = vadd.f32 %v208, %v641
    %v643 = vpop.f32.mrf.mxu0
    %v644 = vpop.f32.mrf.mxu0
    %v645 = vadd.f32 %v208, %v644
    %v646 = vpop.f32.mrf.mxu0
    %647 = vmatprep.mubr.bf16.mxu0 0
    %648 = vmatmul.mubr.bf16.gmra.mxu0 %v435
    %v649 = vpop.f32.mrf.mxu0
    %v650 = vadd.f32 %v208, %v649
    %v651 = vpop.f32.mrf.mxu0
    %v652 = vpop.f32.mrf.mxu0
    %v653 = vadd.f32 %v208, %v652
    %v654 = vpop.f32.mrf.mxu0
    %655 = vmatprep.mubr.bf16.mxu0 0
    %656 = vmatmul.mubr.bf16.gmra.mxu0 %v438
    %v657 = vpop.f32.mrf.mxu0
    %v658 = vadd.f32 %v208, %v657
    %v659 = vpop.f32.mrf.mxu0
    %v660 = vpop.f32.mrf.mxu0
    %v661 = vadd.f32 %v208, %v660
    %v662 = vpop.f32.mrf.mxu0
    %663 = vmatprep.mubr.bf16.mxu0 0
    %664 = vmatmul.mubr.bf16.gmra.mxu0 %v441
    %v665 = vpop.f32.mrf.mxu0
    %v666 = vadd.f32 %v208, %v665
    %v667 = vpop.f32.mrf.mxu0
    %v668 = vpop.f32.mrf.mxu0
    %v669 = vadd.f32 %v208, %v668
    %v670 = vpop.f32.mrf.mxu0
    %671 = vmatprep.mubr.bf16.mxu0 0
    %672 = vmatmul.mubr.bf16.gmra.mxu0 %v444
    %v673 = vpop.f32.mrf.mxu0
    %v674 = vadd.f32 %v208, %v673
    %v675 = vpop.f32.mrf.mxu0
    %v676 = vpop.f32.mrf.mxu0
    %v677 = vadd.f32 %v208, %v676
    %v678 = vpop.f32.mrf.mxu0
    %679 = vmatprep.mubr.bf16.mxu0 0
    %680 = vmatmul.mubr.bf16.gmra.mxu0 %v447
    %v681 = vpop.f32.mrf.mxu0
    %v682 = vadd.f32 %v208, %v681
    %v683 = vpop.f32.mrf.mxu0
    %v684 = vpop.f32.mrf.mxu0
    %v685 = vadd.f32 %v208, %v684
    %v686 = vpop.f32.mrf.mxu0
    %687 = vmatprep.mubr.bf16.mxu0 0
    %688 = vmatmul.mubr.bf16.gmra.mxu0 %v450
    %v689 = vpop.f32.mrf.mxu0
    %v690 = vadd.f32 %v208, %v689
    %v691 = vpop.f32.mrf.mxu0
    %v692 = vpop.f32.mrf.mxu0
    %v693 = vadd.f32 %v208, %v692
    %v694 = vpop.f32.mrf.mxu0
    %695 = vmatprep.mubr.bf16.mxu0 0
    %696 = vmatmul.mubr.bf16.gmra.mxu0 %v453
    %v697 = vpop.f32.mrf.mxu0
    %v698 = vadd.f32 %v208, %v697
    %v699 = vpop.f32.mrf.mxu0
    %v700 = vpop.f32.mrf.mxu0
    %v701 = vadd.f32 %v208, %v700
    %v702 = vpop.f32.mrf.mxu0
    %703 = vmatprep.mubr.bf16.mxu0 0
    %704 = vmatmul.mubr.bf16.gmra.mxu0 %v456
    %v705 = vpop.f32.mrf.mxu0
    %v706 = vadd.f32 %v208, %v705
    %v707 = vpop.f32.mrf.mxu0
    %v708 = vpop.f32.mrf.mxu0
    %v709 = vadd.f32 %v208, %v708
    %v710 = vpop.f32.mrf.mxu0
    %711 = vmatprep.mubr.bf16.mxu0 0
    %712 = vmatmul.mubr.bf16.gmra.mxu0 %v459
    %v713 = vpop.f32.mrf.mxu0
    %v714 = vadd.f32 %v208, %v713
    %v715 = vpop.f32.mrf.mxu0
    %v716 = vpop.f32.mrf.mxu0
    %v717 = vadd.f32 %v208, %v716
    %v718 = vpop.f32.mrf.mxu0
    %719 = vmatprep.mubr.bf16.mxu0 0
    %720 = vmatmul.mubr.bf16.gmra.mxu0 %v462
    %v721 = vpop.f32.mrf.mxu0
    %v722 = vadd.f32 %v208, %v721
    %v723 = vpop.f32.mrf.mxu0
    %v724 = vpop.f32.mrf.mxu0
    %v725 = vadd.f32 %v208, %v724
    %v726 = vpop.f32.mrf.mxu0
    %727 = vmatprep.mubr.bf16.mxu0 0
    %728 = vmatmul.mubr.bf16.gmra.mxu0 %v465
    %v729 = vpop.f32.mrf.mxu0
    %v730 = vadd.f32 %v208, %v729
    %v731 = vpop.f32.mrf.mxu0
    %v732 = vpop.f32.mrf.mxu0
    %v733 = vadd.f32 %v208, %v732
    %v734 = vpop.f32.mrf.mxu0
    %735 = vmatprep.mubr.bf16.mxu0 0
    %736 = vmatmul.mubr.bf16.gmra.mxu0 %v468
    %v737 = vpop.f32.mrf.mxu0
    %v738 = vadd.f32 %v208, %v737
    %v739 = vpop.f32.mrf.mxu0
    %v740 = vpop.f32.mrf.mxu0
    %v741 = vadd.f32 %v208, %v740
    %v742 = vpop.f32.mrf.mxu0
    %743 = vmatprep.mubr.bf16.mxu0 0
    %744 = vmatmul.mubr.bf16.gmra.mxu0 %v471
    %v745 = vpop.f32.mrf.mxu0
    %v746 = vadd.f32 %v208, %v745
    %v747 = vpop.f32.mrf.mxu0
    %v748 = vpop.f32.mrf.mxu0
    %v749 = vadd.f32 %v208, %v748
    %v750 = vpop.f32.mrf.mxu0
    %751 = vmatprep.mubr.bf16.mxu0 0
    %752 = vmatmul.mubr.bf16.gmra.mxu0 %v474
    %v753 = vpop.f32.mrf.mxu0
    %v754 = vadd.f32 %v208, %v753
    %v755 = vpop.f32.mrf.mxu0
    %v756 = vpop.f32.mrf.mxu0
    %v757 = vadd.f32 %v208, %v756
    %v758 = vpop.f32.mrf.mxu0
    %759 = vmatprep.mubr.bf16.mxu0 0
    %760 = vmatmul.mubr.bf16.gmra.mxu0 %v477
    %v761 = vpop.f32.mrf.mxu0
    %v762 = vadd.f32 %v208, %v761
    %v763 = vpop.f32.mrf.mxu0
    %v764 = vpop.f32.mrf.mxu0
    %v765 = vadd.f32 %v208, %v764
    %v766 = vpop.f32.mrf.mxu0
    %767 = vdwg.mxu0
    %v768 = vmax.f32 %v514, 0.0
    %v769 = vmax.f32 %v517, 0.0
    %v770 = vmax.f32 %v522, 0.0
    %v771 = vmax.f32 %v525, 0.0
    %v772 = vmax.f32 %v530, 0.0
    %v773 = vmax.f32 %v533, 0.0
    %v774 = vmax.f32 %v538, 0.0
    %v775 = vmax.f32 %v541, 0.0
    %v776 = vmax.f32 %v546, 0.0
    %v777 = vmax.f32 %v549, 0.0
    %v778 = vmax.f32 %v554, 0.0
    %v779 = vmax.f32 %v557, 0.0
    %v780 = vmax.f32 %v562, 0.0
    %v781 = vmax.f32 %v565, 0.0
    %v782 = vmax.f32 %v570, 0.0
    %v783 = vmax.f32 %v573, 0.0
    %v784 = vmax.f32 %v578, 0.0
    %v785 = vmax.f32 %v581, 0.0
    %v786 = vmax.f32 %v586, 0.0
    %v787 = vmax.f32 %v589, 0.0
    %v788 = vmax.f32 %v594, 0.0
    %v789 = vmax.f32 %v597, 0.0
    %v790 = vmax.f32 %v602, 0.0
    %v791 = vmax.f32 %v605, 0.0
    %v792 = vmax.f32 %v610, 0.0
    %v793 = vmax.f32 %v613, 0.0
    %v794 = vmax.f32 %v618, 0.0
    %v795 = vmax.f32 %v621, 0.0
    %v796 = vmax.f32 %v626, 0.0
    %v797 = vmax.f32 %v629, 0.0
    %v798 = vmax.f32 %v634, 0.0
    %v799 = vmax.f32 %v637, 0.0
    %v800 = vmax.f32 %v642, 0.0
    %v801 = vmax.f32 %v645, 0.0
    %v802 = vmax.f32 %v650, 0.0
    %v803 = vmax.f32 %v653, 0.0
    %v804 = vmax.f32 %v658, 0.0
    %v805 = vmax.f32 %v661, 0.0
    %v806 = vmax.f32 %v666, 0.0
    %v807 = vmax.f32 %v669, 0.0
    %v808 = vmax.f32 %v674, 0.0
    %v809 = vmax.f32 %v677, 0.0
    %v810 = vmax.f32 %v682, 0.0
    %v811 = vmax.f32 %v685, 0.0
    %v812 = vmax.f32 %v690, 0.0
    %v813 = vmax.f32 %v693, 0.0
    %v814 = vmax.f32 %v698, 0.0
    %v815 = vmax.f32 %v701, 0.0
    %v816 = vmax.f32 %v706, 0.0
    %v817 = vmax.f32 %v709, 0.0
    %v818 = vmax.f32 %v714, 0.0
    %v819 = vmax.f32 %v717, 0.0
    %v820 = vmax.f32 %v722, 0.0
    %v821 = vmax.f32 %v725, 0.0
    %v822 = vmax.f32 %v730, 0.0
    %v823 = vmax.f32 %v733, 0.0
    %v824 = vmax.f32 %v738, 0.0
    %v825 = vmax.f32 %v741, 0.0
    %v826 = vmax.f32 %v746, 0.0
    %v827 = vmax.f32 %v749, 0.0
    %v828 = vmax.f32 %v754, 0.0
    %v829 = vmax.f32 %v757, 0.0
    %v830 = vmax.f32 %v762, 0.0
    %v831 = vmax.f32 %v765, 0.0
    %832 = vst.msk [vmem:[%s68 + $0x2] sm:$0xff] %vm42, %v768
    %833 = vst.msk [vmem:[%s68 + $0xa] sm:$0xff] %vm42, %v769
    %834 = vst.msk [vmem:[%s68 + $0x1a] sm:$0xff] %vm42, %v770
    %835 = vst.msk [vmem:[%s68 + $0x22] sm:$0xff] %vm42, %v771
    %836 = vst.msk [vmem:[%s68 + $0x32] sm:$0xff] %vm42, %v772
    %837 = vst.msk [vmem:[%s68 + $0x3a] sm:$0xff] %vm42, %v773
    %838 = vst.msk [vmem:[%s68 + $0x4a] sm:$0xff] %vm42, %v774
    %839 = vst.msk [vmem:[%s68 + $0x52] sm:$0xff] %vm42, %v775
    %840 = vst.msk [vmem:[%s68 + $0x62] sm:$0xff] %vm42, %v776
    %841 = vst.msk [vmem:[%s68 + $0x6a] sm:$0xff] %vm42, %v777
    %842 = vst.msk [vmem:[%s68 + $0x7a] sm:$0xff] %vm42, %v778
    %843 = vst.msk [vmem:[%s68 + $0x82] sm:$0xff] %vm42, %v779
    %844 = vst.msk [vmem:[%s68 + $0x92] sm:$0xff] %vm42, %v780
    %845 = vst.msk [vmem:[%s68 + $0x9a] sm:$0xff] %vm42, %v781
    %846 = vst.msk [vmem:[%s68 + $0xaa] sm:$0xff] %vm42, %v782
    %847 = vst.msk [vmem:[%s68 + $0xb2] sm:$0xff] %vm42, %v783
    %848 = vst.msk [vmem:[%s68 + $0xc2] sm:$0xff] %vm42, %v784
    %849 = vst.msk [vmem:[%s68 + $0xca] sm:$0xff] %vm42, %v785
    %850 = vst.msk [vmem:[%s68 + $0xda] sm:$0xff] %vm42, %v786
    %851 = vst.msk [vmem:[%s68 + $0xe2] sm:$0xff] %vm42, %v787
    %852 = vst.msk [vmem:[%s68 + $0xf2] sm:$0xff] %vm42, %v788
    %853 = vst.msk [vmem:[%s68 + $0xfa] sm:$0xff] %vm42, %v789
    %854 = vst.msk [vmem:[%s68 + $0x10a] sm:$0xff] %vm42, %v790
    %855 = vst.msk [vmem:[%s68 + $0x112] sm:$0xff] %vm42, %v791
    %856 = vst.msk [vmem:[%s68 + $0x122] sm:$0xff] %vm42, %v792
    %857 = vst.msk [vmem:[%s68 + $0x12a] sm:$0xff] %vm42, %v793
    %858 = vst.msk [vmem:[%s68 + $0x13a] sm:$0xff] %vm42, %v794
    %859 = vst.msk [vmem:[%s68 + $0x142] sm:$0xff] %vm42, %v795
    %860 = vst.msk [vmem:[%s68 + $0x152] sm:$0xff] %vm42, %v796
    %861 = vst.msk [vmem:[%s68 + $0x15a] sm:$0xff] %vm42, %v797
    %862 = vst.msk [vmem:[%s68 + $0x16a] sm:$0xff] %vm42, %v798
    %863 = vst.msk [vmem:[%s68 + $0x172] sm:$0xff] %vm42, %v799
    %864 = vst.msk [vmem:[%s68 + $0x182] sm:$0xff] %vm42, %v800
    %865 = vst.msk [vmem:[%s68 + $0x18a] sm:$0xff] %vm42, %v801
    %866 = vst.msk [vmem:[%s68 + $0x19a] sm:$0xff] %vm42, %v802
    %867 = vst.msk [vmem:[%s68 + $0x1a2] sm:$0xff] %vm42, %v803
    %868 = vst.msk [vmem:[%s68 + $0x1b2] sm:$0xff] %vm42, %v804
    %869 = vst.msk [vmem:[%s68 + $0x1ba] sm:$0xff] %vm42, %v805
    %870 = vst.msk [vmem:[%s68 + $0x1ca] sm:$0xff] %vm42, %v806
    %871 = vst.msk [vmem:[%s68 + $0x1d2] sm:$0xff] %vm42, %v807
    %872 = vst.msk [vmem:[%s68 + $0x1e2] sm:$0xff] %vm42, %v808
    %873 = vst.msk [vmem:[%s68 + $0x1ea] sm:$0xff] %vm42, %v809
    %874 = vst.msk [vmem:[%s68 + $0x1fa] sm:$0xff] %vm42, %v810
    %875 = vst.msk [vmem:[%s68 + $0x202] sm:$0xff] %vm42, %v811
    %876 = vst.msk [vmem:[%s68 + $0x212] sm:$0xff] %vm42, %v812
    %877 = vst.msk [vmem:[%s68 + $0x21a] sm:$0xff] %vm42, %v813
    %878 = vst.msk [vmem:[%s68 + $0x22a] sm:$0xff] %vm42, %v814
    %879 = vst.msk [vmem:[%s68 + $0x232] sm:$0xff] %vm42, %v815
    %880 = vst.msk [vmem:[%s68 + $0x242] sm:$0xff] %vm42, %v816
    %881 = vst.msk [vmem:[%s68 + $0x24a] sm:$0xff] %vm42, %v817
    %882 = vst.msk [vmem:[%s68 + $0x25a] sm:$0xff] %vm42, %v818
    %883 = vst.msk [vmem:[%s68 + $0x262] sm:$0xff] %vm42, %v819
    %884 = vst.msk [vmem:[%s68 + $0x272] sm:$0xff] %vm42, %v820
    %885 = vst.msk [vmem:[%s68 + $0x27a] sm:$0xff] %vm42, %v821
    %886 = vst.msk [vmem:[%s68 + $0x28a] sm:$0xff] %vm42, %v822
    %887 = vst.msk [vmem:[%s68 + $0x292] sm:$0xff] %vm42, %v823
    %888 = vst.msk [vmem:[%s68 + $0x2a2] sm:$0xff] %vm42, %v824
    %889 = vst.msk [vmem:[%s68 + $0x2aa] sm:$0xff] %vm42, %v825
    %890 = vst.msk [vmem:[%s68 + $0x2ba] sm:$0xff] %vm42, %v826
    %891 = vst.msk [vmem:[%s68 + $0x2c2] sm:$0xff] %vm42, %v827
    %892 = vst.msk [vmem:[%s68 + $0x2d2] sm:$0xff] %vm42, %v828
    %893 = vst.msk [vmem:[%s68 + $0x2da] sm:$0xff] %vm42, %v829
    %894 = vst.msk [vmem:[%s68 + $0x2ea] sm:$0xff] %vm42, %v830
    %895 = vst.msk [vmem:[%s68 + $0x2f2] sm:$0xff] %vm42, %v831
    %v896 = vld [vmem:[#allocation2] sm:$0xff]
    %v897 = vld [vmem:[#allocation2 + $0x8] sm:$0xff]
    %v898 = vld [vmem:[#allocation2 + $0x18] sm:$0xff]
    %v899 = vld [vmem:[#allocation2 + $0x20] sm:$0xff]
    %v900 = vld [vmem:[#allocation2 + $0x30] sm:$0xff]
    %v901 = vld [vmem:[#allocation2 + $0x38] sm:$0xff]
    %v902 = vld [vmem:[#allocation2 + $0x48] sm:$0xff]
    %v903 = vld [vmem:[#allocation2 + $0x50] sm:$0xff]
    %v904 = vld [vmem:[#allocation2 + $0x60] sm:$0xff]
    %v905 = vld [vmem:[#allocation2 + $0x68] sm:$0xff]
    %v906 = vld [vmem:[#allocation2 + $0x78] sm:$0xff]
    %v907 = vld [vmem:[#allocation2 + $0x80] sm:$0xff]
    %v908 = vld [vmem:[#allocation2 + $0x90] sm:$0xff]
    %v909 = vld [vmem:[#allocation2 + $0x98] sm:$0xff]
    %v910 = vld [vmem:[#allocation2 + $0xa8] sm:$0xff]
    %v911 = vld [vmem:[#allocation2 + $0xb0] sm:$0xff]
    %v912 = vld [vmem:[#allocation2 + $0xc0] sm:$0xff]
    %v913 = vld [vmem:[#allocation2 + $0xc8] sm:$0xff]
    %v914 = vld [vmem:[#allocation2 + $0xd8] sm:$0xff]
    %v915 = vld [vmem:[#allocation2 + $0xe0] sm:$0xff]
    %v916 = vld [vmem:[#allocation2 + $0xf0] sm:$0xff]
    %v917 = vld [vmem:[#allocation2 + $0xf8] sm:$0xff]
    %v918 = vld [vmem:[#allocation2 + $0x108] sm:$0xff]
    %v919 = vld [vmem:[#allocation2 + $0x110] sm:$0xff]
    %v920 = vld [vmem:[#allocation2 + $0x120] sm:$0xff]
    %v921 = vld [vmem:[#allocation2 + $0x128] sm:$0xff]
    %v922 = vld [vmem:[#allocation2 + $0x138] sm:$0xff]
    %v923 = vld [vmem:[#allocation2 + $0x140] sm:$0xff]
    %v924 = vld [vmem:[#allocation2 + $0x150] sm:$0xff]
    %v925 = vld [vmem:[#allocation2 + $0x158] sm:$0xff]
    %v926 = vld [vmem:[#allocation2 + $0x168] sm:$0xff]
    %v927 = vld [vmem:[#allocation2 + $0x170] sm:$0xff]
    %v928 = vld [vmem:[#allocation2 + $0x180] sm:$0xff]
    %v929 = vld [vmem:[#allocation2 + $0x188] sm:$0xff]
    %v930 = vld [vmem:[#allocation2 + $0x198] sm:$0xff]
    %v931 = vld [vmem:[#allocation2 + $0x1a0] sm:$0xff]
    %v932 = vld [vmem:[#allocation2 + $0x1b0] sm:$0xff]
    %v933 = vld [vmem:[#allocation2 + $0x1b8] sm:$0xff]
    %v934 = vld [vmem:[#allocation2 + $0x1c8] sm:$0xff]
    %v935 = vld [vmem:[#allocation2 + $0x1d0] sm:$0xff]
    %v936 = vld [vmem:[#allocation2 + $0x1e0] sm:$0xff]
    %v937 = vld [vmem:[#allocation2 + $0x1e8] sm:$0xff]
    %v938 = vld [vmem:[#allocation2 + $0x1f8] sm:$0xff]
    %v939 = vld [vmem:[#allocation2 + $0x200] sm:$0xff]
    %v940 = vld [vmem:[#allocation2 + $0x210] sm:$0xff]
    %v941 = vld [vmem:[#allocation2 + $0x218] sm:$0xff]
    %v942 = vld [vmem:[#allocation2 + $0x228] sm:$0xff]
    %v943 = vld [vmem:[#allocation2 + $0x230] sm:$0xff]
    %v944 = vld [vmem:[#allocation2 + $0x240] sm:$0xff]
    %v945 = vld [vmem:[#allocation2 + $0x248] sm:$0xff]
    %v946 = vld [vmem:[#allocation2 + $0x258] sm:$0xff]
    %v947 = vld [vmem:[#allocation2 + $0x260] sm:$0xff]
    %v948 = vld [vmem:[#allocation2 + $0x270] sm:$0xff]
    %v949 = vld [vmem:[#allocation2 + $0x278] sm:$0xff]
    %v950 = vld [vmem:[#allocation2 + $0x288] sm:$0xff]
    %v951 = vld [vmem:[#allocation2 + $0x290] sm:$0xff]
    %v952 = vld [vmem:[#allocation2 + $0x2a0] sm:$0xff]
    %v953 = vld [vmem:[#allocation2 + $0x2a8] sm:$0xff]
    %v954 = vld [vmem:[#allocation2 + $0x2b8] sm:$0xff]
    %v955 = vld [vmem:[#allocation2 + $0x2c0] sm:$0xff]
    %v956 = vld [vmem:[#allocation2 + $0x2d0] sm:$0xff]
    %v957 = vld [vmem:[#allocation2 + $0x2d8] sm:$0xff]
    %v958 = vld [vmem:[#allocation2 + $0x2e8] sm:$0xff]
    %v959 = vld [vmem:[#allocation2 + $0x2f0] sm:$0xff]
    %v960 = vld [vmem:[#allocation2 + $0x300] sm:$0xff]
    %v961 = vld [vmem:[#allocation2 + $0x308] sm:$0xff]
    %v962 = vld [vmem:[#allocation2 + $0x318] sm:$0xff]
    %v963 = vld [vmem:[#allocation2 + $0x320] sm:$0xff]
    %v964 = vld [vmem:[#allocation2 + $0x330] sm:$0xff]
    %v965 = vld [vmem:[#allocation2 + $0x338] sm:$0xff]
    %v966 = vld [vmem:[#allocation2 + $0x348] sm:$0xff]
    %v967 = vld [vmem:[#allocation2 + $0x350] sm:$0xff]
    %v968 = vld [vmem:[#allocation2 + $0x360] sm:$0xff]
    %v969 = vld [vmem:[#allocation2 + $0x368] sm:$0xff]
    %v970 = vld [vmem:[#allocation2 + $0x378] sm:$0xff]
    %v971 = vld [vmem:[#allocation2 + $0x380] sm:$0xff]
    %v972 = vld [vmem:[#allocation2 + $0x390] sm:$0xff]
    %v973 = vld [vmem:[#allocation2 + $0x398] sm:$0xff]
    %v974 = vld [vmem:[#allocation2 + $0x3a8] sm:$0xff]
    %v975 = vld [vmem:[#allocation2 + $0x3b0] sm:$0xff]
    %v976 = vpack.c.bf16 %v897, %v896
    %v977 = vpack.c.bf16 %v899, %v898
    %v978 = vpack.c.bf16 %v901, %v900
    %v979 = vpack.c.bf16 %v903, %v902
    %v980 = vpack.c.bf16 %v905, %v904
    %v981 = vpack.c.bf16 %v907, %v906
    %v982 = vpack.c.bf16 %v909, %v908
    %v983 = vpack.c.bf16 %v911, %v910
    %v984 = vpack.c.bf16 %v913, %v912
    %v985 = vpack.c.bf16 %v915, %v914
    %v986 = vpack.c.bf16 %v917, %v916
    %v987 = vpack.c.bf16 %v919, %v918
    %v988 = vpack.c.bf16 %v921, %v920
    %v989 = vpack.c.bf16 %v923, %v922
    %v990 = vpack.c.bf16 %v925, %v924
    %v991 = vpack.c.bf16 %v927, %v926
    %v992 = vpack.c.bf16 %v929, %v928
    %v993 = vpack.c.bf16 %v931, %v930
    %v994 = vpack.c.bf16 %v933, %v932
    %v995 = vpack.c.bf16 %v935, %v934
    %v996 = vpack.c.bf16 %v937, %v936
    %v997 = vpack.c.bf16 %v939, %v938
    %v998 = vpack.c.bf16 %v941, %v940
    %v999 = vpack.c.bf16 %v943, %v942
    %v1000 = vpack.c.bf16 %v945, %v944
    %v1001 = vpack.c.bf16 %v947, %v946
    %v1002 = vpack.c.bf16 %v949, %v948
    %v1003 = vpack.c.bf16 %v951, %v950
    %v1004 = vpack.c.bf16 %v953, %v952
    %v1005 = vpack.c.bf16 %v955, %v954
    %v1006 = vpack.c.bf16 %v957, %v956
    %v1007 = vpack.c.bf16 %v959, %v958
    %v1008 = vpack.c.bf16 %v961, %v960
    %v1009 = vpack.c.bf16 %v963, %v962
    %v1010 = vpack.c.bf16 %v965, %v964
    %v1011 = vpack.c.bf16 %v967, %v966
    %v1012 = vpack.c.bf16 %v969, %v968
    %v1013 = vpack.c.bf16 %v971, %v970
    %v1014 = vpack.c.bf16 %v973, %v972
    %v1015 = vpack.c.bf16 %v975, %v974
    %v1056 = vunpack.c.l.b16 %v976
    %v1057 = vunpack.c.h.b16 %v976
    %v1058 = vunpack.c.l.b16 %v977
    %v1059 = vunpack.c.h.b16 %v977
    %v1060 = vunpack.c.l.b16 %v978
    %v1061 = vunpack.c.h.b16 %v978
    %v1062 = vunpack.c.l.b16 %v979
    %v1063 = vunpack.c.h.b16 %v979
    %v1064 = vunpack.c.l.b16 %v980
    %v1065 = vunpack.c.h.b16 %v980
    %v1066 = vunpack.c.l.b16 %v981
    %v1067 = vunpack.c.h.b16 %v981
    %v1068 = vunpack.c.l.b16 %v982
    %v1069 = vunpack.c.h.b16 %v982
    %v1070 = vunpack.c.l.b16 %v983
    %v1071 = vunpack.c.h.b16 %v983
    %v1072 = vunpack.c.l.b16 %v984
    %v1073 = vunpack.c.h.b16 %v984
    %v1074 = vunpack.c.l.b16 %v985
    %v1075 = vunpack.c.h.b16 %v985
    %v1076 = vunpack.c.l.b16 %v986
    %v1077 = vunpack.c.h.b16 %v986
    %v1078 = vunpack.c.l.b16 %v987
    %v1079 = vunpack.c.h.b16 %v987
    %v1080 = vunpack.c.l.b16 %v988
    %v1081 = vunpack.c.h.b16 %v988
    %v1082 = vunpack.c.l.b16 %v989
    %v1083 = vunpack.c.h.b16 %v989
    %v1084 = vunpack.c.l.b16 %v990
    %v1085 = vunpack.c.h.b16 %v990
    %v1086 = vunpack.c.l.b16 %v991
    %v1087 = vunpack.c.h.b16 %v991
    %v1088 = vunpack.c.l.b16 %v992
    %v1089 = vunpack.c.h.b16 %v992
    %v1090 = vunpack.c.l.b16 %v993
    %v1091 = vunpack.c.h.b16 %v993
    %v1092 = vunpack.c.l.b16 %v994
    %v1093 = vunpack.c.h.b16 %v994
    %v1094 = vunpack.c.l.b16 %v995
    %v1095 = vunpack.c.h.b16 %v995
    %v1096 = vunpack.c.l.b16 %v996
    %v1097 = vunpack.c.h.b16 %v996
    %v1098 = vunpack.c.l.b16 %v997
    %v1099 = vunpack.c.h.b16 %v997
    %v1100 = vunpack.c.l.b16 %v998
    %v1101 = vunpack.c.h.b16 %v998
    %v1102 = vunpack.c.l.b16 %v999
    %v1103 = vunpack.c.h.b16 %v999
    %v1104 = vunpack.c.l.b16 %v1000
    %v1105 = vunpack.c.h.b16 %v1000
    %v1106 = vunpack.c.l.b16 %v1001
    %v1107 = vunpack.c.h.b16 %v1001
    %v1108 = vunpack.c.l.b16 %v1002
    %v1109 = vunpack.c.h.b16 %v1002
    %v1110 = vunpack.c.l.b16 %v1003
    %v1111 = vunpack.c.h.b16 %v1003
    %v1112 = vunpack.c.l.b16 %v1004
    %v1113 = vunpack.c.h.b16 %v1004
    %v1114 = vunpack.c.l.b16 %v1005
    %v1115 = vunpack.c.h.b16 %v1005
    %v1116 = vunpack.c.l.b16 %v1006
    %v1117 = vunpack.c.h.b16 %v1006
    %v1118 = vunpack.c.l.b16 %v1007
    %v1119 = vunpack.c.h.b16 %v1007
    %v1120 = vunpack.c.l.b16 %v1008
    %v1121 = vunpack.c.h.b16 %v1008
    %v1122 = vunpack.c.l.b16 %v1009
    %v1123 = vunpack.c.h.b16 %v1009
    %v1124 = vunpack.c.l.b16 %v1010
    %v1125 = vunpack.c.h.b16 %v1010
    %v1126 = vunpack.c.l.b16 %v1011
    %v1127 = vunpack.c.h.b16 %v1011
    %v1128 = vunpack.c.l.b16 %v1012
    %v1129 = vunpack.c.h.b16 %v1012
    %v1130 = vunpack.c.l.b16 %v1013
    %v1131 = vunpack.c.h.b16 %v1013
    %v1132 = vunpack.c.l.b16 %v1014
    %v1133 = vunpack.c.h.b16 %v1014
    %v1134 = vunpack.c.l.b16 %v1015
    %v1135 = vunpack.c.h.b16 %v1015
    %v1136 = vpack.c.b16 %v1056, %v1056
    %v1137 = vpack.c.b16 %v1057, %v1057
    %v1138 = vpack.c.b16 %v1058, %v1058
    %v1139 = vpack.c.b16 %v1059, %v1059
    %v1140 = vpack.c.b16 %v1060, %v1060
    %v1141 = vpack.c.b16 %v1061, %v1061
    %v1142 = vpack.c.b16 %v1062, %v1062
    %v1143 = vpack.c.b16 %v1063, %v1063
    %v1144 = vpack.c.b16 %v1064, %v1064
    %v1145 = vpack.c.b16 %v1065, %v1065
    %v1146 = vpack.c.b16 %v1066, %v1066
    %v1147 = vpack.c.b16 %v1067, %v1067
    %v1148 = vpack.c.b16 %v1068, %v1068
    %v1149 = vpack.c.b16 %v1069, %v1069
    %v1150 = vpack.c.b16 %v1070, %v1070
    %v1151 = vpack.c.b16 %v1071, %v1071
    %v1152 = vpack.c.b16 %v1072, %v1072
    %v1153 = vpack.c.b16 %v1073, %v1073
    %v1154 = vpack.c.b16 %v1074, %v1074
    %v1155 = vpack.c.b16 %v1075, %v1075
    %v1156 = vpack.c.b16 %v1076, %v1076
    %v1157 = vpack.c.b16 %v1077, %v1077
    %v1158 = vpack.c.b16 %v1078, %v1078
    %v1159 = vpack.c.b16 %v1079, %v1079
    %v1160 = vpack.c.b16 %v1080, %v1080
    %v1161 = vpack.c.b16 %v1081, %v1081
    %v1162 = vpack.c.b16 %v1082, %v1082
    %v1163 = vpack.c.b16 %v1083, %v1083
    %v1164 = vpack.c.b16 %v1084, %v1084
    %v1165 = vpack.c.b16 %v1085, %v1085
    %v1166 = vpack.c.b16 %v1086, %v1086
    %v1167 = vpack.c.b16 %v1087, %v1087
    %v1168 = vpack.c.b16 %v1088, %v1088
    %v1169 = vpack.c.b16 %v1089, %v1089
    %v1170 = vpack.c.b16 %v1090, %v1090
    %v1171 = vpack.c.b16 %v1091, %v1091
    %v1172 = vpack.c.b16 %v1092, %v1092
    %v1173 = vpack.c.b16 %v1093, %v1093
    %v1174 = vpack.c.b16 %v1094, %v1094
    %v1175 = vpack.c.b16 %v1095, %v1095
    %v1176 = vpack.c.b16 %v1096, %v1096
    %v1177 = vpack.c.b16 %v1097, %v1097
    %v1178 = vpack.c.b16 %v1098, %v1098
    %v1179 = vpack.c.b16 %v1099, %v1099
    %v1180 = vpack.c.b16 %v1100, %v1100
    %v1181 = vpack.c.b16 %v1101, %v1101
    %v1182 = vpack.c.b16 %v1102, %v1102
    %v1183 = vpack.c.b16 %v1103, %v1103
    %v1184 = vpack.c.b16 %v1104, %v1104
    %v1185 = vpack.c.b16 %v1105, %v1105
    %v1186 = vpack.c.b16 %v1106, %v1106
    %v1187 = vpack.c.b16 %v1107, %v1107
    %v1188 = vpack.c.b16 %v1108, %v1108
    %v1189 = vpack.c.b16 %v1109, %v1109
    %v1190 = vpack.c.b16 %v1110, %v1110
    %v1191 = vpack.c.b16 %v1111, %v1111
    %v1192 = vpack.c.b16 %v1112, %v1112
    %v1193 = vpack.c.b16 %v1113, %v1113
    %v1194 = vpack.c.b16 %v1114, %v1114
    %v1195 = vpack.c.b16 %v1115, %v1115
    %v1196 = vpack.c.b16 %v1116, %v1116
    %v1197 = vpack.c.b16 %v1117, %v1117
    %v1198 = vpack.c.b16 %v1118, %v1118
    %v1199 = vpack.c.b16 %v1119, %v1119
    %v1200 = vpack.c.b16 %v1120, %v1120
    %v1201 = vpack.c.b16 %v1121, %v1121
    %v1202 = vpack.c.b16 %v1122, %v1122
    %v1203 = vpack.c.b16 %v1123, %v1123
    %v1204 = vpack.c.b16 %v1124, %v1124
    %v1205 = vpack.c.b16 %v1125, %v1125
    %v1206 = vpack.c.b16 %v1126, %v1126
    %v1207 = vpack.c.b16 %v1127, %v1127
    %v1208 = vpack.c.b16 %v1128, %v1128
    %v1209 = vpack.c.b16 %v1129, %v1129
    %v1210 = vpack.c.b16 %v1130, %v1130
    %v1211 = vpack.c.b16 %v1131, %v1131
    %v1212 = vpack.c.b16 %v1132, %v1132
    %v1213 = vpack.c.b16 %v1133, %v1133
    %v1214 = vpack.c.b16 %v1134, %v1134
    %v1215 = vpack.c.b16 %v1135, %v1135
    %vm1296 = vcmask 519168
    %1297 = vst.msk [vmem:[#allocation3] sm:$0xf] %vm1296, %v1136
    %1298 = vst.msk [vmem:[#allocation3 + $0xc] sm:$0xf] %vm1296, %v1137
    %1299 = vst.msk [vmem:[#allocation3 + $0x18] sm:$0xf] %vm1296, %v1138
    %1300 = vst.msk [vmem:[#allocation3 + $0x24] sm:$0xf] %vm1296, %v1139
    %1301 = vst.msk [vmem:[#allocation3 + $0x30] sm:$0xf] %vm1296, %v1140
    %1302 = vst.msk [vmem:[#allocation3 + $0x3c] sm:$0xf] %vm1296, %v1141
    %1303 = vst.msk [vmem:[#allocation3 + $0x48] sm:$0xf] %vm1296, %v1142
    %1304 = vst.msk [vmem:[#allocation3 + $0x54] sm:$0xf] %vm1296, %v1143
    %1305 = vst.msk [vmem:[#allocation3 + $0x60] sm:$0xf] %vm1296, %v1144
    %1306 = vst.msk [vmem:[#allocation3 + $0x6c] sm:$0xf] %vm1296, %v1145
    %1307 = vst.msk [vmem:[#allocation3 + $0x78] sm:$0xf] %vm1296, %v1146
    %1308 = vst.msk [vmem:[#allocation3 + $0x84] sm:$0xf] %vm1296, %v1147
    %1309 = vst.msk [vmem:[#allocation3 + $0x90] sm:$0xf] %vm1296, %v1148
    %1310 = vst.msk [vmem:[#allocation3 + $0x9c] sm:$0xf] %vm1296, %v1149
    %1311 = vst.msk [vmem:[#allocation3 + $0xa8] sm:$0xf] %vm1296, %v1150
    %1312 = vst.msk [vmem:[#allocation3 + $0xb4] sm:$0xf] %vm1296, %v1151
    %1313 = vst.msk [vmem:[#allocation3 + $0xc0] sm:$0xf] %vm1296, %v1152
    %1314 = vst.msk [vmem:[#allocation3 + $0xcc] sm:$0xf] %vm1296, %v1153
    %1315 = vst.msk [vmem:[#allocation3 + $0xd8] sm:$0xf] %vm1296, %v1154
    %1316 = vst.msk [vmem:[#allocation3 + $0xe4] sm:$0xf] %vm1296, %v1155
    %1317 = vst.msk [vmem:[#allocation3 + $0xf0] sm:$0xf] %vm1296, %v1156
    %1318 = vst.msk [vmem:[#allocation3 + $0xfc] sm:$0xf] %vm1296, %v1157
    %1319 = vst.msk [vmem:[#allocation3 + $0x108] sm:$0xf] %vm1296, %v1158
    %1320 = vst.msk [vmem:[#allocation3 + $0x114] sm:$0xf] %vm1296, %v1159
    %1321 = vst.msk [vmem:[#allocation3 + $0x120] sm:$0xf] %vm1296, %v1160
    %1322 = vst.msk [vmem:[#allocation3 + $0x12c] sm:$0xf] %vm1296, %v1161
    %1323 = vst.msk [vmem:[#allocation3 + $0x138] sm:$0xf] %vm1296, %v1162
    %1324 = vst.msk [vmem:[#allocation3 + $0x144] sm:$0xf] %vm1296, %v1163
    %1325 = vst.msk [vmem:[#allocation3 + $0x150] sm:$0xf] %vm1296, %v1164
    %1326 = vst.msk [vmem:[#allocation3 + $0x15c] sm:$0xf] %vm1296, %v1165
    %1327 = vst.msk [vmem:[#allocation3 + $0x168] sm:$0xf] %vm1296, %v1166
    %1328 = vst.msk [vmem:[#allocation3 + $0x174] sm:$0xf] %vm1296, %v1167
    %1329 = vst.msk [vmem:[#allocation3 + $0x180] sm:$0xf] %vm1296, %v1168
    %1330 = vst.msk [vmem:[#allocation3 + $0x18c] sm:$0xf] %vm1296, %v1169
    %1331 = vst.msk [vmem:[#allocation3 + $0x198] sm:$0xf] %vm1296, %v1170
    %1332 = vst.msk [vmem:[#allocation3 + $0x1a4] sm:$0xf] %vm1296, %v1171
    %1333 = vst.msk [vmem:[#allocation3 + $0x1b0] sm:$0xf] %vm1296, %v1172
    %1334 = vst.msk [vmem:[#allocation3 + $0x1bc] sm:$0xf] %vm1296, %v1173
    %1335 = vst.msk [vmem:[#allocation3 + $0x1c8] sm:$0xf] %vm1296, %v1174
    %1336 = vst.msk [vmem:[#allocation3 + $0x1d4] sm:$0xf] %vm1296, %v1175
    %1337 = vst.msk [vmem:[#allocation3 + $0x1e0] sm:$0xf] %vm1296, %v1176
    %1338 = vst.msk [vmem:[#allocation3 + $0x1ec] sm:$0xf] %vm1296, %v1177
    %1339 = vst.msk [vmem:[#allocation3 + $0x1f8] sm:$0xf] %vm1296, %v1178
    %1340 = vst.msk [vmem:[#allocation3 + $0x204] sm:$0xf] %vm1296, %v1179
    %1341 = vst.msk [vmem:[#allocation3 + $0x210] sm:$0xf] %vm1296, %v1180
    %1342 = vst.msk [vmem:[#allocation3 + $0x21c] sm:$0xf] %vm1296, %v1181
    %1343 = vst.msk [vmem:[#allocation3 + $0x228] sm:$0xf] %vm1296, %v1182
    %1344 = vst.msk [vmem:[#allocation3 + $0x234] sm:$0xf] %vm1296, %v1183
    %1345 = vst.msk [vmem:[#allocation3 + $0x240] sm:$0xf] %vm1296, %v1184
    %1346 = vst.msk [vmem:[#allocation3 + $0x24c] sm:$0xf] %vm1296, %v1185
    %1347 = vst.msk [vmem:[#allocation3 + $0x258] sm:$0xf] %vm1296, %v1186
    %1348 = vst.msk [vmem:[#allocation3 + $0x264] sm:$0xf] %vm1296, %v1187
    %1349 = vst.msk [vmem:[#allocation3 + $0x270] sm:$0xf] %vm1296, %v1188
    %1350 = vst.msk [vmem:[#allocation3 + $0x27c] sm:$0xf] %vm1296, %v1189
    %1351 = vst.msk [vmem:[#allocation3 + $0x288] sm:$0xf] %vm1296, %v1190
    %1352 = vst.msk [vmem:[#allocation3 + $0x294] sm:$0xf] %vm1296, %v1191
    %1353 = vst.msk [vmem:[#allocation3 + $0x2a0] sm:$0xf] %vm1296, %v1192
    %1354 = vst.msk [vmem:[#allocation3 + $0x2ac] sm:$0xf] %vm1296, %v1193
    %1355 = vst.msk [vmem:[#allocation3 + $0x2b8] sm:$0xf] %vm1296, %v1194
    %1356 = vst.msk [vmem:[#allocation3 + $0x2c4] sm:$0xf] %vm1296, %v1195
    %1357 = vst.msk [vmem:[#allocation3 + $0x2d0] sm:$0xf] %vm1296, %v1196
    %1358 = vst.msk [vmem:[#allocation3 + $0x2dc] sm:$0xf] %vm1296, %v1197
    %1359 = vst.msk [vmem:[#allocation3 + $0x2e8] sm:$0xf] %vm1296, %v1198
    %1360 = vst.msk [vmem:[#allocation3 + $0x2f4] sm:$0xf] %vm1296, %v1199
    %1361 = vst.msk [vmem:[#allocation3 + $0x300] sm:$0xf] %vm1296, %v1200
    %1362 = vst.msk [vmem:[#allocation3 + $0x30c] sm:$0xf] %vm1296, %v1201
    %1363 = vst.msk [vmem:[#allocation3 + $0x318] sm:$0xf] %vm1296, %v1202
    %1364 = vst.msk [vmem:[#allocation3 + $0x324] sm:$0xf] %vm1296, %v1203
    %1365 = vst.msk [vmem:[#allocation3 + $0x330] sm:$0xf] %vm1296, %v1204
    %1366 = vst.msk [vmem:[#allocation3 + $0x33c] sm:$0xf] %vm1296, %v1205
    %1367 = vst.msk [vmem:[#allocation3 + $0x348] sm:$0xf] %vm1296, %v1206
    %1368 = vst.msk [vmem:[#allocation3 + $0x354] sm:$0xf] %vm1296, %v1207
    %1369 = vst.msk [vmem:[#allocation3 + $0x360] sm:$0xf] %vm1296, %v1208
    %1370 = vst.msk [vmem:[#allocation3 + $0x36c] sm:$0xf] %vm1296, %v1209
    %1371 = vst.msk [vmem:[#allocation3 + $0x378] sm:$0xf] %vm1296, %v1210
    %1372 = vst.msk [vmem:[#allocation3 + $0x384] sm:$0xf] %vm1296, %v1211
    %1373 = vst.msk [vmem:[#allocation3 + $0x390] sm:$0xf] %vm1296, %v1212
    %1374 = vst.msk [vmem:[#allocation3 + $0x39c] sm:$0xf] %vm1296, %v1213
    %1375 = vst.msk [vmem:[#allocation3 + $0x3a8] sm:$0xf] %vm1296, %v1214
    %1376 = vst.msk [vmem:[#allocation3 + $0x3b4] sm:$0xf] %vm1296, %v1215
    %v1377 = vld [vmem:[#allocation2 + $0x1] sm:$0xff]
    %v1378 = vld [vmem:[#allocation2 + $0x9] sm:$0xff]
    %v1379 = vld [vmem:[#allocation2 + $0x19] sm:$0xff]
    %v1380 = vld [vmem:[#allocation2 + $0x21] sm:$0xff]
    %v1381 = vld [vmem:[#allocation2 + $0x31] sm:$0xff]
    %v1382 = vld [vmem:[#allocation2 + $0x39] sm:$0xff]
    %v1383 = vld [vmem:[#allocation2 + $0x49] sm:$0xff]
    %v1384 = vld [vmem:[#allocation2 + $0x51] sm:$0xff]
    %v1385 = vld [vmem:[#allocation2 + $0x61] sm:$0xff]
    %v1386 = vld [vmem:[#allocation2 + $0x69] sm:$0xff]
    %v1387 = vld [vmem:[#allocation2 + $0x79] sm:$0xff]
    %v1388 = vld [vmem:[#allocation2 + $0x81] sm:$0xff]
    %v1389 = vld [vmem:[#allocation2 + $0x91] sm:$0xff]
    %v1390 = vld [vmem:[#allocation2 + $0x99] sm:$0xff]
    %v1391 = vld [vmem:[#allocation2 + $0xa9] sm:$0xff]
    %v1392 = vld [vmem:[#allocation2 + $0xb1] sm:$0xff]
    %v1393 = vld [vmem:[#allocation2 + $0xc1] sm:$0xff]
    %v1394 = vld [vmem:[#allocation2 + $0xc9] sm:$0xff]
    %v1395 = vld [vmem:[#allocation2 + $0xd9] sm:$0xff]
    %v1396 = vld [vmem:[#allocation2 + $0xe1] sm:$0xff]
    %v1397 = vld [vmem:[#allocation2 + $0xf1] sm:$0xff]
    %v1398 = vld [vmem:[#allocation2 + $0xf9] sm:$0xff]
    %v1399 = vld [vmem:[#allocation2 + $0x109] sm:$0xff]
    %v1400 = vld [vmem:[#allocation2 + $0x111] sm:$0xff]
    %v1401 = vld [vmem:[#allocation2 + $0x121] sm:$0xff]
    %v1402 = vld [vmem:[#allocation2 + $0x129] sm:$0xff]
    %v1403 = vld [vmem:[#allocation2 + $0x139] sm:$0xff]
    %v1404 = vld [vmem:[#allocation2 + $0x141] sm:$0xff]
    %v1405 = vld [vmem:[#allocation2 + $0x151] sm:$0xff]
    %v1406 = vld [vmem:[#allocation2 + $0x159] sm:$0xff]
    %v1407 = vld [vmem:[#allocation2 + $0x169] sm:$0xff]
    %v1408 = vld [vmem:[#allocation2 + $0x171] sm:$0xff]
    %v1409 = vld [vmem:[#allocation2 + $0x181] sm:$0xff]
    %v1410 = vld [vmem:[#allocation2 + $0x189] sm:$0xff]
    %v1411 = vld [vmem:[#allocation2 + $0x199] sm:$0xff]
    %v1412 = vld [vmem:[#allocation2 + $0x1a1] sm:$0xff]
    %v1413 = vld [vmem:[#allocation2 + $0x1b1] sm:$0xff]
    %v1414 = vld [vmem:[#allocation2 + $0x1b9] sm:$0xff]
    %v1415 = vld [vmem:[#allocation2 + $0x1c9] sm:$0xff]
    %v1416 = vld [vmem:[#allocation2 + $0x1d1] sm:$0xff]
    %v1417 = vld [vmem:[#allocation2 + $0x1e1] sm:$0xff]
    %v1418 = vld [vmem:[#allocation2 + $0x1e9] sm:$0xff]
    %v1419 = vld [vmem:[#allocation2 + $0x1f9] sm:$0xff]
    %v1420 = vld [vmem:[#allocation2 + $0x201] sm:$0xff]
    %v1421 = vld [vmem:[#allocation2 + $0x211] sm:$0xff]
    %v1422 = vld [vmem:[#allocation2 + $0x219] sm:$0xff]
    %v1423 = vld [vmem:[#allocation2 + $0x229] sm:$0xff]
    %v1424 = vld [vmem:[#allocation2 + $0x231] sm:$0xff]
    %v1425 = vld [vmem:[#allocation2 + $0x241] sm:$0xff]
    %v1426 = vld [vmem:[#allocation2 + $0x249] sm:$0xff]
    %v1427 = vld [vmem:[#allocation2 + $0x259] sm:$0xff]
    %v1428 = vld [vmem:[#allocation2 + $0x261] sm:$0xff]
    %v1429 = vld [vmem:[#allocation2 + $0x271] sm:$0xff]
    %v1430 = vld [vmem:[#allocation2 + $0x279] sm:$0xff]
    %v1431 = vld [vmem:[#allocation2 + $0x289] sm:$0xff]
    %v1432 = vld [vmem:[#allocation2 + $0x291] sm:$0xff]
    %v1433 = vld [vmem:[#allocation2 + $0x2a1] sm:$0xff]
    %v1434 = vld [vmem:[#allocation2 + $0x2a9] sm:$0xff]
    %v1435 = vld [vmem:[#allocation2 + $0x2b9] sm:$0xff]
    %v1436 = vld [vmem:[#allocation2 + $0x2c1] sm:$0xff]
    %v1437 = vld [vmem:[#allocation2 + $0x2d1] sm:$0xff]
    %v1438 = vld [vmem:[#allocation2 + $0x2d9] sm:$0xff]
    %v1439 = vld [vmem:[#allocation2 + $0x2e9] sm:$0xff]
    %v1440 = vld [vmem:[#allocation2 + $0x2f1] sm:$0xff]
    %v1441 = vld [vmem:[#allocation2 + $0x301] sm:$0xff]
    %v1442 = vld [vmem:[#allocation2 + $0x309] sm:$0xff]
    %v1443 = vld [vmem:[#allocation2 + $0x319] sm:$0xff]
    %v1444 = vld [vmem:[#allocation2 + $0x321] sm:$0xff]
    %v1445 = vld [vmem:[#allocation2 + $0x331] sm:$0xff]
    %v1446 = vld [vmem:[#allocation2 + $0x339] sm:$0xff]
    %v1447 = vld [vmem:[#allocation2 + $0x349] sm:$0xff]
    %v1448 = vld [vmem:[#allocation2 + $0x351] sm:$0xff]
    %v1449 = vld [vmem:[#allocation2 + $0x361] sm:$0xff]
    %v1450 = vld [vmem:[#allocation2 + $0x369] sm:$0xff]
    %v1451 = vld [vmem:[#allocation2 + $0x379] sm:$0xff]
    %v1452 = vld [vmem:[#allocation2 + $0x381] sm:$0xff]
    %v1453 = vld [vmem:[#allocation2 + $0x391] sm:$0xff]
    %v1454 = vld [vmem:[#allocation2 + $0x399] sm:$0xff]
    %v1455 = vld [vmem:[#allocation2 + $0x3a9] sm:$0xff]
    %v1456 = vld [vmem:[#allocation2 + $0x3b1] sm:$0xff]
    %v1457 = vpack.c.bf16 %v1378, %v1377
    %v1458 = vpack.c.bf16 %v1380, %v1379
    %v1459 = vpack.c.bf16 %v1382, %v1381
    %v1460 = vpack.c.bf16 %v1384, %v1383
    %v1461 = vpack.c.bf16 %v1386, %v1385
    %v1462 = vpack.c.bf16 %v1388, %v1387
    %v1463 = vpack.c.bf16 %v1390, %v1389
    %v1464 = vpack.c.bf16 %v1392, %v1391
    %v1465 = vpack.c.bf16 %v1394, %v1393
    %v1466 = vpack.c.bf16 %v1396, %v1395
    %v1467 = vpack.c.bf16 %v1398, %v1397
    %v1468 = vpack.c.bf16 %v1400, %v1399
    %v1469 = vpack.c.bf16 %v1402, %v1401
    %v1470 = vpack.c.bf16 %v1404, %v1403
    %v1471 = vpack.c.bf16 %v1406, %v1405
    %v1472 = vpack.c.bf16 %v1408, %v1407
    %v1473 = vpack.c.bf16 %v1410, %v1409
    %v1474 = vpack.c.bf16 %v1412, %v1411
    %v1475 = vpack.c.bf16 %v1414, %v1413
    %v1476 = vpack.c.bf16 %v1416, %v1415
    %v1477 = vpack.c.bf16 %v1418, %v1417
    %v1478 = vpack.c.bf16 %v1420, %v1419
    %v1479 = vpack.c.bf16 %v1422, %v1421
    %v1480 = vpack.c.bf16 %v1424, %v1423
    %v1481 = vpack.c.bf16 %v1426, %v1425
    %v1482 = vpack.c.bf16 %v1428, %v1427
    %v1483 = vpack.c.bf16 %v1430, %v1429
    %v1484 = vpack.c.bf16 %v1432, %v1431
    %v1485 = vpack.c.bf16 %v1434, %v1433
    %v1486 = vpack.c.bf16 %v1436, %v1435
    %v1487 = vpack.c.bf16 %v1438, %v1437
    %v1488 = vpack.c.bf16 %v1440, %v1439
    %v1489 = vpack.c.bf16 %v1442, %v1441
    %v1490 = vpack.c.bf16 %v1444, %v1443
    %v1491 = vpack.c.bf16 %v1446, %v1445
    %v1492 = vpack.c.bf16 %v1448, %v1447
    %v1493 = vpack.c.bf16 %v1450, %v1449
    %v1494 = vpack.c.bf16 %v1452, %v1451
    %v1495 = vpack.c.bf16 %v1454, %v1453
    %v1496 = vpack.c.bf16 %v1456, %v1455
    %v1537 = vunpack.c.l.b16 %v1457
    %v1538 = vunpack.c.h.b16 %v1457
    %v1539 = vunpack.c.l.b16 %v1458
    %v1540 = vunpack.c.h.b16 %v1458
    %v1541 = vunpack.c.l.b16 %v1459
    %v1542 = vunpack.c.h.b16 %v1459
    %v1543 = vunpack.c.l.b16 %v1460
    %v1544 = vunpack.c.h.b16 %v1460
    %v1545 = vunpack.c.l.b16 %v1461
    %v1546 = vunpack.c.h.b16 %v1461
    %v1547 = vunpack.c.l.b16 %v1462
    %v1548 = vunpack.c.h.b16 %v1462
    %v1549 = vunpack.c.l.b16 %v1463
    %v1550 = vunpack.c.h.b16 %v1463
    %v1551 = vunpack.c.l.b16 %v1464
    %v1552 = vunpack.c.h.b16 %v1464
    %v1553 = vunpack.c.l.b16 %v1465
    %v1554 = vunpack.c.h.b16 %v1465
    %v1555 = vunpack.c.l.b16 %v1466
    %v1556 = vunpack.c.h.b16 %v1466
    %v1557 = vunpack.c.l.b16 %v1467
    %v1558 = vunpack.c.h.b16 %v1467
    %v1559 = vunpack.c.l.b16 %v1468
    %v1560 = vunpack.c.h.b16 %v1468
    %v1561 = vunpack.c.l.b16 %v1469
    %v1562 = vunpack.c.h.b16 %v1469
    %v1563 = vunpack.c.l.b16 %v1470
    %v1564 = vunpack.c.h.b16 %v1470
    %v1565 = vunpack.c.l.b16 %v1471
    %v1566 = vunpack.c.h.b16 %v1471
    %v1567 = vunpack.c.l.b16 %v1472
    %v1568 = vunpack.c.h.b16 %v1472
    %v1569 = vunpack.c.l.b16 %v1473
    %v1570 = vunpack.c.h.b16 %v1473
    %v1571 = vunpack.c.l.b16 %v1474
    %v1572 = vunpack.c.h.b16 %v1474
    %v1573 = vunpack.c.l.b16 %v1475
    %v1574 = vunpack.c.h.b16 %v1475
    %v1575 = vunpack.c.l.b16 %v1476
    %v1576 = vunpack.c.h.b16 %v1476
    %v1577 = vunpack.c.l.b16 %v1477
    %v1578 = vunpack.c.h.b16 %v1477
    %v1579 = vunpack.c.l.b16 %v1478
    %v1580 = vunpack.c.h.b16 %v1478
    %v1581 = vunpack.c.l.b16 %v1479
    %v1582 = vunpack.c.h.b16 %v1479
    %v1583 = vunpack.c.l.b16 %v1480
    %v1584 = vunpack.c.h.b16 %v1480
    %v1585 = vunpack.c.l.b16 %v1481
    %v1586 = vunpack.c.h.b16 %v1481
    %v1587 = vunpack.c.l.b16 %v1482
    %v1588 = vunpack.c.h.b16 %v1482
    %v1589 = vunpack.c.l.b16 %v1483
    %v1590 = vunpack.c.h.b16 %v1483
    %v1591 = vunpack.c.l.b16 %v1484
    %v1592 = vunpack.c.h.b16 %v1484
    %v1593 = vunpack.c.l.b16 %v1485
    %v1594 = vunpack.c.h.b16 %v1485
    %v1595 = vunpack.c.l.b16 %v1486
    %v1596 = vunpack.c.h.b16 %v1486
    %v1597 = vunpack.c.l.b16 %v1487
    %v1598 = vunpack.c.h.b16 %v1487
    %v1599 = vunpack.c.l.b16 %v1488
    %v1600 = vunpack.c.h.b16 %v1488
    %v1601 = vunpack.c.l.b16 %v1489
    %v1602 = vunpack.c.h.b16 %v1489
    %v1603 = vunpack.c.l.b16 %v1490
    %v1604 = vunpack.c.h.b16 %v1490
    %v1605 = vunpack.c.l.b16 %v1491
    %v1606 = vunpack.c.h.b16 %v1491
    %v1607 = vunpack.c.l.b16 %v1492
    %v1608 = vunpack.c.h.b16 %v1492
    %v1609 = vunpack.c.l.b16 %v1493
    %v1610 = vunpack.c.h.b16 %v1493
    %v1611 = vunpack.c.l.b16 %v1494
    %v1612 = vunpack.c.h.b16 %v1494
    %v1613 = vunpack.c.l.b16 %v1495
    %v1614 = vunpack.c.h.b16 %v1495
    %v1615 = vunpack.c.l.b16 %v1496
    %v1616 = vunpack.c.h.b16 %v1496
    %v1617 = vpack.c.b16 %v1537, %v1537
    %v1618 = vpack.c.b16 %v1538, %v1538
    %v1619 = vpack.c.b16 %v1539, %v1539
    %v1620 = vpack.c.b16 %v1540, %v1540
    %v1621 = vpack.c.b16 %v1541, %v1541
    %v1622 = vpack.c.b16 %v1542, %v1542
    %v1623 = vpack.c.b16 %v1543, %v1543
    %v1624 = vpack.c.b16 %v1544, %v1544
    %v1625 = vpack.c.b16 %v1545, %v1545
    %v1626 = vpack.c.b16 %v1546, %v1546
    %v1627 = vpack.c.b16 %v1547, %v1547
    %v1628 = vpack.c.b16 %v1548, %v1548
    %v1629 = vpack.c.b16 %v1549, %v1549
    %v1630 = vpack.c.b16 %v1550, %v1550
    %v1631 = vpack.c.b16 %v1551, %v1551
    %v1632 = vpack.c.b16 %v1552, %v1552
    %v1633 = vpack.c.b16 %v1553, %v1553
    %v1634 = vpack.c.b16 %v1554, %v1554
    %v1635 = vpack.c.b16 %v1555, %v1555
    %v1636 = vpack.c.b16 %v1556, %v1556
    %v1637 = vpack.c.b16 %v1557, %v1557
    %v1638 = vpack.c.b16 %v1558, %v1558
    %v1639 = vpack.c.b16 %v1559, %v1559
    %v1640 = vpack.c.b16 %v1560, %v1560
    %v1641 = vpack.c.b16 %v1561, %v1561
    %v1642 = vpack.c.b16 %v1562, %v1562
    %v1643 = vpack.c.b16 %v1563, %v1563
    %v1644 = vpack.c.b16 %v1564, %v1564
    %v1645 = vpack.c.b16 %v1565, %v1565
    %v1646 = vpack.c.b16 %v1566, %v1566
    %v1647 = vpack.c.b16 %v1567, %v1567
    %v1648 = vpack.c.b16 %v1568, %v1568
    %v1649 = vpack.c.b16 %v1569, %v1569
    %v1650 = vpack.c.b16 %v1570, %v1570
    %v1651 = vpack.c.b16 %v1571, %v1571
    %v1652 = vpack.c.b16 %v1572, %v1572
    %v1653 = vpack.c.b16 %v1573, %v1573
    %v1654 = vpack.c.b16 %v1574, %v1574
    %v1655 = vpack.c.b16 %v1575, %v1575
    %v1656 = vpack.c.b16 %v1576, %v1576
    %v1657 = vpack.c.b16 %v1577, %v1577
    %v1658 = vpack.c.b16 %v1578, %v1578
    %v1659 = vpack.c.b16 %v1579, %v1579
    %v1660 = vpack.c.b16 %v1580, %v1580
    %v1661 = vpack.c.b16 %v1581, %v1581
    %v1662 = vpack.c.b16 %v1582, %v1582
    %v1663 = vpack.c.b16 %v1583, %v1583
    %v1664 = vpack.c.b16 %v1584, %v1584
    %v1665 = vpack.c.b16 %v1585, %v1585
    %v1666 = vpack.c.b16 %v1586, %v1586
    %v1667 = vpack.c.b16 %v1587, %v1587
    %v1668 = vpack.c.b16 %v1588, %v1588
    %v1669 = vpack.c.b16 %v1589, %v1589
    %v1670 = vpack.c.b16 %v1590, %v1590
    %v1671 = vpack.c.b16 %v1591, %v1591
    %v1672 = vpack.c.b16 %v1592, %v1592
    %v1673 = vpack.c.b16 %v1593, %v1593
    %v1674 = vpack.c.b16 %v1594, %v1594
    %v1675 = vpack.c.b16 %v1595, %v1595
    %v1676 = vpack.c.b16 %v1596, %v1596
    %v1677 = vpack.c.b16 %v1597, %v1597
    %v1678 = vpack.c.b16 %v1598, %v1598
    %v1679 = vpack.c.b16 %v1599, %v1599
    %v1680 = vpack.c.b16 %v1600, %v1600
    %v1681 = vpack.c.b16 %v1601, %v1601
    %v1682 = vpack.c.b16 %v1602, %v1602
    %v1683 = vpack.c.b16 %v1603, %v1603
    %v1684 = vpack.c.b16 %v1604, %v1604
    %v1685 = vpack.c.b16 %v1605, %v1605
    %v1686 = vpack.c.b16 %v1606, %v1606
    %v1687 = vpack.c.b16 %v1607, %v1607
    %v1688 = vpack.c.b16 %v1608, %v1608
    %v1689 = vpack.c.b16 %v1609, %v1609
    %v1690 = vpack.c.b16 %v1610, %v1610
    %v1691 = vpack.c.b16 %v1611, %v1611
    %v1692 = vpack.c.b16 %v1612, %v1612
    %v1693 = vpack.c.b16 %v1613, %v1613
    %v1694 = vpack.c.b16 %v1614, %v1614
    %v1695 = vpack.c.b16 %v1615, %v1615
    %v1696 = vpack.c.b16 %v1616, %v1616
    %1697 = vrot.lane.b32.xlu0 %v1617, 64
    %v1698 = vpop.permute.xlu0 %1697
    %1699 = vrot.lane.b32.xlu0 %v1618, 64
    %v1700 = vpop.permute.xlu0 %1699
    %1701 = vrot.lane.b32.xlu0 %v1619, 64
    %v1702 = vpop.permute.xlu0 %1701
    %1703 = vrot.lane.b32.xlu0 %v1620, 64
    %v1704 = vpop.permute.xlu0 %1703
    %1705 = vrot.lane.b32.xlu0 %v1621, 64
    %v1706 = vpop.permute.xlu0 %1705
    %1707 = vrot.lane.b32.xlu0 %v1622, 64
    %v1708 = vpop.permute.xlu0 %1707
    %1709 = vrot.lane.b32.xlu0 %v1623, 64
    %v1710 = vpop.permute.xlu0 %1709
    %1711 = vrot.lane.b32.xlu0 %v1624, 64
    %v1712 = vpop.permute.xlu0 %1711
    %1713 = vrot.lane.b32.xlu0 %v1625, 64
    %v1714 = vpop.permute.xlu0 %1713
    %1715 = vrot.lane.b32.xlu0 %v1626, 64
    %v1716 = vpop.permute.xlu0 %1715
    %1717 = vrot.lane.b32.xlu0 %v1627, 64
    %v1718 = vpop.permute.xlu0 %1717
    %1719 = vrot.lane.b32.xlu0 %v1628, 64
    %v1720 = vpop.permute.xlu0 %1719
    %1721 = vrot.lane.b32.xlu0 %v1629, 64
    %v1722 = vpop.permute.xlu0 %1721
    %1723 = vrot.lane.b32.xlu0 %v1630, 64
    %v1724 = vpop.permute.xlu0 %1723
    %1725 = vrot.lane.b32.xlu0 %v1631, 64
    %v1726 = vpop.permute.xlu0 %1725
    %1727 = vrot.lane.b32.xlu0 %v1632, 64
    %v1728 = vpop.permute.xlu0 %1727
    %1729 = vrot.lane.b32.xlu0 %v1633, 64
    %v1730 = vpop.permute.xlu0 %1729
    %1731 = vrot.lane.b32.xlu0 %v1634, 64
    %v1732 = vpop.permute.xlu0 %1731
    %1733 = vrot.lane.b32.xlu0 %v1635, 64
    %v1734 = vpop.permute.xlu0 %1733
    %1735 = vrot.lane.b32.xlu0 %v1636, 64
    %v1736 = vpop.permute.xlu0 %1735
    %1737 = vrot.lane.b32.xlu0 %v1637, 64
    %v1738 = vpop.permute.xlu0 %1737
    %1739 = vrot.lane.b32.xlu0 %v1638, 64
    %v1740 = vpop.permute.xlu0 %1739
    %1741 = vrot.lane.b32.xlu0 %v1639, 64
    %v1742 = vpop.permute.xlu0 %1741
    %1743 = vrot.lane.b32.xlu0 %v1640, 64
    %v1744 = vpop.permute.xlu0 %1743
    %1745 = vrot.lane.b32.xlu0 %v1641, 64
    %v1746 = vpop.permute.xlu0 %1745
    %1747 = vrot.lane.b32.xlu0 %v1642, 64
    %v1748 = vpop.permute.xlu0 %1747
    %1749 = vrot.lane.b32.xlu0 %v1643, 64
    %v1750 = vpop.permute.xlu0 %1749
    %1751 = vrot.lane.b32.xlu0 %v1644, 64
    %v1752 = vpop.permute.xlu0 %1751
    %1753 = vrot.lane.b32.xlu0 %v1645, 64
    %v1754 = vpop.permute.xlu0 %1753
    %1755 = vrot.lane.b32.xlu0 %v1646, 64
    %v1756 = vpop.permute.xlu0 %1755
    %1757 = vrot.lane.b32.xlu0 %v1647, 64
    %v1758 = vpop.permute.xlu0 %1757
    %1759 = vrot.lane.b32.xlu0 %v1648, 64
    %v1760 = vpop.permute.xlu0 %1759
    %1761 = vrot.lane.b32.xlu0 %v1649, 64
    %v1762 = vpop.permute.xlu0 %1761
    %1763 = vrot.lane.b32.xlu0 %v1650, 64
    %v1764 = vpop.permute.xlu0 %1763
    %1765 = vrot.lane.b32.xlu0 %v1651, 64
    %v1766 = vpop.permute.xlu0 %1765
    %1767 = vrot.lane.b32.xlu0 %v1652, 64
    %v1768 = vpop.permute.xlu0 %1767
    %1769 = vrot.lane.b32.xlu0 %v1653, 64
    %v1770 = vpop.permute.xlu0 %1769
    %1771 = vrot.lane.b32.xlu0 %v1654, 64
    %v1772 = vpop.permute.xlu0 %1771
    %1773 = vrot.lane.b32.xlu0 %v1655, 64
    %v1774 = vpop.permute.xlu0 %1773
    %1775 = vrot.lane.b32.xlu0 %v1656, 64
    %v1776 = vpop.permute.xlu0 %1775
    %1777 = vrot.lane.b32.xlu0 %v1657, 64
    %v1778 = vpop.permute.xlu0 %1777
    %1779 = vrot.lane.b32.xlu0 %v1658, 64
    %v1780 = vpop.permute.xlu0 %1779
    %1781 = vrot.lane.b32.xlu0 %v1659, 64
    %v1782 = vpop.permute.xlu0 %1781
    %1783 = vrot.lane.b32.xlu0 %v1660, 64
    %v1784 = vpop.permute.xlu0 %1783
    %1785 = vrot.lane.b32.xlu0 %v1661, 64
    %v1786 = vpop.permute.xlu0 %1785
    %1787 = vrot.lane.b32.xlu0 %v1662, 64
    %v1788 = vpop.permute.xlu0 %1787
    %1789 = vrot.lane.b32.xlu0 %v1663, 64
    %v1790 = vpop.permute.xlu0 %1789
    %1791 = vrot.lane.b32.xlu0 %v1664, 64
    %v1792 = vpop.permute.xlu0 %1791
    %1793 = vrot.lane.b32.xlu0 %v1665, 64
    %v1794 = vpop.permute.xlu0 %1793
    %1795 = vrot.lane.b32.xlu0 %v1666, 64
    %v1796 = vpop.permute.xlu0 %1795
    %1797 = vrot.lane.b32.xlu0 %v1667, 64
    %v1798 = vpop.permute.xlu0 %1797
    %1799 = vrot.lane.b32.xlu0 %v1668, 64
    %v1800 = vpop.permute.xlu0 %1799
    %1801 = vrot.lane.b32.xlu0 %v1669, 64
    %v1802 = vpop.permute.xlu0 %1801
    %1803 = vrot.lane.b32.xlu0 %v1670, 64
    %v1804 = vpop.permute.xlu0 %1803
    %1805 = vrot.lane.b32.xlu0 %v1671, 64
    %v1806 = vpop.permute.xlu0 %1805
    %1807 = vrot.lane.b32.xlu0 %v1672, 64
    %v1808 = vpop.permute.xlu0 %1807
    %1809 = vrot.lane.b32.xlu0 %v1673, 64
    %v1810 = vpop.permute.xlu0 %1809
    %1811 = vrot.lane.b32.xlu0 %v1674, 64
    %v1812 = vpop.permute.xlu0 %1811
    %1813 = vrot.lane.b32.xlu0 %v1675, 64
    %v1814 = vpop.permute.xlu0 %1813
    %1815 = vrot.lane.b32.xlu0 %v1676, 64
    %v1816 = vpop.permute.xlu0 %1815
    %1817 = vrot.lane.b32.xlu0 %v1677, 64
    %v1818 = vpop.permute.xlu0 %1817
    %1819 = vrot.lane.b32.xlu0 %v1678, 64
    %v1820 = vpop.permute.xlu0 %1819
    %1821 = vrot.lane.b32.xlu0 %v1679, 64
    %v1822 = vpop.permute.xlu0 %1821
    %1823 = vrot.lane.b32.xlu0 %v1680, 64
    %v1824 = vpop.permute.xlu0 %1823
    %1825 = vrot.lane.b32.xlu0 %v1681, 64
    %v1826 = vpop.permute.xlu0 %1825
    %1827 = vrot.lane.b32.xlu0 %v1682, 64
    %v1828 = vpop.permute.xlu0 %1827
    %1829 = vrot.lane.b32.xlu0 %v1683, 64
    %v1830 = vpop.permute.xlu0 %1829
    %1831 = vrot.lane.b32.xlu0 %v1684, 64
    %v1832 = vpop.permute.xlu0 %1831
    %1833 = vrot.lane.b32.xlu0 %v1685, 64
    %v1834 = vpop.permute.xlu0 %1833
    %1835 = vrot.lane.b32.xlu0 %v1686, 64
    %v1836 = vpop.permute.xlu0 %1835
    %1837 = vrot.lane.b32.xlu0 %v1687, 64
    %v1838 = vpop.permute.xlu0 %1837
    %1839 = vrot.lane.b32.xlu0 %v1688, 64
    %v1840 = vpop.permute.xlu0 %1839
    %1841 = vrot.lane.b32.xlu0 %v1689, 64
    %v1842 = vpop.permute.xlu0 %1841
    %1843 = vrot.lane.b32.xlu0 %v1690, 64
    %v1844 = vpop.permute.xlu0 %1843
    %1845 = vrot.lane.b32.xlu0 %v1691, 64
    %v1846 = vpop.permute.xlu0 %1845
    %1847 = vrot.lane.b32.xlu0 %v1692, 64
    %v1848 = vpop.permute.xlu0 %1847
    %1849 = vrot.lane.b32.xlu0 %v1693, 64
    %v1850 = vpop.permute.xlu0 %1849
    %1851 = vrot.lane.b32.xlu0 %v1694, 64
    %v1852 = vpop.permute.xlu0 %1851
    %1853 = vrot.lane.b32.xlu0 %v1695, 64
    %v1854 = vpop.permute.xlu0 %1853
    %1855 = vrot.lane.b32.xlu0 %v1696, 64
    %v1856 = vpop.permute.xlu0 %1855
    %vm1937 = vcmask 1043968
    %1938 = vst.msk [vmem:[#allocation3] sm:$0xf] %vm1937, %v1698
    %1939 = vst.msk [vmem:[#allocation3 + $0xc] sm:$0xf] %vm1937, %v1700
    %1940 = vst.msk [vmem:[#allocation3 + $0x18] sm:$0xf] %vm1937, %v1702
    %1941 = vst.msk [vmem:[#allocation3 + $0x24] sm:$0xf] %vm1937, %v1704
    %1942 = vst.msk [vmem:[#allocation3 + $0x30] sm:$0xf] %vm1937, %v1706
    %1943 = vst.msk [vmem:[#allocation3 + $0x3c] sm:$0xf] %vm1937, %v1708
    %1944 = vst.msk [vmem:[#allocation3 + $0x48] sm:$0xf] %vm1937, %v1710
    %1945 = vst.msk [vmem:[#allocation3 + $0x54] sm:$0xf] %vm1937, %v1712
    %1946 = vst.msk [vmem:[#allocation3 + $0x60] sm:$0xf] %vm1937, %v1714
    %1947 = vst.msk [vmem:[#allocation3 + $0x6c] sm:$0xf] %vm1937, %v1716
    %1948 = vst.msk [vmem:[#allocation3 + $0x78] sm:$0xf] %vm1937, %v1718
    %1949 = vst.msk [vmem:[#allocation3 + $0x84] sm:$0xf] %vm1937, %v1720
    %1950 = vst.msk [vmem:[#allocation3 + $0x90] sm:$0xf] %vm1937, %v1722
    %1951 = vst.msk [vmem:[#allocation3 + $0x9c] sm:$0xf] %vm1937, %v1724
    %1952 = vst.msk [vmem:[#allocation3 + $0xa8] sm:$0xf] %vm1937, %v1726
    %1953 = vst.msk [vmem:[#allocation3 + $0xb4] sm:$0xf] %vm1937, %v1728
    %1954 = vst.msk [vmem:[#allocation3 + $0xc0] sm:$0xf] %vm1937, %v1730
    %1955 = vst.msk [vmem:[#allocation3 + $0xcc] sm:$0xf] %vm1937, %v1732
    %1956 = vst.msk [vmem:[#allocation3 + $0xd8] sm:$0xf] %vm1937, %v1734
    %1957 = vst.msk [vmem:[#allocation3 + $0xe4] sm:$0xf] %vm1937, %v1736
    %1958 = vst.msk [vmem:[#allocation3 + $0xf0] sm:$0xf] %vm1937, %v1738
    %1959 = vst.msk [vmem:[#allocation3 + $0xfc] sm:$0xf] %vm1937, %v1740
    %1960 = vst.msk [vmem:[#allocation3 + $0x108] sm:$0xf] %vm1937, %v1742
    %1961 = vst.msk [vmem:[#allocation3 + $0x114] sm:$0xf] %vm1937, %v1744
    %1962 = vst.msk [vmem:[#allocation3 + $0x120] sm:$0xf] %vm1937, %v1746
    %1963 = vst.msk [vmem:[#allocation3 + $0x12c] sm:$0xf] %vm1937, %v1748
    %1964 = vst.msk [vmem:[#allocation3 + $0x138] sm:$0xf] %vm1937, %v1750
    %1965 = vst.msk [vmem:[#allocation3 + $0x144] sm:$0xf] %vm1937, %v1752
    %1966 = vst.msk [vmem:[#allocation3 + $0x150] sm:$0xf] %vm1937, %v1754
    %1967 = vst.msk [vmem:[#allocation3 + $0x15c] sm:$0xf] %vm1937, %v1756
    %1968 = vst.msk [vmem:[#allocation3 + $0x168] sm:$0xf] %vm1937, %v1758
    %1969 = vst.msk [vmem:[#allocation3 + $0x174] sm:$0xf] %vm1937, %v1760
    %1970 = vst.msk [vmem:[#allocation3 + $0x180] sm:$0xf] %vm1937, %v1762
    %1971 = vst.msk [vmem:[#allocation3 + $0x18c] sm:$0xf] %vm1937, %v1764
    %1972 = vst.msk [vmem:[#allocation3 + $0x198] sm:$0xf] %vm1937, %v1766
    %1973 = vst.msk [vmem:[#allocation3 + $0x1a4] sm:$0xf] %vm1937, %v1768
    %1974 = vst.msk [vmem:[#allocation3 + $0x1b0] sm:$0xf] %vm1937, %v1770
    %1975 = vst.msk [vmem:[#allocation3 + $0x1bc] sm:$0xf] %vm1937, %v1772
    %1976 = vst.msk [vmem:[#allocation3 + $0x1c8] sm:$0xf] %vm1937, %v1774
    %1977 = vst.msk [vmem:[#allocation3 + $0x1d4] sm:$0xf] %vm1937, %v1776
    %1978 = vst.msk [vmem:[#allocation3 + $0x1e0] sm:$0xf] %vm1937, %v1778
    %1979 = vst.msk [vmem:[#allocation3 + $0x1ec] sm:$0xf] %vm1937, %v1780
    %1980 = vst.msk [vmem:[#allocation3 + $0x1f8] sm:$0xf] %vm1937, %v1782
    %1981 = vst.msk [vmem:[#allocation3 + $0x204] sm:$0xf] %vm1937, %v1784
    %1982 = vst.msk [vmem:[#allocation3 + $0x210] sm:$0xf] %vm1937, %v1786
    %1983 = vst.msk [vmem:[#allocation3 + $0x21c] sm:$0xf] %vm1937, %v1788
    %1984 = vst.msk [vmem:[#allocation3 + $0x228] sm:$0xf] %vm1937, %v1790
    %1985 = vst.msk [vmem:[#allocation3 + $0x234] sm:$0xf] %vm1937, %v1792
    %1986 = vst.msk [vmem:[#allocation3 + $0x240] sm:$0xf] %vm1937, %v1794
    %1987 = vst.msk [vmem:[#allocation3 + $0x24c] sm:$0xf] %vm1937, %v1796
    %1988 = vst.msk [vmem:[#allocation3 + $0x258] sm:$0xf] %vm1937, %v1798
    %1989 = vst.msk [vmem:[#allocation3 + $0x264] sm:$0xf] %vm1937, %v1800
    %1990 = vst.msk [vmem:[#allocation3 + $0x270] sm:$0xf] %vm1937, %v1802
    %1991 = vst.msk [vmem:[#allocation3 + $0x27c] sm:$0xf] %vm1937, %v1804
    %1992 = vst.msk [vmem:[#allocation3 + $0x288] sm:$0xf] %vm1937, %v1806
    %1993 = vst.msk [vmem:[#allocation3 + $0x294] sm:$0xf] %vm1937, %v1808
    %1994 = vst.msk [vmem:[#allocation3 + $0x2a0] sm:$0xf] %vm1937, %v1810
    %1995 = vst.msk [vmem:[#allocation3 + $0x2ac] sm:$0xf] %vm1937, %v1812
    %1996 = vst.msk [vmem:[#allocation3 + $0x2b8] sm:$0xf] %vm1937, %v1814
    %1997 = vst.msk [vmem:[#allocation3 + $0x2c4] sm:$0xf] %vm1937, %v1816
    %1998 = vst.msk [vmem:[#allocation3 + $0x2d0] sm:$0xf] %vm1937, %v1818
    %1999 = vst.msk [vmem:[#allocation3 + $0x2dc] sm:$0xf] %vm1937, %v1820
    %2000 = vst.msk [vmem:[#allocation3 + $0x2e8] sm:$0xf] %vm1937, %v1822
    %2001 = vst.msk [vmem:[#allocation3 + $0x2f4] sm:$0xf] %vm1937, %v1824
    %2002 = vst.msk [vmem:[#allocation3 + $0x300] sm:$0xf] %vm1937, %v1826
    %2003 = vst.msk [vmem:[#allocation3 + $0x30c] sm:$0xf] %vm1937, %v1828
    %2004 = vst.msk [vmem:[#allocation3 + $0x318] sm:$0xf] %vm1937, %v1830
    %2005 = vst.msk [vmem:[#allocation3 + $0x324] sm:$0xf] %vm1937, %v1832
    %2006 = vst.msk [vmem:[#allocation3 + $0x330] sm:$0xf] %vm1937, %v1834
    %2007 = vst.msk [vmem:[#allocation3 + $0x33c] sm:$0xf] %vm1937, %v1836
    %2008 = vst.msk [vmem:[#allocation3 + $0x348] sm:$0xf] %vm1937, %v1838
    %2009 = vst.msk [vmem:[#allocation3 + $0x354] sm:$0xf] %vm1937, %v1840
    %2010 = vst.msk [vmem:[#allocation3 + $0x360] sm:$0xf] %vm1937, %v1842
    %2011 = vst.msk [vmem:[#allocation3 + $0x36c] sm:$0xf] %vm1937, %v1844
    %2012 = vst.msk [vmem:[#allocation3 + $0x378] sm:$0xf] %vm1937, %v1846
    %2013 = vst.msk [vmem:[#allocation3 + $0x384] sm:$0xf] %vm1937, %v1848
    %2014 = vst.msk [vmem:[#allocation3 + $0x390] sm:$0xf] %vm1937, %v1850
    %2015 = vst.msk [vmem:[#allocation3 + $0x39c] sm:$0xf] %vm1937, %v1852
    %2016 = vst.msk [vmem:[#allocation3 + $0x3a8] sm:$0xf] %vm1937, %v1854
    %2017 = vst.msk [vmem:[#allocation3 + $0x3b4] sm:$0xf] %vm1937, %v1856
    %v2018 = vld [vmem:[#allocation2 + $0x2] sm:$0xff]
    %v2019 = vld [vmem:[#allocation2 + $0xa] sm:$0xff]
    %v2020 = vld [vmem:[#allocation2 + $0x1a] sm:$0xff]
    %v2021 = vld [vmem:[#allocation2 + $0x22] sm:$0xff]
    %v2022 = vld [vmem:[#allocation2 + $0x32] sm:$0xff]
    %v2023 = vld [vmem:[#allocation2 + $0x3a] sm:$0xff]
    %v2024 = vld [vmem:[#allocation2 + $0x4a] sm:$0xff]
    %v2025 = vld [vmem:[#allocation2 + $0x52] sm:$0xff]
    %v2026 = vld [vmem:[#allocation2 + $0x62] sm:$0xff]
    %v2027 = vld [vmem:[#allocation2 + $0x6a] sm:$0xff]
    %v2028 = vld [vmem:[#allocation2 + $0x7a] sm:$0xff]
    %v2029 = vld [vmem:[#allocation2 + $0x82] sm:$0xff]
    %v2030 = vld [vmem:[#allocation2 + $0x92] sm:$0xff]
    %v2031 = vld [vmem:[#allocation2 + $0x9a] sm:$0xff]
    %v2032 = vld [vmem:[#allocation2 + $0xaa] sm:$0xff]
    %v2033 = vld [vmem:[#allocation2 + $0xb2] sm:$0xff]
    %v2034 = vld [vmem:[#allocation2 + $0xc2] sm:$0xff]
    %v2035 = vld [vmem:[#allocation2 + $0xca] sm:$0xff]
    %v2036 = vld [vmem:[#allocation2 + $0xda] sm:$0xff]
    %v2037 = vld [vmem:[#allocation2 + $0xe2] sm:$0xff]
    %v2038 = vld [vmem:[#allocation2 + $0xf2] sm:$0xff]
    %v2039 = vld [vmem:[#allocation2 + $0xfa] sm:$0xff]
    %v2040 = vld [vmem:[#allocation2 + $0x10a] sm:$0xff]
    %v2041 = vld [vmem:[#allocation2 + $0x112] sm:$0xff]
    %v2042 = vld [vmem:[#allocation2 + $0x122] sm:$0xff]
    %v2043 = vld [vmem:[#allocation2 + $0x12a] sm:$0xff]
    %v2044 = vld [vmem:[#allocation2 + $0x13a] sm:$0xff]
    %v2045 = vld [vmem:[#allocation2 + $0x142] sm:$0xff]
    %v2046 = vld [vmem:[#allocation2 + $0x152] sm:$0xff]
    %v2047 = vld [vmem:[#allocation2 + $0x15a] sm:$0xff]
    %v2048 = vld [vmem:[#allocation2 + $0x16a] sm:$0xff]
    %v2049 = vld [vmem:[#allocation2 + $0x172] sm:$0xff]
    %v2050 = vld [vmem:[#allocation2 + $0x182] sm:$0xff]
    %v2051 = vld [vmem:[#allocation2 + $0x18a] sm:$0xff]
    %v2052 = vld [vmem:[#allocation2 + $0x19a] sm:$0xff]
    %v2053 = vld [vmem:[#allocation2 + $0x1a2] sm:$0xff]
    %v2054 = vld [vmem:[#allocation2 + $0x1b2] sm:$0xff]
    %v2055 = vld [vmem:[#allocation2 + $0x1ba] sm:$0xff]
    %v2056 = vld [vmem:[#allocation2 + $0x1ca] sm:$0xff]
    %v2057 = vld [vmem:[#allocation2 + $0x1d2] sm:$0xff]
    %v2058 = vld [vmem:[#allocation2 + $0x1e2] sm:$0xff]
    %v2059 = vld [vmem:[#allocation2 + $0x1ea] sm:$0xff]
    %v2060 = vld [vmem:[#allocation2 + $0x1fa] sm:$0xff]
    %v2061 = vld [vmem:[#allocation2 + $0x202] sm:$0xff]
    %v2062 = vld [vmem:[#allocation2 + $0x212] sm:$0xff]
    %v2063 = vld [vmem:[#allocation2 + $0x21a] sm:$0xff]
    %v2064 = vld [vmem:[#allocation2 + $0x22a] sm:$0xff]
    %v2065 = vld [vmem:[#allocation2 + $0x232] sm:$0xff]
    %v2066 = vld [vmem:[#allocation2 + $0x242] sm:$0xff]
    %v2067 = vld [vmem:[#allocation2 + $0x24a] sm:$0xff]
    %v2068 = vld [vmem:[#allocation2 + $0x25a] sm:$0xff]
    %v2069 = vld [vmem:[#allocation2 + $0x262] sm:$0xff]
    %v2070 = vld [vmem:[#allocation2 + $0x272] sm:$0xff]
    %v2071 = vld [vmem:[#allocation2 + $0x27a] sm:$0xff]
    %v2072 = vld [vmem:[#allocation2 + $0x28a] sm:$0xff]
    %v2073 = vld [vmem:[#allocation2 + $0x292] sm:$0xff]
    %v2074 = vld [vmem:[#allocation2 + $0x2a2] sm:$0xff]
    %v2075 = vld [vmem:[#allocation2 + $0x2aa] sm:$0xff]
    %v2076 = vld [vmem:[#allocation2 + $0x2ba] sm:$0xff]
    %v2077 = vld [vmem:[#allocation2 + $0x2c2] sm:$0xff]
    %v2078 = vld [vmem:[#allocation2 + $0x2d2] sm:$0xff]
    %v2079 = vld [vmem:[#allocation2 + $0x2da] sm:$0xff]
    %v2080 = vld [vmem:[#allocation2 + $0x2ea] sm:$0xff]
    %v2081 = vld [vmem:[#allocation2 + $0x2f2] sm:$0xff]
    %v2082 = vld [vmem:[#allocation2 + $0x302] sm:$0xff]
    %v2083 = vld [vmem:[#allocation2 + $0x30a] sm:$0xff]
    %v2084 = vld [vmem:[#allocation2 + $0x31a] sm:$0xff]
    %v2085 = vld [vmem:[#allocation2 + $0x322] sm:$0xff]
    %v2086 = vld [vmem:[#allocation2 + $0x332] sm:$0xff]
    %v2087 = vld [vmem:[#allocation2 + $0x33a] sm:$0xff]
    %v2088 = vld [vmem:[#allocation2 + $0x34a] sm:$0xff]
    %v2089 = vld [vmem:[#allocation2 + $0x352] sm:$0xff]
    %v2090 = vld [vmem:[#allocation2 + $0x362] sm:$0xff]
    %v2091 = vld [vmem:[#allocation2 + $0x36a] sm:$0xff]
    %v2092 = vld [vmem:[#allocation2 + $0x37a] sm:$0xff]
    %v2093 = vld [vmem:[#allocation2 + $0x382] sm:$0xff]
    %v2094 = vld [vmem:[#allocation2 + $0x392] sm:$0xff]
    %v2095 = vld [vmem:[#allocation2 + $0x39a] sm:$0xff]
    %v2096 = vld [vmem:[#allocation2 + $0x3aa] sm:$0xff]
    %v2097 = vld [vmem:[#allocation2 + $0x3b2] sm:$0xff]
    %v2098 = vpack.c.bf16 %v2019, %v2018
    %v2099 = vpack.c.bf16 %v2021, %v2020
    %v2100 = vpack.c.bf16 %v2023, %v2022
    %v2101 = vpack.c.bf16 %v2025, %v2024
    %v2102 = vpack.c.bf16 %v2027, %v2026
    %v2103 = vpack.c.bf16 %v2029, %v2028
    %v2104 = vpack.c.bf16 %v2031, %v2030
    %v2105 = vpack.c.bf16 %v2033, %v2032
    %v2106 = vpack.c.bf16 %v2035, %v2034
    %v2107 = vpack.c.bf16 %v2037, %v2036
    %v2108 = vpack.c.bf16 %v2039, %v2038
    %v2109 = vpack.c.bf16 %v2041, %v2040
    %v2110 = vpack.c.bf16 %v2043, %v2042
    %v2111 = vpack.c.bf16 %v2045, %v2044
    %v2112 = vpack.c.bf16 %v2047, %v2046
    %v2113 = vpack.c.bf16 %v2049, %v2048
    %v2114 = vpack.c.bf16 %v2051, %v2050
    %v2115 = vpack.c.bf16 %v2053, %v2052
    %v2116 = vpack.c.bf16 %v2055, %v2054
    %v2117 = vpack.c.bf16 %v2057, %v2056
    %v2118 = vpack.c.bf16 %v2059, %v2058
    %v2119 = vpack.c.bf16 %v2061, %v2060
    %v2120 = vpack.c.bf16 %v2063, %v2062
    %v2121 = vpack.c.bf16 %v2065, %v2064
    %v2122 = vpack.c.bf16 %v2067, %v2066
    %v2123 = vpack.c.bf16 %v2069, %v2068
    %v2124 = vpack.c.bf16 %v2071, %v2070
    %v2125 = vpack.c.bf16 %v2073, %v2072
    %v2126 = vpack.c.bf16 %v2075, %v2074
    %v2127 = vpack.c.bf16 %v2077, %v2076
    %v2128 = vpack.c.bf16 %v2079, %v2078
    %v2129 = vpack.c.bf16 %v2081, %v2080
    %v2130 = vpack.c.bf16 %v2083, %v2082
    %v2131 = vpack.c.bf16 %v2085, %v2084
    %v2132 = vpack.c.bf16 %v2087, %v2086
    %v2133 = vpack.c.bf16 %v2089, %v2088
    %v2134 = vpack.c.bf16 %v2091, %v2090
    %v2135 = vpack.c.bf16 %v2093, %v2092
    %v2136 = vpack.c.bf16 %v2095, %v2094
    %v2137 = vpack.c.bf16 %v2097, %v2096
    %v2178 = vunpack.c.l.b16 %v2098
    %v2179 = vunpack.c.h.b16 %v2098
    %v2180 = vunpack.c.l.b16 %v2099
    %v2181 = vunpack.c.h.b16 %v2099
    %v2182 = vunpack.c.l.b16 %v2100
    %v2183 = vunpack.c.h.b16 %v2100
    %v2184 = vunpack.c.l.b16 %v2101
    %v2185 = vunpack.c.h.b16 %v2101
    %v2186 = vunpack.c.l.b16 %v2102
    %v2187 = vunpack.c.h.b16 %v2102
    %v2188 = vunpack.c.l.b16 %v2103
    %v2189 = vunpack.c.h.b16 %v2103
    %v2190 = vunpack.c.l.b16 %v2104
    %v2191 = vunpack.c.h.b16 %v2104
    %v2192 = vunpack.c.l.b16 %v2105
    %v2193 = vunpack.c.h.b16 %v2105
    %v2194 = vunpack.c.l.b16 %v2106
    %v2195 = vunpack.c.h.b16 %v2106
    %v2196 = vunpack.c.l.b16 %v2107
    %v2197 = vunpack.c.h.b16 %v2107
    %v2198 = vunpack.c.l.b16 %v2108
    %v2199 = vunpack.c.h.b16 %v2108
    %v2200 = vunpack.c.l.b16 %v2109
    %v2201 = vunpack.c.h.b16 %v2109
    %v2202 = vunpack.c.l.b16 %v2110
    %v2203 = vunpack.c.h.b16 %v2110
    %v2204 = vunpack.c.l.b16 %v2111
    %v2205 = vunpack.c.h.b16 %v2111
    %v2206 = vunpack.c.l.b16 %v2112
    %v2207 = vunpack.c.h.b16 %v2112
    %v2208 = vunpack.c.l.b16 %v2113
    %v2209 = vunpack.c.h.b16 %v2113
    %v2210 = vunpack.c.l.b16 %v2114
    %v2211 = vunpack.c.h.b16 %v2114
    %v2212 = vunpack.c.l.b16 %v2115
    %v2213 = vunpack.c.h.b16 %v2115
    %v2214 = vunpack.c.l.b16 %v2116
    %v2215 = vunpack.c.h.b16 %v2116
    %v2216 = vunpack.c.l.b16 %v2117
    %v2217 = vunpack.c.h.b16 %v2117
    %v2218 = vunpack.c.l.b16 %v2118
    %v2219 = vunpack.c.h.b16 %v2118
    %v2220 = vunpack.c.l.b16 %v2119
    %v2221 = vunpack.c.h.b16 %v2119
    %v2222 = vunpack.c.l.b16 %v2120
    %v2223 = vunpack.c.h.b16 %v2120
    %v2224 = vunpack.c.l.b16 %v2121
    %v2225 = vunpack.c.h.b16 %v2121
    %v2226 = vunpack.c.l.b16 %v2122
    %v2227 = vunpack.c.h.b16 %v2122
    %v2228 = vunpack.c.l.b16 %v2123
    %v2229 = vunpack.c.h.b16 %v2123
    %v2230 = vunpack.c.l.b16 %v2124
    %v2231 = vunpack.c.h.b16 %v2124
    %v2232 = vunpack.c.l.b16 %v2125
    %v2233 = vunpack.c.h.b16 %v2125
    %v2234 = vunpack.c.l.b16 %v2126
    %v2235 = vunpack.c.h.b16 %v2126
    %v2236 = vunpack.c.l.b16 %v2127
    %v2237 = vunpack.c.h.b16 %v2127
    %v2238 = vunpack.c.l.b16 %v2128
    %v2239 = vunpack.c.h.b16 %v2128
    %v2240 = vunpack.c.l.b16 %v2129
    %v2241 = vunpack.c.h.b16 %v2129
    %v2242 = vunpack.c.l.b16 %v2130
    %v2243 = vunpack.c.h.b16 %v2130
    %v2244 = vunpack.c.l.b16 %v2131
    %v2245 = vunpack.c.h.b16 %v2131
    %v2246 = vunpack.c.l.b16 %v2132
    %v2247 = vunpack.c.h.b16 %v2132
    %v2248 = vunpack.c.l.b16 %v2133
    %v2249 = vunpack.c.h.b16 %v2133
    %v2250 = vunpack.c.l.b16 %v2134
    %v2251 = vunpack.c.h.b16 %v2134
    %v2252 = vunpack.c.l.b16 %v2135
    %v2253 = vunpack.c.h.b16 %v2135
    %v2254 = vunpack.c.l.b16 %v2136
    %v2255 = vunpack.c.h.b16 %v2136
    %v2256 = vunpack.c.l.b16 %v2137
    %v2257 = vunpack.c.h.b16 %v2137
    %v2258 = vpack.c.b16 %v2178, %v2178
    %v2259 = vpack.c.b16 %v2179, %v2179
    %v2260 = vpack.c.b16 %v2180, %v2180
    %v2261 = vpack.c.b16 %v2181, %v2181
    %v2262 = vpack.c.b16 %v2182, %v2182
    %v2263 = vpack.c.b16 %v2183, %v2183
    %v2264 = vpack.c.b16 %v2184, %v2184
    %v2265 = vpack.c.b16 %v2185, %v2185
    %v2266 = vpack.c.b16 %v2186, %v2186
    %v2267 = vpack.c.b16 %v2187, %v2187
    %v2268 = vpack.c.b16 %v2188, %v2188
    %v2269 = vpack.c.b16 %v2189, %v2189
    %v2270 = vpack.c.b16 %v2190, %v2190
    %v2271 = vpack.c.b16 %v2191, %v2191
    %v2272 = vpack.c.b16 %v2192, %v2192
    %v2273 = vpack.c.b16 %v2193, %v2193
    %v2274 = vpack.c.b16 %v2194, %v2194
    %v2275 = vpack.c.b16 %v2195, %v2195
    %v2276 = vpack.c.b16 %v2196, %v2196
    %v2277 = vpack.c.b16 %v2197, %v2197
    %v2278 = vpack.c.b16 %v2198, %v2198
    %v2279 = vpack.c.b16 %v2199, %v2199
    %v2280 = vpack.c.b16 %v2200, %v2200
    %v2281 = vpack.c.b16 %v2201, %v2201
    %v2282 = vpack.c.b16 %v2202, %v2202
    %v2283 = vpack.c.b16 %v2203, %v2203
    %v2284 = vpack.c.b16 %v2204, %v2204
    %v2285 = vpack.c.b16 %v2205, %v2205
    %v2286 = vpack.c.b16 %v2206, %v2206
    %v2287 = vpack.c.b16 %v2207, %v2207
    %v2288 = vpack.c.b16 %v2208, %v2208
    %v2289 = vpack.c.b16 %v2209, %v2209
    %v2290 = vpack.c.b16 %v2210, %v2210
    %v2291 = vpack.c.b16 %v2211, %v2211
    %v2292 = vpack.c.b16 %v2212, %v2212
    %v2293 = vpack.c.b16 %v2213, %v2213
    %v2294 = vpack.c.b16 %v2214, %v2214
    %v2295 = vpack.c.b16 %v2215, %v2215
    %v2296 = vpack.c.b16 %v2216, %v2216
    %v2297 = vpack.c.b16 %v2217, %v2217
    %v2298 = vpack.c.b16 %v2218, %v2218
    %v2299 = vpack.c.b16 %v2219, %v2219
    %v2300 = vpack.c.b16 %v2220, %v2220
    %v2301 = vpack.c.b16 %v2221, %v2221
    %v2302 = vpack.c.b16 %v2222, %v2222
    %v2303 = vpack.c.b16 %v2223, %v2223
    %v2304 = vpack.c.b16 %v2224, %v2224
    %v2305 = vpack.c.b16 %v2225, %v2225
    %v2306 = vpack.c.b16 %v2226, %v2226
    %v2307 = vpack.c.b16 %v2227, %v2227
    %v2308 = vpack.c.b16 %v2228, %v2228
    %v2309 = vpack.c.b16 %v2229, %v2229
    %v2310 = vpack.c.b16 %v2230, %v2230
    %v2311 = vpack.c.b16 %v2231, %v2231
    %v2312 = vpack.c.b16 %v2232, %v2232
    %v2313 = vpack.c.b16 %v2233, %v2233
    %v2314 = vpack.c.b16 %v2234, %v2234
    %v2315 = vpack.c.b16 %v2235, %v2235
    %v2316 = vpack.c.b16 %v2236, %v2236
    %v2317 = vpack.c.b16 %v2237, %v2237
    %v2318 = vpack.c.b16 %v2238, %v2238
    %v2319 = vpack.c.b16 %v2239, %v2239
    %v2320 = vpack.c.b16 %v2240, %v2240
    %v2321 = vpack.c.b16 %v2241, %v2241
    %v2322 = vpack.c.b16 %v2242, %v2242
    %v2323 = vpack.c.b16 %v2243, %v2243
    %v2324 = vpack.c.b16 %v2244, %v2244
    %v2325 = vpack.c.b16 %v2245, %v2245
    %v2326 = vpack.c.b16 %v2246, %v2246
    %v2327 = vpack.c.b16 %v2247, %v2247
    %v2328 = vpack.c.b16 %v2248, %v2248
    %v2329 = vpack.c.b16 %v2249, %v2249
    %v2330 = vpack.c.b16 %v2250, %v2250
    %v2331 = vpack.c.b16 %v2251, %v2251
    %v2332 = vpack.c.b16 %v2252, %v2252
    %v2333 = vpack.c.b16 %v2253, %v2253
    %v2334 = vpack.c.b16 %v2254, %v2254
    %v2335 = vpack.c.b16 %v2255, %v2255
    %v2336 = vpack.c.b16 %v2256, %v2256
    %v2337 = vpack.c.b16 %v2257, %v2257
    %2418 = vst.msk [vmem:[#allocation3 + $0x4] sm:$0xf] %vm1296, %v2258
    %2419 = vst.msk [vmem:[#allocation3 + $0x10] sm:$0xf] %vm1296, %v2259
    %2420 = vst.msk [vmem:[#allocation3 + $0x1c] sm:$0xf] %vm1296, %v2260
    %2421 = vst.msk [vmem:[#allocation3 + $0x28] sm:$0xf] %vm1296, %v2261
    %2422 = vst.msk [vmem:[#allocation3 + $0x34] sm:$0xf] %vm1296, %v2262
    %2423 = vst.msk [vmem:[#allocation3 + $0x40] sm:$0xf] %vm1296, %v2263
    %2424 = vst.msk [vmem:[#allocation3 + $0x4c] sm:$0xf] %vm1296, %v2264
    %2425 = vst.msk [vmem:[#allocation3 + $0x58] sm:$0xf] %vm1296, %v2265
    %2426 = vst.msk [vmem:[#allocation3 + $0x64] sm:$0xf] %vm1296, %v2266
    %2427 = vst.msk [vmem:[#allocation3 + $0x70] sm:$0xf] %vm1296, %v2267
    %2428 = vst.msk [vmem:[#allocation3 + $0x7c] sm:$0xf] %vm1296, %v2268
    %2429 = vst.msk [vmem:[#allocation3 + $0x88] sm:$0xf] %vm1296, %v2269
    %2430 = vst.msk [vmem:[#allocation3 + $0x94] sm:$0xf] %vm1296, %v2270
    %2431 = vst.msk [vmem:[#allocation3 + $0xa0] sm:$0xf] %vm1296, %v2271
    %2432 = vst.msk [vmem:[#allocation3 + $0xac] sm:$0xf] %vm1296, %v2272
    %2433 = vst.msk [vmem:[#allocation3 + $0xb8] sm:$0xf] %vm1296, %v2273
    %2434 = vst.msk [vmem:[#allocation3 + $0xc4] sm:$0xf] %vm1296, %v2274
    %2435 = vst.msk [vmem:[#allocation3 + $0xd0] sm:$0xf] %vm1296, %v2275
    %2436 = vst.msk [vmem:[#allocation3 + $0xdc] sm:$0xf] %vm1296, %v2276
    %2437 = vst.msk [vmem:[#allocation3 + $0xe8] sm:$0xf] %vm1296, %v2277
    %2438 = vst.msk [vmem:[#allocation3 + $0xf4] sm:$0xf] %vm1296, %v2278
    %2439 = vst.msk [vmem:[#allocation3 + $0x100] sm:$0xf] %vm1296, %v2279
    %2440 = vst.msk [vmem:[#allocation3 + $0x10c] sm:$0xf] %vm1296, %v2280
    %2441 = vst.msk [vmem:[#allocation3 + $0x118] sm:$0xf] %vm1296, %v2281
    %2442 = vst.msk [vmem:[#allocation3 + $0x124] sm:$0xf] %vm1296, %v2282
    %2443 = vst.msk [vmem:[#allocation3 + $0x130] sm:$0xf] %vm1296, %v2283
    %2444 = vst.msk [vmem:[#allocation3 + $0x13c] sm:$0xf] %vm1296, %v2284
    %2445 = vst.msk [vmem:[#allocation3 + $0x148] sm:$0xf] %vm1296, %v2285
    %2446 = vst.msk [vmem:[#allocation3 + $0x154] sm:$0xf] %vm1296, %v2286
    %2447 = vst.msk [vmem:[#allocation3 + $0x160] sm:$0xf] %vm1296, %v2287
    %2448 = vst.msk [vmem:[#allocation3 + $0x16c] sm:$0xf] %vm1296, %v2288
    %2449 = vst.msk [vmem:[#allocation3 + $0x178] sm:$0xf] %vm1296, %v2289
    %2450 = vst.msk [vmem:[#allocation3 + $0x184] sm:$0xf] %vm1296, %v2290
    %2451 = vst.msk [vmem:[#allocation3 + $0x190] sm:$0xf] %vm1296, %v2291
    %2452 = vst.msk [vmem:[#allocation3 + $0x19c] sm:$0xf] %vm1296, %v2292
    %2453 = vst.msk [vmem:[#allocation3 + $0x1a8] sm:$0xf] %vm1296, %v2293
    %2454 = vst.msk [vmem:[#allocation3 + $0x1b4] sm:$0xf] %vm1296, %v2294
    %2455 = vst.msk [vmem:[#allocation3 + $0x1c0] sm:$0xf] %vm1296, %v2295
    %2456 = vst.msk [vmem:[#allocation3 + $0x1cc] sm:$0xf] %vm1296, %v2296
    %2457 = vst.msk [vmem:[#allocation3 + $0x1d8] sm:$0xf] %vm1296, %v2297
    %2458 = vst.msk [vmem:[#allocation3 + $0x1e4] sm:$0xf] %vm1296, %v2298
    %2459 = vst.msk [vmem:[#allocation3 + $0x1f0] sm:$0xf] %vm1296, %v2299
    %2460 = vst.msk [vmem:[#allocation3 + $0x1fc] sm:$0xf] %vm1296, %v2300
    %2461 = vst.msk [vmem:[#allocation3 + $0x208] sm:$0xf] %vm1296, %v2301
    %2462 = vst.msk [vmem:[#allocation3 + $0x214] sm:$0xf] %vm1296, %v2302
    %2463 = vst.msk [vmem:[#allocation3 + $0x220] sm:$0xf] %vm1296, %v2303
    %2464 = vst.msk [vmem:[#allocation3 + $0x22c] sm:$0xf] %vm1296, %v2304
    %2465 = vst.msk [vmem:[#allocation3 + $0x238] sm:$0xf] %vm1296, %v2305
    %2466 = vst.msk [vmem:[#allocation3 + $0x244] sm:$0xf] %vm1296, %v2306
    %2467 = vst.msk [vmem:[#allocation3 + $0x250] sm:$0xf] %vm1296, %v2307
    %2468 = vst.msk [vmem:[#allocation3 + $0x25c] sm:$0xf] %vm1296, %v2308
    %2469 = vst.msk [vmem:[#allocation3 + $0x268] sm:$0xf] %vm1296, %v2309
    %2470 = vst.msk [vmem:[#allocation3 + $0x274] sm:$0xf] %vm1296, %v2310
    %2471 = vst.msk [vmem:[#allocation3 + $0x280] sm:$0xf] %vm1296, %v2311
    %2472 = vst.msk [vmem:[#allocation3 + $0x28c] sm:$0xf] %vm1296, %v2312
    %2473 = vst.msk [vmem:[#allocation3 + $0x298] sm:$0xf] %vm1296, %v2313
    %2474 = vst.msk [vmem:[#allocation3 + $0x2a4] sm:$0xf] %vm1296, %v2314
    %2475 = vst.msk [vmem:[#allocation3 + $0x2b0] sm:$0xf] %vm1296, %v2315
    %2476 = vst.msk [vmem:[#allocation3 + $0x2bc] sm:$0xf] %vm1296, %v2316
    %2477 = vst.msk [vmem:[#allocation3 + $0x2c8] sm:$0xf] %vm1296, %v2317
    %2478 = vst.msk [vmem:[#allocation3 + $0x2d4] sm:$0xf] %vm1296, %v2318
    %2479 = vst.msk [vmem:[#allocation3 + $0x2e0] sm:$0xf] %vm1296, %v2319
    %2480 = vst.msk [vmem:[#allocation3 + $0x2ec] sm:$0xf] %vm1296, %v2320
    %2481 = vst.msk [vmem:[#allocation3 + $0x2f8] sm:$0xf] %vm1296, %v2321
    %2482 = vst.msk [vmem:[#allocation3 + $0x304] sm:$0xf] %vm1296, %v2322
    %2483 = vst.msk [vmem:[#allocation3 + $0x310] sm:$0xf] %vm1296, %v2323
    %2484 = vst.msk [vmem:[#allocation3 + $0x31c] sm:$0xf] %vm1296, %v2324
    %2485 = vst.msk [vmem:[#allocation3 + $0x328] sm:$0xf] %vm1296, %v2325
    %2486 = vst.msk [vmem:[#allocation3 + $0x334] sm:$0xf] %vm1296, %v2326
    %2487 = vst.msk [vmem:[#allocation3 + $0x340] sm:$0xf] %vm1296, %v2327
    %2488 = vst.msk [vmem:[#allocation3 + $0x34c] sm:$0xf] %vm1296, %v2328
    %2489 = vst.msk [vmem:[#allocation3 + $0x358] sm:$0xf] %vm1296, %v2329
    %2490 = vst.msk [vmem:[#allocation3 + $0x364] sm:$0xf] %vm1296, %v2330
    %2491 = vst.msk [vmem:[#allocation3 + $0x370] sm:$0xf] %vm1296, %v2331
    %2492 = vst.msk [vmem:[#allocation3 + $0x37c] sm:$0xf] %vm1296, %v2332
    %2493 = vst.msk [vmem:[#allocation3 + $0x388] sm:$0xf] %vm1296, %v2333
    %2494 = vst.msk [vmem:[#allocation3 + $0x394] sm:$0xf] %vm1296, %v2334
    %2495 = vst.msk [vmem:[#allocation3 + $0x3a0] sm:$0xf] %vm1296, %v2335
    %2496 = vst.msk [vmem:[#allocation3 + $0x3ac] sm:$0xf] %vm1296, %v2336
    %2497 = vst.msk [vmem:[#allocation3 + $0x3b8] sm:$0xf] %vm1296, %v2337
    %v2498 = vld [vmem:[#allocation2 + $0x3] sm:$0xff]
    %v2499 = vld [vmem:[#allocation2 + $0xb] sm:$0xff]
    %v2500 = vld [vmem:[#allocation2 + $0x1b] sm:$0xff]
    %v2501 = vld [vmem:[#allocation2 + $0x23] sm:$0xff]
    %v2502 = vld [vmem:[#allocation2 + $0x33] sm:$0xff]
    %v2503 = vld [vmem:[#allocation2 + $0x3b] sm:$0xff]
    %v2504 = vld [vmem:[#allocation2 + $0x4b] sm:$0xff]
    %v2505 = vld [vmem:[#allocation2 + $0x53] sm:$0xff]
    %v2506 = vld [vmem:[#allocation2 + $0x63] sm:$0xff]
    %v2507 = vld [vmem:[#allocation2 + $0x6b] sm:$0xff]
    %v2508 = vld [vmem:[#allocation2 + $0x7b] sm:$0xff]
    %v2509 = vld [vmem:[#allocation2 + $0x83] sm:$0xff]
    %v2510 = vld [vmem:[#allocation2 + $0x93] sm:$0xff]
    %v2511 = vld [vmem:[#allocation2 + $0x9b] sm:$0xff]
    %v2512 = vld [vmem:[#allocation2 + $0xab] sm:$0xff]
    %v2513 = vld [vmem:[#allocation2 + $0xb3] sm:$0xff]
    %v2514 = vld [vmem:[#allocation2 + $0xc3] sm:$0xff]
    %v2515 = vld [vmem:[#allocation2 + $0xcb] sm:$0xff]
    %v2516 = vld [vmem:[#allocation2 + $0xdb] sm:$0xff]
    %v2517 = vld [vmem:[#allocation2 + $0xe3] sm:$0xff]
    %v2518 = vld [vmem:[#allocation2 + $0xf3] sm:$0xff]
    %v2519 = vld [vmem:[#allocation2 + $0xfb] sm:$0xff]
    %v2520 = vld [vmem:[#allocation2 + $0x10b] sm:$0xff]
    %v2521 = vld [vmem:[#allocation2 + $0x113] sm:$0xff]
    %v2522 = vld [vmem:[#allocation2 + $0x123] sm:$0xff]
    %v2523 = vld [vmem:[#allocation2 + $0x12b] sm:$0xff]
    %v2524 = vld [vmem:[#allocation2 + $0x13b] sm:$0xff]
    %v2525 = vld [vmem:[#allocation2 + $0x143] sm:$0xff]
    %v2526 = vld [vmem:[#allocation2 + $0x153] sm:$0xff]
    %v2527 = vld [vmem:[#allocation2 + $0x15b] sm:$0xff]
    %v2528 = vld [vmem:[#allocation2 + $0x16b] sm:$0xff]
    %v2529 = vld [vmem:[#allocation2 + $0x173] sm:$0xff]
    %v2530 = vld [vmem:[#allocation2 + $0x183] sm:$0xff]
    %v2531 = vld [vmem:[#allocation2 + $0x18b] sm:$0xff]
    %v2532 = vld [vmem:[#allocation2 + $0x19b] sm:$0xff]
    %v2533 = vld [vmem:[#allocation2 + $0x1a3] sm:$0xff]
    %v2534 = vld [vmem:[#allocation2 + $0x1b3] sm:$0xff]
    %v2535 = vld [vmem:[#allocation2 + $0x1bb] sm:$0xff]
    %v2536 = vld [vmem:[#allocation2 + $0x1cb] sm:$0xff]
    %v2537 = vld [vmem:[#allocation2 + $0x1d3] sm:$0xff]
    %v2538 = vld [vmem:[#allocation2 + $0x1e3] sm:$0xff]
    %v2539 = vld [vmem:[#allocation2 + $0x1eb] sm:$0xff]
    %v2540 = vld [vmem:[#allocation2 + $0x1fb] sm:$0xff]
    %v2541 = vld [vmem:[#allocation2 + $0x203] sm:$0xff]
    %v2542 = vld [vmem:[#allocation2 + $0x213] sm:$0xff]
    %v2543 = vld [vmem:[#allocation2 + $0x21b] sm:$0xff]
    %v2544 = vld [vmem:[#allocation2 + $0x22b] sm:$0xff]
    %v2545 = vld [vmem:[#allocation2 + $0x233] sm:$0xff]
    %v2546 = vld [vmem:[#allocation2 + $0x243] sm:$0xff]
    %v2547 = vld [vmem:[#allocation2 + $0x24b] sm:$0xff]
    %v2548 = vld [vmem:[#allocation2 + $0x25b] sm:$0xff]
    %v2549 = vld [vmem:[#allocation2 + $0x263] sm:$0xff]
    %v2550 = vld [vmem:[#allocation2 + $0x273] sm:$0xff]
    %v2551 = vld [vmem:[#allocation2 + $0x27b] sm:$0xff]
    %v2552 = vld [vmem:[#allocation2 + $0x28b] sm:$0xff]
    %v2553 = vld [vmem:[#allocation2 + $0x293] sm:$0xff]
    %v2554 = vld [vmem:[#allocation2 + $0x2a3] sm:$0xff]
    %v2555 = vld [vmem:[#allocation2 + $0x2ab] sm:$0xff]
    %v2556 = vld [vmem:[#allocation2 + $0x2bb] sm:$0xff]
    %v2557 = vld [vmem:[#allocation2 + $0x2c3] sm:$0xff]
    %v2558 = vld [vmem:[#allocation2 + $0x2d3] sm:$0xff]
    %v2559 = vld [vmem:[#allocation2 + $0x2db] sm:$0xff]
    %v2560 = vld [vmem:[#allocation2 + $0x2eb] sm:$0xff]
    %v2561 = vld [vmem:[#allocation2 + $0x2f3] sm:$0xff]
    %v2562 = vld [vmem:[#allocation2 + $0x303] sm:$0xff]
    %v2563 = vld [vmem:[#allocation2 + $0x30b] sm:$0xff]
    %v2564 = vld [vmem:[#allocation2 + $0x31b] sm:$0xff]
    %v2565 = vld [vmem:[#allocation2 + $0x323] sm:$0xff]
    %v2566 = vld [vmem:[#allocation2 + $0x333] sm:$0xff]
    %v2567 = vld [vmem:[#allocation2 + $0x33b] sm:$0xff]
    %v2568 = vld [vmem:[#allocation2 + $0x34b] sm:$0xff]
    %v2569 = vld [vmem:[#allocation2 + $0x353] sm:$0xff]
    %v2570 = vld [vmem:[#allocation2 + $0x363] sm:$0xff]
    %v2571 = vld [vmem:[#allocation2 + $0x36b] sm:$0xff]
    %v2572 = vld [vmem:[#allocation2 + $0x37b] sm:$0xff]
    %v2573 = vld [vmem:[#allocation2 + $0x383] sm:$0xff]
    %v2574 = vld [vmem:[#allocation2 + $0x393] sm:$0xff]
    %v2575 = vld [vmem:[#allocation2 + $0x39b] sm:$0xff]
    %v2576 = vld [vmem:[#allocation2 + $0x3ab] sm:$0xff]
    %v2577 = vld [vmem:[#allocation2 + $0x3b3] sm:$0xff]
    %v2578 = vpack.c.bf16 %v2499, %v2498
    %v2579 = vpack.c.bf16 %v2501, %v2500
    %v2580 = vpack.c.bf16 %v2503, %v2502
    %v2581 = vpack.c.bf16 %v2505, %v2504
    %v2582 = vpack.c.bf16 %v2507, %v2506
    %v2583 = vpack.c.bf16 %v2509, %v2508
    %v2584 = vpack.c.bf16 %v2511, %v2510
    %v2585 = vpack.c.bf16 %v2513, %v2512
    %v2586 = vpack.c.bf16 %v2515, %v2514
    %v2587 = vpack.c.bf16 %v2517, %v2516
    %v2588 = vpack.c.bf16 %v2519, %v2518
    %v2589 = vpack.c.bf16 %v2521, %v2520
    %v2590 = vpack.c.bf16 %v2523, %v2522
    %v2591 = vpack.c.bf16 %v2525, %v2524
    %v2592 = vpack.c.bf16 %v2527, %v2526
    %v2593 = vpack.c.bf16 %v2529, %v2528
    %v2594 = vpack.c.bf16 %v2531, %v2530
    %v2595 = vpack.c.bf16 %v2533, %v2532
    %v2596 = vpack.c.bf16 %v2535, %v2534
    %v2597 = vpack.c.bf16 %v2537, %v2536
    %v2598 = vpack.c.bf16 %v2539, %v2538
    %v2599 = vpack.c.bf16 %v2541, %v2540
    %v2600 = vpack.c.bf16 %v2543, %v2542
    %v2601 = vpack.c.bf16 %v2545, %v2544
    %v2602 = vpack.c.bf16 %v2547, %v2546
    %v2603 = vpack.c.bf16 %v2549, %v2548
    %v2604 = vpack.c.bf16 %v2551, %v2550
    %v2605 = vpack.c.bf16 %v2553, %v2552
    %v2606 = vpack.c.bf16 %v2555, %v2554
    %v2607 = vpack.c.bf16 %v2557, %v2556
    %v2608 = vpack.c.bf16 %v2559, %v2558
    %v2609 = vpack.c.bf16 %v2561, %v2560
    %v2610 = vpack.c.bf16 %v2563, %v2562
    %v2611 = vpack.c.bf16 %v2565, %v2564
    %v2612 = vpack.c.bf16 %v2567, %v2566
    %v2613 = vpack.c.bf16 %v2569, %v2568
    %v2614 = vpack.c.bf16 %v2571, %v2570
    %v2615 = vpack.c.bf16 %v2573, %v2572
    %v2616 = vpack.c.bf16 %v2575, %v2574
    %v2617 = vpack.c.bf16 %v2577, %v2576
    %v2658 = vunpack.c.l.b16 %v2578
    %v2659 = vunpack.c.h.b16 %v2578
    %v2660 = vunpack.c.l.b16 %v2579
    %v2661 = vunpack.c.h.b16 %v2579
    %v2662 = vunpack.c.l.b16 %v2580
    %v2663 = vunpack.c.h.b16 %v2580
    %v2664 = vunpack.c.l.b16 %v2581
    %v2665 = vunpack.c.h.b16 %v2581
    %v2666 = vunpack.c.l.b16 %v2582
    %v2667 = vunpack.c.h.b16 %v2582
    %v2668 = vunpack.c.l.b16 %v2583
    %v2669 = vunpack.c.h.b16 %v2583
    %v2670 = vunpack.c.l.b16 %v2584
    %v2671 = vunpack.c.h.b16 %v2584
    %v2672 = vunpack.c.l.b16 %v2585
    %v2673 = vunpack.c.h.b16 %v2585
    %v2674 = vunpack.c.l.b16 %v2586
    %v2675 = vunpack.c.h.b16 %v2586
    %v2676 = vunpack.c.l.b16 %v2587
    %v2677 = vunpack.c.h.b16 %v2587
    %v2678 = vunpack.c.l.b16 %v2588
    %v2679 = vunpack.c.h.b16 %v2588
    %v2680 = vunpack.c.l.b16 %v2589
    %v2681 = vunpack.c.h.b16 %v2589
    %v2682 = vunpack.c.l.b16 %v2590
    %v2683 = vunpack.c.h.b16 %v2590
    %v2684 = vunpack.c.l.b16 %v2591
    %v2685 = vunpack.c.h.b16 %v2591
    %v2686 = vunpack.c.l.b16 %v2592
    %v2687 = vunpack.c.h.b16 %v2592
    %v2688 = vunpack.c.l.b16 %v2593
    %v2689 = vunpack.c.h.b16 %v2593
    %v2690 = vunpack.c.l.b16 %v2594
    %v2691 = vunpack.c.h.b16 %v2594
    %v2692 = vunpack.c.l.b16 %v2595
    %v2693 = vunpack.c.h.b16 %v2595
    %v2694 = vunpack.c.l.b16 %v2596
    %v2695 = vunpack.c.h.b16 %v2596
    %v2696 = vunpack.c.l.b16 %v2597
    %v2697 = vunpack.c.h.b16 %v2597
    %v2698 = vunpack.c.l.b16 %v2598
    %v2699 = vunpack.c.h.b16 %v2598
    %v2700 = vunpack.c.l.b16 %v2599
    %v2701 = vunpack.c.h.b16 %v2599
    %v2702 = vunpack.c.l.b16 %v2600
    %v2703 = vunpack.c.h.b16 %v2600
    %v2704 = vunpack.c.l.b16 %v2601
    %v2705 = vunpack.c.h.b16 %v2601
    %v2706 = vunpack.c.l.b16 %v2602
    %v2707 = vunpack.c.h.b16 %v2602
    %v2708 = vunpack.c.l.b16 %v2603
    %v2709 = vunpack.c.h.b16 %v2603
    %v2710 = vunpack.c.l.b16 %v2604
    %v2711 = vunpack.c.h.b16 %v2604
    %v2712 = vunpack.c.l.b16 %v2605
    %v2713 = vunpack.c.h.b16 %v2605
    %v2714 = vunpack.c.l.b16 %v2606
    %v2715 = vunpack.c.h.b16 %v2606
    %v2716 = vunpack.c.l.b16 %v2607
    %v2717 = vunpack.c.h.b16 %v2607
    %v2718 = vunpack.c.l.b16 %v2608
    %v2719 = vunpack.c.h.b16 %v2608
    %v2720 = vunpack.c.l.b16 %v2609
    %v2721 = vunpack.c.h.b16 %v2609
    %v2722 = vunpack.c.l.b16 %v2610
    %v2723 = vunpack.c.h.b16 %v2610
    %v2724 = vunpack.c.l.b16 %v2611
    %v2725 = vunpack.c.h.b16 %v2611
    %v2726 = vunpack.c.l.b16 %v2612
    %v2727 = vunpack.c.h.b16 %v2612
    %v2728 = vunpack.c.l.b16 %v2613
    %v2729 = vunpack.c.h.b16 %v2613
    %v2730 = vunpack.c.l.b16 %v2614
    %v2731 = vunpack.c.h.b16 %v2614
    %v2732 = vunpack.c.l.b16 %v2615
    %v2733 = vunpack.c.h.b16 %v2615
    %v2734 = vunpack.c.l.b16 %v2616
    %v2735 = vunpack.c.h.b16 %v2616
    %v2736 = vunpack.c.l.b16 %v2617
    %v2737 = vunpack.c.h.b16 %v2617
    %v2738 = vpack.c.b16 %v2658, %v2658
    %v2739 = vpack.c.b16 %v2659, %v2659
    %v2740 = vpack.c.b16 %v2660, %v2660
    %v2741 = vpack.c.b16 %v2661, %v2661
    %v2742 = vpack.c.b16 %v2662, %v2662
    %v2743 = vpack.c.b16 %v2663, %v2663
    %v2744 = vpack.c.b16 %v2664, %v2664
    %v2745 = vpack.c.b16 %v2665, %v2665
    %v2746 = vpack.c.b16 %v2666, %v2666
    %v2747 = vpack.c.b16 %v2667, %v2667
    %v2748 = vpack.c.b16 %v2668, %v2668
    %v2749 = vpack.c.b16 %v2669, %v2669
    %v2750 = vpack.c.b16 %v2670, %v2670
    %v2751 = vpack.c.b16 %v2671, %v2671
    %v2752 = vpack.c.b16 %v2672, %v2672
    %v2753 = vpack.c.b16 %v2673, %v2673
    %v2754 = vpack.c.b16 %v2674, %v2674
    %v2755 = vpack.c.b16 %v2675, %v2675
    %v2756 = vpack.c.b16 %v2676, %v2676
    %v2757 = vpack.c.b16 %v2677, %v2677
    %v2758 = vpack.c.b16 %v2678, %v2678
    %v2759 = vpack.c.b16 %v2679, %v2679
    %v2760 = vpack.c.b16 %v2680, %v2680
    %v2761 = vpack.c.b16 %v2681, %v2681
    %v2762 = vpack.c.b16 %v2682, %v2682
    %v2763 = vpack.c.b16 %v2683, %v2683
    %v2764 = vpack.c.b16 %v2684, %v2684
    %v2765 = vpack.c.b16 %v2685, %v2685
    %v2766 = vpack.c.b16 %v2686, %v2686
    %v2767 = vpack.c.b16 %v2687, %v2687
    %v2768 = vpack.c.b16 %v2688, %v2688
    %v2769 = vpack.c.b16 %v2689, %v2689
    %v2770 = vpack.c.b16 %v2690, %v2690
    %v2771 = vpack.c.b16 %v2691, %v2691
    %v2772 = vpack.c.b16 %v2692, %v2692
    %v2773 = vpack.c.b16 %v2693, %v2693
    %v2774 = vpack.c.b16 %v2694, %v2694
    %v2775 = vpack.c.b16 %v2695, %v2695
    %v2776 = vpack.c.b16 %v2696, %v2696
    %v2777 = vpack.c.b16 %v2697, %v2697
    %v2778 = vpack.c.b16 %v2698, %v2698
    %v2779 = vpack.c.b16 %v2699, %v2699
    %v2780 = vpack.c.b16 %v2700, %v2700
    %v2781 = vpack.c.b16 %v2701, %v2701
    %v2782 = vpack.c.b16 %v2702, %v2702
    %v2783 = vpack.c.b16 %v2703, %v2703
    %v2784 = vpack.c.b16 %v2704, %v2704
    %v2785 = vpack.c.b16 %v2705, %v2705
    %v2786 = vpack.c.b16 %v2706, %v2706
    %v2787 = vpack.c.b16 %v2707, %v2707
    %v2788 = vpack.c.b16 %v2708, %v2708
    %v2789 = vpack.c.b16 %v2709, %v2709
    %v2790 = vpack.c.b16 %v2710, %v2710
    %v2791 = vpack.c.b16 %v2711, %v2711
    %v2792 = vpack.c.b16 %v2712, %v2712
    %v2793 = vpack.c.b16 %v2713, %v2713
    %v2794 = vpack.c.b16 %v2714, %v2714
    %v2795 = vpack.c.b16 %v2715, %v2715
    %v2796 = vpack.c.b16 %v2716, %v2716
    %v2797 = vpack.c.b16 %v2717, %v2717
    %v2798 = vpack.c.b16 %v2718, %v2718
    %v2799 = vpack.c.b16 %v2719, %v2719
    %v2800 = vpack.c.b16 %v2720, %v2720
    %v2801 = vpack.c.b16 %v2721, %v2721
    %v2802 = vpack.c.b16 %v2722, %v2722
    %v2803 = vpack.c.b16 %v2723, %v2723
    %v2804 = vpack.c.b16 %v2724, %v2724
    %v2805 = vpack.c.b16 %v2725, %v2725
    %v2806 = vpack.c.b16 %v2726, %v2726
    %v2807 = vpack.c.b16 %v2727, %v2727
    %v2808 = vpack.c.b16 %v2728, %v2728
    %v2809 = vpack.c.b16 %v2729, %v2729
    %v2810 = vpack.c.b16 %v2730, %v2730
    %v2811 = vpack.c.b16 %v2731, %v2731
    %v2812 = vpack.c.b16 %v2732, %v2732
    %v2813 = vpack.c.b16 %v2733, %v2733
    %v2814 = vpack.c.b16 %v2734, %v2734
    %v2815 = vpack.c.b16 %v2735, %v2735
    %v2816 = vpack.c.b16 %v2736, %v2736
    %v2817 = vpack.c.b16 %v2737, %v2737
    %2818 = vrot.lane.b32.xlu0 %v2738, 64
    %v2819 = vpop.permute.xlu0 %2818
    %2820 = vrot.lane.b32.xlu0 %v2739, 64
    %v2821 = vpop.permute.xlu0 %2820
    %2822 = vrot.lane.b32.xlu0 %v2740, 64
    %v2823 = vpop.permute.xlu0 %2822
    %2824 = vrot.lane.b32.xlu0 %v2741, 64
    %v2825 = vpop.permute.xlu0 %2824
    %2826 = vrot.lane.b32.xlu0 %v2742, 64
    %v2827 = vpop.permute.xlu0 %2826
    %2828 = vrot.lane.b32.xlu0 %v2743, 64
    %v2829 = vpop.permute.xlu0 %2828
    %2830 = vrot.lane.b32.xlu0 %v2744, 64
    %v2831 = vpop.permute.xlu0 %2830
    %2832 = vrot.lane.b32.xlu0 %v2745, 64
    %v2833 = vpop.permute.xlu0 %2832
    %2834 = vrot.lane.b32.xlu0 %v2746, 64
    %v2835 = vpop.permute.xlu0 %2834
    %2836 = vrot.lane.b32.xlu0 %v2747, 64
    %v2837 = vpop.permute.xlu0 %2836
    %2838 = vrot.lane.b32.xlu0 %v2748, 64
    %v2839 = vpop.permute.xlu0 %2838
    %2840 = vrot.lane.b32.xlu0 %v2749, 64
    %v2841 = vpop.permute.xlu0 %2840
    %2842 = vrot.lane.b32.xlu0 %v2750, 64
    %v2843 = vpop.permute.xlu0 %2842
    %2844 = vrot.lane.b32.xlu0 %v2751, 64
    %v2845 = vpop.permute.xlu0 %2844
    %2846 = vrot.lane.b32.xlu0 %v2752, 64
    %v2847 = vpop.permute.xlu0 %2846
    %2848 = vrot.lane.b32.xlu0 %v2753, 64
    %v2849 = vpop.permute.xlu0 %2848
    %2850 = vrot.lane.b32.xlu0 %v2754, 64
    %v2851 = vpop.permute.xlu0 %2850
    %2852 = vrot.lane.b32.xlu0 %v2755, 64
    %v2853 = vpop.permute.xlu0 %2852
    %2854 = vrot.lane.b32.xlu0 %v2756, 64
    %v2855 = vpop.permute.xlu0 %2854
    %2856 = vrot.lane.b32.xlu0 %v2757, 64
    %v2857 = vpop.permute.xlu0 %2856
    %2858 = vrot.lane.b32.xlu0 %v2758, 64
    %v2859 = vpop.permute.xlu0 %2858
    %2860 = vrot.lane.b32.xlu0 %v2759, 64
    %v2861 = vpop.permute.xlu0 %2860
    %2862 = vrot.lane.b32.xlu0 %v2760, 64
    %v2863 = vpop.permute.xlu0 %2862
    %2864 = vrot.lane.b32.xlu0 %v2761, 64
    %v2865 = vpop.permute.xlu0 %2864
    %2866 = vrot.lane.b32.xlu0 %v2762, 64
    %v2867 = vpop.permute.xlu0 %2866
    %2868 = vrot.lane.b32.xlu0 %v2763, 64
    %v2869 = vpop.permute.xlu0 %2868
    %2870 = vrot.lane.b32.xlu0 %v2764, 64
    %v2871 = vpop.permute.xlu0 %2870
    %2872 = vrot.lane.b32.xlu0 %v2765, 64
    %v2873 = vpop.permute.xlu0 %2872
    %2874 = vrot.lane.b32.xlu0 %v2766, 64
    %v2875 = vpop.permute.xlu0 %2874
    %2876 = vrot.lane.b32.xlu0 %v2767, 64
    %v2877 = vpop.permute.xlu0 %2876
    %2878 = vrot.lane.b32.xlu0 %v2768, 64
    %v2879 = vpop.permute.xlu0 %2878
    %2880 = vrot.lane.b32.xlu0 %v2769, 64
    %v2881 = vpop.permute.xlu0 %2880
    %2882 = vrot.lane.b32.xlu0 %v2770, 64
    %v2883 = vpop.permute.xlu0 %2882
    %2884 = vrot.lane.b32.xlu0 %v2771, 64
    %v2885 = vpop.permute.xlu0 %2884
    %2886 = vrot.lane.b32.xlu0 %v2772, 64
    %v2887 = vpop.permute.xlu0 %2886
    %2888 = vrot.lane.b32.xlu0 %v2773, 64
    %v2889 = vpop.permute.xlu0 %2888
    %2890 = vrot.lane.b32.xlu0 %v2774, 64
    %v2891 = vpop.permute.xlu0 %2890
    %2892 = vrot.lane.b32.xlu0 %v2775, 64
    %v2893 = vpop.permute.xlu0 %2892
    %2894 = vrot.lane.b32.xlu0 %v2776, 64
    %v2895 = vpop.permute.xlu0 %2894
    %2896 = vrot.lane.b32.xlu0 %v2777, 64
    %v2897 = vpop.permute.xlu0 %2896
    %2898 = vrot.lane.b32.xlu0 %v2778, 64
    %v2899 = vpop.permute.xlu0 %2898
    %2900 = vrot.lane.b32.xlu0 %v2779, 64
    %v2901 = vpop.permute.xlu0 %2900
    %2902 = vrot.lane.b32.xlu0 %v2780, 64
    %v2903 = vpop.permute.xlu0 %2902
    %2904 = vrot.lane.b32.xlu0 %v2781, 64
    %v2905 = vpop.permute.xlu0 %2904
    %2906 = vrot.lane.b32.xlu0 %v2782, 64
    %v2907 = vpop.permute.xlu0 %2906
    %2908 = vrot.lane.b32.xlu0 %v2783, 64
    %v2909 = vpop.permute.xlu0 %2908
    %2910 = vrot.lane.b32.xlu0 %v2784, 64
    %v2911 = vpop.permute.xlu0 %2910
    %2912 = vrot.lane.b32.xlu0 %v2785, 64
    %v2913 = vpop.permute.xlu0 %2912
    %2914 = vrot.lane.b32.xlu0 %v2786, 64
    %v2915 = vpop.permute.xlu0 %2914
    %2916 = vrot.lane.b32.xlu0 %v2787, 64
    %v2917 = vpop.permute.xlu0 %2916
    %2918 = vrot.lane.b32.xlu0 %v2788, 64
    %v2919 = vpop.permute.xlu0 %2918
    %2920 = vrot.lane.b32.xlu0 %v2789, 64
    %v2921 = vpop.permute.xlu0 %2920
    %2922 = vrot.lane.b32.xlu0 %v2790, 64
    %v2923 = vpop.permute.xlu0 %2922
    %2924 = vrot.lane.b32.xlu0 %v2791, 64
    %v2925 = vpop.permute.xlu0 %2924
    %2926 = vrot.lane.b32.xlu0 %v2792, 64
    %v2927 = vpop.permute.xlu0 %2926
    %2928 = vrot.lane.b32.xlu0 %v2793, 64
    %v2929 = vpop.permute.xlu0 %2928
    %2930 = vrot.lane.b32.xlu0 %v2794, 64
    %v2931 = vpop.permute.xlu0 %2930
    %2932 = vrot.lane.b32.xlu0 %v2795, 64
    %v2933 = vpop.permute.xlu0 %2932
    %2934 = vrot.lane.b32.xlu0 %v2796, 64
    %v2935 = vpop.permute.xlu0 %2934
    %2936 = vrot.lane.b32.xlu0 %v2797, 64
    %v2937 = vpop.permute.xlu0 %2936
    %2938 = vrot.lane.b32.xlu0 %v2798, 64
    %v2939 = vpop.permute.xlu0 %2938
    %2940 = vrot.lane.b32.xlu0 %v2799, 64
    %v2941 = vpop.permute.xlu0 %2940
    %2942 = vrot.lane.b32.xlu0 %v2800, 64
    %v2943 = vpop.permute.xlu0 %2942
    %2944 = vrot.lane.b32.xlu0 %v2801, 64
    %v2945 = vpop.permute.xlu0 %2944
    %2946 = vrot.lane.b32.xlu0 %v2802, 64
    %v2947 = vpop.permute.xlu0 %2946
    %2948 = vrot.lane.b32.xlu0 %v2803, 64
    %v2949 = vpop.permute.xlu0 %2948
    %2950 = vrot.lane.b32.xlu0 %v2804, 64
    %v2951 = vpop.permute.xlu0 %2950
    %2952 = vrot.lane.b32.xlu0 %v2805, 64
    %v2953 = vpop.permute.xlu0 %2952
    %2954 = vrot.lane.b32.xlu0 %v2806, 64
    %v2955 = vpop.permute.xlu0 %2954
    %2956 = vrot.lane.b32.xlu0 %v2807, 64
    %v2957 = vpop.permute.xlu0 %2956
    %2958 = vrot.lane.b32.xlu0 %v2808, 64
    %v2959 = vpop.permute.xlu0 %2958
    %2960 = vrot.lane.b32.xlu0 %v2809, 64
    %v2961 = vpop.permute.xlu0 %2960
    %2962 = vrot.lane.b32.xlu0 %v2810, 64
    %v2963 = vpop.permute.xlu0 %2962
    %2964 = vrot.lane.b32.xlu0 %v2811, 64
    %v2965 = vpop.permute.xlu0 %2964
    %2966 = vrot.lane.b32.xlu0 %v2812, 64
    %v2967 = vpop.permute.xlu0 %2966
    %2968 = vrot.lane.b32.xlu0 %v2813, 64
    %v2969 = vpop.permute.xlu0 %2968
    %2970 = vrot.lane.b32.xlu0 %v2814, 64
    %v2971 = vpop.permute.xlu0 %2970
    %2972 = vrot.lane.b32.xlu0 %v2815, 64
    %v2973 = vpop.permute.xlu0 %2972
    %2974 = vrot.lane.b32.xlu0 %v2816, 64
    %v2975 = vpop.permute.xlu0 %2974
    %2976 = vrot.lane.b32.xlu0 %v2817, 64
    %v2977 = vpop.permute.xlu0 %2976
    %3058 = vst.msk [vmem:[#allocation3 + $0x4] sm:$0xf] %vm1937, %v2819
    %3059 = vst.msk [vmem:[#allocation3 + $0x10] sm:$0xf] %vm1937, %v2821
    %3060 = vst.msk [vmem:[#allocation3 + $0x1c] sm:$0xf] %vm1937, %v2823
    %3061 = vst.msk [vmem:[#allocation3 + $0x28] sm:$0xf] %vm1937, %v2825
    %3062 = vst.msk [vmem:[#allocation3 + $0x34] sm:$0xf] %vm1937, %v2827
    %3063 = vst.msk [vmem:[#allocation3 + $0x40] sm:$0xf] %vm1937, %v2829
    %3064 = vst.msk [vmem:[#allocation3 + $0x4c] sm:$0xf] %vm1937, %v2831
    %3065 = vst.msk [vmem:[#allocation3 + $0x58] sm:$0xf] %vm1937, %v2833
    %3066 = vst.msk [vmem:[#allocation3 + $0x64] sm:$0xf] %vm1937, %v2835
    %3067 = vst.msk [vmem:[#allocation3 + $0x70] sm:$0xf] %vm1937, %v2837
    %3068 = vst.msk [vmem:[#allocation3 + $0x7c] sm:$0xf] %vm1937, %v2839
    %3069 = vst.msk [vmem:[#allocation3 + $0x88] sm:$0xf] %vm1937, %v2841
    %3070 = vst.msk [vmem:[#allocation3 + $0x94] sm:$0xf] %vm1937, %v2843
    %3071 = vst.msk [vmem:[#allocation3 + $0xa0] sm:$0xf] %vm1937, %v2845
    %3072 = vst.msk [vmem:[#allocation3 + $0xac] sm:$0xf] %vm1937, %v2847
    %3073 = vst.msk [vmem:[#allocation3 + $0xb8] sm:$0xf] %vm1937, %v2849
    %3074 = vst.msk [vmem:[#allocation3 + $0xc4] sm:$0xf] %vm1937, %v2851
    %3075 = vst.msk [vmem:[#allocation3 + $0xd0] sm:$0xf] %vm1937, %v2853
    %3076 = vst.msk [vmem:[#allocation3 + $0xdc] sm:$0xf] %vm1937, %v2855
    %3077 = vst.msk [vmem:[#allocation3 + $0xe8] sm:$0xf] %vm1937, %v2857
    %3078 = vst.msk [vmem:[#allocation3 + $0xf4] sm:$0xf] %vm1937, %v2859
    %3079 = vst.msk [vmem:[#allocation3 + $0x100] sm:$0xf] %vm1937, %v2861
    %3080 = vst.msk [vmem:[#allocation3 + $0x10c] sm:$0xf] %vm1937, %v2863
    %3081 = vst.msk [vmem:[#allocation3 + $0x118] sm:$0xf] %vm1937, %v2865
    %3082 = vst.msk [vmem:[#allocation3 + $0x124] sm:$0xf] %vm1937, %v2867
    %3083 = vst.msk [vmem:[#allocation3 + $0x130] sm:$0xf] %vm1937, %v2869
    %3084 = vst.msk [vmem:[#allocation3 + $0x13c] sm:$0xf] %vm1937, %v2871
    %3085 = vst.msk [vmem:[#allocation3 + $0x148] sm:$0xf] %vm1937, %v2873
    %3086 = vst.msk [vmem:[#allocation3 + $0x154] sm:$0xf] %vm1937, %v2875
    %3087 = vst.msk [vmem:[#allocation3 + $0x160] sm:$0xf] %vm1937, %v2877
    %3088 = vst.msk [vmem:[#allocation3 + $0x16c] sm:$0xf] %vm1937, %v2879
    %3089 = vst.msk [vmem:[#allocation3 + $0x178] sm:$0xf] %vm1937, %v2881
    %3090 = vst.msk [vmem:[#allocation3 + $0x184] sm:$0xf] %vm1937, %v2883
    %3091 = vst.msk [vmem:[#allocation3 + $0x190] sm:$0xf] %vm1937, %v2885
    %3092 = vst.msk [vmem:[#allocation3 + $0x19c] sm:$0xf] %vm1937, %v2887
    %3093 = vst.msk [vmem:[#allocation3 + $0x1a8] sm:$0xf] %vm1937, %v2889
    %3094 = vst.msk [vmem:[#allocation3 + $0x1b4] sm:$0xf] %vm1937, %v2891
    %3095 = vst.msk [vmem:[#allocation3 + $0x1c0] sm:$0xf] %vm1937, %v2893
    %3096 = vst.msk [vmem:[#allocation3 + $0x1cc] sm:$0xf] %vm1937, %v2895
    %3097 = vst.msk [vmem:[#allocation3 + $0x1d8] sm:$0xf] %vm1937, %v2897
    %3098 = vst.msk [vmem:[#allocation3 + $0x1e4] sm:$0xf] %vm1937, %v2899
    %3099 = vst.msk [vmem:[#allocation3 + $0x1f0] sm:$0xf] %vm1937, %v2901
    %3100 = vst.msk [vmem:[#allocation3 + $0x1fc] sm:$0xf] %vm1937, %v2903
    %3101 = vst.msk [vmem:[#allocation3 + $0x208] sm:$0xf] %vm1937, %v2905
    %3102 = vst.msk [vmem:[#allocation3 + $0x214] sm:$0xf] %vm1937, %v2907
    %3103 = vst.msk [vmem:[#allocation3 + $0x220] sm:$0xf] %vm1937, %v2909
    %3104 = vst.msk [vmem:[#allocation3 + $0x22c] sm:$0xf] %vm1937, %v2911
    %3105 = vst.msk [vmem:[#allocation3 + $0x238] sm:$0xf] %vm1937, %v2913
    %3106 = vst.msk [vmem:[#allocation3 + $0x244] sm:$0xf] %vm1937, %v2915
    %3107 = vst.msk [vmem:[#allocation3 + $0x250] sm:$0xf] %vm1937, %v2917
    %3108 = vst.msk [vmem:[#allocation3 + $0x25c] sm:$0xf] %vm1937, %v2919
    %3109 = vst.msk [vmem:[#allocation3 + $0x268] sm:$0xf] %vm1937, %v2921
    %3110 = vst.msk [vmem:[#allocation3 + $0x274] sm:$0xf] %vm1937, %v2923
    %3111 = vst.msk [vmem:[#allocation3 + $0x280] sm:$0xf] %vm1937, %v2925
    %3112 = vst.msk [vmem:[#allocation3 + $0x28c] sm:$0xf] %vm1937, %v2927
    %3113 = vst.msk [vmem:[#allocation3 + $0x298] sm:$0xf] %vm1937, %v2929
    %3114 = vst.msk [vmem:[#allocation3 + $0x2a4] sm:$0xf] %vm1937, %v2931
    %3115 = vst.msk [vmem:[#allocation3 + $0x2b0] sm:$0xf] %vm1937, %v2933
    %3116 = vst.msk [vmem:[#allocation3 + $0x2bc] sm:$0xf] %vm1937, %v2935
    %3117 = vst.msk [vmem:[#allocation3 + $0x2c8] sm:$0xf] %vm1937, %v2937
    %3118 = vst.msk [vmem:[#allocation3 + $0x2d4] sm:$0xf] %vm1937, %v2939
    %3119 = vst.msk [vmem:[#allocation3 + $0x2e0] sm:$0xf] %vm1937, %v2941
    %3120 = vst.msk [vmem:[#allocation3 + $0x2ec] sm:$0xf] %vm1937, %v2943
    %3121 = vst.msk [vmem:[#allocation3 + $0x2f8] sm:$0xf] %vm1937, %v2945
    %3122 = vst.msk [vmem:[#allocation3 + $0x304] sm:$0xf] %vm1937, %v2947
    %3123 = vst.msk [vmem:[#allocation3 + $0x310] sm:$0xf] %vm1937, %v2949
    %3124 = vst.msk [vmem:[#allocation3 + $0x31c] sm:$0xf] %vm1937, %v2951
    %3125 = vst.msk [vmem:[#allocation3 + $0x328] sm:$0xf] %vm1937, %v2953
    %3126 = vst.msk [vmem:[#allocation3 + $0x334] sm:$0xf] %vm1937, %v2955
    %3127 = vst.msk [vmem:[#allocation3 + $0x340] sm:$0xf] %vm1937, %v2957
    %3128 = vst.msk [vmem:[#allocation3 + $0x34c] sm:$0xf] %vm1937, %v2959
    %3129 = vst.msk [vmem:[#allocation3 + $0x358] sm:$0xf] %vm1937, %v2961
    %3130 = vst.msk [vmem:[#allocation3 + $0x364] sm:$0xf] %vm1937, %v2963
    %3131 = vst.msk [vmem:[#allocation3 + $0x370] sm:$0xf] %vm1937, %v2965
    %3132 = vst.msk [vmem:[#allocation3 + $0x37c] sm:$0xf] %vm1937, %v2967
    %3133 = vst.msk [vmem:[#allocation3 + $0x388] sm:$0xf] %vm1937, %v2969
    %3134 = vst.msk [vmem:[#allocation3 + $0x394] sm:$0xf] %vm1937, %v2971
    %3135 = vst.msk [vmem:[#allocation3 + $0x3a0] sm:$0xf] %vm1937, %v2973
    %3136 = vst.msk [vmem:[#allocation3 + $0x3ac] sm:$0xf] %vm1937, %v2975
    %3137 = vst.msk [vmem:[#allocation3 + $0x3b8] sm:$0xf] %vm1937, %v2977
    %v3138 = vld [vmem:[#allocation2 + $0x4] sm:$0xff]
    %v3139 = vld [vmem:[#allocation2 + $0xc] sm:$0xff]
    %v3140 = vld [vmem:[#allocation2 + $0x1c] sm:$0xff]
    %v3141 = vld [vmem:[#allocation2 + $0x24] sm:$0xff]
    %v3142 = vld [vmem:[#allocation2 + $0x34] sm:$0xff]
    %v3143 = vld [vmem:[#allocation2 + $0x3c] sm:$0xff]
    %v3144 = vld [vmem:[#allocation2 + $0x4c] sm:$0xff]
    %v3145 = vld [vmem:[#allocation2 + $0x54] sm:$0xff]
    %v3146 = vld [vmem:[#allocation2 + $0x64] sm:$0xff]
    %v3147 = vld [vmem:[#allocation2 + $0x6c] sm:$0xff]
    %v3148 = vld [vmem:[#allocation2 + $0x7c] sm:$0xff]
    %v3149 = vld [vmem:[#allocation2 + $0x84] sm:$0xff]
    %v3150 = vld [vmem:[#allocation2 + $0x94] sm:$0xff]
    %v3151 = vld [vmem:[#allocation2 + $0x9c] sm:$0xff]
    %v3152 = vld [vmem:[#allocation2 + $0xac] sm:$0xff]
    %v3153 = vld [vmem:[#allocation2 + $0xb4] sm:$0xff]
    %v3154 = vld [vmem:[#allocation2 + $0xc4] sm:$0xff]
    %v3155 = vld [vmem:[#allocation2 + $0xcc] sm:$0xff]
    %v3156 = vld [vmem:[#allocation2 + $0xdc] sm:$0xff]
    %v3157 = vld [vmem:[#allocation2 + $0xe4] sm:$0xff]
    %v3158 = vld [vmem:[#allocation2 + $0xf4] sm:$0xff]
    %v3159 = vld [vmem:[#allocation2 + $0xfc] sm:$0xff]
    %v3160 = vld [vmem:[#allocation2 + $0x10c] sm:$0xff]
    %v3161 = vld [vmem:[#allocation2 + $0x114] sm:$0xff]
    %v3162 = vld [vmem:[#allocation2 + $0x124] sm:$0xff]
    %v3163 = vld [vmem:[#allocation2 + $0x12c] sm:$0xff]
    %v3164 = vld [vmem:[#allocation2 + $0x13c] sm:$0xff]
    %v3165 = vld [vmem:[#allocation2 + $0x144] sm:$0xff]
    %v3166 = vld [vmem:[#allocation2 + $0x154] sm:$0xff]
    %v3167 = vld [vmem:[#allocation2 + $0x15c] sm:$0xff]
    %v3168 = vld [vmem:[#allocation2 + $0x16c] sm:$0xff]
    %v3169 = vld [vmem:[#allocation2 + $0x174] sm:$0xff]
    %v3170 = vld [vmem:[#allocation2 + $0x184] sm:$0xff]
    %v3171 = vld [vmem:[#allocation2 + $0x18c] sm:$0xff]
    %v3172 = vld [vmem:[#allocation2 + $0x19c] sm:$0xff]
    %v3173 = vld [vmem:[#allocation2 + $0x1a4] sm:$0xff]
    %v3174 = vld [vmem:[#allocation2 + $0x1b4] sm:$0xff]
    %v3175 = vld [vmem:[#allocation2 + $0x1bc] sm:$0xff]
    %v3176 = vld [vmem:[#allocation2 + $0x1cc] sm:$0xff]
    %v3177 = vld [vmem:[#allocation2 + $0x1d4] sm:$0xff]
    %v3178 = vld [vmem:[#allocation2 + $0x1e4] sm:$0xff]
    %v3179 = vld [vmem:[#allocation2 + $0x1ec] sm:$0xff]
    %v3180 = vld [vmem:[#allocation2 + $0x1fc] sm:$0xff]
    %v3181 = vld [vmem:[#allocation2 + $0x204] sm:$0xff]
    %v3182 = vld [vmem:[#allocation2 + $0x214] sm:$0xff]
    %v3183 = vld [vmem:[#allocation2 + $0x21c] sm:$0xff]
    %v3184 = vld [vmem:[#allocation2 + $0x22c] sm:$0xff]
    %v3185 = vld [vmem:[#allocation2 + $0x234] sm:$0xff]
    %v3186 = vld [vmem:[#allocation2 + $0x244] sm:$0xff]
    %v3187 = vld [vmem:[#allocation2 + $0x24c] sm:$0xff]
    %v3188 = vld [vmem:[#allocation2 + $0x25c] sm:$0xff]
    %v3189 = vld [vmem:[#allocation2 + $0x264] sm:$0xff]
    %v3190 = vld [vmem:[#allocation2 + $0x274] sm:$0xff]
    %v3191 = vld [vmem:[#allocation2 + $0x27c] sm:$0xff]
    %v3192 = vld [vmem:[#allocation2 + $0x28c] sm:$0xff]
    %v3193 = vld [vmem:[#allocation2 + $0x294] sm:$0xff]
    %v3194 = vld [vmem:[#allocation2 + $0x2a4] sm:$0xff]
    %v3195 = vld [vmem:[#allocation2 + $0x2ac] sm:$0xff]
    %v3196 = vld [vmem:[#allocation2 + $0x2bc] sm:$0xff]
    %v3197 = vld [vmem:[#allocation2 + $0x2c4] sm:$0xff]
    %v3198 = vld [vmem:[#allocation2 + $0x2d4] sm:$0xff]
    %v3199 = vld [vmem:[#allocation2 + $0x2dc] sm:$0xff]
    %v3200 = vld [vmem:[#allocation2 + $0x2ec] sm:$0xff]
    %v3201 = vld [vmem:[#allocation2 + $0x2f4] sm:$0xff]
    %v3202 = vld [vmem:[#allocation2 + $0x304] sm:$0xff]
    %v3203 = vld [vmem:[#allocation2 + $0x30c] sm:$0xff]
    %v3204 = vld [vmem:[#allocation2 + $0x31c] sm:$0xff]
    %v3205 = vld [vmem:[#allocation2 + $0x324] sm:$0xff]
    %v3206 = vld [vmem:[#allocation2 + $0x334] sm:$0xff]
    %v3207 = vld [vmem:[#allocation2 + $0x33c] sm:$0xff]
    %v3208 = vld [vmem:[#allocation2 + $0x34c] sm:$0xff]
    %v3209 = vld [vmem:[#allocation2 + $0x354] sm:$0xff]
    %v3210 = vld [vmem:[#allocation2 + $0x364] sm:$0xff]
    %v3211 = vld [vmem:[#allocation2 + $0x36c] sm:$0xff]
    %v3212 = vld [vmem:[#allocation2 + $0x37c] sm:$0xff]
    %v3213 = vld [vmem:[#allocation2 + $0x384] sm:$0xff]
    %v3214 = vld [vmem:[#allocation2 + $0x394] sm:$0xff]
    %v3215 = vld [vmem:[#allocation2 + $0x39c] sm:$0xff]
    %v3216 = vld [vmem:[#allocation2 + $0x3ac] sm:$0xff]
    %v3217 = vld [vmem:[#allocation2 + $0x3b4] sm:$0xff]
    %v3218 = vpack.c.bf16 %v3139, %v3138
    %v3219 = vpack.c.bf16 %v3141, %v3140
    %v3220 = vpack.c.bf16 %v3143, %v3142
    %v3221 = vpack.c.bf16 %v3145, %v3144
    %v3222 = vpack.c.bf16 %v3147, %v3146
    %v3223 = vpack.c.bf16 %v3149, %v3148
    %v3224 = vpack.c.bf16 %v3151, %v3150
    %v3225 = vpack.c.bf16 %v3153, %v3152
    %v3226 = vpack.c.bf16 %v3155, %v3154
    %v3227 = vpack.c.bf16 %v3157, %v3156
    %v3228 = vpack.c.bf16 %v3159, %v3158
    %v3229 = vpack.c.bf16 %v3161, %v3160
    %v3230 = vpack.c.bf16 %v3163, %v3162
    %v3231 = vpack.c.bf16 %v3165, %v3164
    %v3232 = vpack.c.bf16 %v3167, %v3166
    %v3233 = vpack.c.bf16 %v3169, %v3168
    %v3234 = vpack.c.bf16 %v3171, %v3170
    %v3235 = vpack.c.bf16 %v3173, %v3172
    %v3236 = vpack.c.bf16 %v3175, %v3174
    %v3237 = vpack.c.bf16 %v3177, %v3176
    %v3238 = vpack.c.bf16 %v3179, %v3178
    %v3239 = vpack.c.bf16 %v3181, %v3180
    %v3240 = vpack.c.bf16 %v3183, %v3182
    %v3241 = vpack.c.bf16 %v3185, %v3184
    %v3242 = vpack.c.bf16 %v3187, %v3186
    %v3243 = vpack.c.bf16 %v3189, %v3188
    %v3244 = vpack.c.bf16 %v3191, %v3190
    %v3245 = vpack.c.bf16 %v3193, %v3192
    %v3246 = vpack.c.bf16 %v3195, %v3194
    %v3247 = vpack.c.bf16 %v3197, %v3196
    %v3248 = vpack.c.bf16 %v3199, %v3198
    %v3249 = vpack.c.bf16 %v3201, %v3200
    %v3250 = vpack.c.bf16 %v3203, %v3202
    %v3251 = vpack.c.bf16 %v3205, %v3204
    %v3252 = vpack.c.bf16 %v3207, %v3206
    %v3253 = vpack.c.bf16 %v3209, %v3208
    %v3254 = vpack.c.bf16 %v3211, %v3210
    %v3255 = vpack.c.bf16 %v3213, %v3212
    %v3256 = vpack.c.bf16 %v3215, %v3214
    %v3257 = vpack.c.bf16 %v3217, %v3216
    %v3298 = vunpack.c.l.b16 %v3218
    %v3299 = vunpack.c.h.b16 %v3218
    %v3300 = vunpack.c.l.b16 %v3219
    %v3301 = vunpack.c.h.b16 %v3219
    %v3302 = vunpack.c.l.b16 %v3220
    %v3303 = vunpack.c.h.b16 %v3220
    %v3304 = vunpack.c.l.b16 %v3221
    %v3305 = vunpack.c.h.b16 %v3221
    %v3306 = vunpack.c.l.b16 %v3222
    %v3307 = vunpack.c.h.b16 %v3222
    %v3308 = vunpack.c.l.b16 %v3223
    %v3309 = vunpack.c.h.b16 %v3223
    %v3310 = vunpack.c.l.b16 %v3224
    %v3311 = vunpack.c.h.b16 %v3224
    %v3312 = vunpack.c.l.b16 %v3225
    %v3313 = vunpack.c.h.b16 %v3225
    %v3314 = vunpack.c.l.b16 %v3226
    %v3315 = vunpack.c.h.b16 %v3226
    %v3316 = vunpack.c.l.b16 %v3227
    %v3317 = vunpack.c.h.b16 %v3227
    %v3318 = vunpack.c.l.b16 %v3228
    %v3319 = vunpack.c.h.b16 %v3228
    %v3320 = vunpack.c.l.b16 %v3229
    %v3321 = vunpack.c.h.b16 %v3229
    %v3322 = vunpack.c.l.b16 %v3230
    %v3323 = vunpack.c.h.b16 %v3230
    %v3324 = vunpack.c.l.b16 %v3231
    %v3325 = vunpack.c.h.b16 %v3231
    %v3326 = vunpack.c.l.b16 %v3232
    %v3327 = vunpack.c.h.b16 %v3232
    %v3328 = vunpack.c.l.b16 %v3233
    %v3329 = vunpack.c.h.b16 %v3233
    %v3330 = vunpack.c.l.b16 %v3234
    %v3331 = vunpack.c.h.b16 %v3234
    %v3332 = vunpack.c.l.b16 %v3235
    %v3333 = vunpack.c.h.b16 %v3235
    %v3334 = vunpack.c.l.b16 %v3236
    %v3335 = vunpack.c.h.b16 %v3236
    %v3336 = vunpack.c.l.b16 %v3237
    %v3337 = vunpack.c.h.b16 %v3237
    %v3338 = vunpack.c.l.b16 %v3238
    %v3339 = vunpack.c.h.b16 %v3238
    %v3340 = vunpack.c.l.b16 %v3239
    %v3341 = vunpack.c.h.b16 %v3239
    %v3342 = vunpack.c.l.b16 %v3240
    %v3343 = vunpack.c.h.b16 %v3240
    %v3344 = vunpack.c.l.b16 %v3241
    %v3345 = vunpack.c.h.b16 %v3241
    %v3346 = vunpack.c.l.b16 %v3242
    %v3347 = vunpack.c.h.b16 %v3242
    %v3348 = vunpack.c.l.b16 %v3243
    %v3349 = vunpack.c.h.b16 %v3243
    %v3350 = vunpack.c.l.b16 %v3244
    %v3351 = vunpack.c.h.b16 %v3244
    %v3352 = vunpack.c.l.b16 %v3245
    %v3353 = vunpack.c.h.b16 %v3245
    %v3354 = vunpack.c.l.b16 %v3246
    %v3355 = vunpack.c.h.b16 %v3246
    %v3356 = vunpack.c.l.b16 %v3247
    %v3357 = vunpack.c.h.b16 %v3247
    %v3358 = vunpack.c.l.b16 %v3248
    %v3359 = vunpack.c.h.b16 %v3248
    %v3360 = vunpack.c.l.b16 %v3249
    %v3361 = vunpack.c.h.b16 %v3249
    %v3362 = vunpack.c.l.b16 %v3250
    %v3363 = vunpack.c.h.b16 %v3250
    %v3364 = vunpack.c.l.b16 %v3251
    %v3365 = vunpack.c.h.b16 %v3251
    %v3366 = vunpack.c.l.b16 %v3252
    %v3367 = vunpack.c.h.b16 %v3252
    %v3368 = vunpack.c.l.b16 %v3253
    %v3369 = vunpack.c.h.b16 %v3253
    %v3370 = vunpack.c.l.b16 %v3254
    %v3371 = vunpack.c.h.b16 %v3254
    %v3372 = vunpack.c.l.b16 %v3255
    %v3373 = vunpack.c.h.b16 %v3255
    %v3374 = vunpack.c.l.b16 %v3256
    %v3375 = vunpack.c.h.b16 %v3256
    %v3376 = vunpack.c.l.b16 %v3257
    %v3377 = vunpack.c.h.b16 %v3257
    %v3378 = vpack.c.b16 %v3298, %v3298
    %v3379 = vpack.c.b16 %v3299, %v3299
    %v3380 = vpack.c.b16 %v3300, %v3300
    %v3381 = vpack.c.b16 %v3301, %v3301
    %v3382 = vpack.c.b16 %v3302, %v3302
    %v3383 = vpack.c.b16 %v3303, %v3303
    %v3384 = vpack.c.b16 %v3304, %v3304
    %v3385 = vpack.c.b16 %v3305, %v3305
    %v3386 = vpack.c.b16 %v3306, %v3306
    %v3387 = vpack.c.b16 %v3307, %v3307
    %v3388 = vpack.c.b16 %v3308, %v3308
    %v3389 = vpack.c.b16 %v3309, %v3309
    %v3390 = vpack.c.b16 %v3310, %v3310
    %v3391 = vpack.c.b16 %v3311, %v3311
    %v3392 = vpack.c.b16 %v3312, %v3312
    %v3393 = vpack.c.b16 %v3313, %v3313
    %v3394 = vpack.c.b16 %v3314, %v3314
    %v3395 = vpack.c.b16 %v3315, %v3315
    %v3396 = vpack.c.b16 %v3316, %v3316
    %v3397 = vpack.c.b16 %v3317, %v3317
    %v3398 = vpack.c.b16 %v3318, %v3318
    %v3399 = vpack.c.b16 %v3319, %v3319
    %v3400 = vpack.c.b16 %v3320, %v3320
    %v3401 = vpack.c.b16 %v3321, %v3321
    %v3402 = vpack.c.b16 %v3322, %v3322
    %v3403 = vpack.c.b16 %v3323, %v3323
    %v3404 = vpack.c.b16 %v3324, %v3324
    %v3405 = vpack.c.b16 %v3325, %v3325
    %v3406 = vpack.c.b16 %v3326, %v3326
    %v3407 = vpack.c.b16 %v3327, %v3327
    %v3408 = vpack.c.b16 %v3328, %v3328
    %v3409 = vpack.c.b16 %v3329, %v3329
    %v3410 = vpack.c.b16 %v3330, %v3330
    %v3411 = vpack.c.b16 %v3331, %v3331
    %v3412 = vpack.c.b16 %v3332, %v3332
    %v3413 = vpack.c.b16 %v3333, %v3333
    %v3414 = vpack.c.b16 %v3334, %v3334
    %v3415 = vpack.c.b16 %v3335, %v3335
    %v3416 = vpack.c.b16 %v3336, %v3336
    %v3417 = vpack.c.b16 %v3337, %v3337
    %v3418 = vpack.c.b16 %v3338, %v3338
    %v3419 = vpack.c.b16 %v3339, %v3339
    %v3420 = vpack.c.b16 %v3340, %v3340
    %v3421 = vpack.c.b16 %v3341, %v3341
    %v3422 = vpack.c.b16 %v3342, %v3342
    %v3423 = vpack.c.b16 %v3343, %v3343
    %v3424 = vpack.c.b16 %v3344, %v3344
    %v3425 = vpack.c.b16 %v3345, %v3345
    %v3426 = vpack.c.b16 %v3346, %v3346
    %v3427 = vpack.c.b16 %v3347, %v3347
    %v3428 = vpack.c.b16 %v3348, %v3348
    %v3429 = vpack.c.b16 %v3349, %v3349
    %v3430 = vpack.c.b16 %v3350, %v3350
    %v3431 = vpack.c.b16 %v3351, %v3351
    %v3432 = vpack.c.b16 %v3352, %v3352
    %v3433 = vpack.c.b16 %v3353, %v3353
    %v3434 = vpack.c.b16 %v3354, %v3354
    %v3435 = vpack.c.b16 %v3355, %v3355
    %v3436 = vpack.c.b16 %v3356, %v3356
    %v3437 = vpack.c.b16 %v3357, %v3357
    %v3438 = vpack.c.b16 %v3358, %v3358
    %v3439 = vpack.c.b16 %v3359, %v3359
    %v3440 = vpack.c.b16 %v3360, %v3360
    %v3441 = vpack.c.b16 %v3361, %v3361
    %v3442 = vpack.c.b16 %v3362, %v3362
    %v3443 = vpack.c.b16 %v3363, %v3363
    %v3444 = vpack.c.b16 %v3364, %v3364
    %v3445 = vpack.c.b16 %v3365, %v3365
    %v3446 = vpack.c.b16 %v3366, %v3366
    %v3447 = vpack.c.b16 %v3367, %v3367
    %v3448 = vpack.c.b16 %v3368, %v3368
    %v3449 = vpack.c.b16 %v3369, %v3369
    %v3450 = vpack.c.b16 %v3370, %v3370
    %v3451 = vpack.c.b16 %v3371, %v3371
    %v3452 = vpack.c.b16 %v3372, %v3372
    %v3453 = vpack.c.b16 %v3373, %v3373
    %v3454 = vpack.c.b16 %v3374, %v3374
    %v3455 = vpack.c.b16 %v3375, %v3375
    %v3456 = vpack.c.b16 %v3376, %v3376
    %v3457 = vpack.c.b16 %v3377, %v3377
    %3538 = vst.msk [vmem:[#allocation3 + $0x8] sm:$0xf] %vm1296, %v3378
    %3539 = vst.msk [vmem:[#allocation3 + $0x14] sm:$0xf] %vm1296, %v3379
    %3540 = vst.msk [vmem:[#allocation3 + $0x20] sm:$0xf] %vm1296, %v3380
    %3541 = vst.msk [vmem:[#allocation3 + $0x2c] sm:$0xf] %vm1296, %v3381
    %3542 = vst.msk [vmem:[#allocation3 + $0x38] sm:$0xf] %vm1296, %v3382
    %3543 = vst.msk [vmem:[#allocation3 + $0x44] sm:$0xf] %vm1296, %v3383
    %3544 = vst.msk [vmem:[#allocation3 + $0x50] sm:$0xf] %vm1296, %v3384
    %3545 = vst.msk [vmem:[#allocation3 + $0x5c] sm:$0xf] %vm1296, %v3385
    %3546 = vst.msk [vmem:[#allocation3 + $0x68] sm:$0xf] %vm1296, %v3386
    %3547 = vst.msk [vmem:[#allocation3 + $0x74] sm:$0xf] %vm1296, %v3387
    %3548 = vst.msk [vmem:[#allocation3 + $0x80] sm:$0xf] %vm1296, %v3388
    %3549 = vst.msk [vmem:[#allocation3 + $0x8c] sm:$0xf] %vm1296, %v3389
    %3550 = vst.msk [vmem:[#allocation3 + $0x98] sm:$0xf] %vm1296, %v3390
    %3551 = vst.msk [vmem:[#allocation3 + $0xa4] sm:$0xf] %vm1296, %v3391
    %3552 = vst.msk [vmem:[#allocation3 + $0xb0] sm:$0xf] %vm1296, %v3392
    %3553 = vst.msk [vmem:[#allocation3 + $0xbc] sm:$0xf] %vm1296, %v3393
    %3554 = vst.msk [vmem:[#allocation3 + $0xc8] sm:$0xf] %vm1296, %v3394
    %3555 = vst.msk [vmem:[#allocation3 + $0xd4] sm:$0xf] %vm1296, %v3395
    %3556 = vst.msk [vmem:[#allocation3 + $0xe0] sm:$0xf] %vm1296, %v3396
    %3557 = vst.msk [vmem:[#allocation3 + $0xec] sm:$0xf] %vm1296, %v3397
    %3558 = vst.msk [vmem:[#allocation3 + $0xf8] sm:$0xf] %vm1296, %v3398
    %3559 = vst.msk [vmem:[#allocation3 + $0x104] sm:$0xf] %vm1296, %v3399
    %3560 = vst.msk [vmem:[#allocation3 + $0x110] sm:$0xf] %vm1296, %v3400
    %3561 = vst.msk [vmem:[#allocation3 + $0x11c] sm:$0xf] %vm1296, %v3401
    %3562 = vst.msk [vmem:[#allocation3 + $0x128] sm:$0xf] %vm1296, %v3402
    %3563 = vst.msk [vmem:[#allocation3 + $0x134] sm:$0xf] %vm1296, %v3403
    %3564 = vst.msk [vmem:[#allocation3 + $0x140] sm:$0xf] %vm1296, %v3404
    %3565 = vst.msk [vmem:[#allocation3 + $0x14c] sm:$0xf] %vm1296, %v3405
    %3566 = vst.msk [vmem:[#allocation3 + $0x158] sm:$0xf] %vm1296, %v3406
    %3567 = vst.msk [vmem:[#allocation3 + $0x164] sm:$0xf] %vm1296, %v3407
    %3568 = vst.msk [vmem:[#allocation3 + $0x170] sm:$0xf] %vm1296, %v3408
    %3569 = vst.msk [vmem:[#allocation3 + $0x17c] sm:$0xf] %vm1296, %v3409
    %3570 = vst.msk [vmem:[#allocation3 + $0x188] sm:$0xf] %vm1296, %v3410
    %3571 = vst.msk [vmem:[#allocation3 + $0x194] sm:$0xf] %vm1296, %v3411
    %3572 = vst.msk [vmem:[#allocation3 + $0x1a0] sm:$0xf] %vm1296, %v3412
    %3573 = vst.msk [vmem:[#allocation3 + $0x1ac] sm:$0xf] %vm1296, %v3413
    %3574 = vst.msk [vmem:[#allocation3 + $0x1b8] sm:$0xf] %vm1296, %v3414
    %3575 = vst.msk [vmem:[#allocation3 + $0x1c4] sm:$0xf] %vm1296, %v3415
    %3576 = vst.msk [vmem:[#allocation3 + $0x1d0] sm:$0xf] %vm1296, %v3416
    %3577 = vst.msk [vmem:[#allocation3 + $0x1dc] sm:$0xf] %vm1296, %v3417
    %3578 = vst.msk [vmem:[#allocation3 + $0x1e8] sm:$0xf] %vm1296, %v3418
    %3579 = vst.msk [vmem:[#allocation3 + $0x1f4] sm:$0xf] %vm1296, %v3419
    %3580 = vst.msk [vmem:[#allocation3 + $0x200] sm:$0xf] %vm1296, %v3420
    %3581 = vst.msk [vmem:[#allocation3 + $0x20c] sm:$0xf] %vm1296, %v3421
    %3582 = vst.msk [vmem:[#allocation3 + $0x218] sm:$0xf] %vm1296, %v3422
    %3583 = vst.msk [vmem:[#allocation3 + $0x224] sm:$0xf] %vm1296, %v3423
    %3584 = vst.msk [vmem:[#allocation3 + $0x230] sm:$0xf] %vm1296, %v3424
    %3585 = vst.msk [vmem:[#allocation3 + $0x23c] sm:$0xf] %vm1296, %v3425
    %3586 = vst.msk [vmem:[#allocation3 + $0x248] sm:$0xf] %vm1296, %v3426
    %3587 = vst.msk [vmem:[#allocation3 + $0x254] sm:$0xf] %vm1296, %v3427
    %3588 = vst.msk [vmem:[#allocation3 + $0x260] sm:$0xf] %vm1296, %v3428
    %3589 = vst.msk [vmem:[#allocation3 + $0x26c] sm:$0xf] %vm1296, %v3429
    %3590 = vst.msk [vmem:[#allocation3 + $0x278] sm:$0xf] %vm1296, %v3430
    %3591 = vst.msk [vmem:[#allocation3 + $0x284] sm:$0xf] %vm1296, %v3431
    %3592 = vst.msk [vmem:[#allocation3 + $0x290] sm:$0xf] %vm1296, %v3432
    %3593 = vst.msk [vmem:[#allocation3 + $0x29c] sm:$0xf] %vm1296, %v3433
    %3594 = vst.msk [vmem:[#allocation3 + $0x2a8] sm:$0xf] %vm1296, %v3434
    %3595 = vst.msk [vmem:[#allocation3 + $0x2b4] sm:$0xf] %vm1296, %v3435
    %3596 = vst.msk [vmem:[#allocation3 + $0x2c0] sm:$0xf] %vm1296, %v3436
    %3597 = vst.msk [vmem:[#allocation3 + $0x2cc] sm:$0xf] %vm1296, %v3437
    %3598 = vst.msk [vmem:[#allocation3 + $0x2d8] sm:$0xf] %vm1296, %v3438
    %3599 = vst.msk [vmem:[#allocation3 + $0x2e4] sm:$0xf] %vm1296, %v3439
    %3600 = vst.msk [vmem:[#allocation3 + $0x2f0] sm:$0xf] %vm1296, %v3440
    %3601 = vst.msk [vmem:[#allocation3 + $0x2fc] sm:$0xf] %vm1296, %v3441
    %3602 = vst.msk [vmem:[#allocation3 + $0x308] sm:$0xf] %vm1296, %v3442
    %3603 = vst.msk [vmem:[#allocation3 + $0x314] sm:$0xf] %vm1296, %v3443
    %3604 = vst.msk [vmem:[#allocation3 + $0x320] sm:$0xf] %vm1296, %v3444
    %3605 = vst.msk [vmem:[#allocation3 + $0x32c] sm:$0xf] %vm1296, %v3445
    %3606 = vst.msk [vmem:[#allocation3 + $0x338] sm:$0xf] %vm1296, %v3446
    %3607 = vst.msk [vmem:[#allocation3 + $0x344] sm:$0xf] %vm1296, %v3447
    %3608 = vst.msk [vmem:[#allocation3 + $0x350] sm:$0xf] %vm1296, %v3448
    %3609 = vst.msk [vmem:[#allocation3 + $0x35c] sm:$0xf] %vm1296, %v3449
    %3610 = vst.msk [vmem:[#allocation3 + $0x368] sm:$0xf] %vm1296, %v3450
    %3611 = vst.msk [vmem:[#allocation3 + $0x374] sm:$0xf] %vm1296, %v3451
    %3612 = vst.msk [vmem:[#allocation3 + $0x380] sm:$0xf] %vm1296, %v3452
    %3613 = vst.msk [vmem:[#allocation3 + $0x38c] sm:$0xf] %vm1296, %v3453
    %3614 = vst.msk [vmem:[#allocation3 + $0x398] sm:$0xf] %vm1296, %v3454
    %3615 = vst.msk [vmem:[#allocation3 + $0x3a4] sm:$0xf] %vm1296, %v3455
    %3616 = vst.msk [vmem:[#allocation3 + $0x3b0] sm:$0xf] %vm1296, %v3456
    %3617 = vst.msk [vmem:[#allocation3 + $0x3bc] sm:$0xf] %vm1296, %v3457
    %v3618 = vld [vmem:[#allocation3] sm:$0xff]
    %v3619 = vld [vmem:[#allocation3 + $0x8] sm:$0xf]
    %v3620 = vld [vmem:[#allocation3 + $0xc] sm:$0xff]
    %v3621 = vld [vmem:[#allocation3 + $0x14] sm:$0xf]
    %v3622 = vld [vmem:[#allocation3 + $0x18] sm:$0xff]
    %v3623 = vld [vmem:[#allocation3 + $0x20] sm:$0xf]
    %v3624 = vld [vmem:[#allocation3 + $0x24] sm:$0xff]
    %v3625 = vld [vmem:[#allocation3 + $0x2c] sm:$0xf]
    %v3626 = vld [vmem:[#allocation3 + $0x30] sm:$0xff]
    %v3627 = vld [vmem:[#allocation3 + $0x38] sm:$0xf]
    %v3628 = vld [vmem:[#allocation3 + $0x3c] sm:$0xff]
    %v3629 = vld [vmem:[#allocation3 + $0x44] sm:$0xf]
    %v3630 = vld [vmem:[#allocation3 + $0x48] sm:$0xff]
    %v3631 = vld [vmem:[#allocation3 + $0x50] sm:$0xf]
    %v3632 = vld [vmem:[#allocation3 + $0x54] sm:$0xff]
    %v3633 = vld [vmem:[#allocation3 + $0x5c] sm:$0xf]
    %v3634 = vld [vmem:[#allocation3 + $0x60] sm:$0xff]
    %v3635 = vld [vmem:[#allocation3 + $0x68] sm:$0xf]
    %v3636 = vld [vmem:[#allocation3 + $0x6c] sm:$0xff]
    %v3637 = vld [vmem:[#allocation3 + $0x74] sm:$0xf]
    %v3638 = vld [vmem:[#allocation3 + $0x78] sm:$0xff]
    %v3639 = vld [vmem:[#allocation3 + $0x80] sm:$0xf]
    %v3640 = vld [vmem:[#allocation3 + $0x84] sm:$0xff]
    %v3641 = vld [vmem:[#allocation3 + $0x8c] sm:$0xf]
    %v3642 = vld [vmem:[#allocation3 + $0x90] sm:$0xff]
    %v3643 = vld [vmem:[#allocation3 + $0x98] sm:$0xf]
    %v3644 = vld [vmem:[#allocation3 + $0x9c] sm:$0xff]
    %v3645 = vld [vmem:[#allocation3 + $0xa4] sm:$0xf]
    %v3646 = vld [vmem:[#allocation3 + $0xa8] sm:$0xff]
    %v3647 = vld [vmem:[#allocation3 + $0xb0] sm:$0xf]
    %v3648 = vld [vmem:[#allocation3 + $0xb4] sm:$0xff]
    %v3649 = vld [vmem:[#allocation3 + $0xbc] sm:$0xf]
    %v3650 = vld [vmem:[#allocation3 + $0xc0] sm:$0xff]
    %v3651 = vld [vmem:[#allocation3 + $0xc8] sm:$0xf]
    %v3652 = vld [vmem:[#allocation3 + $0xcc] sm:$0xff]
    %v3653 = vld [vmem:[#allocation3 + $0xd4] sm:$0xf]
    %v3654 = vld [vmem:[#allocation3 + $0xd8] sm:$0xff]
    %v3655 = vld [vmem:[#allocation3 + $0xe0] sm:$0xf]
    %v3656 = vld [vmem:[#allocation3 + $0xe4] sm:$0xff]
    %v3657 = vld [vmem:[#allocation3 + $0xec] sm:$0xf]
    %v3658 = vld [vmem:[#allocation3 + $0xf0] sm:$0xff]
    %v3659 = vld [vmem:[#allocation3 + $0xf8] sm:$0xf]
    %v3660 = vld [vmem:[#allocation3 + $0xfc] sm:$0xff]
    %v3661 = vld [vmem:[#allocation3 + $0x104] sm:$0xf]
    %v3662 = vld [vmem:[#allocation3 + $0x108] sm:$0xff]
    %v3663 = vld [vmem:[#allocation3 + $0x110] sm:$0xf]
    %v3664 = vld [vmem:[#allocation3 + $0x114] sm:$0xff]
    %v3665 = vld [vmem:[#allocation3 + $0x11c] sm:$0xf]
    %v3666 = vld [vmem:[#allocation3 + $0x120] sm:$0xff]
    %v3667 = vld [vmem:[#allocation3 + $0x128] sm:$0xf]
    %v3668 = vld [vmem:[#allocation3 + $0x12c] sm:$0xff]
    %v3669 = vld [vmem:[#allocation3 + $0x134] sm:$0xf]
    %v3670 = vld [vmem:[#allocation3 + $0x138] sm:$0xff]
    %v3671 = vld [vmem:[#allocation3 + $0x140] sm:$0xf]
    %v3672 = vld [vmem:[#allocation3 + $0x144] sm:$0xff]
    %v3673 = vld [vmem:[#allocation3 + $0x14c] sm:$0xf]
    %v3674 = vld [vmem:[#allocation3 + $0x150] sm:$0xff]
    %v3675 = vld [vmem:[#allocation3 + $0x158] sm:$0xf]
    %v3676 = vld [vmem:[#allocation3 + $0x15c] sm:$0xff]
    %v3677 = vld [vmem:[#allocation3 + $0x164] sm:$0xf]
    %v3678 = vld [vmem:[#allocation3 + $0x168] sm:$0xff]
    %v3679 = vld [vmem:[#allocation3 + $0x170] sm:$0xf]
    %v3680 = vld [vmem:[#allocation3 + $0x174] sm:$0xff]
    %v3681 = vld [vmem:[#allocation3 + $0x17c] sm:$0xf]
    %v3682 = vld [vmem:[#allocation3 + $0x180] sm:$0xff]
    %v3683 = vld [vmem:[#allocation3 + $0x188] sm:$0xf]
    %v3684 = vld [vmem:[#allocation3 + $0x18c] sm:$0xff]
    %v3685 = vld [vmem:[#allocation3 + $0x194] sm:$0xf]
    %v3686 = vld [vmem:[#allocation3 + $0x198] sm:$0xff]
    %v3687 = vld [vmem:[#allocation3 + $0x1a0] sm:$0xf]
    %v3688 = vld [vmem:[#allocation3 + $0x1a4] sm:$0xff]
    %v3689 = vld [vmem:[#allocation3 + $0x1ac] sm:$0xf]
    %v3690 = vld [vmem:[#allocation3 + $0x1b0] sm:$0xff]
    %v3691 = vld [vmem:[#allocation3 + $0x1b8] sm:$0xf]
    %v3692 = vld [vmem:[#allocation3 + $0x1bc] sm:$0xff]
    %v3693 = vld [vmem:[#allocation3 + $0x1c4] sm:$0xf]
    %v3694 = vld [vmem:[#allocation3 + $0x1c8] sm:$0xff]
    %v3695 = vld [vmem:[#allocation3 + $0x1d0] sm:$0xf]
    %v3696 = vld [vmem:[#allocation3 + $0x1d4] sm:$0xff]
    %v3697 = vld [vmem:[#allocation3 + $0x1dc] sm:$0xf]
    %v3698 = vld [vmem:[#allocation3 + $0x1e0] sm:$0xff]
    %v3699 = vld [vmem:[#allocation3 + $0x1e8] sm:$0xf]
    %v3700 = vld [vmem:[#allocation3 + $0x1ec] sm:$0xff]
    %v3701 = vld [vmem:[#allocation3 + $0x1f4] sm:$0xf]
    %v3702 = vld [vmem:[#allocation3 + $0x1f8] sm:$0xff]
    %v3703 = vld [vmem:[#allocation3 + $0x200] sm:$0xf]
    %v3704 = vld [vmem:[#allocation3 + $0x204] sm:$0xff]
    %v3705 = vld [vmem:[#allocation3 + $0x20c] sm:$0xf]
    %v3706 = vld [vmem:[#allocation3 + $0x210] sm:$0xff]
    %v3707 = vld [vmem:[#allocation3 + $0x218] sm:$0xf]
    %v3708 = vld [vmem:[#allocation3 + $0x21c] sm:$0xff]
    %v3709 = vld [vmem:[#allocation3 + $0x224] sm:$0xf]
    %v3710 = vld [vmem:[#allocation3 + $0x228] sm:$0xff]
    %v3711 = vld [vmem:[#allocation3 + $0x230] sm:$0xf]
    %v3712 = vld [vmem:[#allocation3 + $0x234] sm:$0xff]
    %v3713 = vld [vmem:[#allocation3 + $0x23c] sm:$0xf]
    %v3714 = vld [vmem:[#allocation3 + $0x240] sm:$0xff]
    %v3715 = vld [vmem:[#allocation3 + $0x248] sm:$0xf]
    %v3716 = vld [vmem:[#allocation3 + $0x24c] sm:$0xff]
    %v3717 = vld [vmem:[#allocation3 + $0x254] sm:$0xf]
    %v3718 = vld [vmem:[#allocation3 + $0x258] sm:$0xff]
    %v3719 = vld [vmem:[#allocation3 + $0x260] sm:$0xf]
    %v3720 = vld [vmem:[#allocation3 + $0x264] sm:$0xff]
    %v3721 = vld [vmem:[#allocation3 + $0x26c] sm:$0xf]
    %v3722 = vld [vmem:[#allocation3 + $0x270] sm:$0xff]
    %v3723 = vld [vmem:[#allocation3 + $0x278] sm:$0xf]
    %v3724 = vld [vmem:[#allocation3 + $0x27c] sm:$0xff]
    %v3725 = vld [vmem:[#allocation3 + $0x284] sm:$0xf]
    %v3726 = vld [vmem:[#allocation3 + $0x288] sm:$0xff]
    %v3727 = vld [vmem:[#allocation3 + $0x290] sm:$0xf]
    %v3728 = vld [vmem:[#allocation3 + $0x294] sm:$0xff]
    %v3729 = vld [vmem:[#allocation3 + $0x29c] sm:$0xf]
    %v3730 = vld [vmem:[#allocation3 + $0x2a0] sm:$0xff]
    %v3731 = vld [vmem:[#allocation3 + $0x2a8] sm:$0xf]
    %v3732 = vld [vmem:[#allocation3 + $0x2ac] sm:$0xff]
    %v3733 = vld [vmem:[#allocation3 + $0x2b4] sm:$0xf]
    %v3734 = vld [vmem:[#allocation3 + $0x2b8] sm:$0xff]
    %v3735 = vld [vmem:[#allocation3 + $0x2c0] sm:$0xf]
    %v3736 = vld [vmem:[#allocation3 + $0x2c4] sm:$0xff]
    %v3737 = vld [vmem:[#allocation3 + $0x2cc] sm:$0xf]
    %v3738 = vld [vmem:[#allocation3 + $0x2d0] sm:$0xff]
    %v3739 = vld [vmem:[#allocation3 + $0x2d8] sm:$0xf]
    %v3740 = vld [vmem:[#allocation3 + $0x2dc] sm:$0xff]
    %v3741 = vld [vmem:[#allocation3 + $0x2e4] sm:$0xf]
    %v3742 = vld [vmem:[#allocation3 + $0x2e8] sm:$0xff]
    %v3743 = vld [vmem:[#allocation3 + $0x2f0] sm:$0xf]
    %v3744 = vld [vmem:[#allocation3 + $0x2f4] sm:$0xff]
    %v3745 = vld [vmem:[#allocation3 + $0x2fc] sm:$0xf]
    %v3746 = vld [vmem:[#allocation4] sm:$0xf]
    %v3747 = vld [vmem:[#allocation4 + $0x4] sm:$0xf]
    %v3748 = vld [vmem:[#allocation4 + $0x8] sm:$0xf]
    %v3749 = vld [vmem:[#allocation4 + $0xc] sm:$0xf]
    %v3750 = vld [vmem:[#allocation4 + $0x10] sm:$0xf]
    %v3751 = vld [vmem:[#allocation4 + $0x14] sm:$0xf]
    %v3752 = vld [vmem:[#allocation4 + $0x18] sm:$0xf]
    %v3753 = vld [vmem:[#allocation4 + $0x1c] sm:$0xf]
    %v3754 = vld [vmem:[#allocation4 + $0x20] sm:$0xf]
    %v3755 = vld [vmem:[#allocation4 + $0x24] sm:$0xf]
    %v3756 = vld [vmem:[#allocation4 + $0x28] sm:$0xf]
    %v3757 = vld [vmem:[#allocation4 + $0x2c] sm:$0xf]
    %v3758 = vld [vmem:[#allocation4 + $0x30] sm:$0xf]
    %v3759 = vld [vmem:[#allocation4 + $0x34] sm:$0xf]
    %v3760 = vld [vmem:[#allocation4 + $0x38] sm:$0xf]
    %v3761 = vld [vmem:[#allocation4 + $0x3c] sm:$0xf]
    %v3762 = vld [vmem:[#allocation4 + $0x40] sm:$0xf]
    %v3763 = vld [vmem:[#allocation4 + $0x44] sm:$0xf]
    %v3764 = vld [vmem:[#allocation4 + $0x48] sm:$0xf]
    %v3765 = vld [vmem:[#allocation4 + $0x4c] sm:$0xf]
    %v3766 = vld [vmem:[#allocation4 + $0x50] sm:$0xf]
    %v3767 = vld [vmem:[#allocation4 + $0x54] sm:$0xf]
    %v3768 = vld [vmem:[#allocation4 + $0x58] sm:$0xf]
    %v3769 = vld [vmem:[#allocation4 + $0x5c] sm:$0xf]
    %v3770 = vld [vmem:[#allocation4 + $0x60] sm:$0xf]
    %v3771 = vld [vmem:[#allocation4 + $0x64] sm:$0xf]
    %v3772 = vld [vmem:[#allocation4 + $0x68] sm:$0xf]
    %v3773 = vld [vmem:[#allocation4 + $0x6c] sm:$0xf]
    %v3774 = vld [vmem:[#allocation4 + $0x70] sm:$0xf]
    %v3775 = vld [vmem:[#allocation4 + $0x74] sm:$0xf]
    %v3776 = vld [vmem:[#allocation4 + $0x78] sm:$0xf]
    %v3777 = vld [vmem:[#allocation4 + $0x7c] sm:$0xf]
    %v3778 = vld [vmem:[#allocation4 + $0x80] sm:$0xf]
    %v3779 = vld [vmem:[#allocation4 + $0x84] sm:$0xf]
    %v3780 = vld [vmem:[#allocation4 + $0x88] sm:$0xf]
    %v3781 = vld [vmem:[#allocation4 + $0x8c] sm:$0xf]
    %v3782 = vld [vmem:[#allocation4 + $0x90] sm:$0xf]
    %v3783 = vld [vmem:[#allocation4 + $0x94] sm:$0xf]
    %v3784 = vld [vmem:[#allocation4 + $0x98] sm:$0xf]
    %v3785 = vld [vmem:[#allocation4 + $0x9c] sm:$0xf]
    %v3786 = vld [vmem:[#allocation3 + $0x300] sm:$0xff]
    %v3787 = vld [vmem:[#allocation3 + $0x308] sm:$0xf]
    %v3788 = vld [vmem:[#allocation3 + $0x30c] sm:$0xff]
    %v3789 = vld [vmem:[#allocation3 + $0x314] sm:$0xf]
    %v3790 = vld [vmem:[#allocation3 + $0x318] sm:$0xff]
    %v3791 = vld [vmem:[#allocation3 + $0x320] sm:$0xf]
    %v3792 = vld [vmem:[#allocation3 + $0x324] sm:$0xff]
    %v3793 = vld [vmem:[#allocation3 + $0x32c] sm:$0xf]
    %s3794 = scalar_lea.vmem [#allocation4], 160
    %v3795 = vld [vmem:[%s3794] sm:$0xf]
    %v3796 = vld [vmem:[%s3794 + $0x4] sm:$0xf]
    %v3797 = vld [vmem:[%s3794 + $0x8] sm:$0xf]
    %v3798 = vld [vmem:[%s3794 + $0xc] sm:$0xf]
    %v3799 = vld [vmem:[%s3794 + $0x10] sm:$0xf]
    %v3800 = vld [vmem:[%s3794 + $0x14] sm:$0xf]
    %v3801 = vld [vmem:[%s3794 + $0x18] sm:$0xf]
    %v3802 = vld [vmem:[%s3794 + $0x1c] sm:$0xf]
    %v3803 = vld [vmem:[%s3794 + $0x20] sm:$0xf]
    %v3804 = vld [vmem:[%s3794 + $0x24] sm:$0xf]
    %v3805 = vld [vmem:[%s3794 + $0x28] sm:$0xf]
    %v3806 = vld [vmem:[%s3794 + $0x2c] sm:$0xf]
    %v3807 = vld [vmem:[%s3794 + $0x30] sm:$0xf]
    %v3808 = vld [vmem:[%s3794 + $0x34] sm:$0xf]
    %v3809 = vld [vmem:[%s3794 + $0x38] sm:$0xf]
    %v3810 = vld [vmem:[%s3794 + $0x3c] sm:$0xf]
    %v3811 = vld [vmem:[%s3794 + $0x40] sm:$0xf]
    %v3812 = vld [vmem:[%s3794 + $0x44] sm:$0xf]
    %v3813 = vld [vmem:[%s3794 + $0x48] sm:$0xf]
    %v3814 = vld [vmem:[%s3794 + $0x4c] sm:$0xf]
    %v3815 = vld [vmem:[%s3794 + $0x50] sm:$0xf]
    %v3816 = vld [vmem:[%s3794 + $0x54] sm:$0xf]
    %v3817 = vld [vmem:[%s3794 + $0x58] sm:$0xf]
    %v3818 = vld [vmem:[%s3794 + $0x5c] sm:$0xf]
    %v3819 = vld [vmem:[%s3794 + $0x60] sm:$0xf]
    %v3820 = vld [vmem:[%s3794 + $0x64] sm:$0xf]
    %v3821 = vld [vmem:[%s3794 + $0x68] sm:$0xf]
    %v3822 = vld [vmem:[%s3794 + $0x6c] sm:$0xf]
    %v3823 = vld [vmem:[%s3794 + $0x70] sm:$0xf]
    %v3824 = vld [vmem:[%s3794 + $0x74] sm:$0xf]
    %v3825 = vld [vmem:[%s3794 + $0x78] sm:$0xf]
    %v3826 = vld [vmem:[%s3794 + $0x7c] sm:$0xf]
    %v3827 = vld [vmem:[%s3794 + $0x80] sm:$0xf]
    %v3828 = vld [vmem:[%s3794 + $0x84] sm:$0xf]
    %v3829 = vld [vmem:[%s3794 + $0x88] sm:$0xf]
    %v3830 = vld [vmem:[%s3794 + $0x8c] sm:$0xf]
    %v3831 = vld [vmem:[%s3794 + $0x90] sm:$0xf]
    %v3832 = vld [vmem:[%s3794 + $0x94] sm:$0xf]
    %v3833 = vld [vmem:[%s3794 + $0x98] sm:$0xf]
    %v3834 = vld [vmem:[%s3794 + $0x9c] sm:$0xf]
    %v3963 = vunpack.c.l.b16 %v3626
    %v3964 = vunpack.c.h.b16 %v3626
    %v3965 = vunpack.c.l.b16 %v3627
    %v3966 = vunpack.c.l.b16 %v3628
    %v3967 = vunpack.c.h.b16 %v3628
    %v3968 = vunpack.c.l.b16 %v3629
    %v3969 = vunpack.c.l.b16 %v3630
    %v3970 = vunpack.c.h.b16 %v3630
    %v3971 = vunpack.c.l.b16 %v3631
    %v3972 = vunpack.c.l.b16 %v3632
    %v3973 = vunpack.c.h.b16 %v3632
    %v3974 = vunpack.c.l.b16 %v3633
    %v3975 = vunpack.c.l.b16 %v3634
    %v3976 = vunpack.c.h.b16 %v3634
    %v3977 = vunpack.c.l.b16 %v3635
    %v3978 = vunpack.c.l.b16 %v3636
    %v3979 = vunpack.c.h.b16 %v3636
    %v3980 = vunpack.c.l.b16 %v3637
    %v3981 = vunpack.c.l.b16 %v3638
    %v3982 = vunpack.c.h.b16 %v3638
    %v3983 = vunpack.c.l.b16 %v3639
    %v3984 = vunpack.c.l.b16 %v3640
    %v3985 = vunpack.c.h.b16 %v3640
    %v3986 = vunpack.c.l.b16 %v3641
    %v3987 = vunpack.c.l.b16 %v3642
    %v3988 = vunpack.c.h.b16 %v3642
    %v3989 = vunpack.c.l.b16 %v3643
    %v3990 = vunpack.c.l.b16 %v3644
    %v3991 = vunpack.c.h.b16 %v3644
    %v3992 = vunpack.c.l.b16 %v3645
    %v3993 = vunpack.c.l.b16 %v3646
    %v3994 = vunpack.c.h.b16 %v3646
    %v3995 = vunpack.c.l.b16 %v3647
    %v3996 = vunpack.c.l.b16 %v3648
    %v3997 = vunpack.c.h.b16 %v3648
    %v3998 = vunpack.c.l.b16 %v3649
    %v3999 = vunpack.c.l.b16 %v3650
    %v4000 = vunpack.c.h.b16 %v3650
    %v4001 = vunpack.c.l.b16 %v3651
    %v4002 = vunpack.c.l.b16 %v3652
    %v4003 = vunpack.c.h.b16 %v3652
    %v4004 = vunpack.c.l.b16 %v3653
    %v4005 = vunpack.c.l.b16 %v3654
    %v4006 = vunpack.c.h.b16 %v3654
    %v4007 = vunpack.c.l.b16 %v3655
    %v4008 = vunpack.c.l.b16 %v3656
    %v4009 = vunpack.c.h.b16 %v3656
    %v4010 = vunpack.c.l.b16 %v3657
    %v4011 = vunpack.c.l.b16 %v3658
    %v4012 = vunpack.c.h.b16 %v3658
    %v4013 = vunpack.c.l.b16 %v3659
    %v4014 = vunpack.c.l.b16 %v3660
    %v4015 = vunpack.c.h.b16 %v3660
    %v4016 = vunpack.c.l.b16 %v3661
    %v4017 = vunpack.c.l.b16 %v3662
    %v4018 = vunpack.c.h.b16 %v3662
    %v4019 = vunpack.c.l.b16 %v3663
    %v4020 = vunpack.c.l.b16 %v3664
    %v4021 = vunpack.c.h.b16 %v3664
    %v4022 = vunpack.c.l.b16 %v3665
    %v4023 = vunpack.c.l.b16 %v3666
    %v4024 = vunpack.c.h.b16 %v3666
    %v4025 = vunpack.c.l.b16 %v3667
    %v4026 = vunpack.c.l.b16 %v3668
    %v4027 = vunpack.c.h.b16 %v3668
    %v4028 = vunpack.c.l.b16 %v3669
    %v4029 = vunpack.c.l.b16 %v3670
    %v4030 = vunpack.c.h.b16 %v3670
    %v4031 = vunpack.c.l.b16 %v3671
    %v4032 = vunpack.c.l.b16 %v3672
    %v4033 = vunpack.c.h.b16 %v3672
    %v4034 = vunpack.c.l.b16 %v3673
    %v4035 = vunpack.c.l.b16 %v3674
    %v4036 = vunpack.c.h.b16 %v3674
    %v4037 = vunpack.c.l.b16 %v3675
    %v4038 = vunpack.c.l.b16 %v3676
    %v4039 = vunpack.c.h.b16 %v3676
    %v4040 = vunpack.c.l.b16 %v3677
    %v4041 = vunpack.c.l.b16 %v3678
    %v4042 = vunpack.c.h.b16 %v3678
    %v4043 = vunpack.c.l.b16 %v3679
    %v4044 = vunpack.c.l.b16 %v3680
    %v4045 = vunpack.c.h.b16 %v3680
    %v4046 = vunpack.c.l.b16 %v3681
    %v4047 = vunpack.c.l.b16 %v3682
    %v4048 = vunpack.c.h.b16 %v3682
    %v4049 = vunpack.c.l.b16 %v3683
    %v4050 = vunpack.c.l.b16 %v3684
    %v4051 = vunpack.c.h.b16 %v3684
    %v4052 = vunpack.c.l.b16 %v3685
    %v4053 = vunpack.c.l.b16 %v3686
    %v4054 = vunpack.c.h.b16 %v3686
    %v4055 = vunpack.c.l.b16 %v3687
    %v4056 = vunpack.c.l.b16 %v3688
    %v4057 = vunpack.c.h.b16 %v3688
    %v4058 = vunpack.c.l.b16 %v3689
    %v4059 = vunpack.c.l.b16 %v3690
    %v4060 = vunpack.c.h.b16 %v3690
    %v4061 = vunpack.c.l.b16 %v3691
    %v4062 = vunpack.c.l.b16 %v3692
    %v4063 = vunpack.c.h.b16 %v3692
    %v4064 = vunpack.c.l.b16 %v3693
    %v4065 = vunpack.c.l.b16 %v3694
    %v4066 = vunpack.c.h.b16 %v3694
    %v4067 = vunpack.c.l.b16 %v3695
    %v4068 = vunpack.c.l.b16 %v3696
    %v4069 = vunpack.c.h.b16 %v3696
    %v4070 = vunpack.c.l.b16 %v3697
    %v4071 = vunpack.c.l.b16 %v3698
    %v4072 = vunpack.c.h.b16 %v3698
    %v4073 = vunpack.c.l.b16 %v3699
    %v4074 = vunpack.c.l.b16 %v3700
    %v4075 = vunpack.c.h.b16 %v3700
    %v4076 = vunpack.c.l.b16 %v3701
    %v4077 = vunpack.c.l.b16 %v3702
    %v4078 = vunpack.c.h.b16 %v3702
    %v4079 = vunpack.c.l.b16 %v3703
    %v4080 = vunpack.c.l.b16 %v3704
    %v4081 = vunpack.c.h.b16 %v3704
    %v4082 = vunpack.c.l.b16 %v3705
    %v4083 = vunpack.c.l.b16 %v3706
    %v4084 = vunpack.c.h.b16 %v3706
    %v4085 = vunpack.c.l.b16 %v3707
    %v4086 = vunpack.c.l.b16 %v3708
    %v4087 = vunpack.c.h.b16 %v3708
    %v4088 = vunpack.c.l.b16 %v3709
    %v4089 = vunpack.c.l.b16 %v3710
    %v4090 = vunpack.c.h.b16 %v3710
    %v4091 = vunpack.c.l.b16 %v3711
    %v4092 = vunpack.c.l.b16 %v3712
    %v4093 = vunpack.c.h.b16 %v3712
    %v4094 = vunpack.c.l.b16 %v3713
    %v4095 = vunpack.c.l.b16 %v3714
    %v4096 = vunpack.c.h.b16 %v3714
    %v4097 = vunpack.c.l.b16 %v3715
    %v4098 = vunpack.c.l.b16 %v3716
    %v4099 = vunpack.c.h.b16 %v3716
    %v4100 = vunpack.c.l.b16 %v3717
    %v4101 = vunpack.c.l.b16 %v3718
    %v4102 = vunpack.c.h.b16 %v3718
    %v4103 = vunpack.c.l.b16 %v3719
    %v4104 = vunpack.c.l.b16 %v3720
    %v4105 = vunpack.c.h.b16 %v3720
    %v4106 = vunpack.c.l.b16 %v3721
    %v4107 = vunpack.c.l.b16 %v3722
    %v4108 = vunpack.c.h.b16 %v3722
    %v4109 = vunpack.c.l.b16 %v3723
    %v4110 = vunpack.c.l.b16 %v3724
    %v4111 = vunpack.c.h.b16 %v3724
    %v4112 = vunpack.c.l.b16 %v3725
    %v4113 = vunpack.c.l.b16 %v3726
    %v4114 = vunpack.c.h.b16 %v3726
    %v4115 = vunpack.c.l.b16 %v3727
    %v4116 = vunpack.c.l.b16 %v3728
    %v4117 = vunpack.c.h.b16 %v3728
    %v4118 = vunpack.c.l.b16 %v3729
    %v4119 = vunpack.c.l.b16 %v3730
    %v4120 = vunpack.c.h.b16 %v3730
    %v4121 = vunpack.c.l.b16 %v3731
    %v4122 = vunpack.c.l.b16 %v3732
    %v4123 = vunpack.c.h.b16 %v3732
    %v4124 = vunpack.c.l.b16 %v3733
    %v4125 = vunpack.c.l.b16 %v3734
    %v4126 = vunpack.c.h.b16 %v3734
    %v4127 = vunpack.c.l.b16 %v3735
    %v4128 = vunpack.c.l.b16 %v3736
    %v4129 = vunpack.c.h.b16 %v3736
    %v4130 = vunpack.c.l.b16 %v3737
    %v4131 = vunpack.c.l.b16 %v3738
    %v4132 = vunpack.c.h.b16 %v3738
    %v4133 = vunpack.c.l.b16 %v3739
    %v4134 = vunpack.c.l.b16 %v3740
    %v4135 = vunpack.c.h.b16 %v3740
    %v4136 = vunpack.c.l.b16 %v3741
    %v4137 = vunpack.c.l.b16 %v3742
    %v4138 = vunpack.c.h.b16 %v3742
    %v4139 = vunpack.c.l.b16 %v3743
    %v4140 = vunpack.c.l.b16 %v3744
    %v4141 = vunpack.c.h.b16 %v3744
    %v4142 = vunpack.c.l.b16 %v3745
    %v4143 = vunpack.c.l.b16 %v3786
    %v4144 = vunpack.c.h.b16 %v3786
    %v4145 = vunpack.c.l.b16 %v3787
    %v4146 = vunpack.c.l.b16 %v3788
    %v4147 = vunpack.c.h.b16 %v3788
    %v4148 = vunpack.c.l.b16 %v3789
    %v4149 = vunpack.c.l.b16 %v3790
    %v4150 = vunpack.c.h.b16 %v3790
    %v4151 = vunpack.c.l.b16 %v3791
    %v4152 = vunpack.c.l.b16 %v3792
    %v4153 = vunpack.c.h.b16 %v3792
    %v4154 = vunpack.c.l.b16 %v3793
    %v4155 = vpack.c.b16 %v3966, %v3963
    %v4156 = vpack.c.b16 %v3967, %v3964
    %v4157 = vpack.c.b16 %v3968, %v3965
    %v4158 = vpack.c.b16 %v3972, %v3969
    %v4159 = vpack.c.b16 %v3973, %v3970
    %v4160 = vpack.c.b16 %v3974, %v3971
    %v4161 = vpack.c.b16 %v3978, %v3975
    %v4162 = vpack.c.b16 %v3979, %v3976
    %v4163 = vpack.c.b16 %v3980, %v3977
    %v4164 = vpack.c.b16 %v3984, %v3981
    %v4165 = vpack.c.b16 %v3985, %v3982
    %v4166 = vpack.c.b16 %v3986, %v3983
    %v4167 = vpack.c.b16 %v3990, %v3987
    %v4168 = vpack.c.b16 %v3991, %v3988
    %v4169 = vpack.c.b16 %v3992, %v3989
    %v4170 = vpack.c.b16 %v3996, %v3993
    %v4171 = vpack.c.b16 %v3997, %v3994
    %v4172 = vpack.c.b16 %v3998, %v3995
    %v4173 = vpack.c.b16 %v4002, %v3999
    %v4174 = vpack.c.b16 %v4003, %v4000
    %v4175 = vpack.c.b16 %v4004, %v4001
    %v4176 = vpack.c.b16 %v4008, %v4005
    %v4177 = vpack.c.b16 %v4009, %v4006
    %v4178 = vpack.c.b16 %v4010, %v4007
    %v4179 = vpack.c.b16 %v4014, %v4011
    %v4180 = vpack.c.b16 %v4015, %v4012
    %v4181 = vpack.c.b16 %v4016, %v4013
    %v4182 = vpack.c.b16 %v4020, %v4017
    %v4183 = vpack.c.b16 %v4021, %v4018
    %v4184 = vpack.c.b16 %v4022, %v4019
    %v4185 = vpack.c.b16 %v4026, %v4023
    %v4186 = vpack.c.b16 %v4027, %v4024
    %v4187 = vpack.c.b16 %v4028, %v4025
    %v4188 = vpack.c.b16 %v4032, %v4029
    %v4189 = vpack.c.b16 %v4033, %v4030
    %v4190 = vpack.c.b16 %v4034, %v4031
    %v4191 = vpack.c.b16 %v4038, %v4035
    %v4192 = vpack.c.b16 %v4039, %v4036
    %v4193 = vpack.c.b16 %v4040, %v4037
    %v4194 = vpack.c.b16 %v4044, %v4041
    %v4195 = vpack.c.b16 %v4045, %v4042
    %v4196 = vpack.c.b16 %v4046, %v4043
    %v4197 = vpack.c.b16 %v4050, %v4047
    %v4198 = vpack.c.b16 %v4051, %v4048
    %v4199 = vpack.c.b16 %v4052, %v4049
    %v4200 = vpack.c.b16 %v4056, %v4053
    %v4201 = vpack.c.b16 %v4057, %v4054
    %v4202 = vpack.c.b16 %v4058, %v4055
    %v4203 = vpack.c.b16 %v4062, %v4059
    %v4204 = vpack.c.b16 %v4063, %v4060
    %v4205 = vpack.c.b16 %v4064, %v4061
    %v4206 = vpack.c.b16 %v4068, %v4065
    %v4207 = vpack.c.b16 %v4069, %v4066
    %v4208 = vpack.c.b16 %v4070, %v4067
    %v4209 = vpack.c.b16 %v4074, %v4071
    %v4210 = vpack.c.b16 %v4075, %v4072
    %v4211 = vpack.c.b16 %v4076, %v4073
    %v4212 = vpack.c.b16 %v4080, %v4077
    %v4213 = vpack.c.b16 %v4081, %v4078
    %v4214 = vpack.c.b16 %v4082, %v4079
    %v4215 = vpack.c.b16 %v4086, %v4083
    %v4216 = vpack.c.b16 %v4087, %v4084
    %v4217 = vpack.c.b16 %v4088, %v4085
    %v4218 = vpack.c.b16 %v4092, %v4089
    %v4219 = vpack.c.b16 %v4093, %v4090
    %v4220 = vpack.c.b16 %v4094, %v4091
    %v4221 = vpack.c.b16 %v4098, %v4095
    %v4222 = vpack.c.b16 %v4099, %v4096
    %v4223 = vpack.c.b16 %v4100, %v4097
    %v4224 = vpack.c.b16 %v4104, %v4101
    %v4225 = vpack.c.b16 %v4105, %v4102
    %v4226 = vpack.c.b16 %v4106, %v4103
    %v4227 = vpack.c.b16 %v4110, %v4107
    %v4228 = vpack.c.b16 %v4111, %v4108
    %v4229 = vpack.c.b16 %v4112, %v4109
    %v4230 = vpack.c.b16 %v4116, %v4113
    %v4231 = vpack.c.b16 %v4117, %v4114
    %v4232 = vpack.c.b16 %v4118, %v4115
    %v4233 = vpack.c.b16 %v4122, %v4119
    %v4234 = vpack.c.b16 %v4123, %v4120
    %v4235 = vpack.c.b16 %v4124, %v4121
    %v4236 = vpack.c.b16 %v4128, %v4125
    %v4237 = vpack.c.b16 %v4129, %v4126
    %v4238 = vpack.c.b16 %v4130, %v4127
    %v4239 = vpack.c.b16 %v4134, %v4131
    %v4240 = vpack.c.b16 %v4135, %v4132
    %v4241 = vpack.c.b16 %v4136, %v4133
    %v4242 = vpack.c.b16 %v4140, %v4137
    %v4243 = vpack.c.b16 %v4141, %v4138
    %v4244 = vpack.c.b16 %v4142, %v4139
    %v4245 = vpack.c.b16 %v4146, %v4143
    %v4246 = vpack.c.b16 %v4147, %v4144
    %v4247 = vpack.c.b16 %v4148, %v4145
    %v4248 = vpack.c.b16 %v4152, %v4149
    %v4249 = vpack.c.b16 %v4153, %v4150
    %v4250 = vpack.c.b16 %v4154, %v4151
    %v4355 = vunpack.c.l.b16 %v3795
    %v4356 = vunpack.c.l.b16 %v3796
    %v4357 = vunpack.c.l.b16 %v3797
    %v4358 = vunpack.c.l.b16 %v3798
    %v4359 = vunpack.c.l.b16 %v3799
    %v4360 = vunpack.c.l.b16 %v3800
    %v4361 = vunpack.c.l.b16 %v3801
    %v4362 = vunpack.c.l.b16 %v3802
    %v4363 = vunpack.c.l.b16 %v3803
    %v4364 = vunpack.c.l.b16 %v3804
    %v4365 = vunpack.c.l.b16 %v3805
    %v4366 = vunpack.c.l.b16 %v3806
    %v4367 = vunpack.c.l.b16 %v3807
    %v4368 = vunpack.c.l.b16 %v3808
    %v4369 = vunpack.c.l.b16 %v3809
    %v4370 = vunpack.c.l.b16 %v3810
    %v4371 = vunpack.c.l.b16 %v3811
    %v4372 = vunpack.c.l.b16 %v3812
    %v4373 = vunpack.c.l.b16 %v3813
    %v4374 = vunpack.c.l.b16 %v3814
    %v4375 = vunpack.c.l.b16 %v3815
    %v4376 = vunpack.c.l.b16 %v3816
    %v4377 = vunpack.c.l.b16 %v3817
    %v4378 = vunpack.c.l.b16 %v3818
    %v4379 = vunpack.c.l.b16 %v3819
    %v4380 = vunpack.c.l.b16 %v3820
    %v4381 = vunpack.c.l.b16 %v3821
    %v4382 = vunpack.c.l.b16 %v3822
    %v4383 = vunpack.c.l.b16 %v3823
    %v4384 = vunpack.c.l.b16 %v3824
    %v4385 = vunpack.c.l.b16 %v3825
    %v4386 = vunpack.c.l.b16 %v3826
    %v4387 = vunpack.c.l.b16 %v3827
    %v4388 = vunpack.c.l.b16 %v3828
    %v4389 = vunpack.c.l.b16 %v3829
    %v4390 = vunpack.c.l.b16 %v3830
    %v4391 = vunpack.c.l.b16 %v3831
    %v4392 = vunpack.c.l.b16 %v3832
    %v4393 = vunpack.c.l.b16 %v3833
    %v4394 = vunpack.c.l.b16 %v3834
    %v4395 = vpack.c.b16 %v4356, %v4355
    %v4396 = vpack.c.b16 %v4358, %v4357
    %v4397 = vpack.c.b16 %v4360, %v4359
    %v4398 = vpack.c.b16 %v4362, %v4361
    %v4399 = vpack.c.b16 %v4364, %v4363
    %v4400 = vpack.c.b16 %v4366, %v4365
    %v4401 = vpack.c.b16 %v4368, %v4367
    %v4402 = vpack.c.b16 %v4370, %v4369
    %v4403 = vpack.c.b16 %v4372, %v4371
    %v4404 = vpack.c.b16 %v4374, %v4373
    %v4405 = vpack.c.b16 %v4376, %v4375
    %v4406 = vpack.c.b16 %v4378, %v4377
    %v4407 = vpack.c.b16 %v4380, %v4379
    %v4408 = vpack.c.b16 %v4382, %v4381
    %v4409 = vpack.c.b16 %v4384, %v4383
    %v4410 = vpack.c.b16 %v4386, %v4385
    %v4411 = vpack.c.b16 %v4388, %v4387
    %v4412 = vpack.c.b16 %v4390, %v4389
    %v4413 = vpack.c.b16 %v4392, %v4391
    %v4414 = vpack.c.b16 %v4394, %v4393
    %v4436 = vsel %vm42, %v4157, 0
    %v4439 = vsel %vm42, %v4160, 0
    %v4442 = vsel %vm42, %v4163, 0
    %v4445 = vsel %vm42, %v4166, 0
    %v4448 = vsel %vm42, %v4169, 0
    %v4451 = vsel %vm42, %v4172, 0
    %v4454 = vsel %vm42, %v4175, 0
    %v4457 = vsel %vm42, %v4178, 0
    %v4460 = vsel %vm42, %v4181, 0
    %v4463 = vsel %vm42, %v4184, 0
    %v4466 = vsel %vm42, %v4187, 0
    %v4469 = vsel %vm42, %v4190, 0
    %v4472 = vsel %vm42, %v4193, 0
    %v4475 = vsel %vm42, %v4196, 0
    %v4478 = vsel %vm42, %v4199, 0
    %v4481 = vsel %vm42, %v4202, 0
    %v4484 = vsel %vm42, %v4205, 0
    %v4487 = vsel %vm42, %v4208, 0
    %v4490 = vsel %vm42, %v4211, 0
    %v4493 = vsel %vm42, %v4214, 0
    %v4496 = vsel %vm42, %v4217, 0
    %v4499 = vsel %vm42, %v4220, 0
    %v4502 = vsel %vm42, %v4223, 0
    %v4505 = vsel %vm42, %v4226, 0
    %v4508 = vsel %vm42, %v4229, 0
    %v4511 = vsel %vm42, %v4232, 0
    %v4514 = vsel %vm42, %v4235, 0
    %v4517 = vsel %vm42, %v4238, 0
    %v4520 = vsel %vm42, %v4241, 0
    %v4523 = vsel %vm42, %v4244, 0
    %v4526 = vsel %vm42, %v4247, 0
    %v4529 = vsel %vm42, %v4250, 0
    %4531 = vmatprep.subr.bf16.mxu0 0
    %4532 = vmatpush1.bf16.msra.mxu0 %v4402
    %4533 = vmatprep.subr.bf16.mxu0 0
    %4534 = vmatpush1.bf16.msra.mxu0 %v4401
    %4535 = vmatprep.subr.bf16.mxu0 0
    %4536 = vmatpush1.bf16.msra.mxu0 %v4400
    %4537 = vmatprep.subr.bf16.mxu0 0
    %4538 = vmatpush1.bf16.msra.mxu0 %v4399
    %4539 = vmatprep.subr.bf16.mxu0 0
    %4540 = vmatpush1.bf16.msra.mxu0 %v4398
    %4541 = vmatprep.subr.bf16.mxu0 0
    %4542 = vmatpush1.bf16.msra.mxu0 %v4397
    %4543 = vmatprep.subr.bf16.mxu0 0
    %4544 = vmatpush1.bf16.msra.mxu0 %v4396
    %4545 = vmatprep.subr.bf16.mxu0 0
    %4546 = vmatpush1.bf16.msra.mxu0 %v4395
    %4547 = vmatprep.subr.bf16.mxu0 0
    %4548 = vmatpush2.bf16.msra.mxu0 %v4410
    %4549 = vmatprep.subr.bf16.mxu0 0
    %4550 = vmatpush2.bf16.msra.mxu0 %v4409
    %4551 = vmatprep.subr.bf16.mxu0 0
    %4552 = vmatpush2.bf16.msra.mxu0 %v4408
    %4553 = vmatprep.subr.bf16.mxu0 0
    %4554 = vmatpush2.bf16.msra.mxu0 %v4407
    %4555 = vmatprep.subr.bf16.mxu0 0
    %4556 = vmatpush2.bf16.msra.mxu0 %v4406
    %4557 = vmatprep.subr.bf16.mxu0 0
    %4558 = vmatpush2.bf16.msra.mxu0 %v4405
    %4559 = vmatprep.subr.bf16.mxu0 0
    %4560 = vmatpush2.bf16.msra.mxu0 %v4404
    %4561 = vmatprep.subr.bf16.mxu0 0
    %4562 = vmatpush2.bf16.msra.mxu0 %v4403
    %4563 = vmatprep.mubr.bf16.mxu0 %v4156
    %4564 = vmatmul.mubr.bf16.gmra.mxu0 %v4155
    %v4565 = vpop.f32.mrf.mxu0
    %v4566 = vadd.f32 0.0, %v4565
    %v4567 = vpop.f32.mrf.mxu0
    %v4568 = vpop.f32.mrf.mxu0
    %v4569 = vadd.f32 0.0, %v4568
    %v4570 = vpop.f32.mrf.mxu0
    %4571 = vmatprep.mubr.bf16.mxu0 %v4159
    %4572 = vmatmul.mubr.bf16.gmra.mxu0 %v4158
    %v4573 = vpop.f32.mrf.mxu0
    %v4574 = vadd.f32 0.0, %v4573
    %v4575 = vpop.f32.mrf.mxu0
    %v4576 = vpop.f32.mrf.mxu0
    %v4577 = vadd.f32 0.0, %v4576
    %v4578 = vpop.f32.mrf.mxu0
    %4579 = vmatprep.mubr.bf16.mxu0 %v4162
    %4580 = vmatmul.mubr.bf16.gmra.mxu0 %v4161
    %v4581 = vpop.f32.mrf.mxu0
    %v4582 = vadd.f32 0.0, %v4581
    %v4583 = vpop.f32.mrf.mxu0
    %v4584 = vpop.f32.mrf.mxu0
    %v4585 = vadd.f32 0.0, %v4584
    %v4586 = vpop.f32.mrf.mxu0
    %4587 = vmatprep.mubr.bf16.mxu0 %v4165
    %4588 = vmatmul.mubr.bf16.gmra.mxu0 %v4164
    %v4589 = vpop.f32.mrf.mxu0
    %v4590 = vadd.f32 0.0, %v4589
    %v4591 = vpop.f32.mrf.mxu0
    %v4592 = vpop.f32.mrf.mxu0
    %v4593 = vadd.f32 0.0, %v4592
    %v4594 = vpop.f32.mrf.mxu0
    %4595 = vmatprep.mubr.bf16.mxu0 %v4168
    %4596 = vmatmul.mubr.bf16.gmra.mxu0 %v4167
    %v4597 = vpop.f32.mrf.mxu0
    %v4598 = vadd.f32 0.0, %v4597
    %v4599 = vpop.f32.mrf.mxu0
    %v4600 = vpop.f32.mrf.mxu0
    %v4601 = vadd.f32 0.0, %v4600
    %v4602 = vpop.f32.mrf.mxu0
    %4603 = vmatprep.mubr.bf16.mxu0 %v4171
    %4604 = vmatmul.mubr.bf16.gmra.mxu0 %v4170
    %v4605 = vpop.f32.mrf.mxu0
    %v4606 = vadd.f32 0.0, %v4605
    %v4607 = vpop.f32.mrf.mxu0
    %v4608 = vpop.f32.mrf.mxu0
    %v4609 = vadd.f32 0.0, %v4608
    %v4610 = vpop.f32.mrf.mxu0
    %4611 = vmatprep.mubr.bf16.mxu0 %v4174
    %4612 = vmatmul.mubr.bf16.gmra.mxu0 %v4173
    %v4613 = vpop.f32.mrf.mxu0
    %v4614 = vadd.f32 0.0, %v4613
    %v4615 = vpop.f32.mrf.mxu0
    %v4616 = vpop.f32.mrf.mxu0
    %v4617 = vadd.f32 0.0, %v4616
    %v4618 = vpop.f32.mrf.mxu0
    %4619 = vmatprep.mubr.bf16.mxu0 %v4177
    %4620 = vmatmul.mubr.bf16.gmra.mxu0 %v4176
    %v4621 = vpop.f32.mrf.mxu0
    %v4622 = vadd.f32 0.0, %v4621
    %v4623 = vpop.f32.mrf.mxu0
    %v4624 = vpop.f32.mrf.mxu0
    %v4625 = vadd.f32 0.0, %v4624
    %v4626 = vpop.f32.mrf.mxu0
    %4627 = vmatprep.mubr.bf16.mxu0 %v4180
    %4628 = vmatmul.mubr.bf16.gmra.mxu0 %v4179
    %v4629 = vpop.f32.mrf.mxu0
    %v4630 = vadd.f32 0.0, %v4629
    %v4631 = vpop.f32.mrf.mxu0
    %v4632 = vpop.f32.mrf.mxu0
    %v4633 = vadd.f32 0.0, %v4632
    %v4634 = vpop.f32.mrf.mxu0
    %4635 = vmatprep.mubr.bf16.mxu0 %v4183
    %4636 = vmatmul.mubr.bf16.gmra.mxu0 %v4182
    %v4637 = vpop.f32.mrf.mxu0
    %v4638 = vadd.f32 0.0, %v4637
    %v4639 = vpop.f32.mrf.mxu0
    %v4640 = vpop.f32.mrf.mxu0
    %v4641 = vadd.f32 0.0, %v4640
    %v4642 = vpop.f32.mrf.mxu0
    %4643 = vmatprep.mubr.bf16.mxu0 %v4186
    %4644 = vmatmul.mubr.bf16.gmra.mxu0 %v4185
    %v4645 = vpop.f32.mrf.mxu0
    %v4646 = vadd.f32 0.0, %v4645
    %v4647 = vpop.f32.mrf.mxu0
    %v4648 = vpop.f32.mrf.mxu0
    %v4649 = vadd.f32 0.0, %v4648
    %v4650 = vpop.f32.mrf.mxu0
    %4651 = vmatprep.mubr.bf16.mxu0 %v4189
    %4652 = vmatmul.mubr.bf16.gmra.mxu0 %v4188
    %v4653 = vpop.f32.mrf.mxu0
    %v4654 = vadd.f32 0.0, %v4653
    %v4655 = vpop.f32.mrf.mxu0
    %v4656 = vpop.f32.mrf.mxu0
    %v4657 = vadd.f32 0.0, %v4656
    %v4658 = vpop.f32.mrf.mxu0
    %4659 = vmatprep.mubr.bf16.mxu0 %v4192
    %4660 = vmatmul.mubr.bf16.gmra.mxu0 %v4191
    %v4661 = vpop.f32.mrf.mxu0
    %v4662 = vadd.f32 0.0, %v4661
    %v4663 = vpop.f32.mrf.mxu0
    %v4664 = vpop.f32.mrf.mxu0
    %v4665 = vadd.f32 0.0, %v4664
    %v4666 = vpop.f32.mrf.mxu0
    %4667 = vmatprep.mubr.bf16.mxu0 %v4195
    %4668 = vmatmul.mubr.bf16.gmra.mxu0 %v4194
    %v4669 = vpop.f32.mrf.mxu0
    %v4670 = vadd.f32 0.0, %v4669
    %v4671 = vpop.f32.mrf.mxu0
    %v4672 = vpop.f32.mrf.mxu0
    %v4673 = vadd.f32 0.0, %v4672
    %v4674 = vpop.f32.mrf.mxu0
    %4675 = vmatprep.mubr.bf16.mxu0 %v4198
    %4676 = vmatmul.mubr.bf16.gmra.mxu0 %v4197
    %v4677 = vpop.f32.mrf.mxu0
    %v4678 = vadd.f32 0.0, %v4677
    %v4679 = vpop.f32.mrf.mxu0
    %v4680 = vpop.f32.mrf.mxu0
    %v4681 = vadd.f32 0.0, %v4680
    %v4682 = vpop.f32.mrf.mxu0
    %4683 = vmatprep.mubr.bf16.mxu0 %v4201
    %4684 = vmatmul.mubr.bf16.gmra.mxu0 %v4200
    %v4685 = vpop.f32.mrf.mxu0
    %v4686 = vadd.f32 0.0, %v4685
    %v4687 = vpop.f32.mrf.mxu0
    %v4688 = vpop.f32.mrf.mxu0
    %v4689 = vadd.f32 0.0, %v4688
    %v4690 = vpop.f32.mrf.mxu0
    %4691 = vmatprep.mubr.bf16.mxu0 %v4204
    %4692 = vmatmul.mubr.bf16.gmra.mxu0 %v4203
    %v4693 = vpop.f32.mrf.mxu0
    %v4694 = vadd.f32 0.0, %v4693
    %v4695 = vpop.f32.mrf.mxu0
    %v4696 = vpop.f32.mrf.mxu0
    %v4697 = vadd.f32 0.0, %v4696
    %v4698 = vpop.f32.mrf.mxu0
    %4699 = vmatprep.mubr.bf16.mxu0 %v4207
    %4700 = vmatmul.mubr.bf16.gmra.mxu0 %v4206
    %v4701 = vpop.f32.mrf.mxu0
    %v4702 = vadd.f32 0.0, %v4701
    %v4703 = vpop.f32.mrf.mxu0
    %v4704 = vpop.f32.mrf.mxu0
    %v4705 = vadd.f32 0.0, %v4704
    %v4706 = vpop.f32.mrf.mxu0
    %4707 = vmatprep.mubr.bf16.mxu0 %v4210
    %4708 = vmatmul.mubr.bf16.gmra.mxu0 %v4209
    %v4709 = vpop.f32.mrf.mxu0
    %v4710 = vadd.f32 0.0, %v4709
    %v4711 = vpop.f32.mrf.mxu0
    %v4712 = vpop.f32.mrf.mxu0
    %v4713 = vadd.f32 0.0, %v4712
    %v4714 = vpop.f32.mrf.mxu0
    %4715 = vmatprep.mubr.bf16.mxu0 %v4213
    %4716 = vmatmul.mubr.bf16.gmra.mxu0 %v4212
    %v4717 = vpop.f32.mrf.mxu0
    %v4718 = vadd.f32 0.0, %v4717
    %v4719 = vpop.f32.mrf.mxu0
    %v4720 = vpop.f32.mrf.mxu0
    %v4721 = vadd.f32 0.0, %v4720
    %v4722 = vpop.f32.mrf.mxu0
    %4723 = vmatprep.mubr.bf16.mxu0 %v4216
    %4724 = vmatmul.mubr.bf16.gmra.mxu0 %v4215
    %v4725 = vpop.f32.mrf.mxu0
    %v4726 = vadd.f32 0.0, %v4725
    %v4727 = vpop.f32.mrf.mxu0
    %v4728 = vpop.f32.mrf.mxu0
    %v4729 = vadd.f32 0.0, %v4728
    %v4730 = vpop.f32.mrf.mxu0
    %4731 = vmatprep.mubr.bf16.mxu0 %v4219
    %4732 = vmatmul.mubr.bf16.gmra.mxu0 %v4218
    %v4733 = vpop.f32.mrf.mxu0
    %v4734 = vadd.f32 0.0, %v4733
    %v4735 = vpop.f32.mrf.mxu0
    %v4736 = vpop.f32.mrf.mxu0
    %v4737 = vadd.f32 0.0, %v4736
    %v4738 = vpop.f32.mrf.mxu0
    %4739 = vmatprep.mubr.bf16.mxu0 %v4222
    %4740 = vmatmul.mubr.bf16.gmra.mxu0 %v4221
    %v4741 = vpop.f32.mrf.mxu0
    %v4742 = vadd.f32 0.0, %v4741
    %v4743 = vpop.f32.mrf.mxu0
    %v4744 = vpop.f32.mrf.mxu0
    %v4745 = vadd.f32 0.0, %v4744
    %v4746 = vpop.f32.mrf.mxu0
    %4747 = vmatprep.mubr.bf16.mxu0 %v4225
    %4748 = vmatmul.mubr.bf16.gmra.mxu0 %v4224
    %v4749 = vpop.f32.mrf.mxu0
    %v4750 = vadd.f32 0.0, %v4749
    %v4751 = vpop.f32.mrf.mxu0
    %v4752 = vpop.f32.mrf.mxu0
    %v4753 = vadd.f32 0.0, %v4752
    %v4754 = vpop.f32.mrf.mxu0
    %4755 = vmatprep.mubr.bf16.mxu0 %v4228
    %4756 = vmatmul.mubr.bf16.gmra.mxu0 %v4227
    %v4757 = vpop.f32.mrf.mxu0
    %v4758 = vadd.f32 0.0, %v4757
    %v4759 = vpop.f32.mrf.mxu0
    %v4760 = vpop.f32.mrf.mxu0
    %v4761 = vadd.f32 0.0, %v4760
    %v4762 = vpop.f32.mrf.mxu0
    %4763 = vmatprep.mubr.bf16.mxu0 %v4231
    %4764 = vmatmul.mubr.bf16.gmra.mxu0 %v4230
    %v4765 = vpop.f32.mrf.mxu0
    %v4766 = vadd.f32 0.0, %v4765
    %v4767 = vpop.f32.mrf.mxu0
    %v4768 = vpop.f32.mrf.mxu0
    %v4769 = vadd.f32 0.0, %v4768
    %v4770 = vpop.f32.mrf.mxu0
    %4771 = vmatprep.mubr.bf16.mxu0 %v4234
    %4772 = vmatmul.mubr.bf16.gmra.mxu0 %v4233
    %v4773 = vpop.f32.mrf.mxu0
    %v4774 = vadd.f32 0.0, %v4773
    %v4775 = vpop.f32.mrf.mxu0
    %v4776 = vpop.f32.mrf.mxu0
    %v4777 = vadd.f32 0.0, %v4776
    %v4778 = vpop.f32.mrf.mxu0
    %4779 = vmatprep.mubr.bf16.mxu0 %v4237
    %4780 = vmatmul.mubr.bf16.gmra.mxu0 %v4236
    %v4781 = vpop.f32.mrf.mxu0
    %v4782 = vadd.f32 0.0, %v4781
    %v4783 = vpop.f32.mrf.mxu0
    %v4784 = vpop.f32.mrf.mxu0
    %v4785 = vadd.f32 0.0, %v4784
    %v4786 = vpop.f32.mrf.mxu0
    %4787 = vmatprep.mubr.bf16.mxu0 %v4240
    %4788 = vmatmul.mubr.bf16.gmra.mxu0 %v4239
    %v4789 = vpop.f32.mrf.mxu0
    %v4790 = vadd.f32 0.0, %v4789
    %v4791 = vpop.f32.mrf.mxu0
    %v4792 = vpop.f32.mrf.mxu0
    %v4793 = vadd.f32 0.0, %v4792
    %v4794 = vpop.f32.mrf.mxu0
    %4795 = vmatprep.mubr.bf16.mxu0 %v4243
    %4796 = vmatmul.mubr.bf16.gmra.mxu0 %v4242
    %v4797 = vpop.f32.mrf.mxu0
    %v4798 = vadd.f32 0.0, %v4797
    %v4799 = vpop.f32.mrf.mxu0
    %v4800 = vpop.f32.mrf.mxu0
    %v4801 = vadd.f32 0.0, %v4800
    %v4802 = vpop.f32.mrf.mxu0
    %4803 = vmatprep.mubr.bf16.mxu0 %v4246
    %4804 = vmatmul.mubr.bf16.gmra.mxu0 %v4245
    %v4805 = vpop.f32.mrf.mxu0
    %v4806 = vadd.f32 0.0, %v4805
    %v4807 = vpop.f32.mrf.mxu0
    %v4808 = vpop.f32.mrf.mxu0
    %v4809 = vadd.f32 0.0, %v4808
    %v4810 = vpop.f32.mrf.mxu0
    %4811 = vmatprep.mubr.bf16.mxu0 %v4249
    %4812 = vmatmul.mubr.bf16.gmra.mxu0 %v4248
    %v4813 = vpop.f32.mrf.mxu0
    %v4814 = vadd.f32 0.0, %v4813
    %v4815 = vpop.f32.mrf.mxu0
    %v4816 = vpop.f32.mrf.mxu0
    %v4817 = vadd.f32 0.0, %v4816
    %v4818 = vpop.f32.mrf.mxu0
    %4819 = vdwg.mxu0
    %4820 = vmatprep.subr.bf16.mxu0 0
    %4821 = vmatpush1.bf16.msra.mxu0 0
    %4822 = vmatprep.subr.bf16.mxu0 0
    %4823 = vmatpush1.bf16.msra.mxu0 0
    %4824 = vmatprep.subr.bf16.mxu0 0
    %4825 = vmatpush1.bf16.msra.mxu0 0
    %4826 = vmatprep.subr.bf16.mxu0 0
    %4827 = vmatpush1.bf16.msra.mxu0 0
    %4828 = vmatprep.subr.bf16.mxu0 0
    %4829 = vmatpush1.bf16.msra.mxu0 %v4414
    %4830 = vmatprep.subr.bf16.mxu0 0
    %4831 = vmatpush1.bf16.msra.mxu0 %v4413
    %4832 = vmatprep.subr.bf16.mxu0 0
    %4833 = vmatpush1.bf16.msra.mxu0 %v4412
    %4834 = vmatprep.subr.bf16.mxu0 0
    %4835 = vmatpush1.bf16.msra.mxu0 %v4411
    %4836 = vmatprep.subr.bf16.mxu0 0
    %4837 = vmatpush2.bf16.msra.mxu0 0
    %4838 = vmatprep.subr.bf16.mxu0 0
    %4839 = vmatpush2.bf16.msra.mxu0 0
    %4840 = vmatprep.subr.bf16.mxu0 0
    %4841 = vmatpush2.bf16.msra.mxu0 0
    %4842 = vmatprep.subr.bf16.mxu0 0
    %4843 = vmatpush2.bf16.msra.mxu0 0
    %4844 = vmatprep.subr.bf16.mxu0 0
    %4845 = vmatpush2.bf16.msra.mxu0 0
    %4846 = vmatprep.subr.bf16.mxu0 0
    %4847 = vmatpush2.bf16.msra.mxu0 0
    %4848 = vmatprep.subr.bf16.mxu0 0
    %4849 = vmatpush2.bf16.msra.mxu0 0
    %4850 = vmatprep.subr.bf16.mxu0 0
    %4851 = vmatpush2.bf16.msra.mxu0 0
    %4852 = vmatprep.mubr.bf16.mxu0 0
    %4853 = vmatmul.mubr.bf16.gmra.mxu0 %v4436
    %v4854 = vpop.f32.mrf.mxu0
    %v4855 = vadd.f32 %v4566, %v4854
    %v4856 = vpop.f32.mrf.mxu0
    %v4857 = vpop.f32.mrf.mxu0
    %v4858 = vadd.f32 %v4569, %v4857
    %v4859 = vpop.f32.mrf.mxu0
    %4860 = vmatprep.mubr.bf16.mxu0 0
    %4861 = vmatmul.mubr.bf16.gmra.mxu0 %v4439
    %v4862 = vpop.f32.mrf.mxu0
    %v4863 = vadd.f32 %v4574, %v4862
    %v4864 = vpop.f32.mrf.mxu0
    %v4865 = vpop.f32.mrf.mxu0
    %v4866 = vadd.f32 %v4577, %v4865
    %v4867 = vpop.f32.mrf.mxu0
    %4868 = vmatprep.mubr.bf16.mxu0 0
    %4869 = vmatmul.mubr.bf16.gmra.mxu0 %v4442
    %v4870 = vpop.f32.mrf.mxu0
    %v4871 = vadd.f32 %v4582, %v4870
    %v4872 = vpop.f32.mrf.mxu0
    %v4873 = vpop.f32.mrf.mxu0
    %v4874 = vadd.f32 %v4585, %v4873
    %v4875 = vpop.f32.mrf.mxu0
    %4876 = vmatprep.mubr.bf16.mxu0 0
    %4877 = vmatmul.mubr.bf16.gmra.mxu0 %v4445
    %v4878 = vpop.f32.mrf.mxu0
    %v4879 = vadd.f32 %v4590, %v4878
    %v4880 = vpop.f32.mrf.mxu0
    %v4881 = vpop.f32.mrf.mxu0
    %v4882 = vadd.f32 %v4593, %v4881
    %v4883 = vpop.f32.mrf.mxu0
    %4884 = vmatprep.mubr.bf16.mxu0 0
    %4885 = vmatmul.mubr.bf16.gmra.mxu0 %v4448
    %v4886 = vpop.f32.mrf.mxu0
    %v4887 = vadd.f32 %v4598, %v4886
    %v4888 = vpop.f32.mrf.mxu0
    %v4889 = vpop.f32.mrf.mxu0
    %v4890 = vadd.f32 %v4601, %v4889
    %v4891 = vpop.f32.mrf.mxu0
    %4892 = vmatprep.mubr.bf16.mxu0 0
    %4893 = vmatmul.mubr.bf16.gmra.mxu0 %v4451
    %v4894 = vpop.f32.mrf.mxu0
    %v4895 = vadd.f32 %v4606, %v4894
    %v4896 = vpop.f32.mrf.mxu0
    %v4897 = vpop.f32.mrf.mxu0
    %v4898 = vadd.f32 %v4609, %v4897
    %v4899 = vpop.f32.mrf.mxu0
    %4900 = vmatprep.mubr.bf16.mxu0 0
    %4901 = vmatmul.mubr.bf16.gmra.mxu0 %v4454
    %v4902 = vpop.f32.mrf.mxu0
    %v4903 = vadd.f32 %v4614, %v4902
    %v4904 = vpop.f32.mrf.mxu0
    %v4905 = vpop.f32.mrf.mxu0
    %v4906 = vadd.f32 %v4617, %v4905
    %v4907 = vpop.f32.mrf.mxu0
    %4908 = vmatprep.mubr.bf16.mxu0 0
    %4909 = vmatmul.mubr.bf16.gmra.mxu0 %v4457
    %v4910 = vpop.f32.mrf.mxu0
    %v4911 = vadd.f32 %v4622, %v4910
    %v4912 = vpop.f32.mrf.mxu0
    %v4913 = vpop.f32.mrf.mxu0
    %v4914 = vadd.f32 %v4625, %v4913
    %v4915 = vpop.f32.mrf.mxu0
    %4916 = vmatprep.mubr.bf16.mxu0 0
    %4917 = vmatmul.mubr.bf16.gmra.mxu0 %v4460
    %v4918 = vpop.f32.mrf.mxu0
    %v4919 = vadd.f32 %v4630, %v4918
    %v4920 = vpop.f32.mrf.mxu0
    %v4921 = vpop.f32.mrf.mxu0
    %v4922 = vadd.f32 %v4633, %v4921
    %v4923 = vpop.f32.mrf.mxu0
    %4924 = vmatprep.mubr.bf16.mxu0 0
    %4925 = vmatmul.mubr.bf16.gmra.mxu0 %v4463
    %v4926 = vpop.f32.mrf.mxu0
    %v4927 = vadd.f32 %v4638, %v4926
    %v4928 = vpop.f32.mrf.mxu0
    %v4929 = vpop.f32.mrf.mxu0
    %v4930 = vadd.f32 %v4641, %v4929
    %v4931 = vpop.f32.mrf.mxu0
    %4932 = vmatprep.mubr.bf16.mxu0 0
    %4933 = vmatmul.mubr.bf16.gmra.mxu0 %v4466
    %v4934 = vpop.f32.mrf.mxu0
    %v4935 = vadd.f32 %v4646, %v4934
    %v4936 = vpop.f32.mrf.mxu0
    %v4937 = vpop.f32.mrf.mxu0
    %v4938 = vadd.f32 %v4649, %v4937
    %v4939 = vpop.f32.mrf.mxu0
    %4940 = vmatprep.mubr.bf16.mxu0 0
    %4941 = vmatmul.mubr.bf16.gmra.mxu0 %v4469
    %v4942 = vpop.f32.mrf.mxu0
    %v4943 = vadd.f32 %v4654, %v4942
    %v4944 = vpop.f32.mrf.mxu0
    %v4945 = vpop.f32.mrf.mxu0
    %v4946 = vadd.f32 %v4657, %v4945
    %v4947 = vpop.f32.mrf.mxu0
    %4948 = vmatprep.mubr.bf16.mxu0 0
    %4949 = vmatmul.mubr.bf16.gmra.mxu0 %v4472
    %v4950 = vpop.f32.mrf.mxu0
    %v4951 = vadd.f32 %v4662, %v4950
    %v4952 = vpop.f32.mrf.mxu0
    %v4953 = vpop.f32.mrf.mxu0
    %v4954 = vadd.f32 %v4665, %v4953
    %v4955 = vpop.f32.mrf.mxu0
    %4956 = vmatprep.mubr.bf16.mxu0 0
    %4957 = vmatmul.mubr.bf16.gmra.mxu0 %v4475
    %v4958 = vpop.f32.mrf.mxu0
    %v4959 = vadd.f32 %v4670, %v4958
    %v4960 = vpop.f32.mrf.mxu0
    %v4961 = vpop.f32.mrf.mxu0
    %v4962 = vadd.f32 %v4673, %v4961
    %v4963 = vpop.f32.mrf.mxu0
    %4964 = vmatprep.mubr.bf16.mxu0 0
    %4965 = vmatmul.mubr.bf16.gmra.mxu0 %v4478
    %v4966 = vpop.f32.mrf.mxu0
    %v4967 = vadd.f32 %v4678, %v4966
    %v4968 = vpop.f32.mrf.mxu0
    %v4969 = vpop.f32.mrf.mxu0
    %v4970 = vadd.f32 %v4681, %v4969
    %v4971 = vpop.f32.mrf.mxu0
    %4972 = vmatprep.mubr.bf16.mxu0 0
    %4973 = vmatmul.mubr.bf16.gmra.mxu0 %v4481
    %v4974 = vpop.f32.mrf.mxu0
    %v4975 = vadd.f32 %v4686, %v4974
    %v4976 = vpop.f32.mrf.mxu0
    %v4977 = vpop.f32.mrf.mxu0
    %v4978 = vadd.f32 %v4689, %v4977
    %v4979 = vpop.f32.mrf.mxu0
    %4980 = vmatprep.mubr.bf16.mxu0 0
    %4981 = vmatmul.mubr.bf16.gmra.mxu0 %v4484
    %v4982 = vpop.f32.mrf.mxu0
    %v4983 = vadd.f32 %v4694, %v4982
    %v4984 = vpop.f32.mrf.mxu0
    %v4985 = vpop.f32.mrf.mxu0
    %v4986 = vadd.f32 %v4697, %v4985
    %v4987 = vpop.f32.mrf.mxu0
    %4988 = vmatprep.mubr.bf16.mxu0 0
    %4989 = vmatmul.mubr.bf16.gmra.mxu0 %v4487
    %v4990 = vpop.f32.mrf.mxu0
    %v4991 = vadd.f32 %v4702, %v4990
    %v4992 = vpop.f32.mrf.mxu0
    %v4993 = vpop.f32.mrf.mxu0
    %v4994 = vadd.f32 %v4705, %v4993
    %v4995 = vpop.f32.mrf.mxu0
    %4996 = vmatprep.mubr.bf16.mxu0 0
    %4997 = vmatmul.mubr.bf16.gmra.mxu0 %v4490
    %v4998 = vpop.f32.mrf.mxu0
    %v4999 = vadd.f32 %v4710, %v4998
    %v5000 = vpop.f32.mrf.mxu0
    %v5001 = vpop.f32.mrf.mxu0
    %v5002 = vadd.f32 %v4713, %v5001
    %v5003 = vpop.f32.mrf.mxu0
    %5004 = vmatprep.mubr.bf16.mxu0 0
    %5005 = vmatmul.mubr.bf16.gmra.mxu0 %v4493
    %v5006 = vpop.f32.mrf.mxu0
    %v5007 = vadd.f32 %v4718, %v5006
    %v5008 = vpop.f32.mrf.mxu0
    %v5009 = vpop.f32.mrf.mxu0
    %v5010 = vadd.f32 %v4721, %v5009
    %v5011 = vpop.f32.mrf.mxu0
    %5012 = vmatprep.mubr.bf16.mxu0 0
    %5013 = vmatmul.mubr.bf16.gmra.mxu0 %v4496
    %v5014 = vpop.f32.mrf.mxu0
    %v5015 = vadd.f32 %v4726, %v5014
    %v5016 = vpop.f32.mrf.mxu0
    %v5017 = vpop.f32.mrf.mxu0
    %v5018 = vadd.f32 %v4729, %v5017
    %v5019 = vpop.f32.mrf.mxu0
    %5020 = vmatprep.mubr.bf16.mxu0 0
    %5021 = vmatmul.mubr.bf16.gmra.mxu0 %v4499
    %v5022 = vpop.f32.mrf.mxu0
    %v5023 = vadd.f32 %v4734, %v5022
    %v5024 = vpop.f32.mrf.mxu0
    %v5025 = vpop.f32.mrf.mxu0
    %v5026 = vadd.f32 %v4737, %v5025
    %v5027 = vpop.f32.mrf.mxu0
    %5028 = vmatprep.mubr.bf16.mxu0 0
    %5029 = vmatmul.mubr.bf16.gmra.mxu0 %v4502
    %v5030 = vpop.f32.mrf.mxu0
    %v5031 = vadd.f32 %v4742, %v5030
    %v5032 = vpop.f32.mrf.mxu0
    %v5033 = vpop.f32.mrf.mxu0
    %v5034 = vadd.f32 %v4745, %v5033
    %v5035 = vpop.f32.mrf.mxu0
    %5036 = vmatprep.mubr.bf16.mxu0 0
    %5037 = vmatmul.mubr.bf16.gmra.mxu0 %v4505
    %v5038 = vpop.f32.mrf.mxu0
    %v5039 = vadd.f32 %v4750, %v5038
    %v5040 = vpop.f32.mrf.mxu0
    %v5041 = vpop.f32.mrf.mxu0
    %v5042 = vadd.f32 %v4753, %v5041
    %v5043 = vpop.f32.mrf.mxu0
    %5044 = vmatprep.mubr.bf16.mxu0 0
    %5045 = vmatmul.mubr.bf16.gmra.mxu0 %v4508
    %v5046 = vpop.f32.mrf.mxu0
    %v5047 = vadd.f32 %v4758, %v5046
    %v5048 = vpop.f32.mrf.mxu0
    %v5049 = vpop.f32.mrf.mxu0
    %v5050 = vadd.f32 %v4761, %v5049
    %v5051 = vpop.f32.mrf.mxu0
    %5052 = vmatprep.mubr.bf16.mxu0 0
    %5053 = vmatmul.mubr.bf16.gmra.mxu0 %v4511
    %v5054 = vpop.f32.mrf.mxu0
    %v5055 = vadd.f32 %v4766, %v5054
    %v5056 = vpop.f32.mrf.mxu0
    %v5057 = vpop.f32.mrf.mxu0
    %v5058 = vadd.f32 %v4769, %v5057
    %v5059 = vpop.f32.mrf.mxu0
    %5060 = vmatprep.mubr.bf16.mxu0 0
    %5061 = vmatmul.mubr.bf16.gmra.mxu0 %v4514
    %v5062 = vpop.f32.mrf.mxu0
    %v5063 = vadd.f32 %v4774, %v5062
    %v5064 = vpop.f32.mrf.mxu0
    %v5065 = vpop.f32.mrf.mxu0
    %v5066 = vadd.f32 %v4777, %v5065
    %v5067 = vpop.f32.mrf.mxu0
    %5068 = vmatprep.mubr.bf16.mxu0 0
    %5069 = vmatmul.mubr.bf16.gmra.mxu0 %v4517
    %v5070 = vpop.f32.mrf.mxu0
    %v5071 = vadd.f32 %v4782, %v5070
    %v5072 = vpop.f32.mrf.mxu0
    %v5073 = vpop.f32.mrf.mxu0
    %v5074 = vadd.f32 %v4785, %v5073
    %v5075 = vpop.f32.mrf.mxu0
    %5076 = vmatprep.mubr.bf16.mxu0 0
    %5077 = vmatmul.mubr.bf16.gmra.mxu0 %v4520
    %v5078 = vpop.f32.mrf.mxu0
    %v5079 = vadd.f32 %v4790, %v5078
    %v5080 = vpop.f32.mrf.mxu0
    %v5081 = vpop.f32.mrf.mxu0
    %v5082 = vadd.f32 %v4793, %v5081
    %v5083 = vpop.f32.mrf.mxu0
    %5084 = vmatprep.mubr.bf16.mxu0 0
    %5085 = vmatmul.mubr.bf16.gmra.mxu0 %v4523
    %v5086 = vpop.f32.mrf.mxu0
    %v5087 = vadd.f32 %v4798, %v5086
    %v5088 = vpop.f32.mrf.mxu0
    %v5089 = vpop.f32.mrf.mxu0
    %v5090 = vadd.f32 %v4801, %v5089
    %v5091 = vpop.f32.mrf.mxu0
    %5092 = vmatprep.mubr.bf16.mxu0 0
    %5093 = vmatmul.mubr.bf16.gmra.mxu0 %v4526
    %v5094 = vpop.f32.mrf.mxu0
    %v5095 = vadd.f32 %v4806, %v5094
    %v5096 = vpop.f32.mrf.mxu0
    %v5097 = vpop.f32.mrf.mxu0
    %v5098 = vadd.f32 %v4809, %v5097
    %v5099 = vpop.f32.mrf.mxu0
    %5100 = vmatprep.mubr.bf16.mxu0 0
    %5101 = vmatmul.mubr.bf16.gmra.mxu0 %v4529
    %v5102 = vpop.f32.mrf.mxu0
    %v5103 = vadd.f32 %v4814, %v5102
    %v5104 = vpop.f32.mrf.mxu0
    %v5105 = vpop.f32.mrf.mxu0
    %v5106 = vadd.f32 %v4817, %v5105
    %v5107 = vpop.f32.mrf.mxu0
    %5108 = vdwg.mxu0
    %v5117 = vunpack.c.l.b16 %v3618
    %v5118 = vunpack.c.h.b16 %v3618
    %v5119 = vunpack.c.l.b16 %v3619
    %v5120 = vunpack.c.l.b16 %v3620
    %v5121 = vunpack.c.h.b16 %v3620
    %v5122 = vunpack.c.l.b16 %v3621
    %v5123 = vunpack.c.l.b16 %v3622
    %v5124 = vunpack.c.h.b16 %v3622
    %v5125 = vunpack.c.l.b16 %v3623
    %v5126 = vunpack.c.l.b16 %v3624
    %v5127 = vunpack.c.h.b16 %v3624
    %v5128 = vunpack.c.l.b16 %v3625
    %v5129 = vpack.c.b16 %v5120, %v5117
    %v5130 = vpack.c.b16 %v5121, %v5118
    %v5131 = vpack.c.b16 %v5122, %v5119
    %v5132 = vpack.c.b16 %v5126, %v5123
    %v5133 = vpack.c.b16 %v5127, %v5124
    %v5134 = vpack.c.b16 %v5128, %v5125
    %v5179 = vunpack.c.l.b16 %v3746
    %v5180 = vunpack.c.l.b16 %v3747
    %v5181 = vunpack.c.l.b16 %v3748
    %v5182 = vunpack.c.l.b16 %v3749
    %v5183 = vunpack.c.l.b16 %v3750
    %v5184 = vunpack.c.l.b16 %v3751
    %v5185 = vunpack.c.l.b16 %v3752
    %v5186 = vunpack.c.l.b16 %v3753
    %v5187 = vunpack.c.l.b16 %v3754
    %v5188 = vunpack.c.l.b16 %v3755
    %v5189 = vunpack.c.l.b16 %v3756
    %v5190 = vunpack.c.l.b16 %v3757
    %v5191 = vunpack.c.l.b16 %v3758
    %v5192 = vunpack.c.l.b16 %v3759
    %v5193 = vunpack.c.l.b16 %v3760
    %v5194 = vunpack.c.l.b16 %v3761
    %v5195 = vunpack.c.l.b16 %v3762
    %v5196 = vunpack.c.l.b16 %v3763
    %v5197 = vunpack.c.l.b16 %v3764
    %v5198 = vunpack.c.l.b16 %v3765
    %v5199 = vunpack.c.l.b16 %v3766
    %v5200 = vunpack.c.l.b16 %v3767
    %v5201 = vunpack.c.l.b16 %v3768
    %v5202 = vunpack.c.l.b16 %v3769
    %v5203 = vunpack.c.l.b16 %v3770
    %v5204 = vunpack.c.l.b16 %v3771
    %v5205 = vunpack.c.l.b16 %v3772
    %v5206 = vunpack.c.l.b16 %v3773
    %v5207 = vunpack.c.l.b16 %v3774
    %v5208 = vunpack.c.l.b16 %v3775
    %v5209 = vunpack.c.l.b16 %v3776
    %v5210 = vunpack.c.l.b16 %v3777
    %v5211 = vunpack.c.l.b16 %v3778
    %v5212 = vunpack.c.l.b16 %v3779
    %v5213 = vunpack.c.l.b16 %v3780
    %v5214 = vunpack.c.l.b16 %v3781
    %v5215 = vunpack.c.l.b16 %v3782
    %v5216 = vunpack.c.l.b16 %v3783
    %v5217 = vunpack.c.l.b16 %v3784
    %v5218 = vunpack.c.l.b16 %v3785
    %v5219 = vpack.c.b16 %v5180, %v5179
    %v5220 = vpack.c.b16 %v5182, %v5181
    %v5221 = vpack.c.b16 %v5184, %v5183
    %v5222 = vpack.c.b16 %v5186, %v5185
    %v5223 = vpack.c.b16 %v5188, %v5187
    %v5224 = vpack.c.b16 %v5190, %v5189
    %v5225 = vpack.c.b16 %v5192, %v5191
    %v5226 = vpack.c.b16 %v5194, %v5193
    %v5227 = vpack.c.b16 %v5196, %v5195
    %v5228 = vpack.c.b16 %v5198, %v5197
    %v5229 = vpack.c.b16 %v5200, %v5199
    %v5230 = vpack.c.b16 %v5202, %v5201
    %v5231 = vpack.c.b16 %v5204, %v5203
    %v5232 = vpack.c.b16 %v5206, %v5205
    %v5233 = vpack.c.b16 %v5208, %v5207
    %v5234 = vpack.c.b16 %v5210, %v5209
    %v5235 = vpack.c.b16 %v5212, %v5211
    %v5236 = vpack.c.b16 %v5214, %v5213
    %v5237 = vpack.c.b16 %v5216, %v5215
    %v5238 = vpack.c.b16 %v5218, %v5217
    %v5260 = vsel %vm42, %v5131, 0
    %v5263 = vsel %vm42, %v5134, 0
    %5265 = vmatprep.subr.bf16.mxu0 0
    %5266 = vmatpush1.bf16.msra.mxu0 %v5226
    %5267 = vmatprep.subr.bf16.mxu0 0
    %5268 = vmatpush1.bf16.msra.mxu0 %v5225
    %5269 = vmatprep.subr.bf16.mxu0 0
    %5270 = vmatpush1.bf16.msra.mxu0 %v5224
    %5271 = vmatprep.subr.bf16.mxu0 0
    %5272 = vmatpush1.bf16.msra.mxu0 %v5223
    %5273 = vmatprep.subr.bf16.mxu0 0
    %5274 = vmatpush1.bf16.msra.mxu0 %v5222
    %5275 = vmatprep.subr.bf16.mxu0 0
    %5276 = vmatpush1.bf16.msra.mxu0 %v5221
    %5277 = vmatprep.subr.bf16.mxu0 0
    %5278 = vmatpush1.bf16.msra.mxu0 %v5220
    %5279 = vmatprep.subr.bf16.mxu0 0
    %5280 = vmatpush1.bf16.msra.mxu0 %v5219
    %5281 = vmatprep.subr.bf16.mxu0 0
    %5282 = vmatpush2.bf16.msra.mxu0 %v5234
    %5283 = vmatprep.subr.bf16.mxu0 0
    %5284 = vmatpush2.bf16.msra.mxu0 %v5233
    %5285 = vmatprep.subr.bf16.mxu0 0
    %5286 = vmatpush2.bf16.msra.mxu0 %v5232
    %5287 = vmatprep.subr.bf16.mxu0 0
    %5288 = vmatpush2.bf16.msra.mxu0 %v5231
    %5289 = vmatprep.subr.bf16.mxu0 0
    %5290 = vmatpush2.bf16.msra.mxu0 %v5230
    %5291 = vmatprep.subr.bf16.mxu0 0
    %5292 = vmatpush2.bf16.msra.mxu0 %v5229
    %5293 = vmatprep.subr.bf16.mxu0 0
    %5294 = vmatpush2.bf16.msra.mxu0 %v5228
    %5295 = vmatprep.subr.bf16.mxu0 0
    %5296 = vmatpush2.bf16.msra.mxu0 %v5227
    %5297 = vmatprep.mubr.bf16.mxu0 %v5130
    %5298 = vmatmul.mubr.bf16.gmra.mxu0 %v5129
    %v5299 = vpop.f32.mrf.mxu0
    %v5300 = vadd.f32 %v4855, %v5299
    %v5301 = vpop.f32.mrf.mxu0
    %v5302 = vpop.f32.mrf.mxu0
    %v5303 = vadd.f32 %v4858, %v5302
    %v5304 = vpop.f32.mrf.mxu0
    %5305 = vmatprep.mubr.bf16.mxu0 %v5133
    %5306 = vmatmul.mubr.bf16.gmra.mxu0 %v5132
    %v5307 = vpop.f32.mrf.mxu0
    %v5308 = vadd.f32 %v4863, %v5307
    %v5309 = vpop.f32.mrf.mxu0
    %v5310 = vpop.f32.mrf.mxu0
    %v5311 = vadd.f32 %v4866, %v5310
    %v5312 = vpop.f32.mrf.mxu0
    %5313 = vmatprep.mubr.bf16.mxu0 %v4156
    %5314 = vmatmul.mubr.bf16.gmra.mxu0 %v4155
    %v5315 = vpop.f32.mrf.mxu0
    %v5316 = vadd.f32 %v4871, %v5315
    %v5317 = vpop.f32.mrf.mxu0
    %v5318 = vpop.f32.mrf.mxu0
    %v5319 = vadd.f32 %v4874, %v5318
    %v5320 = vpop.f32.mrf.mxu0
    %5321 = vmatprep.mubr.bf16.mxu0 %v4159
    %5322 = vmatmul.mubr.bf16.gmra.mxu0 %v4158
    %v5323 = vpop.f32.mrf.mxu0
    %v5324 = vadd.f32 %v4879, %v5323
    %v5325 = vpop.f32.mrf.mxu0
    %v5326 = vpop.f32.mrf.mxu0
    %v5327 = vadd.f32 %v4882, %v5326
    %v5328 = vpop.f32.mrf.mxu0
    %5329 = vmatprep.mubr.bf16.mxu0 %v4162
    %5330 = vmatmul.mubr.bf16.gmra.mxu0 %v4161
    %v5331 = vpop.f32.mrf.mxu0
    %v5332 = vadd.f32 %v4887, %v5331
    %v5333 = vpop.f32.mrf.mxu0
    %v5334 = vpop.f32.mrf.mxu0
    %v5335 = vadd.f32 %v4890, %v5334
    %v5336 = vpop.f32.mrf.mxu0
    %5337 = vmatprep.mubr.bf16.mxu0 %v4165
    %5338 = vmatmul.mubr.bf16.gmra.mxu0 %v4164
    %v5339 = vpop.f32.mrf.mxu0
    %v5340 = vadd.f32 %v4895, %v5339
    %v5341 = vpop.f32.mrf.mxu0
    %v5342 = vpop.f32.mrf.mxu0
    %v5343 = vadd.f32 %v4898, %v5342
    %v5344 = vpop.f32.mrf.mxu0
    %5345 = vmatprep.mubr.bf16.mxu0 %v4168
    %5346 = vmatmul.mubr.bf16.gmra.mxu0 %v4167
    %v5347 = vpop.f32.mrf.mxu0
    %v5348 = vadd.f32 %v4903, %v5347
    %v5349 = vpop.f32.mrf.mxu0
    %v5350 = vpop.f32.mrf.mxu0
    %v5351 = vadd.f32 %v4906, %v5350
    %v5352 = vpop.f32.mrf.mxu0
    %5353 = vmatprep.mubr.bf16.mxu0 %v4171
    %5354 = vmatmul.mubr.bf16.gmra.mxu0 %v4170
    %v5355 = vpop.f32.mrf.mxu0
    %v5356 = vadd.f32 %v4911, %v5355
    %v5357 = vpop.f32.mrf.mxu0
    %v5358 = vpop.f32.mrf.mxu0
    %v5359 = vadd.f32 %v4914, %v5358
    %v5360 = vpop.f32.mrf.mxu0
    %5361 = vmatprep.mubr.bf16.mxu0 %v4174
    %5362 = vmatmul.mubr.bf16.gmra.mxu0 %v4173
    %v5363 = vpop.f32.mrf.mxu0
    %v5364 = vadd.f32 %v4919, %v5363
    %v5365 = vpop.f32.mrf.mxu0
    %v5366 = vpop.f32.mrf.mxu0
    %v5367 = vadd.f32 %v4922, %v5366
    %v5368 = vpop.f32.mrf.mxu0
    %5369 = vmatprep.mubr.bf16.mxu0 %v4177
    %5370 = vmatmul.mubr.bf16.gmra.mxu0 %v4176
    %v5371 = vpop.f32.mrf.mxu0
    %v5372 = vadd.f32 %v4927, %v5371
    %v5373 = vpop.f32.mrf.mxu0
    %v5374 = vpop.f32.mrf.mxu0
    %v5375 = vadd.f32 %v4930, %v5374
    %v5376 = vpop.f32.mrf.mxu0
    %5377 = vmatprep.mubr.bf16.mxu0 %v4180
    %5378 = vmatmul.mubr.bf16.gmra.mxu0 %v4179
    %v5379 = vpop.f32.mrf.mxu0
    %v5380 = vadd.f32 %v4935, %v5379
    %v5381 = vpop.f32.mrf.mxu0
    %v5382 = vpop.f32.mrf.mxu0
    %v5383 = vadd.f32 %v4938, %v5382
    %v5384 = vpop.f32.mrf.mxu0
    %5385 = vmatprep.mubr.bf16.mxu0 %v4183
    %5386 = vmatmul.mubr.bf16.gmra.mxu0 %v4182
    %v5387 = vpop.f32.mrf.mxu0
    %v5388 = vadd.f32 %v4943, %v5387
    %v5389 = vpop.f32.mrf.mxu0
    %v5390 = vpop.f32.mrf.mxu0
    %v5391 = vadd.f32 %v4946, %v5390
    %v5392 = vpop.f32.mrf.mxu0
    %5393 = vmatprep.mubr.bf16.mxu0 %v4186
    %5394 = vmatmul.mubr.bf16.gmra.mxu0 %v4185
    %v5395 = vpop.f32.mrf.mxu0
    %v5396 = vadd.f32 %v4951, %v5395
    %v5397 = vpop.f32.mrf.mxu0
    %v5398 = vpop.f32.mrf.mxu0
    %v5399 = vadd.f32 %v4954, %v5398
    %v5400 = vpop.f32.mrf.mxu0
    %5401 = vmatprep.mubr.bf16.mxu0 %v4189
    %5402 = vmatmul.mubr.bf16.gmra.mxu0 %v4188
    %v5403 = vpop.f32.mrf.mxu0
    %v5404 = vadd.f32 %v4959, %v5403
    %v5405 = vpop.f32.mrf.mxu0
    %v5406 = vpop.f32.mrf.mxu0
    %v5407 = vadd.f32 %v4962, %v5406
    %v5408 = vpop.f32.mrf.mxu0
    %5409 = vmatprep.mubr.bf16.mxu0 %v4192
    %5410 = vmatmul.mubr.bf16.gmra.mxu0 %v4191
    %v5411 = vpop.f32.mrf.mxu0
    %v5412 = vadd.f32 %v4967, %v5411
    %v5413 = vpop.f32.mrf.mxu0
    %v5414 = vpop.f32.mrf.mxu0
    %v5415 = vadd.f32 %v4970, %v5414
    %v5416 = vpop.f32.mrf.mxu0
    %5417 = vmatprep.mubr.bf16.mxu0 %v4195
    %5418 = vmatmul.mubr.bf16.gmra.mxu0 %v4194
    %v5419 = vpop.f32.mrf.mxu0
    %v5420 = vadd.f32 %v4975, %v5419
    %v5421 = vpop.f32.mrf.mxu0
    %v5422 = vpop.f32.mrf.mxu0
    %v5423 = vadd.f32 %v4978, %v5422
    %v5424 = vpop.f32.mrf.mxu0
    %5425 = vmatprep.mubr.bf16.mxu0 %v4198
    %5426 = vmatmul.mubr.bf16.gmra.mxu0 %v4197
    %v5427 = vpop.f32.mrf.mxu0
    %v5428 = vadd.f32 %v4983, %v5427
    %v5429 = vpop.f32.mrf.mxu0
    %v5430 = vpop.f32.mrf.mxu0
    %v5431 = vadd.f32 %v4986, %v5430
    %v5432 = vpop.f32.mrf.mxu0
    %5433 = vmatprep.mubr.bf16.mxu0 %v4201
    %5434 = vmatmul.mubr.bf16.gmra.mxu0 %v4200
    %v5435 = vpop.f32.mrf.mxu0
    %v5436 = vadd.f32 %v4991, %v5435
    %v5437 = vpop.f32.mrf.mxu0
    %v5438 = vpop.f32.mrf.mxu0
    %v5439 = vadd.f32 %v4994, %v5438
    %v5440 = vpop.f32.mrf.mxu0
    %5441 = vmatprep.mubr.bf16.mxu0 %v4204
    %5442 = vmatmul.mubr.bf16.gmra.mxu0 %v4203
    %v5443 = vpop.f32.mrf.mxu0
    %v5444 = vadd.f32 %v4999, %v5443
    %v5445 = vpop.f32.mrf.mxu0
    %v5446 = vpop.f32.mrf.mxu0
    %v5447 = vadd.f32 %v5002, %v5446
    %v5448 = vpop.f32.mrf.mxu0
    %5449 = vmatprep.mubr.bf16.mxu0 %v4207
    %5450 = vmatmul.mubr.bf16.gmra.mxu0 %v4206
    %v5451 = vpop.f32.mrf.mxu0
    %v5452 = vadd.f32 %v5007, %v5451
    %v5453 = vpop.f32.mrf.mxu0
    %v5454 = vpop.f32.mrf.mxu0
    %v5455 = vadd.f32 %v5010, %v5454
    %v5456 = vpop.f32.mrf.mxu0
    %5457 = vmatprep.mubr.bf16.mxu0 %v4210
    %5458 = vmatmul.mubr.bf16.gmra.mxu0 %v4209
    %v5459 = vpop.f32.mrf.mxu0
    %v5460 = vadd.f32 %v5015, %v5459
    %v5461 = vpop.f32.mrf.mxu0
    %v5462 = vpop.f32.mrf.mxu0
    %v5463 = vadd.f32 %v5018, %v5462
    %v5464 = vpop.f32.mrf.mxu0
    %5465 = vmatprep.mubr.bf16.mxu0 %v4213
    %5466 = vmatmul.mubr.bf16.gmra.mxu0 %v4212
    %v5467 = vpop.f32.mrf.mxu0
    %v5468 = vadd.f32 %v5023, %v5467
    %v5469 = vpop.f32.mrf.mxu0
    %v5470 = vpop.f32.mrf.mxu0
    %v5471 = vadd.f32 %v5026, %v5470
    %v5472 = vpop.f32.mrf.mxu0
    %5473 = vmatprep.mubr.bf16.mxu0 %v4216
    %5474 = vmatmul.mubr.bf16.gmra.mxu0 %v4215
    %v5475 = vpop.f32.mrf.mxu0
    %v5476 = vadd.f32 %v5031, %v5475
    %v5477 = vpop.f32.mrf.mxu0
    %v5478 = vpop.f32.mrf.mxu0
    %v5479 = vadd.f32 %v5034, %v5478
    %v5480 = vpop.f32.mrf.mxu0
    %5481 = vmatprep.mubr.bf16.mxu0 %v4219
    %5482 = vmatmul.mubr.bf16.gmra.mxu0 %v4218
    %v5483 = vpop.f32.mrf.mxu0
    %v5484 = vadd.f32 %v5039, %v5483
    %v5485 = vpop.f32.mrf.mxu0
    %v5486 = vpop.f32.mrf.mxu0
    %v5487 = vadd.f32 %v5042, %v5486
    %v5488 = vpop.f32.mrf.mxu0
    %5489 = vmatprep.mubr.bf16.mxu0 %v4222
    %5490 = vmatmul.mubr.bf16.gmra.mxu0 %v4221
    %v5491 = vpop.f32.mrf.mxu0
    %v5492 = vadd.f32 %v5047, %v5491
    %v5493 = vpop.f32.mrf.mxu0
    %v5494 = vpop.f32.mrf.mxu0
    %v5495 = vadd.f32 %v5050, %v5494
    %v5496 = vpop.f32.mrf.mxu0
    %5497 = vmatprep.mubr.bf16.mxu0 %v4225
    %5498 = vmatmul.mubr.bf16.gmra.mxu0 %v4224
    %v5499 = vpop.f32.mrf.mxu0
    %v5500 = vadd.f32 %v5055, %v5499
    %v5501 = vpop.f32.mrf.mxu0
    %v5502 = vpop.f32.mrf.mxu0
    %v5503 = vadd.f32 %v5058, %v5502
    %v5504 = vpop.f32.mrf.mxu0
    %5505 = vmatprep.mubr.bf16.mxu0 %v4228
    %5506 = vmatmul.mubr.bf16.gmra.mxu0 %v4227
    %v5507 = vpop.f32.mrf.mxu0
    %v5508 = vadd.f32 %v5063, %v5507
    %v5509 = vpop.f32.mrf.mxu0
    %v5510 = vpop.f32.mrf.mxu0
    %v5511 = vadd.f32 %v5066, %v5510
    %v5512 = vpop.f32.mrf.mxu0
    %5513 = vmatprep.mubr.bf16.mxu0 %v4231
    %5514 = vmatmul.mubr.bf16.gmra.mxu0 %v4230
    %v5515 = vpop.f32.mrf.mxu0
    %v5516 = vadd.f32 %v5071, %v5515
    %v5517 = vpop.f32.mrf.mxu0
    %v5518 = vpop.f32.mrf.mxu0
    %v5519 = vadd.f32 %v5074, %v5518
    %v5520 = vpop.f32.mrf.mxu0
    %5521 = vmatprep.mubr.bf16.mxu0 %v4234
    %5522 = vmatmul.mubr.bf16.gmra.mxu0 %v4233
    %v5523 = vpop.f32.mrf.mxu0
    %v5524 = vadd.f32 %v5079, %v5523
    %v5525 = vpop.f32.mrf.mxu0
    %v5526 = vpop.f32.mrf.mxu0
    %v5527 = vadd.f32 %v5082, %v5526
    %v5528 = vpop.f32.mrf.mxu0
    %5529 = vmatprep.mubr.bf16.mxu0 %v4237
    %5530 = vmatmul.mubr.bf16.gmra.mxu0 %v4236
    %v5531 = vpop.f32.mrf.mxu0
    %v5532 = vadd.f32 %v5087, %v5531
    %v5533 = vpop.f32.mrf.mxu0
    %v5534 = vpop.f32.mrf.mxu0
    %v5535 = vadd.f32 %v5090, %v5534
    %v5536 = vpop.f32.mrf.mxu0
    %5537 = vmatprep.mubr.bf16.mxu0 %v4240
    %5538 = vmatmul.mubr.bf16.gmra.mxu0 %v4239
    %v5539 = vpop.f32.mrf.mxu0
    %v5540 = vadd.f32 %v5095, %v5539
    %v5541 = vpop.f32.mrf.mxu0
    %v5542 = vpop.f32.mrf.mxu0
    %v5543 = vadd.f32 %v5098, %v5542
    %v5544 = vpop.f32.mrf.mxu0
    %5545 = vmatprep.mubr.bf16.mxu0 %v4243
    %5546 = vmatmul.mubr.bf16.gmra.mxu0 %v4242
    %v5547 = vpop.f32.mrf.mxu0
    %v5548 = vadd.f32 %v5103, %v5547
    %v5549 = vpop.f32.mrf.mxu0
    %v5550 = vpop.f32.mrf.mxu0
    %v5551 = vadd.f32 %v5106, %v5550
    %v5552 = vpop.f32.mrf.mxu0
    %5553 = vdwg.mxu0
    %5554 = vmatprep.subr.bf16.mxu0 0
    %5555 = vmatpush1.bf16.msra.mxu0 0
    %5556 = vmatprep.subr.bf16.mxu0 0
    %5557 = vmatpush1.bf16.msra.mxu0 0
    %5558 = vmatprep.subr.bf16.mxu0 0
    %5559 = vmatpush1.bf16.msra.mxu0 0
    %5560 = vmatprep.subr.bf16.mxu0 0
    %5561 = vmatpush1.bf16.msra.mxu0 0
    %5562 = vmatprep.subr.bf16.mxu0 0
    %5563 = vmatpush1.bf16.msra.mxu0 %v5238
    %5564 = vmatprep.subr.bf16.mxu0 0
    %5565 = vmatpush1.bf16.msra.mxu0 %v5237
    %5566 = vmatprep.subr.bf16.mxu0 0
    %5567 = vmatpush1.bf16.msra.mxu0 %v5236
    %5568 = vmatprep.subr.bf16.mxu0 0
    %5569 = vmatpush1.bf16.msra.mxu0 %v5235
    %5570 = vmatprep.subr.bf16.mxu0 0
    %5571 = vmatpush2.bf16.msra.mxu0 0
    %5572 = vmatprep.subr.bf16.mxu0 0
    %5573 = vmatpush2.bf16.msra.mxu0 0
    %5574 = vmatprep.subr.bf16.mxu0 0
    %5575 = vmatpush2.bf16.msra.mxu0 0
    %5576 = vmatprep.subr.bf16.mxu0 0
    %5577 = vmatpush2.bf16.msra.mxu0 0
    %5578 = vmatprep.subr.bf16.mxu0 0
    %5579 = vmatpush2.bf16.msra.mxu0 0
    %5580 = vmatprep.subr.bf16.mxu0 0
    %5581 = vmatpush2.bf16.msra.mxu0 0
    %5582 = vmatprep.subr.bf16.mxu0 0
    %5583 = vmatpush2.bf16.msra.mxu0 0
    %5584 = vmatprep.subr.bf16.mxu0 0
    %5585 = vmatpush2.bf16.msra.mxu0 0
    %5586 = vmatprep.mubr.bf16.mxu0 0
    %5587 = vmatmul.mubr.bf16.gmra.mxu0 %v5260
    %v5588 = vpop.f32.mrf.mxu0
    %v5589 = vadd.f32 %v5300, %v5588
    %v5590 = vpop.f32.mrf.mxu0
    %v5591 = vpop.f32.mrf.mxu0
    %v5592 = vadd.f32 %v5303, %v5591
    %v5593 = vpop.f32.mrf.mxu0
    %5594 = vmatprep.mubr.bf16.mxu0 0
    %5595 = vmatmul.mubr.bf16.gmra.mxu0 %v5263
    %v5596 = vpop.f32.mrf.mxu0
    %v5597 = vadd.f32 %v5308, %v5596
    %v5598 = vpop.f32.mrf.mxu0
    %v5599 = vpop.f32.mrf.mxu0
    %v5600 = vadd.f32 %v5311, %v5599
    %v5601 = vpop.f32.mrf.mxu0
    %5602 = vmatprep.mubr.bf16.mxu0 0
    %5603 = vmatmul.mubr.bf16.gmra.mxu0 %v4436
    %v5604 = vpop.f32.mrf.mxu0
    %v5605 = vadd.f32 %v5316, %v5604
    %v5606 = vpop.f32.mrf.mxu0
    %v5607 = vpop.f32.mrf.mxu0
    %v5608 = vadd.f32 %v5319, %v5607
    %v5609 = vpop.f32.mrf.mxu0
    %5610 = vmatprep.mubr.bf16.mxu0 0
    %5611 = vmatmul.mubr.bf16.gmra.mxu0 %v4439
    %v5612 = vpop.f32.mrf.mxu0
    %v5613 = vadd.f32 %v5324, %v5612
    %v5614 = vpop.f32.mrf.mxu0
    %v5615 = vpop.f32.mrf.mxu0
    %v5616 = vadd.f32 %v5327, %v5615
    %v5617 = vpop.f32.mrf.mxu0
    %5618 = vmatprep.mubr.bf16.mxu0 0
    %5619 = vmatmul.mubr.bf16.gmra.mxu0 %v4442
    %v5620 = vpop.f32.mrf.mxu0
    %v5621 = vadd.f32 %v5332, %v5620
    %v5622 = vpop.f32.mrf.mxu0
    %v5623 = vpop.f32.mrf.mxu0
    %v5624 = vadd.f32 %v5335, %v5623
    %v5625 = vpop.f32.mrf.mxu0
    %5626 = vmatprep.mubr.bf16.mxu0 0
    %5627 = vmatmul.mubr.bf16.gmra.mxu0 %v4445
    %v5628 = vpop.f32.mrf.mxu0
    %v5629 = vadd.f32 %v5340, %v5628
    %v5630 = vpop.f32.mrf.mxu0
    %v5631 = vpop.f32.mrf.mxu0
    %v5632 = vadd.f32 %v5343, %v5631
    %v5633 = vpop.f32.mrf.mxu0
    %5634 = vmatprep.mubr.bf16.mxu0 0
    %5635 = vmatmul.mubr.bf16.gmra.mxu0 %v4448
    %v5636 = vpop.f32.mrf.mxu0
    %v5637 = vadd.f32 %v5348, %v5636
    %v5638 = vpop.f32.mrf.mxu0
    %v5639 = vpop.f32.mrf.mxu0
    %v5640 = vadd.f32 %v5351, %v5639
    %v5641 = vpop.f32.mrf.mxu0
    %5642 = vmatprep.mubr.bf16.mxu0 0
    %5643 = vmatmul.mubr.bf16.gmra.mxu0 %v4451
    %v5644 = vpop.f32.mrf.mxu0
    %v5645 = vadd.f32 %v5356, %v5644
    %v5646 = vpop.f32.mrf.mxu0
    %v5647 = vpop.f32.mrf.mxu0
    %v5648 = vadd.f32 %v5359, %v5647
    %v5649 = vpop.f32.mrf.mxu0
    %5650 = vmatprep.mubr.bf16.mxu0 0
    %5651 = vmatmul.mubr.bf16.gmra.mxu0 %v4454
    %v5652 = vpop.f32.mrf.mxu0
    %v5653 = vadd.f32 %v5364, %v5652
    %v5654 = vpop.f32.mrf.mxu0
    %v5655 = vpop.f32.mrf.mxu0
    %v5656 = vadd.f32 %v5367, %v5655
    %v5657 = vpop.f32.mrf.mxu0
    %5658 = vmatprep.mubr.bf16.mxu0 0
    %5659 = vmatmul.mubr.bf16.gmra.mxu0 %v4457
    %v5660 = vpop.f32.mrf.mxu0
    %v5661 = vadd.f32 %v5372, %v5660
    %v5662 = vpop.f32.mrf.mxu0
    %v5663 = vpop.f32.mrf.mxu0
    %v5664 = vadd.f32 %v5375, %v5663
    %v5665 = vpop.f32.mrf.mxu0
    %5666 = vmatprep.mubr.bf16.mxu0 0
    %5667 = vmatmul.mubr.bf16.gmra.mxu0 %v4460
    %v5668 = vpop.f32.mrf.mxu0
    %v5669 = vadd.f32 %v5380, %v5668
    %v5670 = vpop.f32.mrf.mxu0
    %v5671 = vpop.f32.mrf.mxu0
    %v5672 = vadd.f32 %v5383, %v5671
    %v5673 = vpop.f32.mrf.mxu0
    %5674 = vmatprep.mubr.bf16.mxu0 0
    %5675 = vmatmul.mubr.bf16.gmra.mxu0 %v4463
    %v5676 = vpop.f32.mrf.mxu0
    %v5677 = vadd.f32 %v5388, %v5676
    %v5678 = vpop.f32.mrf.mxu0
    %v5679 = vpop.f32.mrf.mxu0
    %v5680 = vadd.f32 %v5391, %v5679
    %v5681 = vpop.f32.mrf.mxu0
    %5682 = vmatprep.mubr.bf16.mxu0 0
    %5683 = vmatmul.mubr.bf16.gmra.mxu0 %v4466
    %v5684 = vpop.f32.mrf.mxu0
    %v5685 = vadd.f32 %v5396, %v5684
    %v5686 = vpop.f32.mrf.mxu0
    %v5687 = vpop.f32.mrf.mxu0
    %v5688 = vadd.f32 %v5399, %v5687
    %v5689 = vpop.f32.mrf.mxu0
    %5690 = vmatprep.mubr.bf16.mxu0 0
    %5691 = vmatmul.mubr.bf16.gmra.mxu0 %v4469
    %v5692 = vpop.f32.mrf.mxu0
    %v5693 = vadd.f32 %v5404, %v5692
    %v5694 = vpop.f32.mrf.mxu0
    %v5695 = vpop.f32.mrf.mxu0
    %v5696 = vadd.f32 %v5407, %v5695
    %v5697 = vpop.f32.mrf.mxu0
    %5698 = vmatprep.mubr.bf16.mxu0 0
    %5699 = vmatmul.mubr.bf16.gmra.mxu0 %v4472
    %v5700 = vpop.f32.mrf.mxu0
    %v5701 = vadd.f32 %v5412, %v5700
    %v5702 = vpop.f32.mrf.mxu0
    %v5703 = vpop.f32.mrf.mxu0
    %v5704 = vadd.f32 %v5415, %v5703
    %v5705 = vpop.f32.mrf.mxu0
    %5706 = vmatprep.mubr.bf16.mxu0 0
    %5707 = vmatmul.mubr.bf16.gmra.mxu0 %v4475
    %v5708 = vpop.f32.mrf.mxu0
    %v5709 = vadd.f32 %v5420, %v5708
    %v5710 = vpop.f32.mrf.mxu0
    %v5711 = vpop.f32.mrf.mxu0
    %v5712 = vadd.f32 %v5423, %v5711
    %v5713 = vpop.f32.mrf.mxu0
    %5714 = vmatprep.mubr.bf16.mxu0 0
    %5715 = vmatmul.mubr.bf16.gmra.mxu0 %v4478
    %v5716 = vpop.f32.mrf.mxu0
    %v5717 = vadd.f32 %v5428, %v5716
    %v5718 = vpop.f32.mrf.mxu0
    %v5719 = vpop.f32.mrf.mxu0
    %v5720 = vadd.f32 %v5431, %v5719
    %v5721 = vpop.f32.mrf.mxu0
    %5722 = vmatprep.mubr.bf16.mxu0 0
    %5723 = vmatmul.mubr.bf16.gmra.mxu0 %v4481
    %v5724 = vpop.f32.mrf.mxu0
    %v5725 = vadd.f32 %v5436, %v5724
    %v5726 = vpop.f32.mrf.mxu0
    %v5727 = vpop.f32.mrf.mxu0
    %v5728 = vadd.f32 %v5439, %v5727
    %v5729 = vpop.f32.mrf.mxu0
    %5730 = vmatprep.mubr.bf16.mxu0 0
    %5731 = vmatmul.mubr.bf16.gmra.mxu0 %v4484
    %v5732 = vpop.f32.mrf.mxu0
    %v5733 = vadd.f32 %v5444, %v5732
    %v5734 = vpop.f32.mrf.mxu0
    %v5735 = vpop.f32.mrf.mxu0
    %v5736 = vadd.f32 %v5447, %v5735
    %v5737 = vpop.f32.mrf.mxu0
    %5738 = vmatprep.mubr.bf16.mxu0 0
    %5739 = vmatmul.mubr.bf16.gmra.mxu0 %v4487
    %v5740 = vpop.f32.mrf.mxu0
    %v5741 = vadd.f32 %v5452, %v5740
    %v5742 = vpop.f32.mrf.mxu0
    %v5743 = vpop.f32.mrf.mxu0
    %v5744 = vadd.f32 %v5455, %v5743
    %v5745 = vpop.f32.mrf.mxu0
    %5746 = vmatprep.mubr.bf16.mxu0 0
    %5747 = vmatmul.mubr.bf16.gmra.mxu0 %v4490
    %v5748 = vpop.f32.mrf.mxu0
    %v5749 = vadd.f32 %v5460, %v5748
    %v5750 = vpop.f32.mrf.mxu0
    %v5751 = vpop.f32.mrf.mxu0
    %v5752 = vadd.f32 %v5463, %v5751
    %v5753 = vpop.f32.mrf.mxu0
    %5754 = vmatprep.mubr.bf16.mxu0 0
    %5755 = vmatmul.mubr.bf16.gmra.mxu0 %v4493
    %v5756 = vpop.f32.mrf.mxu0
    %v5757 = vadd.f32 %v5468, %v5756
    %v5758 = vpop.f32.mrf.mxu0
    %v5759 = vpop.f32.mrf.mxu0
    %v5760 = vadd.f32 %v5471, %v5759
    %v5761 = vpop.f32.mrf.mxu0
    %5762 = vmatprep.mubr.bf16.mxu0 0
    %5763 = vmatmul.mubr.bf16.gmra.mxu0 %v4496
    %v5764 = vpop.f32.mrf.mxu0
    %v5765 = vadd.f32 %v5476, %v5764
    %v5766 = vpop.f32.mrf.mxu0
    %v5767 = vpop.f32.mrf.mxu0
    %v5768 = vadd.f32 %v5479, %v5767
    %v5769 = vpop.f32.mrf.mxu0
    %5770 = vmatprep.mubr.bf16.mxu0 0
    %5771 = vmatmul.mubr.bf16.gmra.mxu0 %v4499
    %v5772 = vpop.f32.mrf.mxu0
    %v5773 = vadd.f32 %v5484, %v5772
    %v5774 = vpop.f32.mrf.mxu0
    %v5775 = vpop.f32.mrf.mxu0
    %v5776 = vadd.f32 %v5487, %v5775
    %v5777 = vpop.f32.mrf.mxu0
    %5778 = vmatprep.mubr.bf16.mxu0 0
    %5779 = vmatmul.mubr.bf16.gmra.mxu0 %v4502
    %v5780 = vpop.f32.mrf.mxu0
    %v5781 = vadd.f32 %v5492, %v5780
    %v5782 = vpop.f32.mrf.mxu0
    %v5783 = vpop.f32.mrf.mxu0
    %v5784 = vadd.f32 %v5495, %v5783
    %v5785 = vpop.f32.mrf.mxu0
    %5786 = vmatprep.mubr.bf16.mxu0 0
    %5787 = vmatmul.mubr.bf16.gmra.mxu0 %v4505
    %v5788 = vpop.f32.mrf.mxu0
    %v5789 = vadd.f32 %v5500, %v5788
    %v5790 = vpop.f32.mrf.mxu0
    %v5791 = vpop.f32.mrf.mxu0
    %v5792 = vadd.f32 %v5503, %v5791
    %v5793 = vpop.f32.mrf.mxu0
    %5794 = vmatprep.mubr.bf16.mxu0 0
    %5795 = vmatmul.mubr.bf16.gmra.mxu0 %v4508
    %v5796 = vpop.f32.mrf.mxu0
    %v5797 = vadd.f32 %v5508, %v5796
    %v5798 = vpop.f32.mrf.mxu0
    %v5799 = vpop.f32.mrf.mxu0
    %v5800 = vadd.f32 %v5511, %v5799
    %v5801 = vpop.f32.mrf.mxu0
    %5802 = vmatprep.mubr.bf16.mxu0 0
    %5803 = vmatmul.mubr.bf16.gmra.mxu0 %v4511
    %v5804 = vpop.f32.mrf.mxu0
    %v5805 = vadd.f32 %v5516, %v5804
    %v5806 = vpop.f32.mrf.mxu0
    %v5807 = vpop.f32.mrf.mxu0
    %v5808 = vadd.f32 %v5519, %v5807
    %v5809 = vpop.f32.mrf.mxu0
    %5810 = vmatprep.mubr.bf16.mxu0 0
    %5811 = vmatmul.mubr.bf16.gmra.mxu0 %v4514
    %v5812 = vpop.f32.mrf.mxu0
    %v5813 = vadd.f32 %v5524, %v5812
    %v5814 = vpop.f32.mrf.mxu0
    %v5815 = vpop.f32.mrf.mxu0
    %v5816 = vadd.f32 %v5527, %v5815
    %v5817 = vpop.f32.mrf.mxu0
    %5818 = vmatprep.mubr.bf16.mxu0 0
    %5819 = vmatmul.mubr.bf16.gmra.mxu0 %v4517
    %v5820 = vpop.f32.mrf.mxu0
    %v5821 = vadd.f32 %v5532, %v5820
    %v5822 = vpop.f32.mrf.mxu0
    %v5823 = vpop.f32.mrf.mxu0
    %v5824 = vadd.f32 %v5535, %v5823
    %v5825 = vpop.f32.mrf.mxu0
    %5826 = vmatprep.mubr.bf16.mxu0 0
    %5827 = vmatmul.mubr.bf16.gmra.mxu0 %v4520
    %v5828 = vpop.f32.mrf.mxu0
    %v5829 = vadd.f32 %v5540, %v5828
    %v5830 = vpop.f32.mrf.mxu0
    %v5831 = vpop.f32.mrf.mxu0
    %v5832 = vadd.f32 %v5543, %v5831
    %v5833 = vpop.f32.mrf.mxu0
    %5834 = vmatprep.mubr.bf16.mxu0 0
    %5835 = vmatmul.mubr.bf16.gmra.mxu0 %v4523
    %v5836 = vpop.f32.mrf.mxu0
    %v5837 = vadd.f32 %v5548, %v5836
    %v5838 = vpop.f32.mrf.mxu0
    %v5839 = vpop.f32.mrf.mxu0
    %v5840 = vadd.f32 %v5551, %v5839
    %v5841 = vpop.f32.mrf.mxu0
    %5842 = vdwg.mxu0
    %v5843 = vld [vmem:[#allocation3 + $0x60] sm:$0xff]
    %v5844 = vld [vmem:[#allocation3 + $0x68] sm:$0xf]
    %v5845 = vld [vmem:[#allocation3 + $0x6c] sm:$0xff]
    %v5846 = vld [vmem:[#allocation3 + $0x74] sm:$0xf]
    %v5847 = vld [vmem:[#allocation3 + $0x78] sm:$0xff]
    %v5848 = vld [vmem:[#allocation3 + $0x80] sm:$0xf]
    %v5849 = vld [vmem:[#allocation3 + $0x84] sm:$0xff]
    %v5850 = vld [vmem:[#allocation3 + $0x8c] sm:$0xf]
    %v5851 = vld [vmem:[#allocation3 + $0x90] sm:$0xff]
    %v5852 = vld [vmem:[#allocation3 + $0x98] sm:$0xf]
    %v5853 = vld [vmem:[#allocation3 + $0x9c] sm:$0xff]
    %v5854 = vld [vmem:[#allocation3 + $0xa4] sm:$0xf]
    %v5855 = vld [vmem:[#allocation3 + $0xa8] sm:$0xff]
    %v5856 = vld [vmem:[#allocation3 + $0xb0] sm:$0xf]
    %v5857 = vld [vmem:[#allocation3 + $0xb4] sm:$0xff]
    %v5858 = vld [vmem:[#allocation3 + $0xbc] sm:$0xf]
    %v5859 = vld [vmem:[#allocation3 + $0xc0] sm:$0xff]
    %v5860 = vld [vmem:[#allocation3 + $0xc8] sm:$0xf]
    %v5861 = vld [vmem:[#allocation3 + $0xcc] sm:$0xff]
    %v5862 = vld [vmem:[#allocation3 + $0xd4] sm:$0xf]
    %v5863 = vld [vmem:[#allocation3 + $0xd8] sm:$0xff]
    %v5864 = vld [vmem:[#allocation3 + $0xe0] sm:$0xf]
    %v5865 = vld [vmem:[#allocation3 + $0xe4] sm:$0xff]
    %v5866 = vld [vmem:[#allocation3 + $0xec] sm:$0xf]
    %v5867 = vld [vmem:[#allocation3 + $0xf0] sm:$0xff]
    %v5868 = vld [vmem:[#allocation3 + $0xf8] sm:$0xf]
    %v5869 = vld [vmem:[#allocation3 + $0xfc] sm:$0xff]
    %v5870 = vld [vmem:[#allocation3 + $0x104] sm:$0xf]
    %v5871 = vld [vmem:[#allocation3 + $0x108] sm:$0xff]
    %v5872 = vld [vmem:[#allocation3 + $0x110] sm:$0xf]
    %v5873 = vld [vmem:[#allocation3 + $0x114] sm:$0xff]
    %v5874 = vld [vmem:[#allocation3 + $0x11c] sm:$0xf]
    %v5875 = vld [vmem:[#allocation3 + $0x120] sm:$0xff]
    %v5876 = vld [vmem:[#allocation3 + $0x128] sm:$0xf]
    %v5877 = vld [vmem:[#allocation3 + $0x12c] sm:$0xff]
    %v5878 = vld [vmem:[#allocation3 + $0x134] sm:$0xf]
    %v5879 = vld [vmem:[#allocation3 + $0x138] sm:$0xff]
    %v5880 = vld [vmem:[#allocation3 + $0x140] sm:$0xf]
    %v5881 = vld [vmem:[#allocation3 + $0x144] sm:$0xff]
    %v5882 = vld [vmem:[#allocation3 + $0x14c] sm:$0xf]
    %v5883 = vld [vmem:[#allocation3 + $0x150] sm:$0xff]
    %v5884 = vld [vmem:[#allocation3 + $0x158] sm:$0xf]
    %v5885 = vld [vmem:[#allocation3 + $0x15c] sm:$0xff]
    %v5886 = vld [vmem:[#allocation3 + $0x164] sm:$0xf]
    %v5887 = vld [vmem:[#allocation3 + $0x168] sm:$0xff]
    %v5888 = vld [vmem:[#allocation3 + $0x170] sm:$0xf]
    %v5889 = vld [vmem:[#allocation3 + $0x174] sm:$0xff]
    %v5890 = vld [vmem:[#allocation3 + $0x17c] sm:$0xf]
    %v5891 = vld [vmem:[#allocation3 + $0x180] sm:$0xff]
    %v5892 = vld [vmem:[#allocation3 + $0x188] sm:$0xf]
    %v5893 = vld [vmem:[#allocation3 + $0x18c] sm:$0xff]
    %v5894 = vld [vmem:[#allocation3 + $0x194] sm:$0xf]
    %v5895 = vld [vmem:[#allocation3 + $0x198] sm:$0xff]
    %v5896 = vld [vmem:[#allocation3 + $0x1a0] sm:$0xf]
    %v5897 = vld [vmem:[#allocation3 + $0x1a4] sm:$0xff]
    %v5898 = vld [vmem:[#allocation3 + $0x1ac] sm:$0xf]
    %v5899 = vld [vmem:[#allocation3 + $0x1b0] sm:$0xff]
    %v5900 = vld [vmem:[#allocation3 + $0x1b8] sm:$0xf]
    %v5901 = vld [vmem:[#allocation3 + $0x1bc] sm:$0xff]
    %v5902 = vld [vmem:[#allocation3 + $0x1c4] sm:$0xf]
    %v5903 = vld [vmem:[#allocation3 + $0x1c8] sm:$0xff]
    %v5904 = vld [vmem:[#allocation3 + $0x1d0] sm:$0xf]
    %v5905 = vld [vmem:[#allocation3 + $0x1d4] sm:$0xff]
    %v5906 = vld [vmem:[#allocation3 + $0x1dc] sm:$0xf]
    %v5907 = vld [vmem:[#allocation3 + $0x1e0] sm:$0xff]
    %v5908 = vld [vmem:[#allocation3 + $0x1e8] sm:$0xf]
    %v5909 = vld [vmem:[#allocation3 + $0x1ec] sm:$0xff]
    %v5910 = vld [vmem:[#allocation3 + $0x1f4] sm:$0xf]
    %v5911 = vld [vmem:[#allocation3 + $0x1f8] sm:$0xff]
    %v5912 = vld [vmem:[#allocation3 + $0x200] sm:$0xf]
    %v5913 = vld [vmem:[#allocation3 + $0x204] sm:$0xff]
    %v5914 = vld [vmem:[#allocation3 + $0x20c] sm:$0xf]
    %v5915 = vld [vmem:[#allocation3 + $0x210] sm:$0xff]
    %v5916 = vld [vmem:[#allocation3 + $0x218] sm:$0xf]
    %v5917 = vld [vmem:[#allocation3 + $0x21c] sm:$0xff]
    %v5918 = vld [vmem:[#allocation3 + $0x224] sm:$0xf]
    %v5919 = vld [vmem:[#allocation3 + $0x228] sm:$0xff]
    %v5920 = vld [vmem:[#allocation3 + $0x230] sm:$0xf]
    %v5921 = vld [vmem:[#allocation3 + $0x234] sm:$0xff]
    %v5922 = vld [vmem:[#allocation3 + $0x23c] sm:$0xf]
    %v5923 = vld [vmem:[#allocation3 + $0x240] sm:$0xff]
    %v5924 = vld [vmem:[#allocation3 + $0x248] sm:$0xf]
    %v5925 = vld [vmem:[#allocation3 + $0x24c] sm:$0xff]
    %v5926 = vld [vmem:[#allocation3 + $0x254] sm:$0xf]
    %v5927 = vld [vmem:[#allocation3 + $0x258] sm:$0xff]
    %v5928 = vld [vmem:[#allocation3 + $0x260] sm:$0xf]
    %v5929 = vld [vmem:[#allocation3 + $0x264] sm:$0xff]
    %v5930 = vld [vmem:[#allocation3 + $0x26c] sm:$0xf]
    %v5931 = vld [vmem:[#allocation3 + $0x270] sm:$0xff]
    %v5932 = vld [vmem:[#allocation3 + $0x278] sm:$0xf]
    %v5933 = vld [vmem:[#allocation3 + $0x27c] sm:$0xff]
    %v5934 = vld [vmem:[#allocation3 + $0x284] sm:$0xf]
    %v5935 = vld [vmem:[#allocation3 + $0x288] sm:$0xff]
    %v5936 = vld [vmem:[#allocation3 + $0x290] sm:$0xf]
    %v5937 = vld [vmem:[#allocation3 + $0x294] sm:$0xff]
    %v5938 = vld [vmem:[#allocation3 + $0x29c] sm:$0xf]
    %v5939 = vld [vmem:[#allocation3 + $0x2a0] sm:$0xff]
    %v5940 = vld [vmem:[#allocation3 + $0x2a8] sm:$0xf]
    %v5941 = vld [vmem:[#allocation3 + $0x2ac] sm:$0xff]
    %v5942 = vld [vmem:[#allocation3 + $0x2b4] sm:$0xf]
    %v5943 = vld [vmem:[#allocation3 + $0x2b8] sm:$0xff]
    %v5944 = vld [vmem:[#allocation3 + $0x2c0] sm:$0xf]
    %v5945 = vld [vmem:[#allocation3 + $0x2c4] sm:$0xff]
    %v5946 = vld [vmem:[#allocation3 + $0x2cc] sm:$0xf]
    %v5947 = vld [vmem:[#allocation3 + $0x2d0] sm:$0xff]
    %v5948 = vld [vmem:[#allocation3 + $0x2d8] sm:$0xf]
    %v5949 = vld [vmem:[#allocation3 + $0x2dc] sm:$0xff]
    %v5950 = vld [vmem:[#allocation3 + $0x2e4] sm:$0xf]
    %v5951 = vld [vmem:[#allocation3 + $0x2e8] sm:$0xff]
    %v5952 = vld [vmem:[#allocation3 + $0x2f0] sm:$0xf]
    %v5953 = vld [vmem:[#allocation3 + $0x2f4] sm:$0xff]
    %v5954 = vld [vmem:[#allocation3 + $0x2fc] sm:$0xf]
    %v5955 = vld [vmem:[#allocation3 + $0x300] sm:$0xff]
    %v5956 = vld [vmem:[#allocation3 + $0x308] sm:$0xf]
    %v5957 = vld [vmem:[#allocation3 + $0x30c] sm:$0xff]
    %v5958 = vld [vmem:[#allocation3 + $0x314] sm:$0xf]
    %v5959 = vld [vmem:[#allocation3 + $0x318] sm:$0xff]
    %v5960 = vld [vmem:[#allocation3 + $0x320] sm:$0xf]
    %v5961 = vld [vmem:[#allocation3 + $0x324] sm:$0xff]
    %v5962 = vld [vmem:[#allocation3 + $0x32c] sm:$0xf]
    %v5963 = vld [vmem:[#allocation3 + $0x330] sm:$0xff]
    %v5964 = vld [vmem:[#allocation3 + $0x338] sm:$0xf]
    %v5965 = vld [vmem:[#allocation3 + $0x33c] sm:$0xff]
    %v5966 = vld [vmem:[#allocation3 + $0x344] sm:$0xf]
    %v5967 = vld [vmem:[#allocation3 + $0x348] sm:$0xff]
    %v5968 = vld [vmem:[#allocation3 + $0x350] sm:$0xf]
    %v5969 = vld [vmem:[#allocation3 + $0x354] sm:$0xff]
    %v5970 = vld [vmem:[#allocation3 + $0x35c] sm:$0xf]
    %s5971 = scalar_lea.vmem [#allocation4], 320
    %v5972 = vld [vmem:[%s5971] sm:$0xf]
    %v5973 = vld [vmem:[%s5971 + $0x4] sm:$0xf]
    %v5974 = vld [vmem:[%s5971 + $0x8] sm:$0xf]
    %v5975 = vld [vmem:[%s5971 + $0xc] sm:$0xf]
    %v5976 = vld [vmem:[%s5971 + $0x10] sm:$0xf]
    %v5977 = vld [vmem:[%s5971 + $0x14] sm:$0xf]
    %v5978 = vld [vmem:[%s5971 + $0x18] sm:$0xf]
    %v5979 = vld [vmem:[%s5971 + $0x1c] sm:$0xf]
    %v5980 = vld [vmem:[%s5971 + $0x20] sm:$0xf]
    %v5981 = vld [vmem:[%s5971 + $0x24] sm:$0xf]
    %v5982 = vld [vmem:[%s5971 + $0x28] sm:$0xf]
    %v5983 = vld [vmem:[%s5971 + $0x2c] sm:$0xf]
    %v5984 = vld [vmem:[%s5971 + $0x30] sm:$0xf]
    %v5985 = vld [vmem:[%s5971 + $0x34] sm:$0xf]
    %v5986 = vld [vmem:[%s5971 + $0x38] sm:$0xf]
    %v5987 = vld [vmem:[%s5971 + $0x3c] sm:$0xf]
    %v5988 = vld [vmem:[%s5971 + $0x40] sm:$0xf]
    %v5989 = vld [vmem:[%s5971 + $0x44] sm:$0xf]
    %v5990 = vld [vmem:[%s5971 + $0x48] sm:$0xf]
    %v5991 = vld [vmem:[%s5971 + $0x4c] sm:$0xf]
    %v5992 = vld [vmem:[%s5971 + $0x50] sm:$0xf]
    %v5993 = vld [vmem:[%s5971 + $0x54] sm:$0xf]
    %v5994 = vld [vmem:[%s5971 + $0x58] sm:$0xf]
    %v5995 = vld [vmem:[%s5971 + $0x5c] sm:$0xf]
    %v5996 = vld [vmem:[%s5971 + $0x60] sm:$0xf]
    %v5997 = vld [vmem:[%s5971 + $0x64] sm:$0xf]
    %v5998 = vld [vmem:[%s5971 + $0x68] sm:$0xf]
    %v5999 = vld [vmem:[%s5971 + $0x6c] sm:$0xf]
    %v6000 = vld [vmem:[%s5971 + $0x70] sm:$0xf]
    %v6001 = vld [vmem:[%s5971 + $0x74] sm:$0xf]
    %v6002 = vld [vmem:[%s5971 + $0x78] sm:$0xf]
    %v6003 = vld [vmem:[%s5971 + $0x7c] sm:$0xf]
    %v6004 = vld [vmem:[%s5971 + $0x80] sm:$0xf]
    %v6005 = vld [vmem:[%s5971 + $0x84] sm:$0xf]
    %v6006 = vld [vmem:[%s5971 + $0x88] sm:$0xf]
    %v6007 = vld [vmem:[%s5971 + $0x8c] sm:$0xf]
    %v6008 = vld [vmem:[%s5971 + $0x90] sm:$0xf]
    %v6009 = vld [vmem:[%s5971 + $0x94] sm:$0xf]
    %v6010 = vld [vmem:[%s5971 + $0x98] sm:$0xf]
    %v6011 = vld [vmem:[%s5971 + $0x9c] sm:$0xf]
    %v6140 = vunpack.c.l.b16 %v5843
    %v6141 = vunpack.c.h.b16 %v5843
    %v6142 = vunpack.c.l.b16 %v5844
    %v6143 = vunpack.c.l.b16 %v5845
    %v6144 = vunpack.c.h.b16 %v5845
    %v6145 = vunpack.c.l.b16 %v5846
    %v6146 = vunpack.c.l.b16 %v5847
    %v6147 = vunpack.c.h.b16 %v5847
    %v6148 = vunpack.c.l.b16 %v5848
    %v6149 = vunpack.c.l.b16 %v5849
    %v6150 = vunpack.c.h.b16 %v5849
    %v6151 = vunpack.c.l.b16 %v5850
    %v6152 = vunpack.c.l.b16 %v5851
    %v6153 = vunpack.c.h.b16 %v5851
    %v6154 = vunpack.c.l.b16 %v5852
    %v6155 = vunpack.c.l.b16 %v5853
    %v6156 = vunpack.c.h.b16 %v5853
    %v6157 = vunpack.c.l.b16 %v5854
    %v6158 = vunpack.c.l.b16 %v5855
    %v6159 = vunpack.c.h.b16 %v5855
    %v6160 = vunpack.c.l.b16 %v5856
    %v6161 = vunpack.c.l.b16 %v5857
    %v6162 = vunpack.c.h.b16 %v5857
    %v6163 = vunpack.c.l.b16 %v5858
    %v6164 = vunpack.c.l.b16 %v5859
    %v6165 = vunpack.c.h.b16 %v5859
    %v6166 = vunpack.c.l.b16 %v5860
    %v6167 = vunpack.c.l.b16 %v5861
    %v6168 = vunpack.c.h.b16 %v5861
    %v6169 = vunpack.c.l.b16 %v5862
    %v6170 = vunpack.c.l.b16 %v5863
    %v6171 = vunpack.c.h.b16 %v5863
    %v6172 = vunpack.c.l.b16 %v5864
    %v6173 = vunpack.c.l.b16 %v5865
    %v6174 = vunpack.c.h.b16 %v5865
    %v6175 = vunpack.c.l.b16 %v5866
    %v6176 = vunpack.c.l.b16 %v5867
    %v6177 = vunpack.c.h.b16 %v5867
    %v6178 = vunpack.c.l.b16 %v5868
    %v6179 = vunpack.c.l.b16 %v5869
    %v6180 = vunpack.c.h.b16 %v5869
    %v6181 = vunpack.c.l.b16 %v5870
    %v6182 = vunpack.c.l.b16 %v5871
    %v6183 = vunpack.c.h.b16 %v5871
    %v6184 = vunpack.c.l.b16 %v5872
    %v6185 = vunpack.c.l.b16 %v5873
    %v6186 = vunpack.c.h.b16 %v5873
    %v6187 = vunpack.c.l.b16 %v5874
    %v6188 = vunpack.c.l.b16 %v5875
    %v6189 = vunpack.c.h.b16 %v5875
    %v6190 = vunpack.c.l.b16 %v5876
    %v6191 = vunpack.c.l.b16 %v5877
    %v6192 = vunpack.c.h.b16 %v5877
    %v6193 = vunpack.c.l.b16 %v5878
    %v6194 = vunpack.c.l.b16 %v5879
    %v6195 = vunpack.c.h.b16 %v5879
    %v6196 = vunpack.c.l.b16 %v5880
    %v6197 = vunpack.c.l.b16 %v5881
    %v6198 = vunpack.c.h.b16 %v5881
    %v6199 = vunpack.c.l.b16 %v5882
    %v6200 = vunpack.c.l.b16 %v5883
    %v6201 = vunpack.c.h.b16 %v5883
    %v6202 = vunpack.c.l.b16 %v5884
    %v6203 = vunpack.c.l.b16 %v5885
    %v6204 = vunpack.c.h.b16 %v5885
    %v6205 = vunpack.c.l.b16 %v5886
    %v6206 = vunpack.c.l.b16 %v5887
    %v6207 = vunpack.c.h.b16 %v5887
    %v6208 = vunpack.c.l.b16 %v5888
    %v6209 = vunpack.c.l.b16 %v5889
    %v6210 = vunpack.c.h.b16 %v5889
    %v6211 = vunpack.c.l.b16 %v5890
    %v6212 = vunpack.c.l.b16 %v5891
    %v6213 = vunpack.c.h.b16 %v5891
    %v6214 = vunpack.c.l.b16 %v5892
    %v6215 = vunpack.c.l.b16 %v5893
    %v6216 = vunpack.c.h.b16 %v5893
    %v6217 = vunpack.c.l.b16 %v5894
    %v6218 = vunpack.c.l.b16 %v5895
    %v6219 = vunpack.c.h.b16 %v5895
    %v6220 = vunpack.c.l.b16 %v5896
    %v6221 = vunpack.c.l.b16 %v5897
    %v6222 = vunpack.c.h.b16 %v5897
    %v6223 = vunpack.c.l.b16 %v5898
    %v6224 = vunpack.c.l.b16 %v5899
    %v6225 = vunpack.c.h.b16 %v5899
    %v6226 = vunpack.c.l.b16 %v5900
    %v6227 = vunpack.c.l.b16 %v5901
    %v6228 = vunpack.c.h.b16 %v5901
    %v6229 = vunpack.c.l.b16 %v5902
    %v6230 = vunpack.c.l.b16 %v5903
    %v6231 = vunpack.c.h.b16 %v5903
    %v6232 = vunpack.c.l.b16 %v5904
    %v6233 = vunpack.c.l.b16 %v5905
    %v6234 = vunpack.c.h.b16 %v5905
    %v6235 = vunpack.c.l.b16 %v5906
    %v6236 = vunpack.c.l.b16 %v5907
    %v6237 = vunpack.c.h.b16 %v5907
    %v6238 = vunpack.c.l.b16 %v5908
    %v6239 = vunpack.c.l.b16 %v5909
    %v6240 = vunpack.c.h.b16 %v5909
    %v6241 = vunpack.c.l.b16 %v5910
    %v6242 = vunpack.c.l.b16 %v5911
    %v6243 = vunpack.c.h.b16 %v5911
    %v6244 = vunpack.c.l.b16 %v5912
    %v6245 = vunpack.c.l.b16 %v5913
    %v6246 = vunpack.c.h.b16 %v5913
    %v6247 = vunpack.c.l.b16 %v5914
    %v6248 = vunpack.c.l.b16 %v5915
    %v6249 = vunpack.c.h.b16 %v5915
    %v6250 = vunpack.c.l.b16 %v5916
    %v6251 = vunpack.c.l.b16 %v5917
    %v6252 = vunpack.c.h.b16 %v5917
    %v6253 = vunpack.c.l.b16 %v5918
    %v6254 = vunpack.c.l.b16 %v5919
    %v6255 = vunpack.c.h.b16 %v5919
    %v6256 = vunpack.c.l.b16 %v5920
    %v6257 = vunpack.c.l.b16 %v5921
    %v6258 = vunpack.c.h.b16 %v5921
    %v6259 = vunpack.c.l.b16 %v5922
    %v6260 = vunpack.c.l.b16 %v5923
    %v6261 = vunpack.c.h.b16 %v5923
    %v6262 = vunpack.c.l.b16 %v5924
    %v6263 = vunpack.c.l.b16 %v5925
    %v6264 = vunpack.c.h.b16 %v5925
    %v6265 = vunpack.c.l.b16 %v5926
    %v6266 = vunpack.c.l.b16 %v5927
    %v6267 = vunpack.c.h.b16 %v5927
    %v6268 = vunpack.c.l.b16 %v5928
    %v6269 = vunpack.c.l.b16 %v5929
    %v6270 = vunpack.c.h.b16 %v5929
    %v6271 = vunpack.c.l.b16 %v5930
    %v6272 = vunpack.c.l.b16 %v5931
    %v6273 = vunpack.c.h.b16 %v5931
    %v6274 = vunpack.c.l.b16 %v5932
    %v6275 = vunpack.c.l.b16 %v5933
    %v6276 = vunpack.c.h.b16 %v5933
    %v6277 = vunpack.c.l.b16 %v5934
    %v6278 = vunpack.c.l.b16 %v5935
    %v6279 = vunpack.c.h.b16 %v5935
    %v6280 = vunpack.c.l.b16 %v5936
    %v6281 = vunpack.c.l.b16 %v5937
    %v6282 = vunpack.c.h.b16 %v5937
    %v6283 = vunpack.c.l.b16 %v5938
    %v6284 = vunpack.c.l.b16 %v5939
    %v6285 = vunpack.c.h.b16 %v5939
    %v6286 = vunpack.c.l.b16 %v5940
    %v6287 = vunpack.c.l.b16 %v5941
    %v6288 = vunpack.c.h.b16 %v5941
    %v6289 = vunpack.c.l.b16 %v5942
    %v6290 = vunpack.c.l.b16 %v5943
    %v6291 = vunpack.c.h.b16 %v5943
    %v6292 = vunpack.c.l.b16 %v5944
    %v6293 = vunpack.c.l.b16 %v5945
    %v6294 = vunpack.c.h.b16 %v5945
    %v6295 = vunpack.c.l.b16 %v5946
    %v6296 = vunpack.c.l.b16 %v5947
    %v6297 = vunpack.c.h.b16 %v5947
    %v6298 = vunpack.c.l.b16 %v5948
    %v6299 = vunpack.c.l.b16 %v5949
    %v6300 = vunpack.c.h.b16 %v5949
    %v6301 = vunpack.c.l.b16 %v5950
    %v6302 = vunpack.c.l.b16 %v5951
    %v6303 = vunpack.c.h.b16 %v5951
    %v6304 = vunpack.c.l.b16 %v5952
    %v6305 = vunpack.c.l.b16 %v5953
    %v6306 = vunpack.c.h.b16 %v5953
    %v6307 = vunpack.c.l.b16 %v5954
    %v6308 = vunpack.c.l.b16 %v5955
    %v6309 = vunpack.c.h.b16 %v5955
    %v6310 = vunpack.c.l.b16 %v5956
    %v6311 = vunpack.c.l.b16 %v5957
    %v6312 = vunpack.c.h.b16 %v5957
    %v6313 = vunpack.c.l.b16 %v5958
    %v6314 = vunpack.c.l.b16 %v5959
    %v6315 = vunpack.c.h.b16 %v5959
    %v6316 = vunpack.c.l.b16 %v5960
    %v6317 = vunpack.c.l.b16 %v5961
    %v6318 = vunpack.c.h.b16 %v5961
    %v6319 = vunpack.c.l.b16 %v5962
    %v6320 = vunpack.c.l.b16 %v5963
    %v6321 = vunpack.c.h.b16 %v5963
    %v6322 = vunpack.c.l.b16 %v5964
    %v6323 = vunpack.c.l.b16 %v5965
    %v6324 = vunpack.c.h.b16 %v5965
    %v6325 = vunpack.c.l.b16 %v5966
    %v6326 = vunpack.c.l.b16 %v5967
    %v6327 = vunpack.c.h.b16 %v5967
    %v6328 = vunpack.c.l.b16 %v5968
    %v6329 = vunpack.c.l.b16 %v5969
    %v6330 = vunpack.c.h.b16 %v5969
    %v6331 = vunpack.c.l.b16 %v5970
    %v6332 = vpack.c.b16 %v6143, %v6140
    %v6333 = vpack.c.b16 %v6144, %v6141
    %v6334 = vpack.c.b16 %v6145, %v6142
    %v6335 = vpack.c.b16 %v6149, %v6146
    %v6336 = vpack.c.b16 %v6150, %v6147
    %v6337 = vpack.c.b16 %v6151, %v6148
    %v6338 = vpack.c.b16 %v6155, %v6152
    %v6339 = vpack.c.b16 %v6156, %v6153
    %v6340 = vpack.c.b16 %v6157, %v6154
    %v6341 = vpack.c.b16 %v6161, %v6158
    %v6342 = vpack.c.b16 %v6162, %v6159
    %v6343 = vpack.c.b16 %v6163, %v6160
    %v6344 = vpack.c.b16 %v6167, %v6164
    %v6345 = vpack.c.b16 %v6168, %v6165
    %v6346 = vpack.c.b16 %v6169, %v6166
    %v6347 = vpack.c.b16 %v6173, %v6170
    %v6348 = vpack.c.b16 %v6174, %v6171
    %v6349 = vpack.c.b16 %v6175, %v6172
    %v6350 = vpack.c.b16 %v6179, %v6176
    %v6351 = vpack.c.b16 %v6180, %v6177
    %v6352 = vpack.c.b16 %v6181, %v6178
    %v6353 = vpack.c.b16 %v6185, %v6182
    %v6354 = vpack.c.b16 %v6186, %v6183
    %v6355 = vpack.c.b16 %v6187, %v6184
    %v6356 = vpack.c.b16 %v6191, %v6188
    %v6357 = vpack.c.b16 %v6192, %v6189
    %v6358 = vpack.c.b16 %v6193, %v6190
    %v6359 = vpack.c.b16 %v6197, %v6194
    %v6360 = vpack.c.b16 %v6198, %v6195
    %v6361 = vpack.c.b16 %v6199, %v6196
    %v6362 = vpack.c.b16 %v6203, %v6200
    %v6363 = vpack.c.b16 %v6204, %v6201
    %v6364 = vpack.c.b16 %v6205, %v6202
    %v6365 = vpack.c.b16 %v6209, %v6206
    %v6366 = vpack.c.b16 %v6210, %v6207
    %v6367 = vpack.c.b16 %v6211, %v6208
    %v6368 = vpack.c.b16 %v6215, %v6212
    %v6369 = vpack.c.b16 %v6216, %v6213
    %v6370 = vpack.c.b16 %v6217, %v6214
    %v6371 = vpack.c.b16 %v6221, %v6218
    %v6372 = vpack.c.b16 %v6222, %v6219
    %v6373 = vpack.c.b16 %v6223, %v6220
    %v6374 = vpack.c.b16 %v6227, %v6224
    %v6375 = vpack.c.b16 %v6228, %v6225
    %v6376 = vpack.c.b16 %v6229, %v6226
    %v6377 = vpack.c.b16 %v6233, %v6230
    %v6378 = vpack.c.b16 %v6234, %v6231
    %v6379 = vpack.c.b16 %v6235, %v6232
    %v6380 = vpack.c.b16 %v6239, %v6236
    %v6381 = vpack.c.b16 %v6240, %v6237
    %v6382 = vpack.c.b16 %v6241, %v6238
    %v6383 = vpack.c.b16 %v6245, %v6242
    %v6384 = vpack.c.b16 %v6246, %v6243
    %v6385 = vpack.c.b16 %v6247, %v6244
    %v6386 = vpack.c.b16 %v6251, %v6248
    %v6387 = vpack.c.b16 %v6252, %v6249
    %v6388 = vpack.c.b16 %v6253, %v6250
    %v6389 = vpack.c.b16 %v6257, %v6254
    %v6390 = vpack.c.b16 %v6258, %v6255
    %v6391 = vpack.c.b16 %v6259, %v6256
    %v6392 = vpack.c.b16 %v6263, %v6260
    %v6393 = vpack.c.b16 %v6264, %v6261
    %v6394 = vpack.c.b16 %v6265, %v6262
    %v6395 = vpack.c.b16 %v6269, %v6266
    %v6396 = vpack.c.b16 %v6270, %v6267
    %v6397 = vpack.c.b16 %v6271, %v6268
    %v6398 = vpack.c.b16 %v6275, %v6272
    %v6399 = vpack.c.b16 %v6276, %v6273
    %v6400 = vpack.c.b16 %v6277, %v6274
    %v6401 = vpack.c.b16 %v6281, %v6278
    %v6402 = vpack.c.b16 %v6282, %v6279
    %v6403 = vpack.c.b16 %v6283, %v6280
    %v6404 = vpack.c.b16 %v6287, %v6284
    %v6405 = vpack.c.b16 %v6288, %v6285
    %v6406 = vpack.c.b16 %v6289, %v6286
    %v6407 = vpack.c.b16 %v6293, %v6290
    %v6408 = vpack.c.b16 %v6294, %v6291
    %v6409 = vpack.c.b16 %v6295, %v6292
    %v6410 = vpack.c.b16 %v6299, %v6296
    %v6411 = vpack.c.b16 %v6300, %v6297
    %v6412 = vpack.c.b16 %v6301, %v6298
    %v6413 = vpack.c.b16 %v6305, %v6302
    %v6414 = vpack.c.b16 %v6306, %v6303
    %v6415 = vpack.c.b16 %v6307, %v6304
    %v6416 = vpack.c.b16 %v6311, %v6308
    %v6417 = vpack.c.b16 %v6312, %v6309
    %v6418 = vpack.c.b16 %v6313, %v6310
    %v6419 = vpack.c.b16 %v6317, %v6314
    %v6420 = vpack.c.b16 %v6318, %v6315
    %v6421 = vpack.c.b16 %v6319, %v6316
    %v6422 = vpack.c.b16 %v6323, %v6320
    %v6423 = vpack.c.b16 %v6324, %v6321
    %v6424 = vpack.c.b16 %v6325, %v6322
    %v6425 = vpack.c.b16 %v6329, %v6326
    %v6426 = vpack.c.b16 %v6330, %v6327
    %v6427 = vpack.c.b16 %v6331, %v6328
    %v6532 = vunpack.c.l.b16 %v5972
    %v6533 = vunpack.c.l.b16 %v5973
    %v6534 = vunpack.c.l.b16 %v5974
    %v6535 = vunpack.c.l.b16 %v5975
    %v6536 = vunpack.c.l.b16 %v5976
    %v6537 = vunpack.c.l.b16 %v5977
    %v6538 = vunpack.c.l.b16 %v5978
    %v6539 = vunpack.c.l.b16 %v5979
    %v6540 = vunpack.c.l.b16 %v5980
    %v6541 = vunpack.c.l.b16 %v5981
    %v6542 = vunpack.c.l.b16 %v5982
    %v6543 = vunpack.c.l.b16 %v5983
    %v6544 = vunpack.c.l.b16 %v5984
    %v6545 = vunpack.c.l.b16 %v5985
    %v6546 = vunpack.c.l.b16 %v5986
    %v6547 = vunpack.c.l.b16 %v5987
    %v6548 = vunpack.c.l.b16 %v5988
    %v6549 = vunpack.c.l.b16 %v5989
    %v6550 = vunpack.c.l.b16 %v5990
    %v6551 = vunpack.c.l.b16 %v5991
    %v6552 = vunpack.c.l.b16 %v5992
    %v6553 = vunpack.c.l.b16 %v5993
    %v6554 = vunpack.c.l.b16 %v5994
    %v6555 = vunpack.c.l.b16 %v5995
    %v6556 = vunpack.c.l.b16 %v5996
    %v6557 = vunpack.c.l.b16 %v5997
    %v6558 = vunpack.c.l.b16 %v5998
    %v6559 = vunpack.c.l.b16 %v5999
    %v6560 = vunpack.c.l.b16 %v6000
    %v6561 = vunpack.c.l.b16 %v6001
    %v6562 = vunpack.c.l.b16 %v6002
    %v6563 = vunpack.c.l.b16 %v6003
    %v6564 = vunpack.c.l.b16 %v6004
    %v6565 = vunpack.c.l.b16 %v6005
    %v6566 = vunpack.c.l.b16 %v6006
    %v6567 = vunpack.c.l.b16 %v6007
    %v6568 = vunpack.c.l.b16 %v6008
    %v6569 = vunpack.c.l.b16 %v6009
    %v6570 = vunpack.c.l.b16 %v6010
    %v6571 = vunpack.c.l.b16 %v6011
    %v6572 = vpack.c.b16 %v6533, %v6532
    %v6573 = vpack.c.b16 %v6535, %v6534
    %v6574 = vpack.c.b16 %v6537, %v6536
    %v6575 = vpack.c.b16 %v6539, %v6538
    %v6576 = vpack.c.b16 %v6541, %v6540
    %v6577 = vpack.c.b16 %v6543, %v6542
    %v6578 = vpack.c.b16 %v6545, %v6544
    %v6579 = vpack.c.b16 %v6547, %v6546
    %v6580 = vpack.c.b16 %v6549, %v6548
    %v6581 = vpack.c.b16 %v6551, %v6550
    %v6582 = vpack.c.b16 %v6553, %v6552
    %v6583 = vpack.c.b16 %v6555, %v6554
    %v6584 = vpack.c.b16 %v6557, %v6556
    %v6585 = vpack.c.b16 %v6559, %v6558
    %v6586 = vpack.c.b16 %v6561, %v6560
    %v6587 = vpack.c.b16 %v6563, %v6562
    %v6588 = vpack.c.b16 %v6565, %v6564
    %v6589 = vpack.c.b16 %v6567, %v6566
    %v6590 = vpack.c.b16 %v6569, %v6568
    %v6591 = vpack.c.b16 %v6571, %v6570
    %v6613 = vsel %vm42, %v6334, 0
    %v6616 = vsel %vm42, %v6337, 0
    %v6619 = vsel %vm42, %v6340, 0
    %v6622 = vsel %vm42, %v6343, 0
    %v6625 = vsel %vm42, %v6346, 0
    %v6628 = vsel %vm42, %v6349, 0
    %v6631 = vsel %vm42, %v6352, 0
    %v6634 = vsel %vm42, %v6355, 0
    %v6637 = vsel %vm42, %v6358, 0
    %v6640 = vsel %vm42, %v6361, 0
    %v6643 = vsel %vm42, %v6364, 0
    %v6646 = vsel %vm42, %v6367, 0
    %v6649 = vsel %vm42, %v6370, 0
    %v6652 = vsel %vm42, %v6373, 0
    %v6655 = vsel %vm42, %v6376, 0
    %v6658 = vsel %vm42, %v6379, 0
    %v6661 = vsel %vm42, %v6382, 0
    %v6664 = vsel %vm42, %v6385, 0
    %v6667 = vsel %vm42, %v6388, 0
    %v6670 = vsel %vm42, %v6391, 0
    %v6673 = vsel %vm42, %v6394, 0
    %v6676 = vsel %vm42, %v6397, 0
    %v6679 = vsel %vm42, %v6400, 0
    %v6682 = vsel %vm42, %v6403, 0
    %v6685 = vsel %vm42, %v6406, 0
    %v6688 = vsel %vm42, %v6409, 0
    %v6691 = vsel %vm42, %v6412, 0
    %v6694 = vsel %vm42, %v6415, 0
    %v6697 = vsel %vm42, %v6418, 0
    %v6700 = vsel %vm42, %v6421, 0
    %v6703 = vsel %vm42, %v6424, 0
    %v6706 = vsel %vm42, %v6427, 0
    %6708 = vmatprep.subr.bf16.mxu0 0
    %6709 = vmatpush1.bf16.msra.mxu0 %v6579
    %6710 = vmatprep.subr.bf16.mxu0 0
    %6711 = vmatpush1.bf16.msra.mxu0 %v6578
    %6712 = vmatprep.subr.bf16.mxu0 0
    %6713 = vmatpush1.bf16.msra.mxu0 %v6577
    %6714 = vmatprep.subr.bf16.mxu0 0
    %6715 = vmatpush1.bf16.msra.mxu0 %v6576
    %6716 = vmatprep.subr.bf16.mxu0 0
    %6717 = vmatpush1.bf16.msra.mxu0 %v6575
    %6718 = vmatprep.subr.bf16.mxu0 0
    %6719 = vmatpush1.bf16.msra.mxu0 %v6574
    %6720 = vmatprep.subr.bf16.mxu0 0
    %6721 = vmatpush1.bf16.msra.mxu0 %v6573
    %6722 = vmatprep.subr.bf16.mxu0 0
    %6723 = vmatpush1.bf16.msra.mxu0 %v6572
    %6724 = vmatprep.subr.bf16.mxu0 0
    %6725 = vmatpush2.bf16.msra.mxu0 %v6587
    %6726 = vmatprep.subr.bf16.mxu0 0
    %6727 = vmatpush2.bf16.msra.mxu0 %v6586
    %6728 = vmatprep.subr.bf16.mxu0 0
    %6729 = vmatpush2.bf16.msra.mxu0 %v6585
    %6730 = vmatprep.subr.bf16.mxu0 0
    %6731 = vmatpush2.bf16.msra.mxu0 %v6584
    %6732 = vmatprep.subr.bf16.mxu0 0
    %6733 = vmatpush2.bf16.msra.mxu0 %v6583
    %6734 = vmatprep.subr.bf16.mxu0 0
    %6735 = vmatpush2.bf16.msra.mxu0 %v6582
    %6736 = vmatprep.subr.bf16.mxu0 0
    %6737 = vmatpush2.bf16.msra.mxu0 %v6581
    %6738 = vmatprep.subr.bf16.mxu0 0
    %6739 = vmatpush2.bf16.msra.mxu0 %v6580
    %6740 = vmatprep.mubr.bf16.mxu0 %v6333
    %6741 = vmatmul.mubr.bf16.gmra.mxu0 %v6332
    %v6742 = vpop.f32.mrf.mxu0
    %v6743 = vadd.f32 0.0, %v6742
    %v6744 = vpop.f32.mrf.mxu0
    %v6745 = vpop.f32.mrf.mxu0
    %v6746 = vadd.f32 0.0, %v6745
    %v6747 = vpop.f32.mrf.mxu0
    %6748 = vmatprep.mubr.bf16.mxu0 %v6336
    %6749 = vmatmul.mubr.bf16.gmra.mxu0 %v6335
    %v6750 = vpop.f32.mrf.mxu0
    %v6751 = vadd.f32 0.0, %v6750
    %v6752 = vpop.f32.mrf.mxu0
    %v6753 = vpop.f32.mrf.mxu0
    %v6754 = vadd.f32 0.0, %v6753
    %v6755 = vpop.f32.mrf.mxu0
    %6756 = vmatprep.mubr.bf16.mxu0 %v6339
    %6757 = vmatmul.mubr.bf16.gmra.mxu0 %v6338
    %v6758 = vpop.f32.mrf.mxu0
    %v6759 = vadd.f32 0.0, %v6758
    %v6760 = vpop.f32.mrf.mxu0
    %v6761 = vpop.f32.mrf.mxu0
    %v6762 = vadd.f32 0.0, %v6761
    %v6763 = vpop.f32.mrf.mxu0
    %6764 = vmatprep.mubr.bf16.mxu0 %v6342
    %6765 = vmatmul.mubr.bf16.gmra.mxu0 %v6341
    %v6766 = vpop.f32.mrf.mxu0
    %v6767 = vadd.f32 0.0, %v6766
    %v6768 = vpop.f32.mrf.mxu0
    %v6769 = vpop.f32.mrf.mxu0
    %v6770 = vadd.f32 0.0, %v6769
    %v6771 = vpop.f32.mrf.mxu0
    %6772 = vmatprep.mubr.bf16.mxu0 %v6345
    %6773 = vmatmul.mubr.bf16.gmra.mxu0 %v6344
    %v6774 = vpop.f32.mrf.mxu0
    %v6775 = vadd.f32 0.0, %v6774
    %v6776 = vpop.f32.mrf.mxu0
    %v6777 = vpop.f32.mrf.mxu0
    %v6778 = vadd.f32 0.0, %v6777
    %v6779 = vpop.f32.mrf.mxu0
    %6780 = vmatprep.mubr.bf16.mxu0 %v6348
    %6781 = vmatmul.mubr.bf16.gmra.mxu0 %v6347
    %v6782 = vpop.f32.mrf.mxu0
    %v6783 = vadd.f32 0.0, %v6782
    %v6784 = vpop.f32.mrf.mxu0
    %v6785 = vpop.f32.mrf.mxu0
    %v6786 = vadd.f32 0.0, %v6785
    %v6787 = vpop.f32.mrf.mxu0
    %6788 = vmatprep.mubr.bf16.mxu0 %v6351
    %6789 = vmatmul.mubr.bf16.gmra.mxu0 %v6350
    %v6790 = vpop.f32.mrf.mxu0
    %v6791 = vadd.f32 0.0, %v6790
    %v6792 = vpop.f32.mrf.mxu0
    %v6793 = vpop.f32.mrf.mxu0
    %v6794 = vadd.f32 0.0, %v6793
    %v6795 = vpop.f32.mrf.mxu0
    %6796 = vmatprep.mubr.bf16.mxu0 %v6354
    %6797 = vmatmul.mubr.bf16.gmra.mxu0 %v6353
    %v6798 = vpop.f32.mrf.mxu0
    %v6799 = vadd.f32 0.0, %v6798
    %v6800 = vpop.f32.mrf.mxu0
    %v6801 = vpop.f32.mrf.mxu0
    %v6802 = vadd.f32 0.0, %v6801
    %v6803 = vpop.f32.mrf.mxu0
    %6804 = vmatprep.mubr.bf16.mxu0 %v6357
    %6805 = vmatmul.mubr.bf16.gmra.mxu0 %v6356
    %v6806 = vpop.f32.mrf.mxu0
    %v6807 = vadd.f32 0.0, %v6806
    %v6808 = vpop.f32.mrf.mxu0
    %v6809 = vpop.f32.mrf.mxu0
    %v6810 = vadd.f32 0.0, %v6809
    %v6811 = vpop.f32.mrf.mxu0
    %6812 = vmatprep.mubr.bf16.mxu0 %v6360
    %6813 = vmatmul.mubr.bf16.gmra.mxu0 %v6359
    %v6814 = vpop.f32.mrf.mxu0
    %v6815 = vadd.f32 0.0, %v6814
    %v6816 = vpop.f32.mrf.mxu0
    %v6817 = vpop.f32.mrf.mxu0
    %v6818 = vadd.f32 0.0, %v6817
    %v6819 = vpop.f32.mrf.mxu0
    %6820 = vmatprep.mubr.bf16.mxu0 %v6363
    %6821 = vmatmul.mubr.bf16.gmra.mxu0 %v6362
    %v6822 = vpop.f32.mrf.mxu0
    %v6823 = vadd.f32 0.0, %v6822
    %v6824 = vpop.f32.mrf.mxu0
    %v6825 = vpop.f32.mrf.mxu0
    %v6826 = vadd.f32 0.0, %v6825
    %v6827 = vpop.f32.mrf.mxu0
    %6828 = vmatprep.mubr.bf16.mxu0 %v6366
    %6829 = vmatmul.mubr.bf16.gmra.mxu0 %v6365
    %v6830 = vpop.f32.mrf.mxu0
    %v6831 = vadd.f32 0.0, %v6830
    %v6832 = vpop.f32.mrf.mxu0
    %v6833 = vpop.f32.mrf.mxu0
    %v6834 = vadd.f32 0.0, %v6833
    %v6835 = vpop.f32.mrf.mxu0
    %6836 = vmatprep.mubr.bf16.mxu0 %v6369
    %6837 = vmatmul.mubr.bf16.gmra.mxu0 %v6368
    %v6838 = vpop.f32.mrf.mxu0
    %v6839 = vadd.f32 0.0, %v6838
    %v6840 = vpop.f32.mrf.mxu0
    %v6841 = vpop.f32.mrf.mxu0
    %v6842 = vadd.f32 0.0, %v6841
    %v6843 = vpop.f32.mrf.mxu0
    %6844 = vmatprep.mubr.bf16.mxu0 %v6372
    %6845 = vmatmul.mubr.bf16.gmra.mxu0 %v6371
    %v6846 = vpop.f32.mrf.mxu0
    %v6847 = vadd.f32 0.0, %v6846
    %v6848 = vpop.f32.mrf.mxu0
    %v6849 = vpop.f32.mrf.mxu0
    %v6850 = vadd.f32 0.0, %v6849
    %v6851 = vpop.f32.mrf.mxu0
    %6852 = vmatprep.mubr.bf16.mxu0 %v6375
    %6853 = vmatmul.mubr.bf16.gmra.mxu0 %v6374
    %v6854 = vpop.f32.mrf.mxu0
    %v6855 = vadd.f32 0.0, %v6854
    %v6856 = vpop.f32.mrf.mxu0
    %v6857 = vpop.f32.mrf.mxu0
    %v6858 = vadd.f32 0.0, %v6857
    %v6859 = vpop.f32.mrf.mxu0
    %6860 = vmatprep.mubr.bf16.mxu0 %v6378
    %6861 = vmatmul.mubr.bf16.gmra.mxu0 %v6377
    %v6862 = vpop.f32.mrf.mxu0
    %v6863 = vadd.f32 0.0, %v6862
    %v6864 = vpop.f32.mrf.mxu0
    %v6865 = vpop.f32.mrf.mxu0
    %v6866 = vadd.f32 0.0, %v6865
    %v6867 = vpop.f32.mrf.mxu0
    %6868 = vmatprep.mubr.bf16.mxu0 %v6381
    %6869 = vmatmul.mubr.bf16.gmra.mxu0 %v6380
    %v6870 = vpop.f32.mrf.mxu0
    %v6871 = vadd.f32 0.0, %v6870
    %v6872 = vpop.f32.mrf.mxu0
    %v6873 = vpop.f32.mrf.mxu0
    %v6874 = vadd.f32 0.0, %v6873
    %v6875 = vpop.f32.mrf.mxu0
    %6876 = vmatprep.mubr.bf16.mxu0 %v6384
    %6877 = vmatmul.mubr.bf16.gmra.mxu0 %v6383
    %v6878 = vpop.f32.mrf.mxu0
    %v6879 = vadd.f32 0.0, %v6878
    %v6880 = vpop.f32.mrf.mxu0
    %v6881 = vpop.f32.mrf.mxu0
    %v6882 = vadd.f32 0.0, %v6881
    %v6883 = vpop.f32.mrf.mxu0
    %6884 = vmatprep.mubr.bf16.mxu0 %v6387
    %6885 = vmatmul.mubr.bf16.gmra.mxu0 %v6386
    %v6886 = vpop.f32.mrf.mxu0
    %v6887 = vadd.f32 0.0, %v6886
    %v6888 = vpop.f32.mrf.mxu0
    %v6889 = vpop.f32.mrf.mxu0
    %v6890 = vadd.f32 0.0, %v6889
    %v6891 = vpop.f32.mrf.mxu0
    %6892 = vmatprep.mubr.bf16.mxu0 %v6390
    %6893 = vmatmul.mubr.bf16.gmra.mxu0 %v6389
    %v6894 = vpop.f32.mrf.mxu0
    %v6895 = vadd.f32 0.0, %v6894
    %v6896 = vpop.f32.mrf.mxu0
    %v6897 = vpop.f32.mrf.mxu0
    %v6898 = vadd.f32 0.0, %v6897
    %v6899 = vpop.f32.mrf.mxu0
    %6900 = vmatprep.mubr.bf16.mxu0 %v6393
    %6901 = vmatmul.mubr.bf16.gmra.mxu0 %v6392
    %v6902 = vpop.f32.mrf.mxu0
    %v6903 = vadd.f32 0.0, %v6902
    %v6904 = vpop.f32.mrf.mxu0
    %v6905 = vpop.f32.mrf.mxu0
    %v6906 = vadd.f32 0.0, %v6905
    %v6907 = vpop.f32.mrf.mxu0
    %6908 = vmatprep.mubr.bf16.mxu0 %v6396
    %6909 = vmatmul.mubr.bf16.gmra.mxu0 %v6395
    %v6910 = vpop.f32.mrf.mxu0
    %v6911 = vadd.f32 0.0, %v6910
    %v6912 = vpop.f32.mrf.mxu0
    %v6913 = vpop.f32.mrf.mxu0
    %v6914 = vadd.f32 0.0, %v6913
    %v6915 = vpop.f32.mrf.mxu0
    %6916 = vmatprep.mubr.bf16.mxu0 %v6399
    %6917 = vmatmul.mubr.bf16.gmra.mxu0 %v6398
    %v6918 = vpop.f32.mrf.mxu0
    %v6919 = vadd.f32 0.0, %v6918
    %v6920 = vpop.f32.mrf.mxu0
    %v6921 = vpop.f32.mrf.mxu0
    %v6922 = vadd.f32 0.0, %v6921
    %v6923 = vpop.f32.mrf.mxu0
    %6924 = vmatprep.mubr.bf16.mxu0 %v6402
    %6925 = vmatmul.mubr.bf16.gmra.mxu0 %v6401
    %v6926 = vpop.f32.mrf.mxu0
    %v6927 = vadd.f32 0.0, %v6926
    %v6928 = vpop.f32.mrf.mxu0
    %v6929 = vpop.f32.mrf.mxu0
    %v6930 = vadd.f32 0.0, %v6929
    %v6931 = vpop.f32.mrf.mxu0
    %6932 = vmatprep.mubr.bf16.mxu0 %v6405
    %6933 = vmatmul.mubr.bf16.gmra.mxu0 %v6404
    %v6934 = vpop.f32.mrf.mxu0
    %v6935 = vadd.f32 0.0, %v6934
    %v6936 = vpop.f32.mrf.mxu0
    %v6937 = vpop.f32.mrf.mxu0
    %v6938 = vadd.f32 0.0, %v6937
    %v6939 = vpop.f32.mrf.mxu0
    %6940 = vmatprep.mubr.bf16.mxu0 %v6408
    %6941 = vmatmul.mubr.bf16.gmra.mxu0 %v6407
    %v6942 = vpop.f32.mrf.mxu0
    %v6943 = vadd.f32 0.0, %v6942
    %v6944 = vpop.f32.mrf.mxu0
    %v6945 = vpop.f32.mrf.mxu0
    %v6946 = vadd.f32 0.0, %v6945
    %v6947 = vpop.f32.mrf.mxu0
    %6948 = vmatprep.mubr.bf16.mxu0 %v6411
    %6949 = vmatmul.mubr.bf16.gmra.mxu0 %v6410
    %v6950 = vpop.f32.mrf.mxu0
    %v6951 = vadd.f32 0.0, %v6950
    %v6952 = vpop.f32.mrf.mxu0
    %v6953 = vpop.f32.mrf.mxu0
    %v6954 = vadd.f32 0.0, %v6953
    %v6955 = vpop.f32.mrf.mxu0
    %6956 = vmatprep.mubr.bf16.mxu0 %v6414
    %6957 = vmatmul.mubr.bf16.gmra.mxu0 %v6413
    %v6958 = vpop.f32.mrf.mxu0
    %v6959 = vadd.f32 0.0, %v6958
    %v6960 = vpop.f32.mrf.mxu0
    %v6961 = vpop.f32.mrf.mxu0
    %v6962 = vadd.f32 0.0, %v6961
    %v6963 = vpop.f32.mrf.mxu0
    %6964 = vmatprep.mubr.bf16.mxu0 %v6417
    %6965 = vmatmul.mubr.bf16.gmra.mxu0 %v6416
    %v6966 = vpop.f32.mrf.mxu0
    %v6967 = vadd.f32 0.0, %v6966
    %v6968 = vpop.f32.mrf.mxu0
    %v6969 = vpop.f32.mrf.mxu0
    %v6970 = vadd.f32 0.0, %v6969
    %v6971 = vpop.f32.mrf.mxu0
    %6972 = vmatprep.mubr.bf16.mxu0 %v6420
    %6973 = vmatmul.mubr.bf16.gmra.mxu0 %v6419
    %v6974 = vpop.f32.mrf.mxu0
    %v6975 = vadd.f32 0.0, %v6974
    %v6976 = vpop.f32.mrf.mxu0
    %v6977 = vpop.f32.mrf.mxu0
    %v6978 = vadd.f32 0.0, %v6977
    %v6979 = vpop.f32.mrf.mxu0
    %6980 = vmatprep.mubr.bf16.mxu0 %v6423
    %6981 = vmatmul.mubr.bf16.gmra.mxu0 %v6422
    %v6982 = vpop.f32.mrf.mxu0
    %v6983 = vadd.f32 0.0, %v6982
    %v6984 = vpop.f32.mrf.mxu0
    %v6985 = vpop.f32.mrf.mxu0
    %v6986 = vadd.f32 0.0, %v6985
    %v6987 = vpop.f32.mrf.mxu0
    %6988 = vmatprep.mubr.bf16.mxu0 %v6426
    %6989 = vmatmul.mubr.bf16.gmra.mxu0 %v6425
    %v6990 = vpop.f32.mrf.mxu0
    %v6991 = vadd.f32 0.0, %v6990
    %v6992 = vpop.f32.mrf.mxu0
    %v6993 = vpop.f32.mrf.mxu0
    %v6994 = vadd.f32 0.0, %v6993
    %v6995 = vpop.f32.mrf.mxu0
    %6996 = vdwg.mxu0
    %6997 = vmatprep.subr.bf16.mxu0 0
    %6998 = vmatpush1.bf16.msra.mxu0 0
    %6999 = vmatprep.subr.bf16.mxu0 0
    %7000 = vmatpush1.bf16.msra.mxu0 0
    %7001 = vmatprep.subr.bf16.mxu0 0
    %7002 = vmatpush1.bf16.msra.mxu0 0
    %7003 = vmatprep.subr.bf16.mxu0 0
    %7004 = vmatpush1.bf16.msra.mxu0 0
    %7005 = vmatprep.subr.bf16.mxu0 0
    %7006 = vmatpush1.bf16.msra.mxu0 %v6591
    %7007 = vmatprep.subr.bf16.mxu0 0
    %7008 = vmatpush1.bf16.msra.mxu0 %v6590
    %7009 = vmatprep.subr.bf16.mxu0 0
    %7010 = vmatpush1.bf16.msra.mxu0 %v6589
    %7011 = vmatprep.subr.bf16.mxu0 0
    %7012 = vmatpush1.bf16.msra.mxu0 %v6588
    %7013 = vmatprep.subr.bf16.mxu0 0
    %7014 = vmatpush2.bf16.msra.mxu0 0
    %7015 = vmatprep.subr.bf16.mxu0 0
    %7016 = vmatpush2.bf16.msra.mxu0 0
    %7017 = vmatprep.subr.bf16.mxu0 0
    %7018 = vmatpush2.bf16.msra.mxu0 0
    %7019 = vmatprep.subr.bf16.mxu0 0
    %7020 = vmatpush2.bf16.msra.mxu0 0
    %7021 = vmatprep.subr.bf16.mxu0 0
    %7022 = vmatpush2.bf16.msra.mxu0 0
    %7023 = vmatprep.subr.bf16.mxu0 0
    %7024 = vmatpush2.bf16.msra.mxu0 0
    %7025 = vmatprep.subr.bf16.mxu0 0
    %7026 = vmatpush2.bf16.msra.mxu0 0
    %7027 = vmatprep.subr.bf16.mxu0 0
    %7028 = vmatpush2.bf16.msra.mxu0 0
    %7029 = vmatprep.mubr.bf16.mxu0 0
    %7030 = vmatmul.mubr.bf16.gmra.mxu0 %v6613
    %v7031 = vpop.f32.mrf.mxu0
    %v7032 = vadd.f32 %v6743, %v7031
    %v7033 = vpop.f32.mrf.mxu0
    %v7034 = vpop.f32.mrf.mxu0
    %v7035 = vadd.f32 %v6746, %v7034
    %v7036 = vpop.f32.mrf.mxu0
    %7037 = vmatprep.mubr.bf16.mxu0 0
    %7038 = vmatmul.mubr.bf16.gmra.mxu0 %v6616
    %v7039 = vpop.f32.mrf.mxu0
    %v7040 = vadd.f32 %v6751, %v7039
    %v7041 = vpop.f32.mrf.mxu0
    %v7042 = vpop.f32.mrf.mxu0
    %v7043 = vadd.f32 %v6754, %v7042
    %v7044 = vpop.f32.mrf.mxu0
    %7045 = vmatprep.mubr.bf16.mxu0 0
    %7046 = vmatmul.mubr.bf16.gmra.mxu0 %v6619
    %v7047 = vpop.f32.mrf.mxu0
    %v7048 = vadd.f32 %v6759, %v7047
    %v7049 = vpop.f32.mrf.mxu0
    %v7050 = vpop.f32.mrf.mxu0
    %v7051 = vadd.f32 %v6762, %v7050
    %v7052 = vpop.f32.mrf.mxu0
    %7053 = vmatprep.mubr.bf16.mxu0 0
    %7054 = vmatmul.mubr.bf16.gmra.mxu0 %v6622
    %v7055 = vpop.f32.mrf.mxu0
    %v7056 = vadd.f32 %v6767, %v7055
    %v7057 = vpop.f32.mrf.mxu0
    %v7058 = vpop.f32.mrf.mxu0
    %v7059 = vadd.f32 %v6770, %v7058
    %v7060 = vpop.f32.mrf.mxu0
    %7061 = vmatprep.mubr.bf16.mxu0 0
    %7062 = vmatmul.mubr.bf16.gmra.mxu0 %v6625
    %v7063 = vpop.f32.mrf.mxu0
    %v7064 = vadd.f32 %v6775, %v7063
    %v7065 = vpop.f32.mrf.mxu0
    %v7066 = vpop.f32.mrf.mxu0
    %v7067 = vadd.f32 %v6778, %v7066
    %v7068 = vpop.f32.mrf.mxu0
    %7069 = vmatprep.mubr.bf16.mxu0 0
    %7070 = vmatmul.mubr.bf16.gmra.mxu0 %v6628
    %v7071 = vpop.f32.mrf.mxu0
    %v7072 = vadd.f32 %v6783, %v7071
    %v7073 = vpop.f32.mrf.mxu0
    %v7074 = vpop.f32.mrf.mxu0
    %v7075 = vadd.f32 %v6786, %v7074
    %v7076 = vpop.f32.mrf.mxu0
    %7077 = vmatprep.mubr.bf16.mxu0 0
    %7078 = vmatmul.mubr.bf16.gmra.mxu0 %v6631
    %v7079 = vpop.f32.mrf.mxu0
    %v7080 = vadd.f32 %v6791, %v7079
    %v7081 = vpop.f32.mrf.mxu0
    %v7082 = vpop.f32.mrf.mxu0
    %v7083 = vadd.f32 %v6794, %v7082
    %v7084 = vpop.f32.mrf.mxu0
    %7085 = vmatprep.mubr.bf16.mxu0 0
    %7086 = vmatmul.mubr.bf16.gmra.mxu0 %v6634
    %v7087 = vpop.f32.mrf.mxu0
    %v7088 = vadd.f32 %v6799, %v7087
    %v7089 = vpop.f32.mrf.mxu0
    %v7090 = vpop.f32.mrf.mxu0
    %v7091 = vadd.f32 %v6802, %v7090
    %v7092 = vpop.f32.mrf.mxu0
    %7093 = vmatprep.mubr.bf16.mxu0 0
    %7094 = vmatmul.mubr.bf16.gmra.mxu0 %v6637
    %v7095 = vpop.f32.mrf.mxu0
    %v7096 = vadd.f32 %v6807, %v7095
    %v7097 = vpop.f32.mrf.mxu0
    %v7098 = vpop.f32.mrf.mxu0
    %v7099 = vadd.f32 %v6810, %v7098
    %v7100 = vpop.f32.mrf.mxu0
    %7101 = vmatprep.mubr.bf16.mxu0 0
    %7102 = vmatmul.mubr.bf16.gmra.mxu0 %v6640
    %v7103 = vpop.f32.mrf.mxu0
    %v7104 = vadd.f32 %v6815, %v7103
    %v7105 = vpop.f32.mrf.mxu0
    %v7106 = vpop.f32.mrf.mxu0
    %v7107 = vadd.f32 %v6818, %v7106
    %v7108 = vpop.f32.mrf.mxu0
    %7109 = vmatprep.mubr.bf16.mxu0 0
    %7110 = vmatmul.mubr.bf16.gmra.mxu0 %v6643
    %v7111 = vpop.f32.mrf.mxu0
    %v7112 = vadd.f32 %v6823, %v7111
    %v7113 = vpop.f32.mrf.mxu0
    %v7114 = vpop.f32.mrf.mxu0
    %v7115 = vadd.f32 %v6826, %v7114
    %v7116 = vpop.f32.mrf.mxu0
    %7117 = vmatprep.mubr.bf16.mxu0 0
    %7118 = vmatmul.mubr.bf16.gmra.mxu0 %v6646
    %v7119 = vpop.f32.mrf.mxu0
    %v7120 = vadd.f32 %v6831, %v7119
    %v7121 = vpop.f32.mrf.mxu0
    %v7122 = vpop.f32.mrf.mxu0
    %v7123 = vadd.f32 %v6834, %v7122
    %v7124 = vpop.f32.mrf.mxu0
    %7125 = vmatprep.mubr.bf16.mxu0 0
    %7126 = vmatmul.mubr.bf16.gmra.mxu0 %v6649
    %v7127 = vpop.f32.mrf.mxu0
    %v7128 = vadd.f32 %v6839, %v7127
    %v7129 = vpop.f32.mrf.mxu0
    %v7130 = vpop.f32.mrf.mxu0
    %v7131 = vadd.f32 %v6842, %v7130
    %v7132 = vpop.f32.mrf.mxu0
    %7133 = vmatprep.mubr.bf16.mxu0 0
    %7134 = vmatmul.mubr.bf16.gmra.mxu0 %v6652
    %v7135 = vpop.f32.mrf.mxu0
    %v7136 = vadd.f32 %v6847, %v7135
    %v7137 = vpop.f32.mrf.mxu0
    %v7138 = vpop.f32.mrf.mxu0
    %v7139 = vadd.f32 %v6850, %v7138
    %v7140 = vpop.f32.mrf.mxu0
    %7141 = vmatprep.mubr.bf16.mxu0 0
    %7142 = vmatmul.mubr.bf16.gmra.mxu0 %v6655
    %v7143 = vpop.f32.mrf.mxu0
    %v7144 = vadd.f32 %v6855, %v7143
    %v7145 = vpop.f32.mrf.mxu0
    %v7146 = vpop.f32.mrf.mxu0
    %v7147 = vadd.f32 %v6858, %v7146
    %v7148 = vpop.f32.mrf.mxu0
    %7149 = vmatprep.mubr.bf16.mxu0 0
    %7150 = vmatmul.mubr.bf16.gmra.mxu0 %v6658
    %v7151 = vpop.f32.mrf.mxu0
    %v7152 = vadd.f32 %v6863, %v7151
    %v7153 = vpop.f32.mrf.mxu0
    %v7154 = vpop.f32.mrf.mxu0
    %v7155 = vadd.f32 %v6866, %v7154
    %v7156 = vpop.f32.mrf.mxu0
    %7157 = vmatprep.mubr.bf16.mxu0 0
    %7158 = vmatmul.mubr.bf16.gmra.mxu0 %v6661
    %v7159 = vpop.f32.mrf.mxu0
    %v7160 = vadd.f32 %v6871, %v7159
    %v7161 = vpop.f32.mrf.mxu0
    %v7162 = vpop.f32.mrf.mxu0
    %v7163 = vadd.f32 %v6874, %v7162
    %v7164 = vpop.f32.mrf.mxu0
    %7165 = vmatprep.mubr.bf16.mxu0 0
    %7166 = vmatmul.mubr.bf16.gmra.mxu0 %v6664
    %v7167 = vpop.f32.mrf.mxu0
    %v7168 = vadd.f32 %v6879, %v7167
    %v7169 = vpop.f32.mrf.mxu0
    %v7170 = vpop.f32.mrf.mxu0
    %v7171 = vadd.f32 %v6882, %v7170
    %v7172 = vpop.f32.mrf.mxu0
    %7173 = vmatprep.mubr.bf16.mxu0 0
    %7174 = vmatmul.mubr.bf16.gmra.mxu0 %v6667
    %v7175 = vpop.f32.mrf.mxu0
    %v7176 = vadd.f32 %v6887, %v7175
    %v7177 = vpop.f32.mrf.mxu0
    %v7178 = vpop.f32.mrf.mxu0
    %v7179 = vadd.f32 %v6890, %v7178
    %v7180 = vpop.f32.mrf.mxu0
    %7181 = vmatprep.mubr.bf16.mxu0 0
    %7182 = vmatmul.mubr.bf16.gmra.mxu0 %v6670
    %v7183 = vpop.f32.mrf.mxu0
    %v7184 = vadd.f32 %v6895, %v7183
    %v7185 = vpop.f32.mrf.mxu0
    %v7186 = vpop.f32.mrf.mxu0
    %v7187 = vadd.f32 %v6898, %v7186
    %v7188 = vpop.f32.mrf.mxu0
    %7189 = vmatprep.mubr.bf16.mxu0 0
    %7190 = vmatmul.mubr.bf16.gmra.mxu0 %v6673
    %v7191 = vpop.f32.mrf.mxu0
    %v7192 = vadd.f32 %v6903, %v7191
    %v7193 = vpop.f32.mrf.mxu0
    %v7194 = vpop.f32.mrf.mxu0
    %v7195 = vadd.f32 %v6906, %v7194
    %v7196 = vpop.f32.mrf.mxu0
    %7197 = vmatprep.mubr.bf16.mxu0 0
    %7198 = vmatmul.mubr.bf16.gmra.mxu0 %v6676
    %v7199 = vpop.f32.mrf.mxu0
    %v7200 = vadd.f32 %v6911, %v7199
    %v7201 = vpop.f32.mrf.mxu0
    %v7202 = vpop.f32.mrf.mxu0
    %v7203 = vadd.f32 %v6914, %v7202
    %v7204 = vpop.f32.mrf.mxu0
    %7205 = vmatprep.mubr.bf16.mxu0 0
    %7206 = vmatmul.mubr.bf16.gmra.mxu0 %v6679
    %v7207 = vpop.f32.mrf.mxu0
    %v7208 = vadd.f32 %v6919, %v7207
    %v7209 = vpop.f32.mrf.mxu0
    %v7210 = vpop.f32.mrf.mxu0
    %v7211 = vadd.f32 %v6922, %v7210
    %v7212 = vpop.f32.mrf.mxu0
    %7213 = vmatprep.mubr.bf16.mxu0 0
    %7214 = vmatmul.mubr.bf16.gmra.mxu0 %v6682
    %v7215 = vpop.f32.mrf.mxu0
    %v7216 = vadd.f32 %v6927, %v7215
    %v7217 = vpop.f32.mrf.mxu0
    %v7218 = vpop.f32.mrf.mxu0
    %v7219 = vadd.f32 %v6930, %v7218
    %v7220 = vpop.f32.mrf.mxu0
    %7221 = vmatprep.mubr.bf16.mxu0 0
    %7222 = vmatmul.mubr.bf16.gmra.mxu0 %v6685
    %v7223 = vpop.f32.mrf.mxu0
    %v7224 = vadd.f32 %v6935, %v7223
    %v7225 = vpop.f32.mrf.mxu0
    %v7226 = vpop.f32.mrf.mxu0
    %v7227 = vadd.f32 %v6938, %v7226
    %v7228 = vpop.f32.mrf.mxu0
    %7229 = vmatprep.mubr.bf16.mxu0 0
    %7230 = vmatmul.mubr.bf16.gmra.mxu0 %v6688
    %v7231 = vpop.f32.mrf.mxu0
    %v7232 = vadd.f32 %v6943, %v7231
    %v7233 = vpop.f32.mrf.mxu0
    %v7234 = vpop.f32.mrf.mxu0
    %v7235 = vadd.f32 %v6946, %v7234
    %v7236 = vpop.f32.mrf.mxu0
    %7237 = vmatprep.mubr.bf16.mxu0 0
    %7238 = vmatmul.mubr.bf16.gmra.mxu0 %v6691
    %v7239 = vpop.f32.mrf.mxu0
    %v7240 = vadd.f32 %v6951, %v7239
    %v7241 = vpop.f32.mrf.mxu0
    %v7242 = vpop.f32.mrf.mxu0
    %v7243 = vadd.f32 %v6954, %v7242
    %v7244 = vpop.f32.mrf.mxu0
    %7245 = vmatprep.mubr.bf16.mxu0 0
    %7246 = vmatmul.mubr.bf16.gmra.mxu0 %v6694
    %v7247 = vpop.f32.mrf.mxu0
    %v7248 = vadd.f32 %v6959, %v7247
    %v7249 = vpop.f32.mrf.mxu0
    %v7250 = vpop.f32.mrf.mxu0
    %v7251 = vadd.f32 %v6962, %v7250
    %v7252 = vpop.f32.mrf.mxu0
    %7253 = vmatprep.mubr.bf16.mxu0 0
    %7254 = vmatmul.mubr.bf16.gmra.mxu0 %v6697
    %v7255 = vpop.f32.mrf.mxu0
    %v7256 = vadd.f32 %v6967, %v7255
    %v7257 = vpop.f32.mrf.mxu0
    %v7258 = vpop.f32.mrf.mxu0
    %v7259 = vadd.f32 %v6970, %v7258
    %v7260 = vpop.f32.mrf.mxu0
    %7261 = vmatprep.mubr.bf16.mxu0 0
    %7262 = vmatmul.mubr.bf16.gmra.mxu0 %v6700
    %v7263 = vpop.f32.mrf.mxu0
    %v7264 = vadd.f32 %v6975, %v7263
    %v7265 = vpop.f32.mrf.mxu0
    %v7266 = vpop.f32.mrf.mxu0
    %v7267 = vadd.f32 %v6978, %v7266
    %v7268 = vpop.f32.mrf.mxu0
    %7269 = vmatprep.mubr.bf16.mxu0 0
    %7270 = vmatmul.mubr.bf16.gmra.mxu0 %v6703
    %v7271 = vpop.f32.mrf.mxu0
    %v7272 = vadd.f32 %v6983, %v7271
    %v7273 = vpop.f32.mrf.mxu0
    %v7274 = vpop.f32.mrf.mxu0
    %v7275 = vadd.f32 %v6986, %v7274
    %v7276 = vpop.f32.mrf.mxu0
    %7277 = vmatprep.mubr.bf16.mxu0 0
    %7278 = vmatmul.mubr.bf16.gmra.mxu0 %v6706
    %v7279 = vpop.f32.mrf.mxu0
    %v7280 = vadd.f32 %v6991, %v7279
    %v7281 = vpop.f32.mrf.mxu0
    %v7282 = vpop.f32.mrf.mxu0
    %v7283 = vadd.f32 %v6994, %v7282
    %v7284 = vpop.f32.mrf.mxu0
    %7285 = vdwg.mxu0
    %v7286 = vadd.f32 %v5589, %v7032
    %v7287 = vadd.f32 %v5592, %v7035
    %v7288 = vadd.f32 %v5597, %v7040
    %v7289 = vadd.f32 %v5600, %v7043
    %v7290 = vadd.f32 %v5605, %v7048
    %v7291 = vadd.f32 %v5608, %v7051
    %v7292 = vadd.f32 %v5613, %v7056
    %v7293 = vadd.f32 %v5616, %v7059
    %v7294 = vadd.f32 %v5621, %v7064
    %v7295 = vadd.f32 %v5624, %v7067
    %v7296 = vadd.f32 %v5629, %v7072
    %v7297 = vadd.f32 %v5632, %v7075
    %v7298 = vadd.f32 %v5637, %v7080
    %v7299 = vadd.f32 %v5640, %v7083
    %v7300 = vadd.f32 %v5645, %v7088
    %v7301 = vadd.f32 %v5648, %v7091
    %v7302 = vadd.f32 %v5653, %v7096
    %v7303 = vadd.f32 %v5656, %v7099
    %v7304 = vadd.f32 %v5661, %v7104
    %v7305 = vadd.f32 %v5664, %v7107
    %v7306 = vadd.f32 %v5669, %v7112
    %v7307 = vadd.f32 %v5672, %v7115
    %v7308 = vadd.f32 %v5677, %v7120
    %v7309 = vadd.f32 %v5680, %v7123
    %v7310 = vadd.f32 %v5685, %v7128
    %v7311 = vadd.f32 %v5688, %v7131
    %v7312 = vadd.f32 %v5693, %v7136
    %v7313 = vadd.f32 %v5696, %v7139
    %v7314 = vadd.f32 %v5701, %v7144
    %v7315 = vadd.f32 %v5704, %v7147
    %v7316 = vadd.f32 %v5709, %v7152
    %v7317 = vadd.f32 %v5712, %v7155
    %v7318 = vadd.f32 %v5717, %v7160
    %v7319 = vadd.f32 %v5720, %v7163
    %v7320 = vadd.f32 %v5725, %v7168
    %v7321 = vadd.f32 %v5728, %v7171
    %v7322 = vadd.f32 %v5733, %v7176
    %v7323 = vadd.f32 %v5736, %v7179
    %v7324 = vadd.f32 %v5741, %v7184
    %v7325 = vadd.f32 %v5744, %v7187
    %v7326 = vadd.f32 %v5749, %v7192
    %v7327 = vadd.f32 %v5752, %v7195
    %v7328 = vadd.f32 %v5757, %v7200
    %v7329 = vadd.f32 %v5760, %v7203
    %v7330 = vadd.f32 %v5765, %v7208
    %v7331 = vadd.f32 %v5768, %v7211
    %v7332 = vadd.f32 %v5773, %v7216
    %v7333 = vadd.f32 %v5776, %v7219
    %v7334 = vadd.f32 %v5781, %v7224
    %v7335 = vadd.f32 %v5784, %v7227
    %v7336 = vadd.f32 %v5789, %v7232
    %v7337 = vadd.f32 %v5792, %v7235
    %v7338 = vadd.f32 %v5797, %v7240
    %v7339 = vadd.f32 %v5800, %v7243
    %v7340 = vadd.f32 %v5805, %v7248
    %v7341 = vadd.f32 %v5808, %v7251
    %v7342 = vadd.f32 %v5813, %v7256
    %v7343 = vadd.f32 %v5816, %v7259
    %v7344 = vadd.f32 %v5821, %v7264
    %v7345 = vadd.f32 %v5824, %v7267
    %v7346 = vadd.f32 %v5829, %v7272
    %v7347 = vadd.f32 %v5832, %v7275
    %v7348 = vadd.f32 %v5837, %v7280
    %v7349 = vadd.f32 %v5840, %v7283
    %v7350 = vld [vmem:[#allocation3 + $0x90] sm:$0xff]
    %v7351 = vld [vmem:[#allocation3 + $0x98] sm:$0xf]
    %v7352 = vld [vmem:[#allocation3 + $0x9c] sm:$0xff]
    %v7353 = vld [vmem:[#allocation3 + $0xa4] sm:$0xf]
    %v7354 = vld [vmem:[#allocation3 + $0xa8] sm:$0xff]
    %v7355 = vld [vmem:[#allocation3 + $0xb0] sm:$0xf]
    %v7356 = vld [vmem:[#allocation3 + $0xb4] sm:$0xff]
    %v7357 = vld [vmem:[#allocation3 + $0xbc] sm:$0xf]
    %v7358 = vld [vmem:[#allocation3 + $0xc0] sm:$0xff]
    %v7359 = vld [vmem:[#allocation3 + $0xc8] sm:$0xf]
    %v7360 = vld [vmem:[#allocation3 + $0xcc] sm:$0xff]
    %v7361 = vld [vmem:[#allocation3 + $0xd4] sm:$0xf]
    %v7362 = vld [vmem:[#allocation3 + $0xd8] sm:$0xff]
    %v7363 = vld [vmem:[#allocation3 + $0xe0] sm:$0xf]
    %v7364 = vld [vmem:[#allocation3 + $0xe4] sm:$0xff]
    %v7365 = vld [vmem:[#allocation3 + $0xec] sm:$0xf]
    %v7366 = vld [vmem:[#allocation3 + $0xf0] sm:$0xff]
    %v7367 = vld [vmem:[#allocation3 + $0xf8] sm:$0xf]
    %v7368 = vld [vmem:[#allocation3 + $0xfc] sm:$0xff]
    %v7369 = vld [vmem:[#allocation3 + $0x104] sm:$0xf]
    %v7370 = vld [vmem:[#allocation3 + $0x108] sm:$0xff]
    %v7371 = vld [vmem:[#allocation3 + $0x110] sm:$0xf]
    %v7372 = vld [vmem:[#allocation3 + $0x114] sm:$0xff]
    %v7373 = vld [vmem:[#allocation3 + $0x11c] sm:$0xf]
    %v7374 = vld [vmem:[#allocation3 + $0x120] sm:$0xff]
    %v7375 = vld [vmem:[#allocation3 + $0x128] sm:$0xf]
    %v7376 = vld [vmem:[#allocation3 + $0x12c] sm:$0xff]
    %v7377 = vld [vmem:[#allocation3 + $0x134] sm:$0xf]
    %v7378 = vld [vmem:[#allocation3 + $0x138] sm:$0xff]
    %v7379 = vld [vmem:[#allocation3 + $0x140] sm:$0xf]
    %v7380 = vld [vmem:[#allocation3 + $0x144] sm:$0xff]
    %v7381 = vld [vmem:[#allocation3 + $0x14c] sm:$0xf]
    %v7382 = vld [vmem:[#allocation3 + $0x150] sm:$0xff]
    %v7383 = vld [vmem:[#allocation3 + $0x158] sm:$0xf]
    %v7384 = vld [vmem:[#allocation3 + $0x15c] sm:$0xff]
    %v7385 = vld [vmem:[#allocation3 + $0x164] sm:$0xf]
    %v7386 = vld [vmem:[#allocation3 + $0x168] sm:$0xff]
    %v7387 = vld [vmem:[#allocation3 + $0x170] sm:$0xf]
    %v7388 = vld [vmem:[#allocation3 + $0x174] sm:$0xff]
    %v7389 = vld [vmem:[#allocation3 + $0x17c] sm:$0xf]
    %v7390 = vld [vmem:[#allocation3 + $0x180] sm:$0xff]
    %v7391 = vld [vmem:[#allocation3 + $0x188] sm:$0xf]
    %v7392 = vld [vmem:[#allocation3 + $0x18c] sm:$0xff]
    %v7393 = vld [vmem:[#allocation3 + $0x194] sm:$0xf]
    %v7394 = vld [vmem:[#allocation3 + $0x198] sm:$0xff]
    %v7395 = vld [vmem:[#allocation3 + $0x1a0] sm:$0xf]
    %v7396 = vld [vmem:[#allocation3 + $0x1a4] sm:$0xff]
    %v7397 = vld [vmem:[#allocation3 + $0x1ac] sm:$0xf]
    %v7398 = vld [vmem:[#allocation3 + $0x1b0] sm:$0xff]
    %v7399 = vld [vmem:[#allocation3 + $0x1b8] sm:$0xf]
    %v7400 = vld [vmem:[#allocation3 + $0x1bc] sm:$0xff]
    %v7401 = vld [vmem:[#allocation3 + $0x1c4] sm:$0xf]
    %v7402 = vld [vmem:[#allocation3 + $0x1c8] sm:$0xff]
    %v7403 = vld [vmem:[#allocation3 + $0x1d0] sm:$0xf]
    %v7404 = vld [vmem:[#allocation3 + $0x1d4] sm:$0xff]
    %v7405 = vld [vmem:[#allocation3 + $0x1dc] sm:$0xf]
    %v7406 = vld [vmem:[#allocation3 + $0x1e0] sm:$0xff]
    %v7407 = vld [vmem:[#allocation3 + $0x1e8] sm:$0xf]
    %v7408 = vld [vmem:[#allocation3 + $0x1ec] sm:$0xff]
    %v7409 = vld [vmem:[#allocation3 + $0x1f4] sm:$0xf]
    %v7410 = vld [vmem:[#allocation3 + $0x1f8] sm:$0xff]
    %v7411 = vld [vmem:[#allocation3 + $0x200] sm:$0xf]
    %v7412 = vld [vmem:[#allocation3 + $0x204] sm:$0xff]
    %v7413 = vld [vmem:[#allocation3 + $0x20c] sm:$0xf]
    %v7414 = vld [vmem:[#allocation3 + $0x210] sm:$0xff]
    %v7415 = vld [vmem:[#allocation3 + $0x218] sm:$0xf]
    %v7416 = vld [vmem:[#allocation3 + $0x21c] sm:$0xff]
    %v7417 = vld [vmem:[#allocation3 + $0x224] sm:$0xf]
    %v7418 = vld [vmem:[#allocation3 + $0x228] sm:$0xff]
    %v7419 = vld [vmem:[#allocation3 + $0x230] sm:$0xf]
    %v7420 = vld [vmem:[#allocation3 + $0x234] sm:$0xff]
    %v7421 = vld [vmem:[#allocation3 + $0x23c] sm:$0xf]
    %v7422 = vld [vmem:[#allocation3 + $0x240] sm:$0xff]
    %v7423 = vld [vmem:[#allocation3 + $0x248] sm:$0xf]
    %v7424 = vld [vmem:[#allocation3 + $0x24c] sm:$0xff]
    %v7425 = vld [vmem:[#allocation3 + $0x254] sm:$0xf]
    %v7426 = vld [vmem:[#allocation3 + $0x258] sm:$0xff]
    %v7427 = vld [vmem:[#allocation3 + $0x260] sm:$0xf]
    %v7428 = vld [vmem:[#allocation3 + $0x264] sm:$0xff]
    %v7429 = vld [vmem:[#allocation3 + $0x26c] sm:$0xf]
    %v7430 = vld [vmem:[#allocation3 + $0x270] sm:$0xff]
    %v7431 = vld [vmem:[#allocation3 + $0x278] sm:$0xf]
    %v7432 = vld [vmem:[#allocation3 + $0x27c] sm:$0xff]
    %v7433 = vld [vmem:[#allocation3 + $0x284] sm:$0xf]
    %v7434 = vld [vmem:[#allocation3 + $0x288] sm:$0xff]
    %v7435 = vld [vmem:[#allocation3 + $0x290] sm:$0xf]
    %v7436 = vld [vmem:[#allocation3 + $0x294] sm:$0xff]
    %v7437 = vld [vmem:[#allocation3 + $0x29c] sm:$0xf]
    %v7438 = vld [vmem:[#allocation3 + $0x2a0] sm:$0xff]
    %v7439 = vld [vmem:[#allocation3 + $0x2a8] sm:$0xf]
    %v7440 = vld [vmem:[#allocation3 + $0x2ac] sm:$0xff]
    %v7441 = vld [vmem:[#allocation3 + $0x2b4] sm:$0xf]
    %v7442 = vld [vmem:[#allocation3 + $0x2b8] sm:$0xff]
    %v7443 = vld [vmem:[#allocation3 + $0x2c0] sm:$0xf]
    %v7444 = vld [vmem:[#allocation3 + $0x2c4] sm:$0xff]
    %v7445 = vld [vmem:[#allocation3 + $0x2cc] sm:$0xf]
    %v7446 = vld [vmem:[#allocation3 + $0x2d0] sm:$0xff]
    %v7447 = vld [vmem:[#allocation3 + $0x2d8] sm:$0xf]
    %v7448 = vld [vmem:[#allocation3 + $0x2dc] sm:$0xff]
    %v7449 = vld [vmem:[#allocation3 + $0x2e4] sm:$0xf]
    %v7450 = vld [vmem:[#allocation3 + $0x2e8] sm:$0xff]
    %v7451 = vld [vmem:[#allocation3 + $0x2f0] sm:$0xf]
    %v7452 = vld [vmem:[#allocation3 + $0x2f4] sm:$0xff]
    %v7453 = vld [vmem:[#allocation3 + $0x2fc] sm:$0xf]
    %v7454 = vld [vmem:[#allocation3 + $0x300] sm:$0xff]
    %v7455 = vld [vmem:[#allocation3 + $0x308] sm:$0xf]
    %v7456 = vld [vmem:[#allocation3 + $0x30c] sm:$0xff]
    %v7457 = vld [vmem:[#allocation3 + $0x314] sm:$0xf]
    %v7458 = vld [vmem:[#allocation3 + $0x318] sm:$0xff]
    %v7459 = vld [vmem:[#allocation3 + $0x320] sm:$0xf]
    %v7460 = vld [vmem:[#allocation3 + $0x324] sm:$0xff]
    %v7461 = vld [vmem:[#allocation3 + $0x32c] sm:$0xf]
    %v7462 = vld [vmem:[#allocation3 + $0x330] sm:$0xff]
    %v7463 = vld [vmem:[#allocation3 + $0x338] sm:$0xf]
    %v7464 = vld [vmem:[#allocation3 + $0x33c] sm:$0xff]
    %v7465 = vld [vmem:[#allocation3 + $0x344] sm:$0xf]
    %v7466 = vld [vmem:[#allocation3 + $0x348] sm:$0xff]
    %v7467 = vld [vmem:[#allocation3 + $0x350] sm:$0xf]
    %v7468 = vld [vmem:[#allocation3 + $0x354] sm:$0xff]
    %v7469 = vld [vmem:[#allocation3 + $0x35c] sm:$0xf]
    %v7470 = vld [vmem:[#allocation3 + $0x360] sm:$0xff]
    %v7471 = vld [vmem:[#allocation3 + $0x368] sm:$0xf]
    %v7472 = vld [vmem:[#allocation3 + $0x36c] sm:$0xff]
    %v7473 = vld [vmem:[#allocation3 + $0x374] sm:$0xf]
    %v7474 = vld [vmem:[#allocation3 + $0x378] sm:$0xff]
    %v7475 = vld [vmem:[#allocation3 + $0x380] sm:$0xf]
    %v7476 = vld [vmem:[#allocation3 + $0x384] sm:$0xff]
    %v7477 = vld [vmem:[#allocation3 + $0x38c] sm:$0xf]
    %s7478 = scalar_lea.vmem [#allocation4], 480
    %v7479 = vld [vmem:[%s7478] sm:$0xf]
    %v7480 = vld [vmem:[%s7478 + $0x4] sm:$0xf]
    %v7481 = vld [vmem:[%s7478 + $0x8] sm:$0xf]
    %v7482 = vld [vmem:[%s7478 + $0xc] sm:$0xf]
    %v7483 = vld [vmem:[%s7478 + $0x10] sm:$0xf]
    %v7484 = vld [vmem:[%s7478 + $0x14] sm:$0xf]
    %v7485 = vld [vmem:[%s7478 + $0x18] sm:$0xf]
    %v7486 = vld [vmem:[%s7478 + $0x1c] sm:$0xf]
    %v7487 = vld [vmem:[%s7478 + $0x20] sm:$0xf]
    %v7488 = vld [vmem:[%s7478 + $0x24] sm:$0xf]
    %v7489 = vld [vmem:[%s7478 + $0x28] sm:$0xf]
    %v7490 = vld [vmem:[%s7478 + $0x2c] sm:$0xf]
    %v7491 = vld [vmem:[%s7478 + $0x30] sm:$0xf]
    %v7492 = vld [vmem:[%s7478 + $0x34] sm:$0xf]
    %v7493 = vld [vmem:[%s7478 + $0x38] sm:$0xf]
    %v7494 = vld [vmem:[%s7478 + $0x3c] sm:$0xf]
    %v7495 = vld [vmem:[%s7478 + $0x40] sm:$0xf]
    %v7496 = vld [vmem:[%s7478 + $0x44] sm:$0xf]
    %v7497 = vld [vmem:[%s7478 + $0x48] sm:$0xf]
    %v7498 = vld [vmem:[%s7478 + $0x4c] sm:$0xf]
    %v7499 = vld [vmem:[%s7478 + $0x50] sm:$0xf]
    %v7500 = vld [vmem:[%s7478 + $0x54] sm:$0xf]
    %v7501 = vld [vmem:[%s7478 + $0x58] sm:$0xf]
    %v7502 = vld [vmem:[%s7478 + $0x5c] sm:$0xf]
    %v7503 = vld [vmem:[%s7478 + $0x60] sm:$0xf]
    %v7504 = vld [vmem:[%s7478 + $0x64] sm:$0xf]
    %v7505 = vld [vmem:[%s7478 + $0x68] sm:$0xf]
    %v7506 = vld [vmem:[%s7478 + $0x6c] sm:$0xf]
    %v7507 = vld [vmem:[%s7478 + $0x70] sm:$0xf]
    %v7508 = vld [vmem:[%s7478 + $0x74] sm:$0xf]
    %v7509 = vld [vmem:[%s7478 + $0x78] sm:$0xf]
    %v7510 = vld [vmem:[%s7478 + $0x7c] sm:$0xf]
    %v7511 = vld [vmem:[%s7478 + $0x80] sm:$0xf]
    %v7512 = vld [vmem:[%s7478 + $0x84] sm:$0xf]
    %v7513 = vld [vmem:[%s7478 + $0x88] sm:$0xf]
    %v7514 = vld [vmem:[%s7478 + $0x8c] sm:$0xf]
    %v7515 = vld [vmem:[%s7478 + $0x90] sm:$0xf]
    %v7516 = vld [vmem:[%s7478 + $0x94] sm:$0xf]
    %v7517 = vld [vmem:[%s7478 + $0x98] sm:$0xf]
    %v7518 = vld [vmem:[%s7478 + $0x9c] sm:$0xf]
    %v7647 = vunpack.c.l.b16 %v7350
    %v7648 = vunpack.c.h.b16 %v7350
    %v7649 = vunpack.c.l.b16 %v7351
    %v7650 = vunpack.c.l.b16 %v7352
    %v7651 = vunpack.c.h.b16 %v7352
    %v7652 = vunpack.c.l.b16 %v7353
    %v7653 = vunpack.c.l.b16 %v7354
    %v7654 = vunpack.c.h.b16 %v7354
    %v7655 = vunpack.c.l.b16 %v7355
    %v7656 = vunpack.c.l.b16 %v7356
    %v7657 = vunpack.c.h.b16 %v7356
    %v7658 = vunpack.c.l.b16 %v7357
    %v7659 = vunpack.c.l.b16 %v7358
    %v7660 = vunpack.c.h.b16 %v7358
    %v7661 = vunpack.c.l.b16 %v7359
    %v7662 = vunpack.c.l.b16 %v7360
    %v7663 = vunpack.c.h.b16 %v7360
    %v7664 = vunpack.c.l.b16 %v7361
    %v7665 = vunpack.c.l.b16 %v7362
    %v7666 = vunpack.c.h.b16 %v7362
    %v7667 = vunpack.c.l.b16 %v7363
    %v7668 = vunpack.c.l.b16 %v7364
    %v7669 = vunpack.c.h.b16 %v7364
    %v7670 = vunpack.c.l.b16 %v7365
    %v7671 = vunpack.c.l.b16 %v7366
    %v7672 = vunpack.c.h.b16 %v7366
    %v7673 = vunpack.c.l.b16 %v7367
    %v7674 = vunpack.c.l.b16 %v7368
    %v7675 = vunpack.c.h.b16 %v7368
    %v7676 = vunpack.c.l.b16 %v7369
    %v7677 = vunpack.c.l.b16 %v7370
    %v7678 = vunpack.c.h.b16 %v7370
    %v7679 = vunpack.c.l.b16 %v7371
    %v7680 = vunpack.c.l.b16 %v7372
    %v7681 = vunpack.c.h.b16 %v7372
    %v7682 = vunpack.c.l.b16 %v7373
    %v7683 = vunpack.c.l.b16 %v7374
    %v7684 = vunpack.c.h.b16 %v7374
    %v7685 = vunpack.c.l.b16 %v7375
    %v7686 = vunpack.c.l.b16 %v7376
    %v7687 = vunpack.c.h.b16 %v7376
    %v7688 = vunpack.c.l.b16 %v7377
    %v7689 = vunpack.c.l.b16 %v7378
    %v7690 = vunpack.c.h.b16 %v7378
    %v7691 = vunpack.c.l.b16 %v7379
    %v7692 = vunpack.c.l.b16 %v7380
    %v7693 = vunpack.c.h.b16 %v7380
    %v7694 = vunpack.c.l.b16 %v7381
    %v7695 = vunpack.c.l.b16 %v7382
    %v7696 = vunpack.c.h.b16 %v7382
    %v7697 = vunpack.c.l.b16 %v7383
    %v7698 = vunpack.c.l.b16 %v7384
    %v7699 = vunpack.c.h.b16 %v7384
    %v7700 = vunpack.c.l.b16 %v7385
    %v7701 = vunpack.c.l.b16 %v7386
    %v7702 = vunpack.c.h.b16 %v7386
    %v7703 = vunpack.c.l.b16 %v7387
    %v7704 = vunpack.c.l.b16 %v7388
    %v7705 = vunpack.c.h.b16 %v7388
    %v7706 = vunpack.c.l.b16 %v7389
    %v7707 = vunpack.c.l.b16 %v7390
    %v7708 = vunpack.c.h.b16 %v7390
    %v7709 = vunpack.c.l.b16 %v7391
    %v7710 = vunpack.c.l.b16 %v7392
    %v7711 = vunpack.c.h.b16 %v7392
    %v7712 = vunpack.c.l.b16 %v7393
    %v7713 = vunpack.c.l.b16 %v7394
    %v7714 = vunpack.c.h.b16 %v7394
    %v7715 = vunpack.c.l.b16 %v7395
    %v7716 = vunpack.c.l.b16 %v7396
    %v7717 = vunpack.c.h.b16 %v7396
    %v7718 = vunpack.c.l.b16 %v7397
    %v7719 = vunpack.c.l.b16 %v7398
    %v7720 = vunpack.c.h.b16 %v7398
    %v7721 = vunpack.c.l.b16 %v7399
    %v7722 = vunpack.c.l.b16 %v7400
    %v7723 = vunpack.c.h.b16 %v7400
    %v7724 = vunpack.c.l.b16 %v7401
    %v7725 = vunpack.c.l.b16 %v7402
    %v7726 = vunpack.c.h.b16 %v7402
    %v7727 = vunpack.c.l.b16 %v7403
    %v7728 = vunpack.c.l.b16 %v7404
    %v7729 = vunpack.c.h.b16 %v7404
    %v7730 = vunpack.c.l.b16 %v7405
    %v7731 = vunpack.c.l.b16 %v7406
    %v7732 = vunpack.c.h.b16 %v7406
    %v7733 = vunpack.c.l.b16 %v7407
    %v7734 = vunpack.c.l.b16 %v7408
    %v7735 = vunpack.c.h.b16 %v7408
    %v7736 = vunpack.c.l.b16 %v7409
    %v7737 = vunpack.c.l.b16 %v7410
    %v7738 = vunpack.c.h.b16 %v7410
    %v7739 = vunpack.c.l.b16 %v7411
    %v7740 = vunpack.c.l.b16 %v7412
    %v7741 = vunpack.c.h.b16 %v7412
    %v7742 = vunpack.c.l.b16 %v7413
    %v7743 = vunpack.c.l.b16 %v7414
    %v7744 = vunpack.c.h.b16 %v7414
    %v7745 = vunpack.c.l.b16 %v7415
    %v7746 = vunpack.c.l.b16 %v7416
    %v7747 = vunpack.c.h.b16 %v7416
    %v7748 = vunpack.c.l.b16 %v7417
    %v7749 = vunpack.c.l.b16 %v7418
    %v7750 = vunpack.c.h.b16 %v7418
    %v7751 = vunpack.c.l.b16 %v7419
    %v7752 = vunpack.c.l.b16 %v7420
    %v7753 = vunpack.c.h.b16 %v7420
    %v7754 = vunpack.c.l.b16 %v7421
    %v7755 = vunpack.c.l.b16 %v7422
    %v7756 = vunpack.c.h.b16 %v7422
    %v7757 = vunpack.c.l.b16 %v7423
    %v7758 = vunpack.c.l.b16 %v7424
    %v7759 = vunpack.c.h.b16 %v7424
    %v7760 = vunpack.c.l.b16 %v7425
    %v7761 = vunpack.c.l.b16 %v7426
    %v7762 = vunpack.c.h.b16 %v7426
    %v7763 = vunpack.c.l.b16 %v7427
    %v7764 = vunpack.c.l.b16 %v7428
    %v7765 = vunpack.c.h.b16 %v7428
    %v7766 = vunpack.c.l.b16 %v7429
    %v7767 = vunpack.c.l.b16 %v7430
    %v7768 = vunpack.c.h.b16 %v7430
    %v7769 = vunpack.c.l.b16 %v7431
    %v7770 = vunpack.c.l.b16 %v7432
    %v7771 = vunpack.c.h.b16 %v7432
    %v7772 = vunpack.c.l.b16 %v7433
    %v7773 = vunpack.c.l.b16 %v7434
    %v7774 = vunpack.c.h.b16 %v7434
    %v7775 = vunpack.c.l.b16 %v7435
    %v7776 = vunpack.c.l.b16 %v7436
    %v7777 = vunpack.c.h.b16 %v7436
    %v7778 = vunpack.c.l.b16 %v7437
    %v7779 = vunpack.c.l.b16 %v7438
    %v7780 = vunpack.c.h.b16 %v7438
    %v7781 = vunpack.c.l.b16 %v7439
    %v7782 = vunpack.c.l.b16 %v7440
    %v7783 = vunpack.c.h.b16 %v7440
    %v7784 = vunpack.c.l.b16 %v7441
    %v7785 = vunpack.c.l.b16 %v7442
    %v7786 = vunpack.c.h.b16 %v7442
    %v7787 = vunpack.c.l.b16 %v7443
    %v7788 = vunpack.c.l.b16 %v7444
    %v7789 = vunpack.c.h.b16 %v7444
    %v7790 = vunpack.c.l.b16 %v7445
    %v7791 = vunpack.c.l.b16 %v7446
    %v7792 = vunpack.c.h.b16 %v7446
    %v7793 = vunpack.c.l.b16 %v7447
    %v7794 = vunpack.c.l.b16 %v7448
    %v7795 = vunpack.c.h.b16 %v7448
    %v7796 = vunpack.c.l.b16 %v7449
    %v7797 = vunpack.c.l.b16 %v7450
    %v7798 = vunpack.c.h.b16 %v7450
    %v7799 = vunpack.c.l.b16 %v7451
    %v7800 = vunpack.c.l.b16 %v7452
    %v7801 = vunpack.c.h.b16 %v7452
    %v7802 = vunpack.c.l.b16 %v7453
    %v7803 = vunpack.c.l.b16 %v7454
    %v7804 = vunpack.c.h.b16 %v7454
    %v7805 = vunpack.c.l.b16 %v7455
    %v7806 = vunpack.c.l.b16 %v7456
    %v7807 = vunpack.c.h.b16 %v7456
    %v7808 = vunpack.c.l.b16 %v7457
    %v7809 = vunpack.c.l.b16 %v7458
    %v7810 = vunpack.c.h.b16 %v7458
    %v7811 = vunpack.c.l.b16 %v7459
    %v7812 = vunpack.c.l.b16 %v7460
    %v7813 = vunpack.c.h.b16 %v7460
    %v7814 = vunpack.c.l.b16 %v7461
    %v7815 = vunpack.c.l.b16 %v7462
    %v7816 = vunpack.c.h.b16 %v7462
    %v7817 = vunpack.c.l.b16 %v7463
    %v7818 = vunpack.c.l.b16 %v7464
    %v7819 = vunpack.c.h.b16 %v7464
    %v7820 = vunpack.c.l.b16 %v7465
    %v7821 = vunpack.c.l.b16 %v7466
    %v7822 = vunpack.c.h.b16 %v7466
    %v7823 = vunpack.c.l.b16 %v7467
    %v7824 = vunpack.c.l.b16 %v7468
    %v7825 = vunpack.c.h.b16 %v7468
    %v7826 = vunpack.c.l.b16 %v7469
    %v7827 = vunpack.c.l.b16 %v7470
    %v7828 = vunpack.c.h.b16 %v7470
    %v7829 = vunpack.c.l.b16 %v7471
    %v7830 = vunpack.c.l.b16 %v7472
    %v7831 = vunpack.c.h.b16 %v7472
    %v7832 = vunpack.c.l.b16 %v7473
    %v7833 = vunpack.c.l.b16 %v7474
    %v7834 = vunpack.c.h.b16 %v7474
    %v7835 = vunpack.c.l.b16 %v7475
    %v7836 = vunpack.c.l.b16 %v7476
    %v7837 = vunpack.c.h.b16 %v7476
    %v7838 = vunpack.c.l.b16 %v7477
    %v7839 = vpack.c.b16 %v7650, %v7647
    %v7840 = vpack.c.b16 %v7651, %v7648
    %v7841 = vpack.c.b16 %v7652, %v7649
    %v7842 = vpack.c.b16 %v7656, %v7653
    %v7843 = vpack.c.b16 %v7657, %v7654
    %v7844 = vpack.c.b16 %v7658, %v7655
    %v7845 = vpack.c.b16 %v7662, %v7659
    %v7846 = vpack.c.b16 %v7663, %v7660
    %v7847 = vpack.c.b16 %v7664, %v7661
    %v7848 = vpack.c.b16 %v7668, %v7665
    %v7849 = vpack.c.b16 %v7669, %v7666
    %v7850 = vpack.c.b16 %v7670, %v7667
    %v7851 = vpack.c.b16 %v7674, %v7671
    %v7852 = vpack.c.b16 %v7675, %v7672
    %v7853 = vpack.c.b16 %v7676, %v7673
    %v7854 = vpack.c.b16 %v7680, %v7677
    %v7855 = vpack.c.b16 %v7681, %v7678
    %v7856 = vpack.c.b16 %v7682, %v7679
    %v7857 = vpack.c.b16 %v7686, %v7683
    %v7858 = vpack.c.b16 %v7687, %v7684
    %v7859 = vpack.c.b16 %v7688, %v7685
    %v7860 = vpack.c.b16 %v7692, %v7689
    %v7861 = vpack.c.b16 %v7693, %v7690
    %v7862 = vpack.c.b16 %v7694, %v7691
    %v7863 = vpack.c.b16 %v7698, %v7695
    %v7864 = vpack.c.b16 %v7699, %v7696
    %v7865 = vpack.c.b16 %v7700, %v7697
    %v7866 = vpack.c.b16 %v7704, %v7701
    %v7867 = vpack.c.b16 %v7705, %v7702
    %v7868 = vpack.c.b16 %v7706, %v7703
    %v7869 = vpack.c.b16 %v7710, %v7707
    %v7870 = vpack.c.b16 %v7711, %v7708
    %v7871 = vpack.c.b16 %v7712, %v7709
    %v7872 = vpack.c.b16 %v7716, %v7713
    %v7873 = vpack.c.b16 %v7717, %v7714
    %v7874 = vpack.c.b16 %v7718, %v7715
    %v7875 = vpack.c.b16 %v7722, %v7719
    %v7876 = vpack.c.b16 %v7723, %v7720
    %v7877 = vpack.c.b16 %v7724, %v7721
    %v7878 = vpack.c.b16 %v7728, %v7725
    %v7879 = vpack.c.b16 %v7729, %v7726
    %v7880 = vpack.c.b16 %v7730, %v7727
    %v7881 = vpack.c.b16 %v7734, %v7731
    %v7882 = vpack.c.b16 %v7735, %v7732
    %v7883 = vpack.c.b16 %v7736, %v7733
    %v7884 = vpack.c.b16 %v7740, %v7737
    %v7885 = vpack.c.b16 %v7741, %v7738
    %v7886 = vpack.c.b16 %v7742, %v7739
    %v7887 = vpack.c.b16 %v7746, %v7743
    %v7888 = vpack.c.b16 %v7747, %v7744
    %v7889 = vpack.c.b16 %v7748, %v7745
    %v7890 = vpack.c.b16 %v7752, %v7749
    %v7891 = vpack.c.b16 %v7753, %v7750
    %v7892 = vpack.c.b16 %v7754, %v7751
    %v7893 = vpack.c.b16 %v7758, %v7755
    %v7894 = vpack.c.b16 %v7759, %v7756
    %v7895 = vpack.c.b16 %v7760, %v7757
    %v7896 = vpack.c.b16 %v7764, %v7761
    %v7897 = vpack.c.b16 %v7765, %v7762
    %v7898 = vpack.c.b16 %v7766, %v7763
    %v7899 = vpack.c.b16 %v7770, %v7767
    %v7900 = vpack.c.b16 %v7771, %v7768
    %v7901 = vpack.c.b16 %v7772, %v7769
    %v7902 = vpack.c.b16 %v7776, %v7773
    %v7903 = vpack.c.b16 %v7777, %v7774
    %v7904 = vpack.c.b16 %v7778, %v7775
    %v7905 = vpack.c.b16 %v7782, %v7779
    %v7906 = vpack.c.b16 %v7783, %v7780
    %v7907 = vpack.c.b16 %v7784, %v7781
    %v7908 = vpack.c.b16 %v7788, %v7785
    %v7909 = vpack.c.b16 %v7789, %v7786
    %v7910 = vpack.c.b16 %v7790, %v7787
    %v7911 = vpack.c.b16 %v7794, %v7791
    %v7912 = vpack.c.b16 %v7795, %v7792
    %v7913 = vpack.c.b16 %v7796, %v7793
    %v7914 = vpack.c.b16 %v7800, %v7797
    %v7915 = vpack.c.b16 %v7801, %v7798
    %v7916 = vpack.c.b16 %v7802, %v7799
    %v7917 = vpack.c.b16 %v7806, %v7803
    %v7918 = vpack.c.b16 %v7807, %v7804
    %v7919 = vpack.c.b16 %v7808, %v7805
    %v7920 = vpack.c.b16 %v7812, %v7809
    %v7921 = vpack.c.b16 %v7813, %v7810
    %v7922 = vpack.c.b16 %v7814, %v7811
    %v7923 = vpack.c.b16 %v7818, %v7815
    %v7924 = vpack.c.b16 %v7819, %v7816
    %v7925 = vpack.c.b16 %v7820, %v7817
    %v7926 = vpack.c.b16 %v7824, %v7821
    %v7927 = vpack.c.b16 %v7825, %v7822
    %v7928 = vpack.c.b16 %v7826, %v7823
    %v7929 = vpack.c.b16 %v7830, %v7827
    %v7930 = vpack.c.b16 %v7831, %v7828
    %v7931 = vpack.c.b16 %v7832, %v7829
    %v7932 = vpack.c.b16 %v7836, %v7833
    %v7933 = vpack.c.b16 %v7837, %v7834
    %v7934 = vpack.c.b16 %v7838, %v7835
    %v8039 = vunpack.c.l.b16 %v7479
    %v8040 = vunpack.c.l.b16 %v7480
    %v8041 = vunpack.c.l.b16 %v7481
    %v8042 = vunpack.c.l.b16 %v7482
    %v8043 = vunpack.c.l.b16 %v7483
    %v8044 = vunpack.c.l.b16 %v7484
    %v8045 = vunpack.c.l.b16 %v7485
    %v8046 = vunpack.c.l.b16 %v7486
    %v8047 = vunpack.c.l.b16 %v7487
    %v8048 = vunpack.c.l.b16 %v7488
    %v8049 = vunpack.c.l.b16 %v7489
    %v8050 = vunpack.c.l.b16 %v7490
    %v8051 = vunpack.c.l.b16 %v7491
    %v8052 = vunpack.c.l.b16 %v7492
    %v8053 = vunpack.c.l.b16 %v7493
    %v8054 = vunpack.c.l.b16 %v7494
    %v8055 = vunpack.c.l.b16 %v7495
    %v8056 = vunpack.c.l.b16 %v7496
    %v8057 = vunpack.c.l.b16 %v7497
    %v8058 = vunpack.c.l.b16 %v7498
    %v8059 = vunpack.c.l.b16 %v7499
    %v8060 = vunpack.c.l.b16 %v7500
    %v8061 = vunpack.c.l.b16 %v7501
    %v8062 = vunpack.c.l.b16 %v7502
    %v8063 = vunpack.c.l.b16 %v7503
    %v8064 = vunpack.c.l.b16 %v7504
    %v8065 = vunpack.c.l.b16 %v7505
    %v8066 = vunpack.c.l.b16 %v7506
    %v8067 = vunpack.c.l.b16 %v7507
    %v8068 = vunpack.c.l.b16 %v7508
    %v8069 = vunpack.c.l.b16 %v7509
    %v8070 = vunpack.c.l.b16 %v7510
    %v8071 = vunpack.c.l.b16 %v7511
    %v8072 = vunpack.c.l.b16 %v7512
    %v8073 = vunpack.c.l.b16 %v7513
    %v8074 = vunpack.c.l.b16 %v7514
    %v8075 = vunpack.c.l.b16 %v7515
    %v8076 = vunpack.c.l.b16 %v7516
    %v8077 = vunpack.c.l.b16 %v7517
    %v8078 = vunpack.c.l.b16 %v7518
    %v8079 = vpack.c.b16 %v8040, %v8039
    %v8080 = vpack.c.b16 %v8042, %v8041
    %v8081 = vpack.c.b16 %v8044, %v8043
    %v8082 = vpack.c.b16 %v8046, %v8045
    %v8083 = vpack.c.b16 %v8048, %v8047
    %v8084 = vpack.c.b16 %v8050, %v8049
    %v8085 = vpack.c.b16 %v8052, %v8051
    %v8086 = vpack.c.b16 %v8054, %v8053
    %v8087 = vpack.c.b16 %v8056, %v8055
    %v8088 = vpack.c.b16 %v8058, %v8057
    %v8089 = vpack.c.b16 %v8060, %v8059
    %v8090 = vpack.c.b16 %v8062, %v8061
    %v8091 = vpack.c.b16 %v8064, %v8063
    %v8092 = vpack.c.b16 %v8066, %v8065
    %v8093 = vpack.c.b16 %v8068, %v8067
    %v8094 = vpack.c.b16 %v8070, %v8069
    %v8095 = vpack.c.b16 %v8072, %v8071
    %v8096 = vpack.c.b16 %v8074, %v8073
    %v8097 = vpack.c.b16 %v8076, %v8075
    %v8098 = vpack.c.b16 %v8078, %v8077
    %v8120 = vsel %vm42, %v7841, 0
    %v8123 = vsel %vm42, %v7844, 0
    %v8126 = vsel %vm42, %v7847, 0
    %v8129 = vsel %vm42, %v7850, 0
    %v8132 = vsel %vm42, %v7853, 0
    %v8135 = vsel %vm42, %v7856, 0
    %v8138 = vsel %vm42, %v7859, 0
    %v8141 = vsel %vm42, %v7862, 0
    %v8144 = vsel %vm42, %v7865, 0
    %v8147 = vsel %vm42, %v7868, 0
    %v8150 = vsel %vm42, %v7871, 0
    %v8153 = vsel %vm42, %v7874, 0
    %v8156 = vsel %vm42, %v7877, 0
    %v8159 = vsel %vm42, %v7880, 0
    %v8162 = vsel %vm42, %v7883, 0
    %v8165 = vsel %vm42, %v7886, 0
    %v8168 = vsel %vm42, %v7889, 0
    %v8171 = vsel %vm42, %v7892, 0
    %v8174 = vsel %vm42, %v7895, 0
    %v8177 = vsel %vm42, %v7898, 0
    %v8180 = vsel %vm42, %v7901, 0
    %v8183 = vsel %vm42, %v7904, 0
    %v8186 = vsel %vm42, %v7907, 0
    %v8189 = vsel %vm42, %v7910, 0
    %v8192 = vsel %vm42, %v7913, 0
    %v8195 = vsel %vm42, %v7916, 0
    %v8198 = vsel %vm42, %v7919, 0
    %v8201 = vsel %vm42, %v7922, 0
    %v8204 = vsel %vm42, %v7925, 0
    %v8207 = vsel %vm42, %v7928, 0
    %v8210 = vsel %vm42, %v7931, 0
    %v8213 = vsel %vm42, %v7934, 0
    %8215 = vmatprep.subr.bf16.mxu0 0
    %8216 = vmatpush1.bf16.msra.mxu0 %v8086
    %8217 = vmatprep.subr.bf16.mxu0 0
    %8218 = vmatpush1.bf16.msra.mxu0 %v8085
    %8219 = vmatprep.subr.bf16.mxu0 0
    %8220 = vmatpush1.bf16.msra.mxu0 %v8084
    %8221 = vmatprep.subr.bf16.mxu0 0
    %8222 = vmatpush1.bf16.msra.mxu0 %v8083
    %8223 = vmatprep.subr.bf16.mxu0 0
    %8224 = vmatpush1.bf16.msra.mxu0 %v8082
    %8225 = vmatprep.subr.bf16.mxu0 0
    %8226 = vmatpush1.bf16.msra.mxu0 %v8081
    %8227 = vmatprep.subr.bf16.mxu0 0
    %8228 = vmatpush1.bf16.msra.mxu0 %v8080
    %8229 = vmatprep.subr.bf16.mxu0 0
    %8230 = vmatpush1.bf16.msra.mxu0 %v8079
    %8231 = vmatprep.subr.bf16.mxu0 0
    %8232 = vmatpush2.bf16.msra.mxu0 %v8094
    %8233 = vmatprep.subr.bf16.mxu0 0
    %8234 = vmatpush2.bf16.msra.mxu0 %v8093
    %8235 = vmatprep.subr.bf16.mxu0 0
    %8236 = vmatpush2.bf16.msra.mxu0 %v8092
    %8237 = vmatprep.subr.bf16.mxu0 0
    %8238 = vmatpush2.bf16.msra.mxu0 %v8091
    %8239 = vmatprep.subr.bf16.mxu0 0
    %8240 = vmatpush2.bf16.msra.mxu0 %v8090
    %8241 = vmatprep.subr.bf16.mxu0 0
    %8242 = vmatpush2.bf16.msra.mxu0 %v8089
    %8243 = vmatprep.subr.bf16.mxu0 0
    %8244 = vmatpush2.bf16.msra.mxu0 %v8088
    %8245 = vmatprep.subr.bf16.mxu0 0
    %8246 = vmatpush2.bf16.msra.mxu0 %v8087
    %8247 = vmatprep.mubr.bf16.mxu0 %v7840
    %8248 = vmatmul.mubr.bf16.gmra.mxu0 %v7839
    %v8249 = vpop.f32.mrf.mxu0
    %v8250 = vadd.f32 0.0, %v8249
    %v8251 = vpop.f32.mrf.mxu0
    %v8252 = vpop.f32.mrf.mxu0
    %v8253 = vadd.f32 0.0, %v8252
    %v8254 = vpop.f32.mrf.mxu0
    %8255 = vmatprep.mubr.bf16.mxu0 %v7843
    %8256 = vmatmul.mubr.bf16.gmra.mxu0 %v7842
    %v8257 = vpop.f32.mrf.mxu0
    %v8258 = vadd.f32 0.0, %v8257
    %v8259 = vpop.f32.mrf.mxu0
    %v8260 = vpop.f32.mrf.mxu0
    %v8261 = vadd.f32 0.0, %v8260
    %v8262 = vpop.f32.mrf.mxu0
    %8263 = vmatprep.mubr.bf16.mxu0 %v7846
    %8264 = vmatmul.mubr.bf16.gmra.mxu0 %v7845
    %v8265 = vpop.f32.mrf.mxu0
    %v8266 = vadd.f32 0.0, %v8265
    %v8267 = vpop.f32.mrf.mxu0
    %v8268 = vpop.f32.mrf.mxu0
    %v8269 = vadd.f32 0.0, %v8268
    %v8270 = vpop.f32.mrf.mxu0
    %8271 = vmatprep.mubr.bf16.mxu0 %v7849
    %8272 = vmatmul.mubr.bf16.gmra.mxu0 %v7848
    %v8273 = vpop.f32.mrf.mxu0
    %v8274 = vadd.f32 0.0, %v8273
    %v8275 = vpop.f32.mrf.mxu0
    %v8276 = vpop.f32.mrf.mxu0
    %v8277 = vadd.f32 0.0, %v8276
    %v8278 = vpop.f32.mrf.mxu0
    %8279 = vmatprep.mubr.bf16.mxu0 %v7852
    %8280 = vmatmul.mubr.bf16.gmra.mxu0 %v7851
    %v8281 = vpop.f32.mrf.mxu0
    %v8282 = vadd.f32 0.0, %v8281
    %v8283 = vpop.f32.mrf.mxu0
    %v8284 = vpop.f32.mrf.mxu0
    %v8285 = vadd.f32 0.0, %v8284
    %v8286 = vpop.f32.mrf.mxu0
    %8287 = vmatprep.mubr.bf16.mxu0 %v7855
    %8288 = vmatmul.mubr.bf16.gmra.mxu0 %v7854
    %v8289 = vpop.f32.mrf.mxu0
    %v8290 = vadd.f32 0.0, %v8289
    %v8291 = vpop.f32.mrf.mxu0
    %v8292 = vpop.f32.mrf.mxu0
    %v8293 = vadd.f32 0.0, %v8292
    %v8294 = vpop.f32.mrf.mxu0
    %8295 = vmatprep.mubr.bf16.mxu0 %v7858
    %8296 = vmatmul.mubr.bf16.gmra.mxu0 %v7857
    %v8297 = vpop.f32.mrf.mxu0
    %v8298 = vadd.f32 0.0, %v8297
    %v8299 = vpop.f32.mrf.mxu0
    %v8300 = vpop.f32.mrf.mxu0
    %v8301 = vadd.f32 0.0, %v8300
    %v8302 = vpop.f32.mrf.mxu0
    %8303 = vmatprep.mubr.bf16.mxu0 %v7861
    %8304 = vmatmul.mubr.bf16.gmra.mxu0 %v7860
    %v8305 = vpop.f32.mrf.mxu0
    %v8306 = vadd.f32 0.0, %v8305
    %v8307 = vpop.f32.mrf.mxu0
    %v8308 = vpop.f32.mrf.mxu0
    %v8309 = vadd.f32 0.0, %v8308
    %v8310 = vpop.f32.mrf.mxu0
    %8311 = vmatprep.mubr.bf16.mxu0 %v7864
    %8312 = vmatmul.mubr.bf16.gmra.mxu0 %v7863
    %v8313 = vpop.f32.mrf.mxu0
    %v8314 = vadd.f32 0.0, %v8313
    %v8315 = vpop.f32.mrf.mxu0
    %v8316 = vpop.f32.mrf.mxu0
    %v8317 = vadd.f32 0.0, %v8316
    %v8318 = vpop.f32.mrf.mxu0
    %8319 = vmatprep.mubr.bf16.mxu0 %v7867
    %8320 = vmatmul.mubr.bf16.gmra.mxu0 %v7866
    %v8321 = vpop.f32.mrf.mxu0
    %v8322 = vadd.f32 0.0, %v8321
    %v8323 = vpop.f32.mrf.mxu0
    %v8324 = vpop.f32.mrf.mxu0
    %v8325 = vadd.f32 0.0, %v8324
    %v8326 = vpop.f32.mrf.mxu0
    %8327 = vmatprep.mubr.bf16.mxu0 %v7870
    %8328 = vmatmul.mubr.bf16.gmra.mxu0 %v7869
    %v8329 = vpop.f32.mrf.mxu0
    %v8330 = vadd.f32 0.0, %v8329
    %v8331 = vpop.f32.mrf.mxu0
    %v8332 = vpop.f32.mrf.mxu0
    %v8333 = vadd.f32 0.0, %v8332
    %v8334 = vpop.f32.mrf.mxu0
    %8335 = vmatprep.mubr.bf16.mxu0 %v7873
    %8336 = vmatmul.mubr.bf16.gmra.mxu0 %v7872
    %v8337 = vpop.f32.mrf.mxu0
    %v8338 = vadd.f32 0.0, %v8337
    %v8339 = vpop.f32.mrf.mxu0
    %v8340 = vpop.f32.mrf.mxu0
    %v8341 = vadd.f32 0.0, %v8340
    %v8342 = vpop.f32.mrf.mxu0
    %8343 = vmatprep.mubr.bf16.mxu0 %v7876
    %8344 = vmatmul.mubr.bf16.gmra.mxu0 %v7875
    %v8345 = vpop.f32.mrf.mxu0
    %v8346 = vadd.f32 0.0, %v8345
    %v8347 = vpop.f32.mrf.mxu0
    %v8348 = vpop.f32.mrf.mxu0
    %v8349 = vadd.f32 0.0, %v8348
    %v8350 = vpop.f32.mrf.mxu0
    %8351 = vmatprep.mubr.bf16.mxu0 %v7879
    %8352 = vmatmul.mubr.bf16.gmra.mxu0 %v7878
    %v8353 = vpop.f32.mrf.mxu0
    %v8354 = vadd.f32 0.0, %v8353
    %v8355 = vpop.f32.mrf.mxu0
    %v8356 = vpop.f32.mrf.mxu0
    %v8357 = vadd.f32 0.0, %v8356
    %v8358 = vpop.f32.mrf.mxu0
    %8359 = vmatprep.mubr.bf16.mxu0 %v7882
    %8360 = vmatmul.mubr.bf16.gmra.mxu0 %v7881
    %v8361 = vpop.f32.mrf.mxu0
    %v8362 = vadd.f32 0.0, %v8361
    %v8363 = vpop.f32.mrf.mxu0
    %v8364 = vpop.f32.mrf.mxu0
    %v8365 = vadd.f32 0.0, %v8364
    %v8366 = vpop.f32.mrf.mxu0
    %8367 = vmatprep.mubr.bf16.mxu0 %v7885
    %8368 = vmatmul.mubr.bf16.gmra.mxu0 %v7884
    %v8369 = vpop.f32.mrf.mxu0
    %v8370 = vadd.f32 0.0, %v8369
    %v8371 = vpop.f32.mrf.mxu0
    %v8372 = vpop.f32.mrf.mxu0
    %v8373 = vadd.f32 0.0, %v8372
    %v8374 = vpop.f32.mrf.mxu0
    %8375 = vmatprep.mubr.bf16.mxu0 %v7888
    %8376 = vmatmul.mubr.bf16.gmra.mxu0 %v7887
    %v8377 = vpop.f32.mrf.mxu0
    %v8378 = vadd.f32 0.0, %v8377
    %v8379 = vpop.f32.mrf.mxu0
    %v8380 = vpop.f32.mrf.mxu0
    %v8381 = vadd.f32 0.0, %v8380
    %v8382 = vpop.f32.mrf.mxu0
    %8383 = vmatprep.mubr.bf16.mxu0 %v7891
    %8384 = vmatmul.mubr.bf16.gmra.mxu0 %v7890
    %v8385 = vpop.f32.mrf.mxu0
    %v8386 = vadd.f32 0.0, %v8385
    %v8387 = vpop.f32.mrf.mxu0
    %v8388 = vpop.f32.mrf.mxu0
    %v8389 = vadd.f32 0.0, %v8388
    %v8390 = vpop.f32.mrf.mxu0
    %8391 = vmatprep.mubr.bf16.mxu0 %v7894
    %8392 = vmatmul.mubr.bf16.gmra.mxu0 %v7893
    %v8393 = vpop.f32.mrf.mxu0
    %v8394 = vadd.f32 0.0, %v8393
    %v8395 = vpop.f32.mrf.mxu0
    %v8396 = vpop.f32.mrf.mxu0
    %v8397 = vadd.f32 0.0, %v8396
    %v8398 = vpop.f32.mrf.mxu0
    %8399 = vmatprep.mubr.bf16.mxu0 %v7897
    %8400 = vmatmul.mubr.bf16.gmra.mxu0 %v7896
    %v8401 = vpop.f32.mrf.mxu0
    %v8402 = vadd.f32 0.0, %v8401
    %v8403 = vpop.f32.mrf.mxu0
    %v8404 = vpop.f32.mrf.mxu0
    %v8405 = vadd.f32 0.0, %v8404
    %v8406 = vpop.f32.mrf.mxu0
    %8407 = vmatprep.mubr.bf16.mxu0 %v7900
    %8408 = vmatmul.mubr.bf16.gmra.mxu0 %v7899
    %v8409 = vpop.f32.mrf.mxu0
    %v8410 = vadd.f32 0.0, %v8409
    %v8411 = vpop.f32.mrf.mxu0
    %v8412 = vpop.f32.mrf.mxu0
    %v8413 = vadd.f32 0.0, %v8412
    %v8414 = vpop.f32.mrf.mxu0
    %8415 = vmatprep.mubr.bf16.mxu0 %v7903
    %8416 = vmatmul.mubr.bf16.gmra.mxu0 %v7902
    %v8417 = vpop.f32.mrf.mxu0
    %v8418 = vadd.f32 0.0, %v8417
    %v8419 = vpop.f32.mrf.mxu0
    %v8420 = vpop.f32.mrf.mxu0
    %v8421 = vadd.f32 0.0, %v8420
    %v8422 = vpop.f32.mrf.mxu0
    %8423 = vmatprep.mubr.bf16.mxu0 %v7906
    %8424 = vmatmul.mubr.bf16.gmra.mxu0 %v7905
    %v8425 = vpop.f32.mrf.mxu0
    %v8426 = vadd.f32 0.0, %v8425
    %v8427 = vpop.f32.mrf.mxu0
    %v8428 = vpop.f32.mrf.mxu0
    %v8429 = vadd.f32 0.0, %v8428
    %v8430 = vpop.f32.mrf.mxu0
    %8431 = vmatprep.mubr.bf16.mxu0 %v7909
    %8432 = vmatmul.mubr.bf16.gmra.mxu0 %v7908
    %v8433 = vpop.f32.mrf.mxu0
    %v8434 = vadd.f32 0.0, %v8433
    %v8435 = vpop.f32.mrf.mxu0
    %v8436 = vpop.f32.mrf.mxu0
    %v8437 = vadd.f32 0.0, %v8436
    %v8438 = vpop.f32.mrf.mxu0
    %8439 = vmatprep.mubr.bf16.mxu0 %v7912
    %8440 = vmatmul.mubr.bf16.gmra.mxu0 %v7911
    %v8441 = vpop.f32.mrf.mxu0
    %v8442 = vadd.f32 0.0, %v8441
    %v8443 = vpop.f32.mrf.mxu0
    %v8444 = vpop.f32.mrf.mxu0
    %v8445 = vadd.f32 0.0, %v8444
    %v8446 = vpop.f32.mrf.mxu0
    %8447 = vmatprep.mubr.bf16.mxu0 %v7915
    %8448 = vmatmul.mubr.bf16.gmra.mxu0 %v7914
    %v8449 = vpop.f32.mrf.mxu0
    %v8450 = vadd.f32 0.0, %v8449
    %v8451 = vpop.f32.mrf.mxu0
    %v8452 = vpop.f32.mrf.mxu0
    %v8453 = vadd.f32 0.0, %v8452
    %v8454 = vpop.f32.mrf.mxu0
    %8455 = vmatprep.mubr.bf16.mxu0 %v7918
    %8456 = vmatmul.mubr.bf16.gmra.mxu0 %v7917
    %v8457 = vpop.f32.mrf.mxu0
    %v8458 = vadd.f32 0.0, %v8457
    %v8459 = vpop.f32.mrf.mxu0
    %v8460 = vpop.f32.mrf.mxu0
    %v8461 = vadd.f32 0.0, %v8460
    %v8462 = vpop.f32.mrf.mxu0
    %8463 = vmatprep.mubr.bf16.mxu0 %v7921
    %8464 = vmatmul.mubr.bf16.gmra.mxu0 %v7920
    %v8465 = vpop.f32.mrf.mxu0
    %v8466 = vadd.f32 0.0, %v8465
    %v8467 = vpop.f32.mrf.mxu0
    %v8468 = vpop.f32.mrf.mxu0
    %v8469 = vadd.f32 0.0, %v8468
    %v8470 = vpop.f32.mrf.mxu0
    %8471 = vmatprep.mubr.bf16.mxu0 %v7924
    %8472 = vmatmul.mubr.bf16.gmra.mxu0 %v7923
    %v8473 = vpop.f32.mrf.mxu0
    %v8474 = vadd.f32 0.0, %v8473
    %v8475 = vpop.f32.mrf.mxu0
    %v8476 = vpop.f32.mrf.mxu0
    %v8477 = vadd.f32 0.0, %v8476
    %v8478 = vpop.f32.mrf.mxu0
    %8479 = vmatprep.mubr.bf16.mxu0 %v7927
    %8480 = vmatmul.mubr.bf16.gmra.mxu0 %v7926
    %v8481 = vpop.f32.mrf.mxu0
    %v8482 = vadd.f32 0.0, %v8481
    %v8483 = vpop.f32.mrf.mxu0
    %v8484 = vpop.f32.mrf.mxu0
    %v8485 = vadd.f32 0.0, %v8484
    %v8486 = vpop.f32.mrf.mxu0
    %8487 = vmatprep.mubr.bf16.mxu0 %v7930
    %8488 = vmatmul.mubr.bf16.gmra.mxu0 %v7929
    %v8489 = vpop.f32.mrf.mxu0
    %v8490 = vadd.f32 0.0, %v8489
    %v8491 = vpop.f32.mrf.mxu0
    %v8492 = vpop.f32.mrf.mxu0
    %v8493 = vadd.f32 0.0, %v8492
    %v8494 = vpop.f32.mrf.mxu0
    %8495 = vmatprep.mubr.bf16.mxu0 %v7933
    %8496 = vmatmul.mubr.bf16.gmra.mxu0 %v7932
    %v8497 = vpop.f32.mrf.mxu0
    %v8498 = vadd.f32 0.0, %v8497
    %v8499 = vpop.f32.mrf.mxu0
    %v8500 = vpop.f32.mrf.mxu0
    %v8501 = vadd.f32 0.0, %v8500
    %v8502 = vpop.f32.mrf.mxu0
    %8503 = vdwg.mxu0
    %8504 = vmatprep.subr.bf16.mxu0 0
    %8505 = vmatpush1.bf16.msra.mxu0 0
    %8506 = vmatprep.subr.bf16.mxu0 0
    %8507 = vmatpush1.bf16.msra.mxu0 0
    %8508 = vmatprep.subr.bf16.mxu0 0
    %8509 = vmatpush1.bf16.msra.mxu0 0
    %8510 = vmatprep.subr.bf16.mxu0 0
    %8511 = vmatpush1.bf16.msra.mxu0 0
    %8512 = vmatprep.subr.bf16.mxu0 0
    %8513 = vmatpush1.bf16.msra.mxu0 %v8098
    %8514 = vmatprep.subr.bf16.mxu0 0
    %8515 = vmatpush1.bf16.msra.mxu0 %v8097
    %8516 = vmatprep.subr.bf16.mxu0 0
    %8517 = vmatpush1.bf16.msra.mxu0 %v8096
    %8518 = vmatprep.subr.bf16.mxu0 0
    %8519 = vmatpush1.bf16.msra.mxu0 %v8095
    %8520 = vmatprep.subr.bf16.mxu0 0
    %8521 = vmatpush2.bf16.msra.mxu0 0
    %8522 = vmatprep.subr.bf16.mxu0 0
    %8523 = vmatpush2.bf16.msra.mxu0 0
    %8524 = vmatprep.subr.bf16.mxu0 0
    %8525 = vmatpush2.bf16.msra.mxu0 0
    %8526 = vmatprep.subr.bf16.mxu0 0
    %8527 = vmatpush2.bf16.msra.mxu0 0
    %8528 = vmatprep.subr.bf16.mxu0 0
    %8529 = vmatpush2.bf16.msra.mxu0 0
    %8530 = vmatprep.subr.bf16.mxu0 0
    %8531 = vmatpush2.bf16.msra.mxu0 0
    %8532 = vmatprep.subr.bf16.mxu0 0
    %8533 = vmatpush2.bf16.msra.mxu0 0
    %8534 = vmatprep.subr.bf16.mxu0 0
    %8535 = vmatpush2.bf16.msra.mxu0 0
    %8536 = vmatprep.mubr.bf16.mxu0 0
    %8537 = vmatmul.mubr.bf16.gmra.mxu0 %v8120
    %v8538 = vpop.f32.mrf.mxu0
    %v8539 = vadd.f32 %v8250, %v8538
    %v8540 = vpop.f32.mrf.mxu0
    %v8541 = vpop.f32.mrf.mxu0
    %v8542 = vadd.f32 %v8253, %v8541
    %v8543 = vpop.f32.mrf.mxu0
    %8544 = vmatprep.mubr.bf16.mxu0 0
    %8545 = vmatmul.mubr.bf16.gmra.mxu0 %v8123
    %v8546 = vpop.f32.mrf.mxu0
    %v8547 = vadd.f32 %v8258, %v8546
    %v8548 = vpop.f32.mrf.mxu0
    %v8549 = vpop.f32.mrf.mxu0
    %v8550 = vadd.f32 %v8261, %v8549
    %v8551 = vpop.f32.mrf.mxu0
    %8552 = vmatprep.mubr.bf16.mxu0 0
    %8553 = vmatmul.mubr.bf16.gmra.mxu0 %v8126
    %v8554 = vpop.f32.mrf.mxu0
    %v8555 = vadd.f32 %v8266, %v8554
    %v8556 = vpop.f32.mrf.mxu0
    %v8557 = vpop.f32.mrf.mxu0
    %v8558 = vadd.f32 %v8269, %v8557
    %v8559 = vpop.f32.mrf.mxu0
    %8560 = vmatprep.mubr.bf16.mxu0 0
    %8561 = vmatmul.mubr.bf16.gmra.mxu0 %v8129
    %v8562 = vpop.f32.mrf.mxu0
    %v8563 = vadd.f32 %v8274, %v8562
    %v8564 = vpop.f32.mrf.mxu0
    %v8565 = vpop.f32.mrf.mxu0
    %v8566 = vadd.f32 %v8277, %v8565
    %v8567 = vpop.f32.mrf.mxu0
    %8568 = vmatprep.mubr.bf16.mxu0 0
    %8569 = vmatmul.mubr.bf16.gmra.mxu0 %v8132
    %v8570 = vpop.f32.mrf.mxu0
    %v8571 = vadd.f32 %v8282, %v8570
    %v8572 = vpop.f32.mrf.mxu0
    %v8573 = vpop.f32.mrf.mxu0
    %v8574 = vadd.f32 %v8285, %v8573
    %v8575 = vpop.f32.mrf.mxu0
    %8576 = vmatprep.mubr.bf16.mxu0 0
    %8577 = vmatmul.mubr.bf16.gmra.mxu0 %v8135
    %v8578 = vpop.f32.mrf.mxu0
    %v8579 = vadd.f32 %v8290, %v8578
    %v8580 = vpop.f32.mrf.mxu0
    %v8581 = vpop.f32.mrf.mxu0
    %v8582 = vadd.f32 %v8293, %v8581
    %v8583 = vpop.f32.mrf.mxu0
    %8584 = vmatprep.mubr.bf16.mxu0 0
    %8585 = vmatmul.mubr.bf16.gmra.mxu0 %v8138
    %v8586 = vpop.f32.mrf.mxu0
    %v8587 = vadd.f32 %v8298, %v8586
    %v8588 = vpop.f32.mrf.mxu0
    %v8589 = vpop.f32.mrf.mxu0
    %v8590 = vadd.f32 %v8301, %v8589
    %v8591 = vpop.f32.mrf.mxu0
    %8592 = vmatprep.mubr.bf16.mxu0 0
    %8593 = vmatmul.mubr.bf16.gmra.mxu0 %v8141
    %v8594 = vpop.f32.mrf.mxu0
    %v8595 = vadd.f32 %v8306, %v8594
    %v8596 = vpop.f32.mrf.mxu0
    %v8597 = vpop.f32.mrf.mxu0
    %v8598 = vadd.f32 %v8309, %v8597
    %v8599 = vpop.f32.mrf.mxu0
    %8600 = vmatprep.mubr.bf16.mxu0 0
    %8601 = vmatmul.mubr.bf16.gmra.mxu0 %v8144
    %v8602 = vpop.f32.mrf.mxu0
    %v8603 = vadd.f32 %v8314, %v8602
    %v8604 = vpop.f32.mrf.mxu0
    %v8605 = vpop.f32.mrf.mxu0
    %v8606 = vadd.f32 %v8317, %v8605
    %v8607 = vpop.f32.mrf.mxu0
    %8608 = vmatprep.mubr.bf16.mxu0 0
    %8609 = vmatmul.mubr.bf16.gmra.mxu0 %v8147
    %v8610 = vpop.f32.mrf.mxu0
    %v8611 = vadd.f32 %v8322, %v8610
    %v8612 = vpop.f32.mrf.mxu0
    %v8613 = vpop.f32.mrf.mxu0
    %v8614 = vadd.f32 %v8325, %v8613
    %v8615 = vpop.f32.mrf.mxu0
    %8616 = vmatprep.mubr.bf16.mxu0 0
    %8617 = vmatmul.mubr.bf16.gmra.mxu0 %v8150
    %v8618 = vpop.f32.mrf.mxu0
    %v8619 = vadd.f32 %v8330, %v8618
    %v8620 = vpop.f32.mrf.mxu0
    %v8621 = vpop.f32.mrf.mxu0
    %v8622 = vadd.f32 %v8333, %v8621
    %v8623 = vpop.f32.mrf.mxu0
    %8624 = vmatprep.mubr.bf16.mxu0 0
    %8625 = vmatmul.mubr.bf16.gmra.mxu0 %v8153
    %v8626 = vpop.f32.mrf.mxu0
    %v8627 = vadd.f32 %v8338, %v8626
    %v8628 = vpop.f32.mrf.mxu0
    %v8629 = vpop.f32.mrf.mxu0
    %v8630 = vadd.f32 %v8341, %v8629
    %v8631 = vpop.f32.mrf.mxu0
    %8632 = vmatprep.mubr.bf16.mxu0 0
    %8633 = vmatmul.mubr.bf16.gmra.mxu0 %v8156
    %v8634 = vpop.f32.mrf.mxu0
    %v8635 = vadd.f32 %v8346, %v8634
    %v8636 = vpop.f32.mrf.mxu0
    %v8637 = vpop.f32.mrf.mxu0
    %v8638 = vadd.f32 %v8349, %v8637
    %v8639 = vpop.f32.mrf.mxu0
    %8640 = vmatprep.mubr.bf16.mxu0 0
    %8641 = vmatmul.mubr.bf16.gmra.mxu0 %v8159
    %v8642 = vpop.f32.mrf.mxu0
    %v8643 = vadd.f32 %v8354, %v8642
    %v8644 = vpop.f32.mrf.mxu0
    %v8645 = vpop.f32.mrf.mxu0
    %v8646 = vadd.f32 %v8357, %v8645
    %v8647 = vpop.f32.mrf.mxu0
    %8648 = vmatprep.mubr.bf16.mxu0 0
    %8649 = vmatmul.mubr.bf16.gmra.mxu0 %v8162
    %v8650 = vpop.f32.mrf.mxu0
    %v8651 = vadd.f32 %v8362, %v8650
    %v8652 = vpop.f32.mrf.mxu0
    %v8653 = vpop.f32.mrf.mxu0
    %v8654 = vadd.f32 %v8365, %v8653
    %v8655 = vpop.f32.mrf.mxu0
    %8656 = vmatprep.mubr.bf16.mxu0 0
    %8657 = vmatmul.mubr.bf16.gmra.mxu0 %v8165
    %v8658 = vpop.f32.mrf.mxu0
    %v8659 = vadd.f32 %v8370, %v8658
    %v8660 = vpop.f32.mrf.mxu0
    %v8661 = vpop.f32.mrf.mxu0
    %v8662 = vadd.f32 %v8373, %v8661
    %v8663 = vpop.f32.mrf.mxu0
    %8664 = vmatprep.mubr.bf16.mxu0 0
    %8665 = vmatmul.mubr.bf16.gmra.mxu0 %v8168
    %v8666 = vpop.f32.mrf.mxu0
    %v8667 = vadd.f32 %v8378, %v8666
    %v8668 = vpop.f32.mrf.mxu0
    %v8669 = vpop.f32.mrf.mxu0
    %v8670 = vadd.f32 %v8381, %v8669
    %v8671 = vpop.f32.mrf.mxu0
    %8672 = vmatprep.mubr.bf16.mxu0 0
    %8673 = vmatmul.mubr.bf16.gmra.mxu0 %v8171
    %v8674 = vpop.f32.mrf.mxu0
    %v8675 = vadd.f32 %v8386, %v8674
    %v8676 = vpop.f32.mrf.mxu0
    %v8677 = vpop.f32.mrf.mxu0
    %v8678 = vadd.f32 %v8389, %v8677
    %v8679 = vpop.f32.mrf.mxu0
    %8680 = vmatprep.mubr.bf16.mxu0 0
    %8681 = vmatmul.mubr.bf16.gmra.mxu0 %v8174
    %v8682 = vpop.f32.mrf.mxu0
    %v8683 = vadd.f32 %v8394, %v8682
    %v8684 = vpop.f32.mrf.mxu0
    %v8685 = vpop.f32.mrf.mxu0
    %v8686 = vadd.f32 %v8397, %v8685
    %v8687 = vpop.f32.mrf.mxu0
    %8688 = vmatprep.mubr.bf16.mxu0 0
    %8689 = vmatmul.mubr.bf16.gmra.mxu0 %v8177
    %v8690 = vpop.f32.mrf.mxu0
    %v8691 = vadd.f32 %v8402, %v8690
    %v8692 = vpop.f32.mrf.mxu0
    %v8693 = vpop.f32.mrf.mxu0
    %v8694 = vadd.f32 %v8405, %v8693
    %v8695 = vpop.f32.mrf.mxu0
    %8696 = vmatprep.mubr.bf16.mxu0 0
    %8697 = vmatmul.mubr.bf16.gmra.mxu0 %v8180
    %v8698 = vpop.f32.mrf.mxu0
    %v8699 = vadd.f32 %v8410, %v8698
    %v8700 = vpop.f32.mrf.mxu0
    %v8701 = vpop.f32.mrf.mxu0
    %v8702 = vadd.f32 %v8413, %v8701
    %v8703 = vpop.f32.mrf.mxu0
    %8704 = vmatprep.mubr.bf16.mxu0 0
    %8705 = vmatmul.mubr.bf16.gmra.mxu0 %v8183
    %v8706 = vpop.f32.mrf.mxu0
    %v8707 = vadd.f32 %v8418, %v8706
    %v8708 = vpop.f32.mrf.mxu0
    %v8709 = vpop.f32.mrf.mxu0
    %v8710 = vadd.f32 %v8421, %v8709
    %v8711 = vpop.f32.mrf.mxu0
    %8712 = vmatprep.mubr.bf16.mxu0 0
    %8713 = vmatmul.mubr.bf16.gmra.mxu0 %v8186
    %v8714 = vpop.f32.mrf.mxu0
    %v8715 = vadd.f32 %v8426, %v8714
    %v8716 = vpop.f32.mrf.mxu0
    %v8717 = vpop.f32.mrf.mxu0
    %v8718 = vadd.f32 %v8429, %v8717
    %v8719 = vpop.f32.mrf.mxu0
    %8720 = vmatprep.mubr.bf16.mxu0 0
    %8721 = vmatmul.mubr.bf16.gmra.mxu0 %v8189
    %v8722 = vpop.f32.mrf.mxu0
    %v8723 = vadd.f32 %v8434, %v8722
    %v8724 = vpop.f32.mrf.mxu0
    %v8725 = vpop.f32.mrf.mxu0
    %v8726 = vadd.f32 %v8437, %v8725
    %v8727 = vpop.f32.mrf.mxu0
    %8728 = vmatprep.mubr.bf16.mxu0 0
    %8729 = vmatmul.mubr.bf16.gmra.mxu0 %v8192
    %v8730 = vpop.f32.mrf.mxu0
    %v8731 = vadd.f32 %v8442, %v8730
    %v8732 = vpop.f32.mrf.mxu0
    %v8733 = vpop.f32.mrf.mxu0
    %v8734 = vadd.f32 %v8445, %v8733
    %v8735 = vpop.f32.mrf.mxu0
    %8736 = vmatprep.mubr.bf16.mxu0 0
    %8737 = vmatmul.mubr.bf16.gmra.mxu0 %v8195
    %v8738 = vpop.f32.mrf.mxu0
    %v8739 = vadd.f32 %v8450, %v8738
    %v8740 = vpop.f32.mrf.mxu0
    %v8741 = vpop.f32.mrf.mxu0
    %v8742 = vadd.f32 %v8453, %v8741
    %v8743 = vpop.f32.mrf.mxu0
    %8744 = vmatprep.mubr.bf16.mxu0 0
    %8745 = vmatmul.mubr.bf16.gmra.mxu0 %v8198
    %v8746 = vpop.f32.mrf.mxu0
    %v8747 = vadd.f32 %v8458, %v8746
    %v8748 = vpop.f32.mrf.mxu0
    %v8749 = vpop.f32.mrf.mxu0
    %v8750 = vadd.f32 %v8461, %v8749
    %v8751 = vpop.f32.mrf.mxu0
    %8752 = vmatprep.mubr.bf16.mxu0 0
    %8753 = vmatmul.mubr.bf16.gmra.mxu0 %v8201
    %v8754 = vpop.f32.mrf.mxu0
    %v8755 = vadd.f32 %v8466, %v8754
    %v8756 = vpop.f32.mrf.mxu0
    %v8757 = vpop.f32.mrf.mxu0
    %v8758 = vadd.f32 %v8469, %v8757
    %v8759 = vpop.f32.mrf.mxu0
    %8760 = vmatprep.mubr.bf16.mxu0 0
    %8761 = vmatmul.mubr.bf16.gmra.mxu0 %v8204
    %v8762 = vpop.f32.mrf.mxu0
    %v8763 = vadd.f32 %v8474, %v8762
    %v8764 = vpop.f32.mrf.mxu0
    %v8765 = vpop.f32.mrf.mxu0
    %v8766 = vadd.f32 %v8477, %v8765
    %v8767 = vpop.f32.mrf.mxu0
    %8768 = vmatprep.mubr.bf16.mxu0 0
    %8769 = vmatmul.mubr.bf16.gmra.mxu0 %v8207
    %v8770 = vpop.f32.mrf.mxu0
    %v8771 = vadd.f32 %v8482, %v8770
    %v8772 = vpop.f32.mrf.mxu0
    %v8773 = vpop.f32.mrf.mxu0
    %v8774 = vadd.f32 %v8485, %v8773
    %v8775 = vpop.f32.mrf.mxu0
    %8776 = vmatprep.mubr.bf16.mxu0 0
    %8777 = vmatmul.mubr.bf16.gmra.mxu0 %v8210
    %v8778 = vpop.f32.mrf.mxu0
    %v8779 = vadd.f32 %v8490, %v8778
    %v8780 = vpop.f32.mrf.mxu0
    %v8781 = vpop.f32.mrf.mxu0
    %v8782 = vadd.f32 %v8493, %v8781
    %v8783 = vpop.f32.mrf.mxu0
    %8784 = vmatprep.mubr.bf16.mxu0 0
    %8785 = vmatmul.mubr.bf16.gmra.mxu0 %v8213
    %v8786 = vpop.f32.mrf.mxu0
    %v8787 = vadd.f32 %v8498, %v8786
    %v8788 = vpop.f32.mrf.mxu0
    %v8789 = vpop.f32.mrf.mxu0
    %v8790 = vadd.f32 %v8501, %v8789
    %v8791 = vpop.f32.mrf.mxu0
    %8792 = vdwg.mxu0
    %v8793 = vadd.f32 %v7286, %v8539
    %v8794 = vadd.f32 %v7287, %v8542
    %v8795 = vadd.f32 %v7288, %v8547
    %v8796 = vadd.f32 %v7289, %v8550
    %v8797 = vadd.f32 %v7290, %v8555
    %v8798 = vadd.f32 %v7291, %v8558
    %v8799 = vadd.f32 %v7292, %v8563
    %v8800 = vadd.f32 %v7293, %v8566
    %v8801 = vadd.f32 %v7294, %v8571
    %v8802 = vadd.f32 %v7295, %v8574
    %v8803 = vadd.f32 %v7296, %v8579
    %v8804 = vadd.f32 %v7297, %v8582
    %v8805 = vadd.f32 %v7298, %v8587
    %v8806 = vadd.f32 %v7299, %v8590
    %v8807 = vadd.f32 %v7300, %v8595
    %v8808 = vadd.f32 %v7301, %v8598
    %v8809 = vadd.f32 %v7302, %v8603
    %v8810 = vadd.f32 %v7303, %v8606
    %v8811 = vadd.f32 %v7304, %v8611
    %v8812 = vadd.f32 %v7305, %v8614
    %v8813 = vadd.f32 %v7306, %v8619
    %v8814 = vadd.f32 %v7307, %v8622
    %v8815 = vadd.f32 %v7308, %v8627
    %v8816 = vadd.f32 %v7309, %v8630
    %v8817 = vadd.f32 %v7310, %v8635
    %v8818 = vadd.f32 %v7311, %v8638
    %v8819 = vadd.f32 %v7312, %v8643
    %v8820 = vadd.f32 %v7313, %v8646
    %v8821 = vadd.f32 %v7314, %v8651
    %v8822 = vadd.f32 %v7315, %v8654
    %v8823 = vadd.f32 %v7316, %v8659
    %v8824 = vadd.f32 %v7317, %v8662
    %v8825 = vadd.f32 %v7318, %v8667
    %v8826 = vadd.f32 %v7319, %v8670
    %v8827 = vadd.f32 %v7320, %v8675
    %v8828 = vadd.f32 %v7321, %v8678
    %v8829 = vadd.f32 %v7322, %v8683
    %v8830 = vadd.f32 %v7323, %v8686
    %v8831 = vadd.f32 %v7324, %v8691
    %v8832 = vadd.f32 %v7325, %v8694
    %v8833 = vadd.f32 %v7326, %v8699
    %v8834 = vadd.f32 %v7327, %v8702
    %v8835 = vadd.f32 %v7328, %v8707
    %v8836 = vadd.f32 %v7329, %v8710
    %v8837 = vadd.f32 %v7330, %v8715
    %v8838 = vadd.f32 %v7331, %v8718
    %v8839 = vadd.f32 %v7332, %v8723
    %v8840 = vadd.f32 %v7333, %v8726
    %v8841 = vadd.f32 %v7334, %v8731
    %v8842 = vadd.f32 %v7335, %v8734
    %v8843 = vadd.f32 %v7336, %v8739
    %v8844 = vadd.f32 %v7337, %v8742
    %v8845 = vadd.f32 %v7338, %v8747
    %v8846 = vadd.f32 %v7339, %v8750
    %v8847 = vadd.f32 %v7340, %v8755
    %v8848 = vadd.f32 %v7341, %v8758
    %v8849 = vadd.f32 %v7342, %v8763
    %v8850 = vadd.f32 %v7343, %v8766
    %v8851 = vadd.f32 %v7344, %v8771
    %v8852 = vadd.f32 %v7345, %v8774
    %v8853 = vadd.f32 %v7346, %v8779
    %v8854 = vadd.f32 %v7347, %v8782
    %v8855 = vadd.f32 %v7348, %v8787
    %v8856 = vadd.f32 %v7349, %v8790
    %v8857 = vld [vmem:[#allocation3 + $0xc0] sm:$0xff]
    %v8858 = vld [vmem:[#allocation3 + $0xc8] sm:$0xf]
    %v8859 = vld [vmem:[#allocation3 + $0xcc] sm:$0xff]
    %v8860 = vld [vmem:[#allocation3 + $0xd4] sm:$0xf]
    %v8861 = vld [vmem:[#allocation3 + $0xd8] sm:$0xff]
    %v8862 = vld [vmem:[#allocation3 + $0xe0] sm:$0xf]
    %v8863 = vld [vmem:[#allocation3 + $0xe4] sm:$0xff]
    %v8864 = vld [vmem:[#allocation3 + $0xec] sm:$0xf]
    %v8865 = vld [vmem:[#allocation3 + $0xf0] sm:$0xff]
    %v8866 = vld [vmem:[#allocation3 + $0xf8] sm:$0xf]
    %v8867 = vld [vmem:[#allocation3 + $0xfc] sm:$0xff]
    %v8868 = vld [vmem:[#allocation3 + $0x104] sm:$0xf]
    %v8869 = vld [vmem:[#allocation3 + $0x108] sm:$0xff]
    %v8870 = vld [vmem:[#allocation3 + $0x110] sm:$0xf]
    %v8871 = vld [vmem:[#allocation3 + $0x114] sm:$0xff]
    %v8872 = vld [vmem:[#allocation3 + $0x11c] sm:$0xf]
    %v8873 = vld [vmem:[#allocation3 + $0x120] sm:$0xff]
    %v8874 = vld [vmem:[#allocation3 + $0x128] sm:$0xf]
    %v8875 = vld [vmem:[#allocation3 + $0x12c] sm:$0xff]
    %v8876 = vld [vmem:[#allocation3 + $0x134] sm:$0xf]
    %v8877 = vld [vmem:[#allocation3 + $0x138] sm:$0xff]
    %v8878 = vld [vmem:[#allocation3 + $0x140] sm:$0xf]
    %v8879 = vld [vmem:[#allocation3 + $0x144] sm:$0xff]
    %v8880 = vld [vmem:[#allocation3 + $0x14c] sm:$0xf]
    %v8881 = vld [vmem:[#allocation3 + $0x150] sm:$0xff]
    %v8882 = vld [vmem:[#allocation3 + $0x158] sm:$0xf]
    %v8883 = vld [vmem:[#allocation3 + $0x15c] sm:$0xff]
    %v8884 = vld [vmem:[#allocation3 + $0x164] sm:$0xf]
    %v8885 = vld [vmem:[#allocation3 + $0x168] sm:$0xff]
    %v8886 = vld [vmem:[#allocation3 + $0x170] sm:$0xf]
    %v8887 = vld [vmem:[#allocation3 + $0x174] sm:$0xff]
    %v8888 = vld [vmem:[#allocation3 + $0x17c] sm:$0xf]
    %v8889 = vld [vmem:[#allocation3 + $0x180] sm:$0xff]
    %v8890 = vld [vmem:[#allocation3 + $0x188] sm:$0xf]
    %v8891 = vld [vmem:[#allocation3 + $0x18c] sm:$0xff]
    %v8892 = vld [vmem:[#allocation3 + $0x194] sm:$0xf]
    %v8893 = vld [vmem:[#allocation3 + $0x198] sm:$0xff]
    %v8894 = vld [vmem:[#allocation3 + $0x1a0] sm:$0xf]
    %v8895 = vld [vmem:[#allocation3 + $0x1a4] sm:$0xff]
    %v8896 = vld [vmem:[#allocation3 + $0x1ac] sm:$0xf]
    %v8897 = vld [vmem:[#allocation3 + $0x1b0] sm:$0xff]
    %v8898 = vld [vmem:[#allocation3 + $0x1b8] sm:$0xf]
    %v8899 = vld [vmem:[#allocation3 + $0x1bc] sm:$0xff]
    %v8900 = vld [vmem:[#allocation3 + $0x1c4] sm:$0xf]
    %v8901 = vld [vmem:[#allocation3 + $0x1c8] sm:$0xff]
    %v8902 = vld [vmem:[#allocation3 + $0x1d0] sm:$0xf]
    %v8903 = vld [vmem:[#allocation3 + $0x1d4] sm:$0xff]
    %v8904 = vld [vmem:[#allocation3 + $0x1dc] sm:$0xf]
    %v8905 = vld [vmem:[#allocation3 + $0x1e0] sm:$0xff]
    %v8906 = vld [vmem:[#allocation3 + $0x1e8] sm:$0xf]
    %v8907 = vld [vmem:[#allocation3 + $0x1ec] sm:$0xff]
    %v8908 = vld [vmem:[#allocation3 + $0x1f4] sm:$0xf]
    %v8909 = vld [vmem:[#allocation3 + $0x1f8] sm:$0xff]
    %v8910 = vld [vmem:[#allocation3 + $0x200] sm:$0xf]
    %v8911 = vld [vmem:[#allocation3 + $0x204] sm:$0xff]
    %v8912 = vld [vmem:[#allocation3 + $0x20c] sm:$0xf]
    %v8913 = vld [vmem:[#allocation3 + $0x210] sm:$0xff]
    %v8914 = vld [vmem:[#allocation3 + $0x218] sm:$0xf]
    %v8915 = vld [vmem:[#allocation3 + $0x21c] sm:$0xff]
    %v8916 = vld [vmem:[#allocation3 + $0x224] sm:$0xf]
    %v8917 = vld [vmem:[#allocation3 + $0x228] sm:$0xff]
    %v8918 = vld [vmem:[#allocation3 + $0x230] sm:$0xf]
    %v8919 = vld [vmem:[#allocation3 + $0x234] sm:$0xff]
    %v8920 = vld [vmem:[#allocation3 + $0x23c] sm:$0xf]
    %v8921 = vld [vmem:[#allocation3 + $0x240] sm:$0xff]
    %v8922 = vld [vmem:[#allocation3 + $0x248] sm:$0xf]
    %v8923 = vld [vmem:[#allocation3 + $0x24c] sm:$0xff]
    %v8924 = vld [vmem:[#allocation3 + $0x254] sm:$0xf]
    %v8925 = vld [vmem:[#allocation3 + $0x258] sm:$0xff]
    %v8926 = vld [vmem:[#allocation3 + $0x260] sm:$0xf]
    %v8927 = vld [vmem:[#allocation3 + $0x264] sm:$0xff]
    %v8928 = vld [vmem:[#allocation3 + $0x26c] sm:$0xf]
    %v8929 = vld [vmem:[#allocation3 + $0x270] sm:$0xff]
    %v8930 = vld [vmem:[#allocation3 + $0x278] sm:$0xf]
    %v8931 = vld [vmem:[#allocation3 + $0x27c] sm:$0xff]
    %v8932 = vld [vmem:[#allocation3 + $0x284] sm:$0xf]
    %v8933 = vld [vmem:[#allocation3 + $0x288] sm:$0xff]
    %v8934 = vld [vmem:[#allocation3 + $0x290] sm:$0xf]
    %v8935 = vld [vmem:[#allocation3 + $0x294] sm:$0xff]
    %v8936 = vld [vmem:[#allocation3 + $0x29c] sm:$0xf]
    %v8937 = vld [vmem:[#allocation3 + $0x2a0] sm:$0xff]
    %v8938 = vld [vmem:[#allocation3 + $0x2a8] sm:$0xf]
    %v8939 = vld [vmem:[#allocation3 + $0x2ac] sm:$0xff]
    %v8940 = vld [vmem:[#allocation3 + $0x2b4] sm:$0xf]
    %v8941 = vld [vmem:[#allocation3 + $0x2b8] sm:$0xff]
    %v8942 = vld [vmem:[#allocation3 + $0x2c0] sm:$0xf]
    %v8943 = vld [vmem:[#allocation3 + $0x2c4] sm:$0xff]
    %v8944 = vld [vmem:[#allocation3 + $0x2cc] sm:$0xf]
    %v8945 = vld [vmem:[#allocation3 + $0x2d0] sm:$0xff]
    %v8946 = vld [vmem:[#allocation3 + $0x2d8] sm:$0xf]
    %v8947 = vld [vmem:[#allocation3 + $0x2dc] sm:$0xff]
    %v8948 = vld [vmem:[#allocation3 + $0x2e4] sm:$0xf]
    %v8949 = vld [vmem:[#allocation3 + $0x2e8] sm:$0xff]
    %v8950 = vld [vmem:[#allocation3 + $0x2f0] sm:$0xf]
    %v8951 = vld [vmem:[#allocation3 + $0x2f4] sm:$0xff]
    %v8952 = vld [vmem:[#allocation3 + $0x2fc] sm:$0xf]
    %v8953 = vld [vmem:[#allocation3 + $0x300] sm:$0xff]
    %v8954 = vld [vmem:[#allocation3 + $0x308] sm:$0xf]
    %v8955 = vld [vmem:[#allocation3 + $0x30c] sm:$0xff]
    %v8956 = vld [vmem:[#allocation3 + $0x314] sm:$0xf]
    %v8957 = vld [vmem:[#allocation3 + $0x318] sm:$0xff]
    %v8958 = vld [vmem:[#allocation3 + $0x320] sm:$0xf]
    %v8959 = vld [vmem:[#allocation3 + $0x324] sm:$0xff]
    %v8960 = vld [vmem:[#allocation3 + $0x32c] sm:$0xf]
    %v8961 = vld [vmem:[#allocation3 + $0x330] sm:$0xff]
    %v8962 = vld [vmem:[#allocation3 + $0x338] sm:$0xf]
    %v8963 = vld [vmem:[#allocation3 + $0x33c] sm:$0xff]
    %v8964 = vld [vmem:[#allocation3 + $0x344] sm:$0xf]
    %v8965 = vld [vmem:[#allocation3 + $0x348] sm:$0xff]
    %v8966 = vld [vmem:[#allocation3 + $0x350] sm:$0xf]
    %v8967 = vld [vmem:[#allocation3 + $0x354] sm:$0xff]
    %v8968 = vld [vmem:[#allocation3 + $0x35c] sm:$0xf]
    %v8969 = vld [vmem:[#allocation3 + $0x360] sm:$0xff]
    %v8970 = vld [vmem:[#allocation3 + $0x368] sm:$0xf]
    %v8971 = vld [vmem:[#allocation3 + $0x36c] sm:$0xff]
    %v8972 = vld [vmem:[#allocation3 + $0x374] sm:$0xf]
    %v8973 = vld [vmem:[#allocation3 + $0x378] sm:$0xff]
    %v8974 = vld [vmem:[#allocation3 + $0x380] sm:$0xf]
    %v8975 = vld [vmem:[#allocation3 + $0x384] sm:$0xff]
    %v8976 = vld [vmem:[#allocation3 + $0x38c] sm:$0xf]
    %v8977 = vld [vmem:[#allocation3 + $0x390] sm:$0xff]
    %v8978 = vld [vmem:[#allocation3 + $0x398] sm:$0xf]
    %v8979 = vld [vmem:[#allocation3 + $0x39c] sm:$0xff]
    %v8980 = vld [vmem:[#allocation3 + $0x3a4] sm:$0xf]
    %v8981 = vld [vmem:[#allocation3 + $0x3a8] sm:$0xff]
    %v8982 = vld [vmem:[#allocation3 + $0x3b0] sm:$0xf]
    %v8983 = vld [vmem:[#allocation3 + $0x3b4] sm:$0xff]
    %v8984 = vld [vmem:[#allocation3 + $0x3bc] sm:$0xf]
    %s8985 = scalar_lea.vmem [#allocation4], 640
    %v8986 = vld [vmem:[%s8985] sm:$0xf]
    %v8987 = vld [vmem:[%s8985 + $0x4] sm:$0xf]
    %v8988 = vld [vmem:[%s8985 + $0x8] sm:$0xf]
    %v8989 = vld [vmem:[%s8985 + $0xc] sm:$0xf]
    %v8990 = vld [vmem:[%s8985 + $0x10] sm:$0xf]
    %v8991 = vld [vmem:[%s8985 + $0x14] sm:$0xf]
    %v8992 = vld [vmem:[%s8985 + $0x18] sm:$0xf]
    %v8993 = vld [vmem:[%s8985 + $0x1c] sm:$0xf]
    %v8994 = vld [vmem:[%s8985 + $0x20] sm:$0xf]
    %v8995 = vld [vmem:[%s8985 + $0x24] sm:$0xf]
    %v8996 = vld [vmem:[%s8985 + $0x28] sm:$0xf]
    %v8997 = vld [vmem:[%s8985 + $0x2c] sm:$0xf]
    %v8998 = vld [vmem:[%s8985 + $0x30] sm:$0xf]
    %v8999 = vld [vmem:[%s8985 + $0x34] sm:$0xf]
    %v9000 = vld [vmem:[%s8985 + $0x38] sm:$0xf]
    %v9001 = vld [vmem:[%s8985 + $0x3c] sm:$0xf]
    %v9002 = vld [vmem:[%s8985 + $0x40] sm:$0xf]
    %v9003 = vld [vmem:[%s8985 + $0x44] sm:$0xf]
    %v9004 = vld [vmem:[%s8985 + $0x48] sm:$0xf]
    %v9005 = vld [vmem:[%s8985 + $0x4c] sm:$0xf]
    %v9006 = vld [vmem:[%s8985 + $0x50] sm:$0xf]
    %v9007 = vld [vmem:[%s8985 + $0x54] sm:$0xf]
    %v9008 = vld [vmem:[%s8985 + $0x58] sm:$0xf]
    %v9009 = vld [vmem:[%s8985 + $0x5c] sm:$0xf]
    %v9010 = vld [vmem:[%s8985 + $0x60] sm:$0xf]
    %v9011 = vld [vmem:[%s8985 + $0x64] sm:$0xf]
    %v9012 = vld [vmem:[%s8985 + $0x68] sm:$0xf]
    %v9013 = vld [vmem:[%s8985 + $0x6c] sm:$0xf]
    %v9014 = vld [vmem:[%s8985 + $0x70] sm:$0xf]
    %v9015 = vld [vmem:[%s8985 + $0x74] sm:$0xf]
    %v9016 = vld [vmem:[%s8985 + $0x78] sm:$0xf]
    %v9017 = vld [vmem:[%s8985 + $0x7c] sm:$0xf]
    %v9018 = vld [vmem:[%s8985 + $0x80] sm:$0xf]
    %v9019 = vld [vmem:[%s8985 + $0x84] sm:$0xf]
    %v9020 = vld [vmem:[%s8985 + $0x88] sm:$0xf]
    %v9021 = vld [vmem:[%s8985 + $0x8c] sm:$0xf]
    %v9022 = vld [vmem:[%s8985 + $0x90] sm:$0xf]
    %v9023 = vld [vmem:[%s8985 + $0x94] sm:$0xf]
    %v9024 = vld [vmem:[%s8985 + $0x98] sm:$0xf]
    %v9025 = vld [vmem:[%s8985 + $0x9c] sm:$0xf]
    %v9154 = vunpack.c.l.b16 %v8857
    %v9155 = vunpack.c.h.b16 %v8857
    %v9156 = vunpack.c.l.b16 %v8858
    %v9157 = vunpack.c.l.b16 %v8859
    %v9158 = vunpack.c.h.b16 %v8859
    %v9159 = vunpack.c.l.b16 %v8860
    %v9160 = vunpack.c.l.b16 %v8861
    %v9161 = vunpack.c.h.b16 %v8861
    %v9162 = vunpack.c.l.b16 %v8862
    %v9163 = vunpack.c.l.b16 %v8863
    %v9164 = vunpack.c.h.b16 %v8863
    %v9165 = vunpack.c.l.b16 %v8864
    %v9166 = vunpack.c.l.b16 %v8865
    %v9167 = vunpack.c.h.b16 %v8865
    %v9168 = vunpack.c.l.b16 %v8866
    %v9169 = vunpack.c.l.b16 %v8867
    %v9170 = vunpack.c.h.b16 %v8867
    %v9171 = vunpack.c.l.b16 %v8868
    %v9172 = vunpack.c.l.b16 %v8869
    %v9173 = vunpack.c.h.b16 %v8869
    %v9174 = vunpack.c.l.b16 %v8870
    %v9175 = vunpack.c.l.b16 %v8871
    %v9176 = vunpack.c.h.b16 %v8871
    %v9177 = vunpack.c.l.b16 %v8872
    %v9178 = vunpack.c.l.b16 %v8873
    %v9179 = vunpack.c.h.b16 %v8873
    %v9180 = vunpack.c.l.b16 %v8874
    %v9181 = vunpack.c.l.b16 %v8875
    %v9182 = vunpack.c.h.b16 %v8875
    %v9183 = vunpack.c.l.b16 %v8876
    %v9184 = vunpack.c.l.b16 %v8877
    %v9185 = vunpack.c.h.b16 %v8877
    %v9186 = vunpack.c.l.b16 %v8878
    %v9187 = vunpack.c.l.b16 %v8879
    %v9188 = vunpack.c.h.b16 %v8879
    %v9189 = vunpack.c.l.b16 %v8880
    %v9190 = vunpack.c.l.b16 %v8881
    %v9191 = vunpack.c.h.b16 %v8881
    %v9192 = vunpack.c.l.b16 %v8882
    %v9193 = vunpack.c.l.b16 %v8883
    %v9194 = vunpack.c.h.b16 %v8883
    %v9195 = vunpack.c.l.b16 %v8884
    %v9196 = vunpack.c.l.b16 %v8885
    %v9197 = vunpack.c.h.b16 %v8885
    %v9198 = vunpack.c.l.b16 %v8886
    %v9199 = vunpack.c.l.b16 %v8887
    %v9200 = vunpack.c.h.b16 %v8887
    %v9201 = vunpack.c.l.b16 %v8888
    %v9202 = vunpack.c.l.b16 %v8889
    %v9203 = vunpack.c.h.b16 %v8889
    %v9204 = vunpack.c.l.b16 %v8890
    %v9205 = vunpack.c.l.b16 %v8891
    %v9206 = vunpack.c.h.b16 %v8891
    %v9207 = vunpack.c.l.b16 %v8892
    %v9208 = vunpack.c.l.b16 %v8893
    %v9209 = vunpack.c.h.b16 %v8893
    %v9210 = vunpack.c.l.b16 %v8894
    %v9211 = vunpack.c.l.b16 %v8895
    %v9212 = vunpack.c.h.b16 %v8895
    %v9213 = vunpack.c.l.b16 %v8896
    %v9214 = vunpack.c.l.b16 %v8897
    %v9215 = vunpack.c.h.b16 %v8897
    %v9216 = vunpack.c.l.b16 %v8898
    %v9217 = vunpack.c.l.b16 %v8899
    %v9218 = vunpack.c.h.b16 %v8899
    %v9219 = vunpack.c.l.b16 %v8900
    %v9220 = vunpack.c.l.b16 %v8901
    %v9221 = vunpack.c.h.b16 %v8901
    %v9222 = vunpack.c.l.b16 %v8902
    %v9223 = vunpack.c.l.b16 %v8903
    %v9224 = vunpack.c.h.b16 %v8903
    %v9225 = vunpack.c.l.b16 %v8904
    %v9226 = vunpack.c.l.b16 %v8905
    %v9227 = vunpack.c.h.b16 %v8905
    %v9228 = vunpack.c.l.b16 %v8906
    %v9229 = vunpack.c.l.b16 %v8907
    %v9230 = vunpack.c.h.b16 %v8907
    %v9231 = vunpack.c.l.b16 %v8908
    %v9232 = vunpack.c.l.b16 %v8909
    %v9233 = vunpack.c.h.b16 %v8909
    %v9234 = vunpack.c.l.b16 %v8910
    %v9235 = vunpack.c.l.b16 %v8911
    %v9236 = vunpack.c.h.b16 %v8911
    %v9237 = vunpack.c.l.b16 %v8912
    %v9238 = vunpack.c.l.b16 %v8913
    %v9239 = vunpack.c.h.b16 %v8913
    %v9240 = vunpack.c.l.b16 %v8914
    %v9241 = vunpack.c.l.b16 %v8915
    %v9242 = vunpack.c.h.b16 %v8915
    %v9243 = vunpack.c.l.b16 %v8916
    %v9244 = vunpack.c.l.b16 %v8917
    %v9245 = vunpack.c.h.b16 %v8917
    %v9246 = vunpack.c.l.b16 %v8918
    %v9247 = vunpack.c.l.b16 %v8919
    %v9248 = vunpack.c.h.b16 %v8919
    %v9249 = vunpack.c.l.b16 %v8920
    %v9250 = vunpack.c.l.b16 %v8921
    %v9251 = vunpack.c.h.b16 %v8921
    %v9252 = vunpack.c.l.b16 %v8922
    %v9253 = vunpack.c.l.b16 %v8923
    %v9254 = vunpack.c.h.b16 %v8923
    %v9255 = vunpack.c.l.b16 %v8924
    %v9256 = vunpack.c.l.b16 %v8925
    %v9257 = vunpack.c.h.b16 %v8925
    %v9258 = vunpack.c.l.b16 %v8926
    %v9259 = vunpack.c.l.b16 %v8927
    %v9260 = vunpack.c.h.b16 %v8927
    %v9261 = vunpack.c.l.b16 %v8928
    %v9262 = vunpack.c.l.b16 %v8929
    %v9263 = vunpack.c.h.b16 %v8929
    %v9264 = vunpack.c.l.b16 %v8930
    %v9265 = vunpack.c.l.b16 %v8931
    %v9266 = vunpack.c.h.b16 %v8931
    %v9267 = vunpack.c.l.b16 %v8932
    %v9268 = vunpack.c.l.b16 %v8933
    %v9269 = vunpack.c.h.b16 %v8933
    %v9270 = vunpack.c.l.b16 %v8934
    %v9271 = vunpack.c.l.b16 %v8935
    %v9272 = vunpack.c.h.b16 %v8935
    %v9273 = vunpack.c.l.b16 %v8936
    %v9274 = vunpack.c.l.b16 %v8937
    %v9275 = vunpack.c.h.b16 %v8937
    %v9276 = vunpack.c.l.b16 %v8938
    %v9277 = vunpack.c.l.b16 %v8939
    %v9278 = vunpack.c.h.b16 %v8939
    %v9279 = vunpack.c.l.b16 %v8940
    %v9280 = vunpack.c.l.b16 %v8941
    %v9281 = vunpack.c.h.b16 %v8941
    %v9282 = vunpack.c.l.b16 %v8942
    %v9283 = vunpack.c.l.b16 %v8943
    %v9284 = vunpack.c.h.b16 %v8943
    %v9285 = vunpack.c.l.b16 %v8944
    %v9286 = vunpack.c.l.b16 %v8945
    %v9287 = vunpack.c.h.b16 %v8945
    %v9288 = vunpack.c.l.b16 %v8946
    %v9289 = vunpack.c.l.b16 %v8947
    %v9290 = vunpack.c.h.b16 %v8947
    %v9291 = vunpack.c.l.b16 %v8948
    %v9292 = vunpack.c.l.b16 %v8949
    %v9293 = vunpack.c.h.b16 %v8949
    %v9294 = vunpack.c.l.b16 %v8950
    %v9295 = vunpack.c.l.b16 %v8951
    %v9296 = vunpack.c.h.b16 %v8951
    %v9297 = vunpack.c.l.b16 %v8952
    %v9298 = vunpack.c.l.b16 %v8953
    %v9299 = vunpack.c.h.b16 %v8953
    %v9300 = vunpack.c.l.b16 %v8954
    %v9301 = vunpack.c.l.b16 %v8955
    %v9302 = vunpack.c.h.b16 %v8955
    %v9303 = vunpack.c.l.b16 %v8956
    %v9304 = vunpack.c.l.b16 %v8957
    %v9305 = vunpack.c.h.b16 %v8957
    %v9306 = vunpack.c.l.b16 %v8958
    %v9307 = vunpack.c.l.b16 %v8959
    %v9308 = vunpack.c.h.b16 %v8959
    %v9309 = vunpack.c.l.b16 %v8960
    %v9310 = vunpack.c.l.b16 %v8961
    %v9311 = vunpack.c.h.b16 %v8961
    %v9312 = vunpack.c.l.b16 %v8962
    %v9313 = vunpack.c.l.b16 %v8963
    %v9314 = vunpack.c.h.b16 %v8963
    %v9315 = vunpack.c.l.b16 %v8964
    %v9316 = vunpack.c.l.b16 %v8965
    %v9317 = vunpack.c.h.b16 %v8965
    %v9318 = vunpack.c.l.b16 %v8966
    %v9319 = vunpack.c.l.b16 %v8967
    %v9320 = vunpack.c.h.b16 %v8967
    %v9321 = vunpack.c.l.b16 %v8968
    %v9322 = vunpack.c.l.b16 %v8969
    %v9323 = vunpack.c.h.b16 %v8969
    %v9324 = vunpack.c.l.b16 %v8970
    %v9325 = vunpack.c.l.b16 %v8971
    %v9326 = vunpack.c.h.b16 %v8971
    %v9327 = vunpack.c.l.b16 %v8972
    %v9328 = vunpack.c.l.b16 %v8973
    %v9329 = vunpack.c.h.b16 %v8973
    %v9330 = vunpack.c.l.b16 %v8974
    %v9331 = vunpack.c.l.b16 %v8975
    %v9332 = vunpack.c.h.b16 %v8975
    %v9333 = vunpack.c.l.b16 %v8976
    %v9334 = vunpack.c.l.b16 %v8977
    %v9335 = vunpack.c.h.b16 %v8977
    %v9336 = vunpack.c.l.b16 %v8978
    %v9337 = vunpack.c.l.b16 %v8979
    %v9338 = vunpack.c.h.b16 %v8979
    %v9339 = vunpack.c.l.b16 %v8980
    %v9340 = vunpack.c.l.b16 %v8981
    %v9341 = vunpack.c.h.b16 %v8981
    %v9342 = vunpack.c.l.b16 %v8982
    %v9343 = vunpack.c.l.b16 %v8983
    %v9344 = vunpack.c.h.b16 %v8983
    %v9345 = vunpack.c.l.b16 %v8984
    %v9346 = vpack.c.b16 %v9157, %v9154
    %v9347 = vpack.c.b16 %v9158, %v9155
    %v9348 = vpack.c.b16 %v9159, %v9156
    %v9349 = vpack.c.b16 %v9163, %v9160
    %v9350 = vpack.c.b16 %v9164, %v9161
    %v9351 = vpack.c.b16 %v9165, %v9162
    %v9352 = vpack.c.b16 %v9169, %v9166
    %v9353 = vpack.c.b16 %v9170, %v9167
    %v9354 = vpack.c.b16 %v9171, %v9168
    %v9355 = vpack.c.b16 %v9175, %v9172
    %v9356 = vpack.c.b16 %v9176, %v9173
    %v9357 = vpack.c.b16 %v9177, %v9174
    %v9358 = vpack.c.b16 %v9181, %v9178
    %v9359 = vpack.c.b16 %v9182, %v9179
    %v9360 = vpack.c.b16 %v9183, %v9180
    %v9361 = vpack.c.b16 %v9187, %v9184
    %v9362 = vpack.c.b16 %v9188, %v9185
    %v9363 = vpack.c.b16 %v9189, %v9186
    %v9364 = vpack.c.b16 %v9193, %v9190
    %v9365 = vpack.c.b16 %v9194, %v9191
    %v9366 = vpack.c.b16 %v9195, %v9192
    %v9367 = vpack.c.b16 %v9199, %v9196
    %v9368 = vpack.c.b16 %v9200, %v9197
    %v9369 = vpack.c.b16 %v9201, %v9198
    %v9370 = vpack.c.b16 %v9205, %v9202
    %v9371 = vpack.c.b16 %v9206, %v9203
    %v9372 = vpack.c.b16 %v9207, %v9204
    %v9373 = vpack.c.b16 %v9211, %v9208
    %v9374 = vpack.c.b16 %v9212, %v9209
    %v9375 = vpack.c.b16 %v9213, %v9210
    %v9376 = vpack.c.b16 %v9217, %v9214
    %v9377 = vpack.c.b16 %v9218, %v9215
    %v9378 = vpack.c.b16 %v9219, %v9216
    %v9379 = vpack.c.b16 %v9223, %v9220
    %v9380 = vpack.c.b16 %v9224, %v9221
    %v9381 = vpack.c.b16 %v9225, %v9222
    %v9382 = vpack.c.b16 %v9229, %v9226
    %v9383 = vpack.c.b16 %v9230, %v9227
    %v9384 = vpack.c.b16 %v9231, %v9228
    %v9385 = vpack.c.b16 %v9235, %v9232
    %v9386 = vpack.c.b16 %v9236, %v9233
    %v9387 = vpack.c.b16 %v9237, %v9234
    %v9388 = vpack.c.b16 %v9241, %v9238
    %v9389 = vpack.c.b16 %v9242, %v9239
    %v9390 = vpack.c.b16 %v9243, %v9240
    %v9391 = vpack.c.b16 %v9247, %v9244
    %v9392 = vpack.c.b16 %v9248, %v9245
    %v9393 = vpack.c.b16 %v9249, %v9246
    %v9394 = vpack.c.b16 %v9253, %v9250
    %v9395 = vpack.c.b16 %v9254, %v9251
    %v9396 = vpack.c.b16 %v9255, %v9252
    %v9397 = vpack.c.b16 %v9259, %v9256
    %v9398 = vpack.c.b16 %v9260, %v9257
    %v9399 = vpack.c.b16 %v9261, %v9258
    %v9400 = vpack.c.b16 %v9265, %v9262
    %v9401 = vpack.c.b16 %v9266, %v9263
    %v9402 = vpack.c.b16 %v9267, %v9264
    %v9403 = vpack.c.b16 %v9271, %v9268
    %v9404 = vpack.c.b16 %v9272, %v9269
    %v9405 = vpack.c.b16 %v9273, %v9270
    %v9406 = vpack.c.b16 %v9277, %v9274
    %v9407 = vpack.c.b16 %v9278, %v9275
    %v9408 = vpack.c.b16 %v9279, %v9276
    %v9409 = vpack.c.b16 %v9283, %v9280
    %v9410 = vpack.c.b16 %v9284, %v9281
    %v9411 = vpack.c.b16 %v9285, %v9282
    %v9412 = vpack.c.b16 %v9289, %v9286
    %v9413 = vpack.c.b16 %v9290, %v9287
    %v9414 = vpack.c.b16 %v9291, %v9288
    %v9415 = vpack.c.b16 %v9295, %v9292
    %v9416 = vpack.c.b16 %v9296, %v9293
    %v9417 = vpack.c.b16 %v9297, %v9294
    %v9418 = vpack.c.b16 %v9301, %v9298
    %v9419 = vpack.c.b16 %v9302, %v9299
    %v9420 = vpack.c.b16 %v9303, %v9300
    %v9421 = vpack.c.b16 %v9307, %v9304
    %v9422 = vpack.c.b16 %v9308, %v9305
    %v9423 = vpack.c.b16 %v9309, %v9306
    %v9424 = vpack.c.b16 %v9313, %v9310
    %v9425 = vpack.c.b16 %v9314, %v9311
    %v9426 = vpack.c.b16 %v9315, %v9312
    %v9427 = vpack.c.b16 %v9319, %v9316
    %v9428 = vpack.c.b16 %v9320, %v9317
    %v9429 = vpack.c.b16 %v9321, %v9318
    %v9430 = vpack.c.b16 %v9325, %v9322
    %v9431 = vpack.c.b16 %v9326, %v9323
    %v9432 = vpack.c.b16 %v9327, %v9324
    %v9433 = vpack.c.b16 %v9331, %v9328
    %v9434 = vpack.c.b16 %v9332, %v9329
    %v9435 = vpack.c.b16 %v9333, %v9330
    %v9436 = vpack.c.b16 %v9337, %v9334
    %v9437 = vpack.c.b16 %v9338, %v9335
    %v9438 = vpack.c.b16 %v9339, %v9336
    %v9439 = vpack.c.b16 %v9343, %v9340
    %v9440 = vpack.c.b16 %v9344, %v9341
    %v9441 = vpack.c.b16 %v9345, %v9342
    %v9546 = vunpack.c.l.b16 %v8986
    %v9547 = vunpack.c.l.b16 %v8987
    %v9548 = vunpack.c.l.b16 %v8988
    %v9549 = vunpack.c.l.b16 %v8989
    %v9550 = vunpack.c.l.b16 %v8990
    %v9551 = vunpack.c.l.b16 %v8991
    %v9552 = vunpack.c.l.b16 %v8992
    %v9553 = vunpack.c.l.b16 %v8993
    %v9554 = vunpack.c.l.b16 %v8994
    %v9555 = vunpack.c.l.b16 %v8995
    %v9556 = vunpack.c.l.b16 %v8996
    %v9557 = vunpack.c.l.b16 %v8997
    %v9558 = vunpack.c.l.b16 %v8998
    %v9559 = vunpack.c.l.b16 %v8999
    %v9560 = vunpack.c.l.b16 %v9000
    %v9561 = vunpack.c.l.b16 %v9001
    %v9562 = vunpack.c.l.b16 %v9002
    %v9563 = vunpack.c.l.b16 %v9003
    %v9564 = vunpack.c.l.b16 %v9004
    %v9565 = vunpack.c.l.b16 %v9005
    %v9566 = vunpack.c.l.b16 %v9006
    %v9567 = vunpack.c.l.b16 %v9007
    %v9568 = vunpack.c.l.b16 %v9008
    %v9569 = vunpack.c.l.b16 %v9009
    %v9570 = vunpack.c.l.b16 %v9010
    %v9571 = vunpack.c.l.b16 %v9011
    %v9572 = vunpack.c.l.b16 %v9012
    %v9573 = vunpack.c.l.b16 %v9013
    %v9574 = vunpack.c.l.b16 %v9014
    %v9575 = vunpack.c.l.b16 %v9015
    %v9576 = vunpack.c.l.b16 %v9016
    %v9577 = vunpack.c.l.b16 %v9017
    %v9578 = vunpack.c.l.b16 %v9018
    %v9579 = vunpack.c.l.b16 %v9019
    %v9580 = vunpack.c.l.b16 %v9020
    %v9581 = vunpack.c.l.b16 %v9021
    %v9582 = vunpack.c.l.b16 %v9022
    %v9583 = vunpack.c.l.b16 %v9023
    %v9584 = vunpack.c.l.b16 %v9024
    %v9585 = vunpack.c.l.b16 %v9025
    %v9586 = vpack.c.b16 %v9547, %v9546
    %v9587 = vpack.c.b16 %v9549, %v9548
    %v9588 = vpack.c.b16 %v9551, %v9550
    %v9589 = vpack.c.b16 %v9553, %v9552
    %v9590 = vpack.c.b16 %v9555, %v9554
    %v9591 = vpack.c.b16 %v9557, %v9556
    %v9592 = vpack.c.b16 %v9559, %v9558
    %v9593 = vpack.c.b16 %v9561, %v9560
    %v9594 = vpack.c.b16 %v9563, %v9562
    %v9595 = vpack.c.b16 %v9565, %v9564
    %v9596 = vpack.c.b16 %v9567, %v9566
    %v9597 = vpack.c.b16 %v9569, %v9568
    %v9598 = vpack.c.b16 %v9571, %v9570
    %v9599 = vpack.c.b16 %v9573, %v9572
    %v9600 = vpack.c.b16 %v9575, %v9574
    %v9601 = vpack.c.b16 %v9577, %v9576
    %v9602 = vpack.c.b16 %v9579, %v9578
    %v9603 = vpack.c.b16 %v9581, %v9580
    %v9604 = vpack.c.b16 %v9583, %v9582
    %v9605 = vpack.c.b16 %v9585, %v9584
    %v9627 = vsel %vm42, %v9348, 0
    %v9630 = vsel %vm42, %v9351, 0
    %v9633 = vsel %vm42, %v9354, 0
    %v9636 = vsel %vm42, %v9357, 0
    %v9639 = vsel %vm42, %v9360, 0
    %v9642 = vsel %vm42, %v9363, 0
    %v9645 = vsel %vm42, %v9366, 0
    %v9648 = vsel %vm42, %v9369, 0
    %v9651 = vsel %vm42, %v9372, 0
    %v9654 = vsel %vm42, %v9375, 0
    %v9657 = vsel %vm42, %v9378, 0
    %v9660 = vsel %vm42, %v9381, 0
    %v9663 = vsel %vm42, %v9384, 0
    %v9666 = vsel %vm42, %v9387, 0
    %v9669 = vsel %vm42, %v9390, 0
    %v9672 = vsel %vm42, %v9393, 0
    %v9675 = vsel %vm42, %v9396, 0
    %v9678 = vsel %vm42, %v9399, 0
    %v9681 = vsel %vm42, %v9402, 0
    %v9684 = vsel %vm42, %v9405, 0
    %v9687 = vsel %vm42, %v9408, 0
    %v9690 = vsel %vm42, %v9411, 0
    %v9693 = vsel %vm42, %v9414, 0
    %v9696 = vsel %vm42, %v9417, 0
    %v9699 = vsel %vm42, %v9420, 0
    %v9702 = vsel %vm42, %v9423, 0
    %v9705 = vsel %vm42, %v9426, 0
    %v9708 = vsel %vm42, %v9429, 0
    %v9711 = vsel %vm42, %v9432, 0
    %v9714 = vsel %vm42, %v9435, 0
    %v9717 = vsel %vm42, %v9438, 0
    %v9720 = vsel %vm42, %v9441, 0
    %9722 = vmatprep.subr.bf16.mxu0 0
    %9723 = vmatpush1.bf16.msra.mxu0 %v9593
    %9724 = vmatprep.subr.bf16.mxu0 0
    %9725 = vmatpush1.bf16.msra.mxu0 %v9592
    %9726 = vmatprep.subr.bf16.mxu0 0
    %9727 = vmatpush1.bf16.msra.mxu0 %v9591
    %9728 = vmatprep.subr.bf16.mxu0 0
    %9729 = vmatpush1.bf16.msra.mxu0 %v9590
    %9730 = vmatprep.subr.bf16.mxu0 0
    %9731 = vmatpush1.bf16.msra.mxu0 %v9589
    %9732 = vmatprep.subr.bf16.mxu0 0
    %9733 = vmatpush1.bf16.msra.mxu0 %v9588
    %9734 = vmatprep.subr.bf16.mxu0 0
    %9735 = vmatpush1.bf16.msra.mxu0 %v9587
    %9736 = vmatprep.subr.bf16.mxu0 0
    %9737 = vmatpush1.bf16.msra.mxu0 %v9586
    %9738 = vmatprep.subr.bf16.mxu0 0
    %9739 = vmatpush2.bf16.msra.mxu0 %v9601
    %9740 = vmatprep.subr.bf16.mxu0 0
    %9741 = vmatpush2.bf16.msra.mxu0 %v9600
    %9742 = vmatprep.subr.bf16.mxu0 0
    %9743 = vmatpush2.bf16.msra.mxu0 %v9599
    %9744 = vmatprep.subr.bf16.mxu0 0
    %9745 = vmatpush2.bf16.msra.mxu0 %v9598
    %9746 = vmatprep.subr.bf16.mxu0 0
    %9747 = vmatpush2.bf16.msra.mxu0 %v9597
    %9748 = vmatprep.subr.bf16.mxu0 0
    %9749 = vmatpush2.bf16.msra.mxu0 %v9596
    %9750 = vmatprep.subr.bf16.mxu0 0
    %9751 = vmatpush2.bf16.msra.mxu0 %v9595
    %9752 = vmatprep.subr.bf16.mxu0 0
    %9753 = vmatpush2.bf16.msra.mxu0 %v9594
    %9754 = vmatprep.mubr.bf16.mxu0 %v9347
    %9755 = vmatmul.mubr.bf16.gmra.mxu0 %v9346
    %v9756 = vpop.f32.mrf.mxu0
    %v9757 = vadd.f32 0.0, %v9756
    %v9758 = vpop.f32.mrf.mxu0
    %v9759 = vpop.f32.mrf.mxu0
    %v9760 = vadd.f32 0.0, %v9759
    %v9761 = vpop.f32.mrf.mxu0
    %9762 = vmatprep.mubr.bf16.mxu0 %v9350
    %9763 = vmatmul.mubr.bf16.gmra.mxu0 %v9349
    %v9764 = vpop.f32.mrf.mxu0
    %v9765 = vadd.f32 0.0, %v9764
    %v9766 = vpop.f32.mrf.mxu0
    %v9767 = vpop.f32.mrf.mxu0
    %v9768 = vadd.f32 0.0, %v9767
    %v9769 = vpop.f32.mrf.mxu0
    %9770 = vmatprep.mubr.bf16.mxu0 %v9353
    %9771 = vmatmul.mubr.bf16.gmra.mxu0 %v9352
    %v9772 = vpop.f32.mrf.mxu0
    %v9773 = vadd.f32 0.0, %v9772
    %v9774 = vpop.f32.mrf.mxu0
    %v9775 = vpop.f32.mrf.mxu0
    %v9776 = vadd.f32 0.0, %v9775
    %v9777 = vpop.f32.mrf.mxu0
    %9778 = vmatprep.mubr.bf16.mxu0 %v9356
    %9779 = vmatmul.mubr.bf16.gmra.mxu0 %v9355
    %v9780 = vpop.f32.mrf.mxu0
    %v9781 = vadd.f32 0.0, %v9780
    %v9782 = vpop.f32.mrf.mxu0
    %v9783 = vpop.f32.mrf.mxu0
    %v9784 = vadd.f32 0.0, %v9783
    %v9785 = vpop.f32.mrf.mxu0
    %9786 = vmatprep.mubr.bf16.mxu0 %v9359
    %9787 = vmatmul.mubr.bf16.gmra.mxu0 %v9358
    %v9788 = vpop.f32.mrf.mxu0
    %v9789 = vadd.f32 0.0, %v9788
    %v9790 = vpop.f32.mrf.mxu0
    %v9791 = vpop.f32.mrf.mxu0
    %v9792 = vadd.f32 0.0, %v9791
    %v9793 = vpop.f32.mrf.mxu0
    %9794 = vmatprep.mubr.bf16.mxu0 %v9362
    %9795 = vmatmul.mubr.bf16.gmra.mxu0 %v9361
    %v9796 = vpop.f32.mrf.mxu0
    %v9797 = vadd.f32 0.0, %v9796
    %v9798 = vpop.f32.mrf.mxu0
    %v9799 = vpop.f32.mrf.mxu0
    %v9800 = vadd.f32 0.0, %v9799
    %v9801 = vpop.f32.mrf.mxu0
    %9802 = vmatprep.mubr.bf16.mxu0 %v9365
    %9803 = vmatmul.mubr.bf16.gmra.mxu0 %v9364
    %v9804 = vpop.f32.mrf.mxu0
    %v9805 = vadd.f32 0.0, %v9804
    %v9806 = vpop.f32.mrf.mxu0
    %v9807 = vpop.f32.mrf.mxu0
    %v9808 = vadd.f32 0.0, %v9807
    %v9809 = vpop.f32.mrf.mxu0
    %9810 = vmatprep.mubr.bf16.mxu0 %v9368
    %9811 = vmatmul.mubr.bf16.gmra.mxu0 %v9367
    %v9812 = vpop.f32.mrf.mxu0
    %v9813 = vadd.f32 0.0, %v9812
    %v9814 = vpop.f32.mrf.mxu0
    %v9815 = vpop.f32.mrf.mxu0
    %v9816 = vadd.f32 0.0, %v9815
    %v9817 = vpop.f32.mrf.mxu0
    %9818 = vmatprep.mubr.bf16.mxu0 %v9371
    %9819 = vmatmul.mubr.bf16.gmra.mxu0 %v9370
    %v9820 = vpop.f32.mrf.mxu0
    %v9821 = vadd.f32 0.0, %v9820
    %v9822 = vpop.f32.mrf.mxu0
    %v9823 = vpop.f32.mrf.mxu0
    %v9824 = vadd.f32 0.0, %v9823
    %v9825 = vpop.f32.mrf.mxu0
    %9826 = vmatprep.mubr.bf16.mxu0 %v9374
    %9827 = vmatmul.mubr.bf16.gmra.mxu0 %v9373
    %v9828 = vpop.f32.mrf.mxu0
    %v9829 = vadd.f32 0.0, %v9828
    %v9830 = vpop.f32.mrf.mxu0
    %v9831 = vpop.f32.mrf.mxu0
    %v9832 = vadd.f32 0.0, %v9831
    %v9833 = vpop.f32.mrf.mxu0
    %9834 = vmatprep.mubr.bf16.mxu0 %v9377
    %9835 = vmatmul.mubr.bf16.gmra.mxu0 %v9376
    %v9836 = vpop.f32.mrf.mxu0
    %v9837 = vadd.f32 0.0, %v9836
    %v9838 = vpop.f32.mrf.mxu0
    %v9839 = vpop.f32.mrf.mxu0
    %v9840 = vadd.f32 0.0, %v9839
    %v9841 = vpop.f32.mrf.mxu0
    %9842 = vmatprep.mubr.bf16.mxu0 %v9380
    %9843 = vmatmul.mubr.bf16.gmra.mxu0 %v9379
    %v9844 = vpop.f32.mrf.mxu0
    %v9845 = vadd.f32 0.0, %v9844
    %v9846 = vpop.f32.mrf.mxu0
    %v9847 = vpop.f32.mrf.mxu0
    %v9848 = vadd.f32 0.0, %v9847
    %v9849 = vpop.f32.mrf.mxu0
    %9850 = vmatprep.mubr.bf16.mxu0 %v9383
    %9851 = vmatmul.mubr.bf16.gmra.mxu0 %v9382
    %v9852 = vpop.f32.mrf.mxu0
    %v9853 = vadd.f32 0.0, %v9852
    %v9854 = vpop.f32.mrf.mxu0
    %v9855 = vpop.f32.mrf.mxu0
    %v9856 = vadd.f32 0.0, %v9855
    %v9857 = vpop.f32.mrf.mxu0
    %9858 = vmatprep.mubr.bf16.mxu0 %v9386
    %9859 = vmatmul.mubr.bf16.gmra.mxu0 %v9385
    %v9860 = vpop.f32.mrf.mxu0
    %v9861 = vadd.f32 0.0, %v9860
    %v9862 = vpop.f32.mrf.mxu0
    %v9863 = vpop.f32.mrf.mxu0
    %v9864 = vadd.f32 0.0, %v9863
    %v9865 = vpop.f32.mrf.mxu0
    %9866 = vmatprep.mubr.bf16.mxu0 %v9389
    %9867 = vmatmul.mubr.bf16.gmra.mxu0 %v9388
    %v9868 = vpop.f32.mrf.mxu0
    %v9869 = vadd.f32 0.0, %v9868
    %v9870 = vpop.f32.mrf.mxu0
    %v9871 = vpop.f32.mrf.mxu0
    %v9872 = vadd.f32 0.0, %v9871
    %v9873 = vpop.f32.mrf.mxu0
    %9874 = vmatprep.mubr.bf16.mxu0 %v9392
    %9875 = vmatmul.mubr.bf16.gmra.mxu0 %v9391
    %v9876 = vpop.f32.mrf.mxu0
    %v9877 = vadd.f32 0.0, %v9876
    %v9878 = vpop.f32.mrf.mxu0
    %v9879 = vpop.f32.mrf.mxu0
    %v9880 = vadd.f32 0.0, %v9879
    %v9881 = vpop.f32.mrf.mxu0
    %9882 = vmatprep.mubr.bf16.mxu0 %v9395
    %9883 = vmatmul.mubr.bf16.gmra.mxu0 %v9394
    %v9884 = vpop.f32.mrf.mxu0
    %v9885 = vadd.f32 0.0, %v9884
    %v9886 = vpop.f32.mrf.mxu0
    %v9887 = vpop.f32.mrf.mxu0
    %v9888 = vadd.f32 0.0, %v9887
    %v9889 = vpop.f32.mrf.mxu0
    %9890 = vmatprep.mubr.bf16.mxu0 %v9398
    %9891 = vmatmul.mubr.bf16.gmra.mxu0 %v9397
    %v9892 = vpop.f32.mrf.mxu0
    %v9893 = vadd.f32 0.0, %v9892
    %v9894 = vpop.f32.mrf.mxu0
    %v9895 = vpop.f32.mrf.mxu0
    %v9896 = vadd.f32 0.0, %v9895
    %v9897 = vpop.f32.mrf.mxu0
    %9898 = vmatprep.mubr.bf16.mxu0 %v9401
    %9899 = vmatmul.mubr.bf16.gmra.mxu0 %v9400
    %v9900 = vpop.f32.mrf.mxu0
    %v9901 = vadd.f32 0.0, %v9900
    %v9902 = vpop.f32.mrf.mxu0
    %v9903 = vpop.f32.mrf.mxu0
    %v9904 = vadd.f32 0.0, %v9903
    %v9905 = vpop.f32.mrf.mxu0
    %9906 = vmatprep.mubr.bf16.mxu0 %v9404
    %9907 = vmatmul.mubr.bf16.gmra.mxu0 %v9403
    %v9908 = vpop.f32.mrf.mxu0
    %v9909 = vadd.f32 0.0, %v9908
    %v9910 = vpop.f32.mrf.mxu0
    %v9911 = vpop.f32.mrf.mxu0
    %v9912 = vadd.f32 0.0, %v9911
    %v9913 = vpop.f32.mrf.mxu0
    %9914 = vmatprep.mubr.bf16.mxu0 %v9407
    %9915 = vmatmul.mubr.bf16.gmra.mxu0 %v9406
    %v9916 = vpop.f32.mrf.mxu0
    %v9917 = vadd.f32 0.0, %v9916
    %v9918 = vpop.f32.mrf.mxu0
    %v9919 = vpop.f32.mrf.mxu0
    %v9920 = vadd.f32 0.0, %v9919
    %v9921 = vpop.f32.mrf.mxu0
    %9922 = vmatprep.mubr.bf16.mxu0 %v9410
    %9923 = vmatmul.mubr.bf16.gmra.mxu0 %v9409
    %v9924 = vpop.f32.mrf.mxu0
    %v9925 = vadd.f32 0.0, %v9924
    %v9926 = vpop.f32.mrf.mxu0
    %v9927 = vpop.f32.mrf.mxu0
    %v9928 = vadd.f32 0.0, %v9927
    %v9929 = vpop.f32.mrf.mxu0
    %9930 = vmatprep.mubr.bf16.mxu0 %v9413
    %9931 = vmatmul.mubr.bf16.gmra.mxu0 %v9412
    %v9932 = vpop.f32.mrf.mxu0
    %v9933 = vadd.f32 0.0, %v9932
    %v9934 = vpop.f32.mrf.mxu0
    %v9935 = vpop.f32.mrf.mxu0
    %v9936 = vadd.f32 0.0, %v9935
    %v9937 = vpop.f32.mrf.mxu0
    %9938 = vmatprep.mubr.bf16.mxu0 %v9416
    %9939 = vmatmul.mubr.bf16.gmra.mxu0 %v9415
    %v9940 = vpop.f32.mrf.mxu0
    %v9941 = vadd.f32 0.0, %v9940
    %v9942 = vpop.f32.mrf.mxu0
    %v9943 = vpop.f32.mrf.mxu0
    %v9944 = vadd.f32 0.0, %v9943
    %v9945 = vpop.f32.mrf.mxu0
    %9946 = vmatprep.mubr.bf16.mxu0 %v9419
    %9947 = vmatmul.mubr.bf16.gmra.mxu0 %v9418
    %v9948 = vpop.f32.mrf.mxu0
    %v9949 = vadd.f32 0.0, %v9948
    %v9950 = vpop.f32.mrf.mxu0
    %v9951 = vpop.f32.mrf.mxu0
    %v9952 = vadd.f32 0.0, %v9951
    %v9953 = vpop.f32.mrf.mxu0
    %9954 = vmatprep.mubr.bf16.mxu0 %v9422
    %9955 = vmatmul.mubr.bf16.gmra.mxu0 %v9421
    %v9956 = vpop.f32.mrf.mxu0
    %v9957 = vadd.f32 0.0, %v9956
    %v9958 = vpop.f32.mrf.mxu0
    %v9959 = vpop.f32.mrf.mxu0
    %v9960 = vadd.f32 0.0, %v9959
    %v9961 = vpop.f32.mrf.mxu0
    %9962 = vmatprep.mubr.bf16.mxu0 %v9425
    %9963 = vmatmul.mubr.bf16.gmra.mxu0 %v9424
    %v9964 = vpop.f32.mrf.mxu0
    %v9965 = vadd.f32 0.0, %v9964
    %v9966 = vpop.f32.mrf.mxu0
    %v9967 = vpop.f32.mrf.mxu0
    %v9968 = vadd.f32 0.0, %v9967
    %v9969 = vpop.f32.mrf.mxu0
    %9970 = vmatprep.mubr.bf16.mxu0 %v9428
    %9971 = vmatmul.mubr.bf16.gmra.mxu0 %v9427
    %v9972 = vpop.f32.mrf.mxu0
    %v9973 = vadd.f32 0.0, %v9972
    %v9974 = vpop.f32.mrf.mxu0
    %v9975 = vpop.f32.mrf.mxu0
    %v9976 = vadd.f32 0.0, %v9975
    %v9977 = vpop.f32.mrf.mxu0
    %9978 = vmatprep.mubr.bf16.mxu0 %v9431
    %9979 = vmatmul.mubr.bf16.gmra.mxu0 %v9430
    %v9980 = vpop.f32.mrf.mxu0
    %v9981 = vadd.f32 0.0, %v9980
    %v9982 = vpop.f32.mrf.mxu0
    %v9983 = vpop.f32.mrf.mxu0
    %v9984 = vadd.f32 0.0, %v9983
    %v9985 = vpop.f32.mrf.mxu0
    %9986 = vmatprep.mubr.bf16.mxu0 %v9434
    %9987 = vmatmul.mubr.bf16.gmra.mxu0 %v9433
    %v9988 = vpop.f32.mrf.mxu0
    %v9989 = vadd.f32 0.0, %v9988
    %v9990 = vpop.f32.mrf.mxu0
    %v9991 = vpop.f32.mrf.mxu0
    %v9992 = vadd.f32 0.0, %v9991
    %v9993 = vpop.f32.mrf.mxu0
    %9994 = vmatprep.mubr.bf16.mxu0 %v9437
    %9995 = vmatmul.mubr.bf16.gmra.mxu0 %v9436
    %v9996 = vpop.f32.mrf.mxu0
    %v9997 = vadd.f32 0.0, %v9996
    %v9998 = vpop.f32.mrf.mxu0
    %v9999 = vpop.f32.mrf.mxu0
    %v10000 = vadd.f32 0.0, %v9999
    %v10001 = vpop.f32.mrf.mxu0
    %10002 = vmatprep.mubr.bf16.mxu0 %v9440
    %10003 = vmatmul.mubr.bf16.gmra.mxu0 %v9439
    %v10004 = vpop.f32.mrf.mxu0
    %v10005 = vadd.f32 0.0, %v10004
    %v10006 = vpop.f32.mrf.mxu0
    %v10007 = vpop.f32.mrf.mxu0
    %v10008 = vadd.f32 0.0, %v10007
    %v10009 = vpop.f32.mrf.mxu0
    %10010 = vdwg.mxu0
    %10011 = vmatprep.subr.bf16.mxu0 0
    %10012 = vmatpush1.bf16.msra.mxu0 0
    %10013 = vmatprep.subr.bf16.mxu0 0
    %10014 = vmatpush1.bf16.msra.mxu0 0
    %10015 = vmatprep.subr.bf16.mxu0 0
    %10016 = vmatpush1.bf16.msra.mxu0 0
    %10017 = vmatprep.subr.bf16.mxu0 0
    %10018 = vmatpush1.bf16.msra.mxu0 0
    %10019 = vmatprep.subr.bf16.mxu0 0
    %10020 = vmatpush1.bf16.msra.mxu0 %v9605
    %10021 = vmatprep.subr.bf16.mxu0 0
    %10022 = vmatpush1.bf16.msra.mxu0 %v9604
    %10023 = vmatprep.subr.bf16.mxu0 0
    %10024 = vmatpush1.bf16.msra.mxu0 %v9603
    %10025 = vmatprep.subr.bf16.mxu0 0
    %10026 = vmatpush1.bf16.msra.mxu0 %v9602
    %10027 = vmatprep.subr.bf16.mxu0 0
    %10028 = vmatpush2.bf16.msra.mxu0 0
    %10029 = vmatprep.subr.bf16.mxu0 0
    %10030 = vmatpush2.bf16.msra.mxu0 0
    %10031 = vmatprep.subr.bf16.mxu0 0
    %10032 = vmatpush2.bf16.msra.mxu0 0
    %10033 = vmatprep.subr.bf16.mxu0 0
    %10034 = vmatpush2.bf16.msra.mxu0 0
    %10035 = vmatprep.subr.bf16.mxu0 0
    %10036 = vmatpush2.bf16.msra.mxu0 0
    %10037 = vmatprep.subr.bf16.mxu0 0
    %10038 = vmatpush2.bf16.msra.mxu0 0
    %10039 = vmatprep.subr.bf16.mxu0 0
    %10040 = vmatpush2.bf16.msra.mxu0 0
    %10041 = vmatprep.subr.bf16.mxu0 0
    %10042 = vmatpush2.bf16.msra.mxu0 0
    %10043 = vmatprep.mubr.bf16.mxu0 0
    %10044 = vmatmul.mubr.bf16.gmra.mxu0 %v9627
    %v10045 = vpop.f32.mrf.mxu0
    %v10046 = vadd.f32 %v9757, %v10045
    %v10047 = vpop.f32.mrf.mxu0
    %v10048 = vpop.f32.mrf.mxu0
    %v10049 = vadd.f32 %v9760, %v10048
    %v10050 = vpop.f32.mrf.mxu0
    %10051 = vmatprep.mubr.bf16.mxu0 0
    %10052 = vmatmul.mubr.bf16.gmra.mxu0 %v9630
    %v10053 = vpop.f32.mrf.mxu0
    %v10054 = vadd.f32 %v9765, %v10053
    %v10055 = vpop.f32.mrf.mxu0
    %v10056 = vpop.f32.mrf.mxu0
    %v10057 = vadd.f32 %v9768, %v10056
    %v10058 = vpop.f32.mrf.mxu0
    %10059 = vmatprep.mubr.bf16.mxu0 0
    %10060 = vmatmul.mubr.bf16.gmra.mxu0 %v9633
    %v10061 = vpop.f32.mrf.mxu0
    %v10062 = vadd.f32 %v9773, %v10061
    %v10063 = vpop.f32.mrf.mxu0
    %v10064 = vpop.f32.mrf.mxu0
    %v10065 = vadd.f32 %v9776, %v10064
    %v10066 = vpop.f32.mrf.mxu0
    %10067 = vmatprep.mubr.bf16.mxu0 0
    %10068 = vmatmul.mubr.bf16.gmra.mxu0 %v9636
    %v10069 = vpop.f32.mrf.mxu0
    %v10070 = vadd.f32 %v9781, %v10069
    %v10071 = vpop.f32.mrf.mxu0
    %v10072 = vpop.f32.mrf.mxu0
    %v10073 = vadd.f32 %v9784, %v10072
    %v10074 = vpop.f32.mrf.mxu0
    %10075 = vmatprep.mubr.bf16.mxu0 0
    %10076 = vmatmul.mubr.bf16.gmra.mxu0 %v9639
    %v10077 = vpop.f32.mrf.mxu0
    %v10078 = vadd.f32 %v9789, %v10077
    %v10079 = vpop.f32.mrf.mxu0
    %v10080 = vpop.f32.mrf.mxu0
    %v10081 = vadd.f32 %v9792, %v10080
    %v10082 = vpop.f32.mrf.mxu0
    %10083 = vmatprep.mubr.bf16.mxu0 0
    %10084 = vmatmul.mubr.bf16.gmra.mxu0 %v9642
    %v10085 = vpop.f32.mrf.mxu0
    %v10086 = vadd.f32 %v9797, %v10085
    %v10087 = vpop.f32.mrf.mxu0
    %v10088 = vpop.f32.mrf.mxu0
    %v10089 = vadd.f32 %v9800, %v10088
    %v10090 = vpop.f32.mrf.mxu0
    %10091 = vmatprep.mubr.bf16.mxu0 0
    %10092 = vmatmul.mubr.bf16.gmra.mxu0 %v9645
    %v10093 = vpop.f32.mrf.mxu0
    %v10094 = vadd.f32 %v9805, %v10093
    %v10095 = vpop.f32.mrf.mxu0
    %v10096 = vpop.f32.mrf.mxu0
    %v10097 = vadd.f32 %v9808, %v10096
    %v10098 = vpop.f32.mrf.mxu0
    %10099 = vmatprep.mubr.bf16.mxu0 0
    %10100 = vmatmul.mubr.bf16.gmra.mxu0 %v9648
    %v10101 = vpop.f32.mrf.mxu0
    %v10102 = vadd.f32 %v9813, %v10101
    %v10103 = vpop.f32.mrf.mxu0
    %v10104 = vpop.f32.mrf.mxu0
    %v10105 = vadd.f32 %v9816, %v10104
    %v10106 = vpop.f32.mrf.mxu0
    %10107 = vmatprep.mubr.bf16.mxu0 0
    %10108 = vmatmul.mubr.bf16.gmra.mxu0 %v9651
    %v10109 = vpop.f32.mrf.mxu0
    %v10110 = vadd.f32 %v9821, %v10109
    %v10111 = vpop.f32.mrf.mxu0
    %v10112 = vpop.f32.mrf.mxu0
    %v10113 = vadd.f32 %v9824, %v10112
    %v10114 = vpop.f32.mrf.mxu0
    %10115 = vmatprep.mubr.bf16.mxu0 0
    %10116 = vmatmul.mubr.bf16.gmra.mxu0 %v9654
    %v10117 = vpop.f32.mrf.mxu0
    %v10118 = vadd.f32 %v9829, %v10117
    %v10119 = vpop.f32.mrf.mxu0
    %v10120 = vpop.f32.mrf.mxu0
    %v10121 = vadd.f32 %v9832, %v10120
    %v10122 = vpop.f32.mrf.mxu0
    %10123 = vmatprep.mubr.bf16.mxu0 0
    %10124 = vmatmul.mubr.bf16.gmra.mxu0 %v9657
    %v10125 = vpop.f32.mrf.mxu0
    %v10126 = vadd.f32 %v9837, %v10125
    %v10127 = vpop.f32.mrf.mxu0
    %v10128 = vpop.f32.mrf.mxu0
    %v10129 = vadd.f32 %v9840, %v10128
    %v10130 = vpop.f32.mrf.mxu0
    %10131 = vmatprep.mubr.bf16.mxu0 0
    %10132 = vmatmul.mubr.bf16.gmra.mxu0 %v9660
    %v10133 = vpop.f32.mrf.mxu0
    %v10134 = vadd.f32 %v9845, %v10133
    %v10135 = vpop.f32.mrf.mxu0
    %v10136 = vpop.f32.mrf.mxu0
    %v10137 = vadd.f32 %v9848, %v10136
    %v10138 = vpop.f32.mrf.mxu0
    %10139 = vmatprep.mubr.bf16.mxu0 0
    %10140 = vmatmul.mubr.bf16.gmra.mxu0 %v9663
    %v10141 = vpop.f32.mrf.mxu0
    %v10142 = vadd.f32 %v9853, %v10141
    %v10143 = vpop.f32.mrf.mxu0
    %v10144 = vpop.f32.mrf.mxu0
    %v10145 = vadd.f32 %v9856, %v10144
    %v10146 = vpop.f32.mrf.mxu0
    %10147 = vmatprep.mubr.bf16.mxu0 0
    %10148 = vmatmul.mubr.bf16.gmra.mxu0 %v9666
    %v10149 = vpop.f32.mrf.mxu0
    %v10150 = vadd.f32 %v9861, %v10149
    %v10151 = vpop.f32.mrf.mxu0
    %v10152 = vpop.f32.mrf.mxu0
    %v10153 = vadd.f32 %v9864, %v10152
    %v10154 = vpop.f32.mrf.mxu0
    %10155 = vmatprep.mubr.bf16.mxu0 0
    %10156 = vmatmul.mubr.bf16.gmra.mxu0 %v9669
    %v10157 = vpop.f32.mrf.mxu0
    %v10158 = vadd.f32 %v9869, %v10157
    %v10159 = vpop.f32.mrf.mxu0
    %v10160 = vpop.f32.mrf.mxu0
    %v10161 = vadd.f32 %v9872, %v10160
    %v10162 = vpop.f32.mrf.mxu0
    %10163 = vmatprep.mubr.bf16.mxu0 0
    %10164 = vmatmul.mubr.bf16.gmra.mxu0 %v9672
    %v10165 = vpop.f32.mrf.mxu0
    %v10166 = vadd.f32 %v9877, %v10165
    %v10167 = vpop.f32.mrf.mxu0
    %v10168 = vpop.f32.mrf.mxu0
    %v10169 = vadd.f32 %v9880, %v10168
    %v10170 = vpop.f32.mrf.mxu0
    %10171 = vmatprep.mubr.bf16.mxu0 0
    %10172 = vmatmul.mubr.bf16.gmra.mxu0 %v9675
    %v10173 = vpop.f32.mrf.mxu0
    %v10174 = vadd.f32 %v9885, %v10173
    %v10175 = vpop.f32.mrf.mxu0
    %v10176 = vpop.f32.mrf.mxu0
    %v10177 = vadd.f32 %v9888, %v10176
    %v10178 = vpop.f32.mrf.mxu0
    %10179 = vmatprep.mubr.bf16.mxu0 0
    %10180 = vmatmul.mubr.bf16.gmra.mxu0 %v9678
    %v10181 = vpop.f32.mrf.mxu0
    %v10182 = vadd.f32 %v9893, %v10181
    %v10183 = vpop.f32.mrf.mxu0
    %v10184 = vpop.f32.mrf.mxu0
    %v10185 = vadd.f32 %v9896, %v10184
    %v10186 = vpop.f32.mrf.mxu0
    %10187 = vmatprep.mubr.bf16.mxu0 0
    %10188 = vmatmul.mubr.bf16.gmra.mxu0 %v9681
    %v10189 = vpop.f32.mrf.mxu0
    %v10190 = vadd.f32 %v9901, %v10189
    %v10191 = vpop.f32.mrf.mxu0
    %v10192 = vpop.f32.mrf.mxu0
    %v10193 = vadd.f32 %v9904, %v10192
    %v10194 = vpop.f32.mrf.mxu0
    %10195 = vmatprep.mubr.bf16.mxu0 0
    %10196 = vmatmul.mubr.bf16.gmra.mxu0 %v9684
    %v10197 = vpop.f32.mrf.mxu0
    %v10198 = vadd.f32 %v9909, %v10197
    %v10199 = vpop.f32.mrf.mxu0
    %v10200 = vpop.f32.mrf.mxu0
    %v10201 = vadd.f32 %v9912, %v10200
    %v10202 = vpop.f32.mrf.mxu0
    %10203 = vmatprep.mubr.bf16.mxu0 0
    %10204 = vmatmul.mubr.bf16.gmra.mxu0 %v9687
    %v10205 = vpop.f32.mrf.mxu0
    %v10206 = vadd.f32 %v9917, %v10205
    %v10207 = vpop.f32.mrf.mxu0
    %v10208 = vpop.f32.mrf.mxu0
    %v10209 = vadd.f32 %v9920, %v10208
    %v10210 = vpop.f32.mrf.mxu0
    %10211 = vmatprep.mubr.bf16.mxu0 0
    %10212 = vmatmul.mubr.bf16.gmra.mxu0 %v9690
    %v10213 = vpop.f32.mrf.mxu0
    %v10214 = vadd.f32 %v9925, %v10213
    %v10215 = vpop.f32.mrf.mxu0
    %v10216 = vpop.f32.mrf.mxu0
    %v10217 = vadd.f32 %v9928, %v10216
    %v10218 = vpop.f32.mrf.mxu0
    %10219 = vmatprep.mubr.bf16.mxu0 0
    %10220 = vmatmul.mubr.bf16.gmra.mxu0 %v9693
    %v10221 = vpop.f32.mrf.mxu0
    %v10222 = vadd.f32 %v9933, %v10221
    %v10223 = vpop.f32.mrf.mxu0
    %v10224 = vpop.f32.mrf.mxu0
    %v10225 = vadd.f32 %v9936, %v10224
    %v10226 = vpop.f32.mrf.mxu0
    %10227 = vmatprep.mubr.bf16.mxu0 0
    %10228 = vmatmul.mubr.bf16.gmra.mxu0 %v9696
    %v10229 = vpop.f32.mrf.mxu0
    %v10230 = vadd.f32 %v9941, %v10229
    %v10231 = vpop.f32.mrf.mxu0
    %v10232 = vpop.f32.mrf.mxu0
    %v10233 = vadd.f32 %v9944, %v10232
    %v10234 = vpop.f32.mrf.mxu0
    %10235 = vmatprep.mubr.bf16.mxu0 0
    %10236 = vmatmul.mubr.bf16.gmra.mxu0 %v9699
    %v10237 = vpop.f32.mrf.mxu0
    %v10238 = vadd.f32 %v9949, %v10237
    %v10239 = vpop.f32.mrf.mxu0
    %v10240 = vpop.f32.mrf.mxu0
    %v10241 = vadd.f32 %v9952, %v10240
    %v10242 = vpop.f32.mrf.mxu0
    %10243 = vmatprep.mubr.bf16.mxu0 0
    %10244 = vmatmul.mubr.bf16.gmra.mxu0 %v9702
    %v10245 = vpop.f32.mrf.mxu0
    %v10246 = vadd.f32 %v9957, %v10245
    %v10247 = vpop.f32.mrf.mxu0
    %v10248 = vpop.f32.mrf.mxu0
    %v10249 = vadd.f32 %v9960, %v10248
    %v10250 = vpop.f32.mrf.mxu0
    %10251 = vmatprep.mubr.bf16.mxu0 0
    %10252 = vmatmul.mubr.bf16.gmra.mxu0 %v9705
    %v10253 = vpop.f32.mrf.mxu0
    %v10254 = vadd.f32 %v9965, %v10253
    %v10255 = vpop.f32.mrf.mxu0
    %v10256 = vpop.f32.mrf.mxu0
    %v10257 = vadd.f32 %v9968, %v10256
    %v10258 = vpop.f32.mrf.mxu0
    %10259 = vmatprep.mubr.bf16.mxu0 0
    %10260 = vmatmul.mubr.bf16.gmra.mxu0 %v9708
    %v10261 = vpop.f32.mrf.mxu0
    %v10262 = vadd.f32 %v9973, %v10261
    %v10263 = vpop.f32.mrf.mxu0
    %v10264 = vpop.f32.mrf.mxu0
    %v10265 = vadd.f32 %v9976, %v10264
    %v10266 = vpop.f32.mrf.mxu0
    %10267 = vmatprep.mubr.bf16.mxu0 0
    %10268 = vmatmul.mubr.bf16.gmra.mxu0 %v9711
    %v10269 = vpop.f32.mrf.mxu0
    %v10270 = vadd.f32 %v9981, %v10269
    %v10271 = vpop.f32.mrf.mxu0
    %v10272 = vpop.f32.mrf.mxu0
    %v10273 = vadd.f32 %v9984, %v10272
    %v10274 = vpop.f32.mrf.mxu0
    %10275 = vmatprep.mubr.bf16.mxu0 0
    %10276 = vmatmul.mubr.bf16.gmra.mxu0 %v9714
    %v10277 = vpop.f32.mrf.mxu0
    %v10278 = vadd.f32 %v9989, %v10277
    %v10279 = vpop.f32.mrf.mxu0
    %v10280 = vpop.f32.mrf.mxu0
    %v10281 = vadd.f32 %v9992, %v10280
    %v10282 = vpop.f32.mrf.mxu0
    %10283 = vmatprep.mubr.bf16.mxu0 0
    %10284 = vmatmul.mubr.bf16.gmra.mxu0 %v9717
    %v10285 = vpop.f32.mrf.mxu0
    %v10286 = vadd.f32 %v9997, %v10285
    %v10287 = vpop.f32.mrf.mxu0
    %v10288 = vpop.f32.mrf.mxu0
    %v10289 = vadd.f32 %v10000, %v10288
    %v10290 = vpop.f32.mrf.mxu0
    %10291 = vmatprep.mubr.bf16.mxu0 0
    %10292 = vmatmul.mubr.bf16.gmra.mxu0 %v9720
    %v10293 = vpop.f32.mrf.mxu0
    %v10294 = vadd.f32 %v10005, %v10293
    %v10295 = vpop.f32.mrf.mxu0
    %v10296 = vpop.f32.mrf.mxu0
    %v10297 = vadd.f32 %v10008, %v10296
    %v10298 = vpop.f32.mrf.mxu0
    %10299 = vdwg.mxu0
    %v10300 = vadd.f32 %v8793, %v10046
    %v10301 = vadd.f32 %v8794, %v10049
    %v10302 = vadd.f32 %v8795, %v10054
    %v10303 = vadd.f32 %v8796, %v10057
    %v10304 = vadd.f32 %v8797, %v10062
    %v10305 = vadd.f32 %v8798, %v10065
    %v10306 = vadd.f32 %v8799, %v10070
    %v10307 = vadd.f32 %v8800, %v10073
    %v10308 = vadd.f32 %v8801, %v10078
    %v10309 = vadd.f32 %v8802, %v10081
    %v10310 = vadd.f32 %v8803, %v10086
    %v10311 = vadd.f32 %v8804, %v10089
    %v10312 = vadd.f32 %v8805, %v10094
    %v10313 = vadd.f32 %v8806, %v10097
    %v10314 = vadd.f32 %v8807, %v10102
    %v10315 = vadd.f32 %v8808, %v10105
    %v10316 = vadd.f32 %v8809, %v10110
    %v10317 = vadd.f32 %v8810, %v10113
    %v10318 = vadd.f32 %v8811, %v10118
    %v10319 = vadd.f32 %v8812, %v10121
    %v10320 = vadd.f32 %v8813, %v10126
    %v10321 = vadd.f32 %v8814, %v10129
    %v10322 = vadd.f32 %v8815, %v10134
    %v10323 = vadd.f32 %v8816, %v10137
    %v10324 = vadd.f32 %v8817, %v10142
    %v10325 = vadd.f32 %v8818, %v10145
    %v10326 = vadd.f32 %v8819, %v10150
    %v10327 = vadd.f32 %v8820, %v10153
    %v10328 = vadd.f32 %v8821, %v10158
    %v10329 = vadd.f32 %v8822, %v10161
    %v10330 = vadd.f32 %v8823, %v10166
    %v10331 = vadd.f32 %v8824, %v10169
    %v10332 = vadd.f32 %v8825, %v10174
    %v10333 = vadd.f32 %v8826, %v10177
    %v10334 = vadd.f32 %v8827, %v10182
    %v10335 = vadd.f32 %v8828, %v10185
    %v10336 = vadd.f32 %v8829, %v10190
    %v10337 = vadd.f32 %v8830, %v10193
    %v10338 = vadd.f32 %v8831, %v10198
    %v10339 = vadd.f32 %v8832, %v10201
    %v10340 = vadd.f32 %v8833, %v10206
    %v10341 = vadd.f32 %v8834, %v10209
    %v10342 = vadd.f32 %v8835, %v10214
    %v10343 = vadd.f32 %v8836, %v10217
    %v10344 = vadd.f32 %v8837, %v10222
    %v10345 = vadd.f32 %v8838, %v10225
    %v10346 = vadd.f32 %v8839, %v10230
    %v10347 = vadd.f32 %v8840, %v10233
    %v10348 = vadd.f32 %v8841, %v10238
    %v10349 = vadd.f32 %v8842, %v10241
    %v10350 = vadd.f32 %v8843, %v10246
    %v10351 = vadd.f32 %v8844, %v10249
    %v10352 = vadd.f32 %v8845, %v10254
    %v10353 = vadd.f32 %v8846, %v10257
    %v10354 = vadd.f32 %v8847, %v10262
    %v10355 = vadd.f32 %v8848, %v10265
    %v10356 = vadd.f32 %v8849, %v10270
    %v10357 = vadd.f32 %v8850, %v10273
    %v10358 = vadd.f32 %v8851, %v10278
    %v10359 = vadd.f32 %v8852, %v10281
    %v10360 = vadd.f32 %v8853, %v10286
    %v10361 = vadd.f32 %v8854, %v10289
    %v10362 = vadd.f32 %v8855, %v10294
    %v10363 = vadd.f32 %v8856, %v10297
    %v10364 = vld [vmem:[%s4] sm:$0x1]
    %v10366 = vlaneseq
    %v10367 = vshrl.u32 %v10366, 7
    %v10368 = vsub.s32 0, %v10367
    %v10369 = vrot.slane %v10364, %v10368
    %v10371 = vadd.f32 %v10300, %v10369
    %v10372 = vadd.f32 %v10301, %v10369
    %v10373 = vadd.f32 %v10302, %v10369
    %v10374 = vadd.f32 %v10303, %v10369
    %v10375 = vadd.f32 %v10304, %v10369
    %v10376 = vadd.f32 %v10305, %v10369
    %v10377 = vadd.f32 %v10306, %v10369
    %v10378 = vadd.f32 %v10307, %v10369
    %v10379 = vadd.f32 %v10308, %v10369
    %v10380 = vadd.f32 %v10309, %v10369
    %v10381 = vadd.f32 %v10310, %v10369
    %v10382 = vadd.f32 %v10311, %v10369
    %v10383 = vadd.f32 %v10312, %v10369
    %v10384 = vadd.f32 %v10313, %v10369
    %v10385 = vadd.f32 %v10314, %v10369
    %v10386 = vadd.f32 %v10315, %v10369
    %v10387 = vadd.f32 %v10316, %v10369
    %v10388 = vadd.f32 %v10317, %v10369
    %v10389 = vadd.f32 %v10318, %v10369
    %v10390 = vadd.f32 %v10319, %v10369
    %v10391 = vadd.f32 %v10320, %v10369
    %v10392 = vadd.f32 %v10321, %v10369
    %v10393 = vadd.f32 %v10322, %v10369
    %v10394 = vadd.f32 %v10323, %v10369
    %v10395 = vadd.f32 %v10324, %v10369
    %v10396 = vadd.f32 %v10325, %v10369
    %v10397 = vadd.f32 %v10326, %v10369
    %v10398 = vadd.f32 %v10327, %v10369
    %v10399 = vadd.f32 %v10328, %v10369
    %v10400 = vadd.f32 %v10329, %v10369
    %v10401 = vadd.f32 %v10330, %v10369
    %v10402 = vadd.f32 %v10331, %v10369
    %v10403 = vadd.f32 %v10332, %v10369
    %v10404 = vadd.f32 %v10333, %v10369
    %v10405 = vadd.f32 %v10334, %v10369
    %v10406 = vadd.f32 %v10335, %v10369
    %v10407 = vadd.f32 %v10336, %v10369
    %v10408 = vadd.f32 %v10337, %v10369
    %v10409 = vadd.f32 %v10338, %v10369
    %v10410 = vadd.f32 %v10339, %v10369
    %v10411 = vadd.f32 %v10340, %v10369
    %v10412 = vadd.f32 %v10341, %v10369
    %v10413 = vadd.f32 %v10342, %v10369
    %v10414 = vadd.f32 %v10343, %v10369
    %v10415 = vadd.f32 %v10344, %v10369
    %v10416 = vadd.f32 %v10345, %v10369
    %v10417 = vadd.f32 %v10346, %v10369
    %v10418 = vadd.f32 %v10347, %v10369
    %v10419 = vadd.f32 %v10348, %v10369
    %v10420 = vadd.f32 %v10349, %v10369
    %v10421 = vadd.f32 %v10350, %v10369
    %v10422 = vadd.f32 %v10351, %v10369
    %v10423 = vadd.f32 %v10352, %v10369
    %v10424 = vadd.f32 %v10353, %v10369
    %v10425 = vadd.f32 %v10354, %v10369
    %v10426 = vadd.f32 %v10355, %v10369
    %v10427 = vadd.f32 %v10356, %v10369
    %v10428 = vadd.f32 %v10357, %v10369
    %v10429 = vadd.f32 %v10358, %v10369
    %v10430 = vadd.f32 %v10359, %v10369
    %v10431 = vadd.f32 %v10360, %v10369
    %v10432 = vadd.f32 %v10361, %v10369
    %v10433 = vadd.f32 %v10362, %v10369
    %v10434 = vadd.f32 %v10363, %v10369
    %v10435 = vadd.f32 %v10371, %v10372
    %v10436 = vadd.f32 %v10435, %v10373
    %v10437 = vadd.f32 %v10436, %v10374
    %v10438 = vadd.f32 %v10437, %v10375
    %v10439 = vadd.f32 %v10438, %v10376
    %v10440 = vadd.f32 %v10439, %v10377
    %v10441 = vadd.f32 %v10440, %v10378
    %v10442 = vadd.f32 %v10441, %v10379
    %v10443 = vadd.f32 %v10442, %v10380
    %v10444 = vadd.f32 %v10443, %v10381
    %v10445 = vadd.f32 %v10444, %v10382
    %v10446 = vadd.f32 %v10445, %v10383
    %v10447 = vadd.f32 %v10446, %v10384
    %v10448 = vadd.f32 %v10447, %v10385
    %v10449 = vadd.f32 %v10448, %v10386
    %v10450 = vadd.f32 %v10449, %v10387
    %v10451 = vadd.f32 %v10450, %v10388
    %v10452 = vadd.f32 %v10451, %v10389
    %v10453 = vadd.f32 %v10452, %v10390
    %v10454 = vadd.f32 %v10453, %v10391
    %v10455 = vadd.f32 %v10454, %v10392
    %v10456 = vadd.f32 %v10455, %v10393
    %v10457 = vadd.f32 %v10456, %v10394
    %v10458 = vadd.f32 %v10457, %v10395
    %v10459 = vadd.f32 %v10458, %v10396
    %v10460 = vadd.f32 %v10459, %v10397
    %v10461 = vadd.f32 %v10460, %v10398
    %v10462 = vadd.f32 %v10461, %v10399
    %v10463 = vadd.f32 %v10462, %v10400
    %v10464 = vadd.f32 %v10463, %v10401
    %v10465 = vadd.f32 %v10464, %v10402
    %v10466 = vadd.f32 %v10465, %v10403
    %v10467 = vadd.f32 %v10466, %v10404
    %v10468 = vadd.f32 %v10467, %v10405
    %v10469 = vadd.f32 %v10468, %v10406
    %v10470 = vadd.f32 %v10469, %v10407
    %v10471 = vadd.f32 %v10470, %v10408
    %v10472 = vadd.f32 %v10471, %v10409
    %v10473 = vadd.f32 %v10472, %v10410
    %v10474 = vadd.f32 %v10473, %v10411
    %v10475 = vadd.f32 %v10474, %v10412
    %v10476 = vadd.f32 %v10475, %v10413
    %v10477 = vadd.f32 %v10476, %v10414
    %v10478 = vadd.f32 %v10477, %v10415
    %v10479 = vadd.f32 %v10478, %v10416
    %v10480 = vadd.f32 %v10479, %v10417
    %v10481 = vadd.f32 %v10480, %v10418
    %v10482 = vadd.f32 %v10481, %v10419
    %v10483 = vadd.f32 %v10482, %v10420
    %v10484 = vadd.f32 %v10483, %v10421
    %v10485 = vadd.f32 %v10484, %v10422
    %v10486 = vadd.f32 %v10485, %v10423
    %v10487 = vadd.f32 %v10486, %v10424
    %v10488 = vadd.f32 %v10487, %v10425
    %v10489 = vadd.f32 %v10488, %v10426
    %v10490 = vadd.f32 %v10489, %v10427
    %v10491 = vadd.f32 %v10490, %v10428
    %v10492 = vadd.f32 %v10491, %v10429
    %v10493 = vadd.f32 %v10492, %v10430
    %v10494 = vadd.f32 %v10493, %v10431
    %v10495 = vadd.f32 %v10494, %v10432
    %v10496 = vadd.f32 %v10495, %v10433
    %v10497 = vadd.f32 %v10496, %v10434
    %v10498 = vrot.slane %v10497, 4
    %v10499 = vadd.f32 %v10497, %v10498
    %v10500 = vrot.slane %v10499, 2
    %v10501 = vadd.f32 %v10499, %v10500
    %v10502 = vrot.slane %v10501, 1
    %v10503 = vadd.f32 %v10501, %v10502
    %v10504 = vmul.f32 %v10503, 0.001953125
    %v10505 = vmul.f32 %v10371, %v10371
    %v10506 = vmul.f32 %v10372, %v10372
    %v10507 = vmul.f32 %v10373, %v10373
    %v10508 = vmul.f32 %v10374, %v10374
    %v10509 = vmul.f32 %v10375, %v10375
    %v10510 = vmul.f32 %v10376, %v10376
    %v10511 = vmul.f32 %v10377, %v10377
    %v10512 = vmul.f32 %v10378, %v10378
    %v10513 = vmul.f32 %v10379, %v10379
    %v10514 = vmul.f32 %v10380, %v10380
    %v10515 = vmul.f32 %v10381, %v10381
    %v10516 = vmul.f32 %v10382, %v10382
    %v10517 = vmul.f32 %v10383, %v10383
    %v10518 = vmul.f32 %v10384, %v10384
    %v10519 = vmul.f32 %v10385, %v10385
    %v10520 = vmul.f32 %v10386, %v10386
    %v10521 = vmul.f32 %v10387, %v10387
    %v10522 = vmul.f32 %v10388, %v10388
    %v10523 = vmul.f32 %v10389, %v10389
    %v10524 = vmul.f32 %v10390, %v10390
    %v10525 = vmul.f32 %v10391, %v10391
    %v10526 = vmul.f32 %v10392, %v10392
    %v10527 = vmul.f32 %v10393, %v10393
    %v10528 = vmul.f32 %v10394, %v10394
    %v10529 = vmul.f32 %v10395, %v10395
    %v10530 = vmul.f32 %v10396, %v10396
    %v10531 = vmul.f32 %v10397, %v10397
    %v10532 = vmul.f32 %v10398, %v10398
    %v10533 = vmul.f32 %v10399, %v10399
    %v10534 = vmul.f32 %v10400, %v10400
    %v10535 = vmul.f32 %v10401, %v10401
    %v10536 = vmul.f32 %v10402, %v10402
    %v10537 = vmul.f32 %v10403, %v10403
    %v10538 = vmul.f32 %v10404, %v10404
    %v10539 = vmul.f32 %v10405, %v10405
    %v10540 = vmul.f32 %v10406, %v10406
    %v10541 = vmul.f32 %v10407, %v10407
    %v10542 = vmul.f32 %v10408, %v10408
    %v10543 = vmul.f32 %v10409, %v10409
    %v10544 = vmul.f32 %v10410, %v10410
    %v10545 = vmul.f32 %v10411, %v10411
    %v10546 = vmul.f32 %v10412, %v10412
    %v10547 = vmul.f32 %v10413, %v10413
    %v10548 = vmul.f32 %v10414, %v10414
    %v10549 = vmul.f32 %v10415, %v10415
    %v10550 = vmul.f32 %v10416, %v10416
    %v10551 = vmul.f32 %v10417, %v10417
    %v10552 = vmul.f32 %v10418, %v10418
    %v10553 = vmul.f32 %v10419, %v10419
    %v10554 = vmul.f32 %v10420, %v10420
    %v10555 = vmul.f32 %v10421, %v10421
    %v10556 = vmul.f32 %v10422, %v10422
    %v10557 = vmul.f32 %v10423, %v10423
    %v10558 = vmul.f32 %v10424, %v10424
    %v10559 = vmul.f32 %v10425, %v10425
    %v10560 = vmul.f32 %v10426, %v10426
    %v10561 = vmul.f32 %v10427, %v10427
    %v10562 = vmul.f32 %v10428, %v10428
    %v10563 = vmul.f32 %v10429, %v10429
    %v10564 = vmul.f32 %v10430, %v10430
    %v10565 = vmul.f32 %v10431, %v10431
    %v10566 = vmul.f32 %v10432, %v10432
    %v10567 = vmul.f32 %v10433, %v10433
    %v10568 = vmul.f32 %v10434, %v10434
    %v10569 = vadd.f32 %v10505, %v10506
    %v10570 = vadd.f32 %v10569, %v10507
    %v10571 = vadd.f32 %v10570, %v10508
    %v10572 = vadd.f32 %v10571, %v10509
    %v10573 = vadd.f32 %v10572, %v10510
    %v10574 = vadd.f32 %v10573, %v10511
    %v10575 = vadd.f32 %v10574, %v10512
    %v10576 = vadd.f32 %v10575, %v10513
    %v10577 = vadd.f32 %v10576, %v10514
    %v10578 = vadd.f32 %v10577, %v10515
    %v10579 = vadd.f32 %v10578, %v10516
    %v10580 = vadd.f32 %v10579, %v10517
    %v10581 = vadd.f32 %v10580, %v10518
    %v10582 = vadd.f32 %v10581, %v10519
    %v10583 = vadd.f32 %v10582, %v10520
    %v10584 = vadd.f32 %v10583, %v10521
    %v10585 = vadd.f32 %v10584, %v10522
    %v10586 = vadd.f32 %v10585, %v10523
    %v10587 = vadd.f32 %v10586, %v10524
    %v10588 = vadd.f32 %v10587, %v10525
    %v10589 = vadd.f32 %v10588, %v10526
    %v10590 = vadd.f32 %v10589, %v10527
    %v10591 = vadd.f32 %v10590, %v10528
    %v10592 = vadd.f32 %v10591, %v10529
    %v10593 = vadd.f32 %v10592, %v10530
    %v10594 = vadd.f32 %v10593, %v10531
    %v10595 = vadd.f32 %v10594, %v10532
    %v10596 = vadd.f32 %v10595, %v10533
    %v10597 = vadd.f32 %v10596, %v10534
    %v10598 = vadd.f32 %v10597, %v10535
    %v10599 = vadd.f32 %v10598, %v10536
    %v10600 = vadd.f32 %v10599, %v10537
    %v10601 = vadd.f32 %v10600, %v10538
    %v10602 = vadd.f32 %v10601, %v10539
    %v10603 = vadd.f32 %v10602, %v10540
    %v10604 = vadd.f32 %v10603, %v10541
    %v10605 = vadd.f32 %v10604, %v10542
    %v10606 = vadd.f32 %v10605, %v10543
    %v10607 = vadd.f32 %v10606, %v10544
    %v10608 = vadd.f32 %v10607, %v10545
    %v10609 = vadd.f32 %v10608, %v10546
    %v10610 = vadd.f32 %v10609, %v10547
    %v10611 = vadd.f32 %v10610, %v10548
    %v10612 = vadd.f32 %v10611, %v10549
    %v10613 = vadd.f32 %v10612, %v10550
    %v10614 = vadd.f32 %v10613, %v10551
    %v10615 = vadd.f32 %v10614, %v10552
    %v10616 = vadd.f32 %v10615, %v10553
    %v10617 = vadd.f32 %v10616, %v10554
    %v10618 = vadd.f32 %v10617, %v10555
    %v10619 = vadd.f32 %v10618, %v10556
    %v10620 = vadd.f32 %v10619, %v10557
    %v10621 = vadd.f32 %v10620, %v10558
    %v10622 = vadd.f32 %v10621, %v10559
    %v10623 = vadd.f32 %v10622, %v10560
    %v10624 = vadd.f32 %v10623, %v10561
    %v10625 = vadd.f32 %v10624, %v10562
    %v10626 = vadd.f32 %v10625, %v10563
    %v10627 = vadd.f32 %v10626, %v10564
    %v10628 = vadd.f32 %v10627, %v10565
    %v10629 = vadd.f32 %v10628, %v10566
    %v10630 = vadd.f32 %v10629, %v10567
    %v10631 = vadd.f32 %v10630, %v10568
    %v10632 = vrot.slane %v10631, 4
    %v10633 = vadd.f32 %v10631, %v10632
    %v10634 = vrot.slane %v10633, 2
    %v10635 = vadd.f32 %v10633, %v10634
    %v10636 = vrot.slane %v10635, 1
    %v10637 = vadd.f32 %v10635, %v10636
    %v10638 = vmul.f32 %v10637, 0.001953125
    %v10639 = vmul.f32 %v10504, %v10504
    %v10640 = vsub.f32 %v10638, %v10639
    %v10641 = vmax.f32 %v10640, 0.0
    %v10642 = vld [vmem:[%s5] sm:$0x1]
    %v10643 = vadd.f32 %v10641, 1e-05
    %v10644 = vrsqrt.pop %v10643
    %v10645 = vmul.f32 %v10642, %v10644
    %v10646 = vld [vmem:[%s6] sm:$0x1]
    %v10647 = vmul.f32 %v10504, %v10645
    %v10648 = vsub.f32 %v10646, %v10647
    %v10650 = vlaneseq
    %v10651 = vshrl.u32 %v10650, 7
    %v10652 = vsub.s32 0, %v10651
    %v10653 = vrot.slane %v10645, %v10652
    %v10655 = vmul.f32 %v10371, %v10653
    %v10656 = vmul.f32 %v10372, %v10653
    %v10657 = vmul.f32 %v10373, %v10653
    %v10658 = vmul.f32 %v10374, %v10653
    %v10659 = vmul.f32 %v10375, %v10653
    %v10660 = vmul.f32 %v10376, %v10653
    %v10661 = vmul.f32 %v10377, %v10653
    %v10662 = vmul.f32 %v10378, %v10653
    %v10663 = vmul.f32 %v10379, %v10653
    %v10664 = vmul.f32 %v10380, %v10653
    %v10665 = vmul.f32 %v10381, %v10653
    %v10666 = vmul.f32 %v10382, %v10653
    %v10667 = vmul.f32 %v10383, %v10653
    %v10668 = vmul.f32 %v10384, %v10653
    %v10669 = vmul.f32 %v10385, %v10653
    %v10670 = vmul.f32 %v10386, %v10653
    %v10671 = vmul.f32 %v10387, %v10653
    %v10672 = vmul.f32 %v10388, %v10653
    %v10673 = vmul.f32 %v10389, %v10653
    %v10674 = vmul.f32 %v10390, %v10653
    %v10675 = vmul.f32 %v10391, %v10653
    %v10676 = vmul.f32 %v10392, %v10653
    %v10677 = vmul.f32 %v10393, %v10653
    %v10678 = vmul.f32 %v10394, %v10653
    %v10679 = vmul.f32 %v10395, %v10653
    %v10680 = vmul.f32 %v10396, %v10653
    %v10681 = vmul.f32 %v10397, %v10653
    %v10682 = vmul.f32 %v10398, %v10653
    %v10683 = vmul.f32 %v10399, %v10653
    %v10684 = vmul.f32 %v10400, %v10653
    %v10685 = vmul.f32 %v10401, %v10653
    %v10686 = vmul.f32 %v10402, %v10653
    %v10687 = vmul.f32 %v10403, %v10653
    %v10688 = vmul.f32 %v10404, %v10653
    %v10689 = vmul.f32 %v10405, %v10653
    %v10690 = vmul.f32 %v10406, %v10653
    %v10691 = vmul.f32 %v10407, %v10653
    %v10692 = vmul.f32 %v10408, %v10653
    %v10693 = vmul.f32 %v10409, %v10653
    %v10694 = vmul.f32 %v10410, %v10653
    %v10695 = vmul.f32 %v10411, %v10653
    %v10696 = vmul.f32 %v10412, %v10653
    %v10697 = vmul.f32 %v10413, %v10653
    %v10698 = vmul.f32 %v10414, %v10653
    %v10699 = vmul.f32 %v10415, %v10653
    %v10700 = vmul.f32 %v10416, %v10653
    %v10701 = vmul.f32 %v10417, %v10653
    %v10702 = vmul.f32 %v10418, %v10653
    %v10703 = vmul.f32 %v10419, %v10653
    %v10704 = vmul.f32 %v10420, %v10653
    %v10705 = vmul.f32 %v10421, %v10653
    %v10706 = vmul.f32 %v10422, %v10653
    %v10707 = vmul.f32 %v10423, %v10653
    %v10708 = vmul.f32 %v10424, %v10653
    %v10709 = vmul.f32 %v10425, %v10653
    %v10710 = vmul.f32 %v10426, %v10653
    %v10711 = vmul.f32 %v10427, %v10653
    %v10712 = vmul.f32 %v10428, %v10653
    %v10713 = vmul.f32 %v10429, %v10653
    %v10714 = vmul.f32 %v10430, %v10653
    %v10715 = vmul.f32 %v10431, %v10653
    %v10716 = vmul.f32 %v10432, %v10653
    %v10717 = vmul.f32 %v10433, %v10653
    %v10718 = vmul.f32 %v10434, %v10653
    %v10720 = vlaneseq
    %v10721 = vshrl.u32 %v10720, 7
    %v10722 = vsub.s32 0, %v10721
    %v10723 = vrot.slane %v10648, %v10722
    %v10725 = vadd.f32 %v10655, %v10723
    %v10726 = vadd.f32 %v10656, %v10723
    %v10727 = vadd.f32 %v10657, %v10723
    %v10728 = vadd.f32 %v10658, %v10723
    %v10729 = vadd.f32 %v10659, %v10723
    %v10730 = vadd.f32 %v10660, %v10723
    %v10731 = vadd.f32 %v10661, %v10723
    %v10732 = vadd.f32 %v10662, %v10723
    %v10733 = vadd.f32 %v10663, %v10723
    %v10734 = vadd.f32 %v10664, %v10723
    %v10735 = vadd.f32 %v10665, %v10723
    %v10736 = vadd.f32 %v10666, %v10723
    %v10737 = vadd.f32 %v10667, %v10723
    %v10738 = vadd.f32 %v10668, %v10723
    %v10739 = vadd.f32 %v10669, %v10723
    %v10740 = vadd.f32 %v10670, %v10723
    %v10741 = vadd.f32 %v10671, %v10723
    %v10742 = vadd.f32 %v10672, %v10723
    %v10743 = vadd.f32 %v10673, %v10723
    %v10744 = vadd.f32 %v10674, %v10723
    %v10745 = vadd.f32 %v10675, %v10723
    %v10746 = vadd.f32 %v10676, %v10723
    %v10747 = vadd.f32 %v10677, %v10723
    %v10748 = vadd.f32 %v10678, %v10723
    %v10749 = vadd.f32 %v10679, %v10723
    %v10750 = vadd.f32 %v10680, %v10723
    %v10751 = vadd.f32 %v10681, %v10723
    %v10752 = vadd.f32 %v10682, %v10723
    %v10753 = vadd.f32 %v10683, %v10723
    %v10754 = vadd.f32 %v10684, %v10723
    %v10755 = vadd.f32 %v10685, %v10723
    %v10756 = vadd.f32 %v10686, %v10723
    %v10757 = vadd.f32 %v10687, %v10723
    %v10758 = vadd.f32 %v10688, %v10723
    %v10759 = vadd.f32 %v10689, %v10723
    %v10760 = vadd.f32 %v10690, %v10723
    %v10761 = vadd.f32 %v10691, %v10723
    %v10762 = vadd.f32 %v10692, %v10723
    %v10763 = vadd.f32 %v10693, %v10723
    %v10764 = vadd.f32 %v10694, %v10723
    %v10765 = vadd.f32 %v10695, %v10723
    %v10766 = vadd.f32 %v10696, %v10723
    %v10767 = vadd.f32 %v10697, %v10723
    %v10768 = vadd.f32 %v10698, %v10723
    %v10769 = vadd.f32 %v10699, %v10723
    %v10770 = vadd.f32 %v10700, %v10723
    %v10771 = vadd.f32 %v10701, %v10723
    %v10772 = vadd.f32 %v10702, %v10723
    %v10773 = vadd.f32 %v10703, %v10723
    %v10774 = vadd.f32 %v10704, %v10723
    %v10775 = vadd.f32 %v10705, %v10723
    %v10776 = vadd.f32 %v10706, %v10723
    %v10777 = vadd.f32 %v10707, %v10723
    %v10778 = vadd.f32 %v10708, %v10723
    %v10779 = vadd.f32 %v10709, %v10723
    %v10780 = vadd.f32 %v10710, %v10723
    %v10781 = vadd.f32 %v10711, %v10723
    %v10782 = vadd.f32 %v10712, %v10723
    %v10783 = vadd.f32 %v10713, %v10723
    %v10784 = vadd.f32 %v10714, %v10723
    %v10785 = vadd.f32 %v10715, %v10723
    %v10786 = vadd.f32 %v10716, %v10723
    %v10787 = vadd.f32 %v10717, %v10723
    %v10788 = vadd.f32 %v10718, %v10723
    %10789 = vst [vmem:[#allocation7] sm:$0xff] %v10725
    %10790 = vst [vmem:[#allocation7 + $0x8] sm:$0xff] %v10726
    %10791 = vst [vmem:[#allocation7 + $0x10] sm:$0xff] %v10727
    %10792 = vst [vmem:[#allocation7 + $0x18] sm:$0xff] %v10728
    %10793 = vst [vmem:[#allocation7 + $0x20] sm:$0xff] %v10729
    %10794 = vst [vmem:[#allocation7 + $0x28] sm:$0xff] %v10730
    %10795 = vst [vmem:[#allocation7 + $0x30] sm:$0xff] %v10731
    %10796 = vst [vmem:[#allocation7 + $0x38] sm:$0xff] %v10732
    %10797 = vst [vmem:[#allocation7 + $0x40] sm:$0xff] %v10733
    %10798 = vst [vmem:[#allocation7 + $0x48] sm:$0xff] %v10734
    %10799 = vst [vmem:[#allocation7 + $0x50] sm:$0xff] %v10735
    %10800 = vst [vmem:[#allocation7 + $0x58] sm:$0xff] %v10736
    %10801 = vst [vmem:[#allocation7 + $0x60] sm:$0xff] %v10737
    %10802 = vst [vmem:[#allocation7 + $0x68] sm:$0xff] %v10738
    %10803 = vst [vmem:[#allocation7 + $0x70] sm:$0xff] %v10739
    %10804 = vst [vmem:[#allocation7 + $0x78] sm:$0xff] %v10740
    %10805 = vst [vmem:[#allocation7 + $0x80] sm:$0xff] %v10741
    %10806 = vst [vmem:[#allocation7 + $0x88] sm:$0xff] %v10742
    %10807 = vst [vmem:[#allocation7 + $0x90] sm:$0xff] %v10743
    %10808 = vst [vmem:[#allocation7 + $0x98] sm:$0xff] %v10744
    %10809 = vst [vmem:[#allocation7 + $0xa0] sm:$0xff] %v10745
    %10810 = vst [vmem:[#allocation7 + $0xa8] sm:$0xff] %v10746
    %10811 = vst [vmem:[#allocation7 + $0xb0] sm:$0xff] %v10747
    %10812 = vst [vmem:[#allocation7 + $0xb8] sm:$0xff] %v10748
    %10813 = vst [vmem:[#allocation7 + $0xc0] sm:$0xff] %v10749
    %10814 = vst [vmem:[#allocation7 + $0xc8] sm:$0xff] %v10750
    %10815 = vst [vmem:[#allocation7 + $0xd0] sm:$0xff] %v10751
    %10816 = vst [vmem:[#allocation7 + $0xd8] sm:$0xff] %v10752
    %10817 = vst [vmem:[#allocation7 + $0xe0] sm:$0xff] %v10753
    %10818 = vst [vmem:[#allocation7 + $0xe8] sm:$0xff] %v10754
    %10819 = vst [vmem:[#allocation7 + $0xf0] sm:$0xff] %v10755
    %10820 = vst [vmem:[#allocation7 + $0xf8] sm:$0xff] %v10756
    %10821 = vst [vmem:[#allocation7 + $0x100] sm:$0xff] %v10757
    %10822 = vst [vmem:[#allocation7 + $0x108] sm:$0xff] %v10758
    %10823 = vst [vmem:[#allocation7 + $0x110] sm:$0xff] %v10759
    %10824 = vst [vmem:[#allocation7 + $0x118] sm:$0xff] %v10760
    %10825 = vst [vmem:[#allocation7 + $0x120] sm:$0xff] %v10761
    %10826 = vst [vmem:[#allocation7 + $0x128] sm:$0xff] %v10762
    %10827 = vst [vmem:[#allocation7 + $0x130] sm:$0xff] %v10763
    %10828 = vst [vmem:[#allocation7 + $0x138] sm:$0xff] %v10764
    %10829 = vst [vmem:[#allocation7 + $0x140] sm:$0xff] %v10765
    %10830 = vst [vmem:[#allocation7 + $0x148] sm:$0xff] %v10766
    %10831 = vst [vmem:[#allocation7 + $0x150] sm:$0xff] %v10767
    %10832 = vst [vmem:[#allocation7 + $0x158] sm:$0xff] %v10768
    %10833 = vst [vmem:[#allocation7 + $0x160] sm:$0xff] %v10769
    %10834 = vst [vmem:[#allocation7 + $0x168] sm:$0xff] %v10770
    %10835 = vst [vmem:[#allocation7 + $0x170] sm:$0xff] %v10771
    %10836 = vst [vmem:[#allocation7 + $0x178] sm:$0xff] %v10772
    %10837 = vst [vmem:[#allocation7 + $0x180] sm:$0xff] %v10773
    %10838 = vst [vmem:[#allocation7 + $0x188] sm:$0xff] %v10774
    %10839 = vst [vmem:[#allocation7 + $0x190] sm:$0xff] %v10775
    %10840 = vst [vmem:[#allocation7 + $0x198] sm:$0xff] %v10776
    %10841 = vst [vmem:[#allocation7 + $0x1a0] sm:$0xff] %v10777
    %10842 = vst [vmem:[#allocation7 + $0x1a8] sm:$0xff] %v10778
    %10843 = vst [vmem:[#allocation7 + $0x1b0] sm:$0xff] %v10779
    %10844 = vst [vmem:[#allocation7 + $0x1b8] sm:$0xff] %v10780
    %10845 = vst [vmem:[#allocation7 + $0x1c0] sm:$0xff] %v10781
    %10846 = vst [vmem:[#allocation7 + $0x1c8] sm:$0xff] %v10782
    %10847 = vst [vmem:[#allocation7 + $0x1d0] sm:$0xff] %v10783
    %10848 = vst [vmem:[#allocation7 + $0x1d8] sm:$0xff] %v10784
    %10849 = vst [vmem:[#allocation7 + $0x1e0] sm:$0xff] %v10785
    %10850 = vst [vmem:[#allocation7 + $0x1e8] sm:$0xff] %v10786
    %10851 = vst [vmem:[#allocation7 + $0x1f0] sm:$0xff] %v10787
    %10852 = vst [vmem:[#allocation7 + $0x1f8] sm:$0xff] %v10788
    // Predicated region
    $region34: #{tpu_custom_call.1} parent=1 // pred_check
      _
    $region35: #{tpu_custom_call.1} parent=1 // pred_check_branch
      %10854 = sbr.rel (0) target = $region37
    $region36: #{tpu_custom_call.1} parent=1 // pred_region
      %s10856 = ssub.s32 8192, 8192
      %10857 = vsyncadd [#allocation6], %s10856
      %s10858 = sshll.u32 [#allocation7], 4
      %s10859 = int_to_ptr.vmem [resolvable:$true] %s10858
      %10864 = dma.vmem_to_hbm [thread:$0]  %s10859, 8192, %s7, [#allocation6], 128, 128, 8
    $region37: #{tpu_custom_call.1} parent=1 // pred_fallthru
      _
    // Predicated region
    $region38: #{tpu_custom_call.1} parent=1 // pred_check
      _
    $region39: #{tpu_custom_call.1} parent=1 // pred_check_branch
      %10866 = sbr.rel (0) target = $region41
    $region40: #{tpu_custom_call.1} parent=1 // pred_region
      %10867 = dma.done [#allocation6], 8192
    $region41: #{tpu_custom_call.1} parent=1 // pred_fallthru
      _
    %10868 = vsyncpa [#allocation5], 1
    %10869 = vsyncpa [#allocation6], 1

</llo_original>
